<compile_context>
chip_gen: v5e
topology: v5e:2x2
jax: 0.10.0
libtpu: 0.0.40
codegen_flags: <defaults>
</compile_context>

<pallas_src>
import jax
import jax.numpy as jnp
from jax.experimental import pallas as pl
from jax.experimental.pallas import tpu as pltpu


def _round_up(x: int, m: int) -> int:
    return (x + m - 1) // m * m


def _pool_kernel(hidden_ref, wm_ref, inv_den_ref, out_ref, acc_ref):
    """One (TB, TS, H) block of the weighted-masked-mean reduction.

    hidden_ref:  (TB, TS, H) bf16/f32 -- encoder last_hidden_state block
    wm_ref:      (TB, TS)    f32      -- mask * (position + 1)
    inv_den_ref: (TB, 1)     f32      -- 1 / sum_s(wm)
    out_ref:     (TB, H)     f32      -- pooled embedding (written at last k)
    acc_ref:     (TB, H)     f32      -- VMEM accumulator scratch
    """
    k = pl.program_id(1)

    @pl.when(k == 0)
    def _init():
        acc_ref[...] = jnp.zeros_like(acc_ref)

    # Upcast after load: bf16 over HBM, f32 math/accumulation on the VPU
    # (also keeps v5e happy, which has no bf16 VALUs).
    h = hidden_ref[...].astype(jnp.float32)               # (TB, TS, H)
    wm = wm_ref[...]                                      # (TB, TS)
    acc_ref[...] += jnp.sum(h * wm[:, :, None], axis=1)   # (TB, H)

    @pl.when(k == pl.num_programs(1) - 1)
    def _finalize():
        out_ref[...] = acc_ref[...] * inv_den_ref[...]


def last_weighted_pool(hidden, wm, inv_den, *, tb=8, ts=None,
                       target_block_bytes=8 * 1024 * 1024):
    """Weighted masked mean over the sequence axis.

    hidden:  (B, S, H) bf16 or f32
    wm:      (B, S)    f32   -- mask * (position + 1)
    inv_den: (B, 1)    f32   -- 1 / sum_s(wm)  (0 for all-pad rows)
    returns: (B, H)    f32
    """
    B, S, H = hidden.shape
    itemsize = hidden.dtype.itemsize

    H_p = _round_up(H, 128)
    if ts is None:
        # ~8 MiB hidden block by default (fits double-buffered in the 32 MiB
        # scoped limit we request; safe on v7x's 64 MiB physical VMEM).
        ts = (target_block_bytes // max(1, tb * H_p * itemsize)) // 128 * 128
        ts = max(128, min(ts, _round_up(S, 128)))
    B_p = _round_up(B, tb)
    S_p = _round_up(S, ts)

    if (B_p, S_p, H_p) != (B, S, H):
        hidden = jnp.pad(hidden, ((0, B_p - B), (0, S_p - S), (0, H_p - H)))
    if (B_p, S_p) != (B, S):
        wm = jnp.pad(wm, ((0, B_p - B), (0, S_p - S)))
    if B_p != B:
        inv_den = jnp.pad(inv_den, ((0, B_p - B), (0, 0)))

    grid = (B_p // tb, S_p // ts)

    hid_block_bytes = tb * ts * H_p * itemsize
    vmem_limit = int(min(64 * 1024 * 1024,
                         max(32 * 1024 * 1024,
                             3 * hid_block_bytes + 8 * 1024 * 1024)))

    cost = pl.CostEstimate(
        flops=2 * B_p * S_p * H_p,
        transcendentals=0,
        bytes_accessed=(B_p * S_p * H_p * itemsize   # hidden stream
                        + B_p * S_p * 4              # wm
                        + B_p * 4                    # inv_den
                        + B_p * H_p * 4),            # output
    )

    out = pl.pallas_call(
        _pool_kernel,
        out_shape=jax.ShapeDtypeStruct((B_p, H_p), jnp.float32),
        grid=grid,
        in_specs=[
            pl.BlockSpec((tb, ts, H_p), lambda b, k: (b, k, 0)),
            pl.BlockSpec((tb, ts), lambda b, k: (b, k)),
            pl.BlockSpec((tb, 1), lambda b, k: (b, 0)),
        ],
        out_specs=pl.BlockSpec((tb, H_p), lambda b, k: (b, 0)),
        scratch_shapes=[pltpu.VMEM((tb, H_p), jnp.float32)],
        compiler_params=pltpu.CompilerParams(
            dimension_semantics=("parallel", "arbitrary"),
            vmem_limit_bytes=vmem_limit,
        ),
        cost_estimate=cost,
    )(hidden, wm, inv_den)

    return out[:B, :H]


class LastWeightedEmbedderJAX:
    """JAX/Pallas port of uniem LastWeightedEmbedder (last_weighted pooling)."""

    def __init__(self, vocab_size, hidden_size, pad_token_id=0,
                 key=jax.random.PRNGKey(0)):
        self.pad_token_id = pad_token_id
        # TODO(synk): full HF transformer encoder not implemented; stand-in
        #             deterministic embedding table simulates last_hidden_state.
        self.embedding_table = (
            jax.random.normal(key, (vocab_size, hidden_size), dtype=jnp.float32) * 0.02
        )

    def _encode(self, input_ids):
        # stand-in for encoder(input_ids).last_hidden_state -> (B, S, H), bf16
        return jnp.take(self.embedding_table, input_ids, axis=0).astype(jnp.bfloat16)

    def __call__(self, input_ids, mask=None, *, ts=None):
        if mask is None:
            mask = input_ids != self.pad_token_id                  # (B, S) bool
        S = input_ids.shape[1]
        weights = jnp.arange(1, S + 1, dtype=jnp.float32)          # (S,)
        wm = mask.astype(jnp.float32) * weights[None, :]           # (B, S)
        den = jnp.sum(wm, axis=-1, keepdims=True)                  # (B, 1)
        # Guard all-pad rows (PyTorch original would produce inf/NaN there).
        inv_den = jnp.where(den > 0, 1.0 / den, 0.0)               # (B, 1)
        hidden = self._encode(input_ids)                           # (B, S, H) bf16
        return last_weighted_pool(hidden, wm, inv_den, ts=ts)      # (B, H) f32


def _reference(embedder, input_ids):
    """Pure-JAX reference mirroring the PyTorch forward (same bf16 encoder)."""
    mask = (input_ids != embedder.pad_token_id).astype(jnp.float32)   # (B, S)
    S = input_ids.shape[1]
    weights = (jnp.arange(S) + 1).astype(jnp.float32)                 # (S,)
    h = embedder._encode(input_ids).astype(jnp.float32)               # (B, S, H)
    h = h * mask[..., None] * weights[None, :, None]
    return jnp.sum(h, axis=1) / jnp.sum(weights * mask, axis=-1, keepdims=True)


if __name__ == "__main__":
    key = jax.random.PRNGKey(0)
    k_emb, k_ids = jax.random.split(key)

    # Deliberately non-(8,128)-aligned shapes: the wrapper pads B/S/H and
    # slices the result back.
    B, S, H, V = 6, 300, 320, 1000
    pad_token_id = 0

    embedder = LastWeightedEmbedderJAX(V, H, pad_token_id, key=k_emb)

    input_ids = jax.random.randint(k_ids, (B, S), minval=1, maxval=V, dtype=jnp.int32)
    lengths = [S, S - 3, 250, 150, 5, S - 1]          # trailing pads per row
    for b, L in enumerate(lengths):
        input_ids = input_ids.at[b, L:].set(pad_token_id)

    out_auto = jax.block_until_ready(embedder(input_ids))            # auto tiling
    out_tiled = jax.block_until_ready(embedder(input_ids, ts=128))   # multi-step S reduction

    ref = _reference(embedder, input_ids)
    assert out_auto.shape == (B, H)
    assert jnp.allclose(out_auto, ref, atol=1e-5, rtol=1e-5), "auto-tiled mismatch"
    assert jnp.allclose(out_tiled, ref, atol=1e-5, rtol=1e-5), "S-tiled mismatch"

    print("KERNEL_OK")
</pallas_src>

<mosaic_0001>
module attributes {stable_mosaic.version = 11 : i64} {
  func.func @_pool_kernel(%arg0: i32, %arg1: i32, %arg2: memref<8x384x384xbf16, #tpu.memory_space<vmem>>, %arg3: memref<8x384xf32, #tpu.memory_space<vmem>>, %arg4: memref<8x1xf32, #tpu.memory_space<vmem>>, %arg5: memref<8x384xf32, #tpu.memory_space<vmem>>, %arg6: memref<8x384xf32, #tpu.memory_space<vmem>>) attributes {dimension_semantics = [#tpu.dimension_semantics<parallel>, #tpu.dimension_semantics<arbitrary>], iteration_bounds = array<i64: 1, 1>, scalar_prefetch = 0 : i64, scratch_operands = 1 : i64, tpu.core_type = #tpu.core_type<tc>, window_params = [{transform_indices = @transform_0, window_bounds = array<i64: 8, 384, 384>}, {transform_indices = @transform_1, window_bounds = array<i64: 8, 384>}, {transform_indices = @transform_2, window_bounds = array<i64: 8, 1>}, {transform_indices = @transform_3, window_bounds = array<i64: 8, 384>}]} {
    %c0_i32 = arith.constant 0 : i32
    %0 = arith.cmpi eq, %arg1, %c0_i32 : i32
    %1 = arith.extui %0 : i1 to i32
    %c0_i32_0 = arith.constant 0 : i32
    %2 = arith.cmpi ne, %1, %c0_i32_0 : i32
    scf.if %2 {
      %cst_11 = arith.constant 0.000000e+00 : f32
      %16 = vector.broadcast %cst_11 : f32 to vector<8x384xf32>
      %c0_12 = arith.constant 0 : index
      %c0_13 = arith.constant 0 : index
      %17 = vector.load %arg6[%c0_12, %c0_13] : memref<8x384xf32, #tpu.memory_space<vmem>>, vector<8x384xf32>
      tpu.vector_store %arg6[%c0_12, %c0_13], %16 {strides = array<i32>} : memref<8x384xf32, #tpu.memory_space<vmem>>, vector<8x384xf32>,
    } else {
    }
    %c0 = arith.constant 0 : index
    %c0_1 = arith.constant 0 : index
    %c0_2 = arith.constant 0 : index
    %3 = vector.load %arg2[%c0, %c0_1, %c0_2] : memref<8x384x384xbf16, #tpu.memory_space<vmem>>, vector<8x384x384xbf16>
    %4 = arith.extf %3 : vector<8x384x384xbf16> to vector<8x384x384xf32>
    %c0_3 = arith.constant 0 : index
    %c0_4 = arith.constant 0 : index
    %5 = vector.load %arg3[%c0_3, %c0_4] : memref<8x384xf32, #tpu.memory_space<vmem>>, vector<8x384xf32>
    %c0_5 = arith.constant 0 : index
    %c0_6 = arith.constant 0 : index
    %6 = vector.load %arg6[%c0_5, %c0_6] : memref<8x384xf32, #tpu.memory_space<vmem>>, vector<8x384xf32>
    %7 = vector.shape_cast %5 : vector<8x384xf32> to vector<8x384x1xf32>
    %8 = vector.broadcast %7 : vector<8x384x1xf32> to vector<8x384x384xf32>
    %9 = arith.mulf %4, %8 : vector<8x384x384xf32>
    %cst = arith.constant dense<0.000000e+00> : vector<8x384xf32>
    %10 = vector.multi_reduction <add>, %9, %cst [1] : vector<8x384x384xf32> to vector<8x384xf32>
    %11 = arith.addf %6, %10 : vector<8x384xf32>
    %c0_7 = arith.constant 0 : index
    %c0_8 = arith.constant 0 : index
    %12 = vector.load %arg6[%c0_7, %c0_8] : memref<8x384xf32, #tpu.memory_space<vmem>>, vector<8x384xf32>
    tpu.vector_store %arg6[%c0_7, %c0_8], %11 {strides = array<i32>} : memref<8x384xf32, #tpu.memory_space<vmem>>, vector<8x384xf32>,
    %c0_i32_9 = arith.constant 0 : i32
    %13 = arith.cmpi eq, %arg1, %c0_i32_9 : i32
    %14 = arith.extui %13 : i1 to i32
    %c0_i32_10 = arith.constant 0 : i32
    %15 = arith.cmpi ne, %14, %c0_i32_10 : i32
    scf.if %15 {
      %c0_11 = arith.constant 0 : index
      %c0_12 = arith.constant 0 : index
      %16 = vector.load %arg6[%c0_11, %c0_12] : memref<8x384xf32, #tpu.memory_space<vmem>>, vector<8x384xf32>
      %c0_13 = arith.constant 0 : index
      %c0_14 = arith.constant 0 : index
      %17 = vector.load %arg4[%c0_13, %c0_14] : memref<8x1xf32, #tpu.memory_space<vmem>>, vector<8x1xf32>
      %18 = vector.broadcast %17 : vector<8x1xf32> to vector<8x384xf32>
      %19 = arith.mulf %16, %18 : vector<8x384xf32>
      %c0_15 = arith.constant 0 : index
      %c0_16 = arith.constant 0 : index
      %20 = vector.load %arg5[%c0_15, %c0_16] : memref<8x384xf32, #tpu.memory_space<vmem>>, vector<8x384xf32>
      tpu.vector_store %arg5[%c0_15, %c0_16], %19 {strides = array<i32>} : memref<8x384xf32, #tpu.memory_space<vmem>>, vector<8x384xf32>,
    } else {
    }
    return
  }
  func.func @transform_0(%arg0: i32, %arg1: i32) -> (i32, i32, i32) {
    %c0_i32 = arith.constant 0 : i32
    %c0_i32_0 = arith.constant 0 : i32
    return %arg0, %arg1, %c0_i32 : i32, i32, i32
  }
  func.func @transform_1(%arg0: i32, %arg1: i32) -> (i32, i32) {
    %c0_i32 = arith.constant 0 : i32
    return %arg0, %arg1 : i32, i32
  }
  func.func @transform_2(%arg0: i32, %arg1: i32) -> (i32, i32) {
    %c0_i32 = arith.constant 0 : i32
    %c0_i32_0 = arith.constant 0 : i32
    return %arg0, %c0_i32 : i32, i32
  }
  func.func @transform_3(%arg0: i32, %arg1: i32) -> (i32, i32) {
    %c0_i32 = arith.constant 0 : i32
    %c0_i32_0 = arith.constant 0 : i32
    return %arg0, %c0_i32 : i32, i32
  }
}

</mosaic_0001>

<llo_original>
// kernel: tpu_custom_call.1
$region0: #{tpu_custom_call.1}
  #allocation0 [shape = 'u32[]', space=smem, size = 0x4, offset = 0x4, fixed_abs, tag = 'smem constant byte address 0x4 - core index']
  #allocation1 [shape = 'u32[72,128]{1,0:T(1,128)}', space=vmem, size = 0x9000, scoped, tag = 'internal scratch']
  #allocation2 [shape = 'f32[8,384]{1,0:T(8,128)}', space=vmem, size = 0x3000, scoped, tag = 'scratch operand']
  %s0 = inlined_call_operand.hbm [shape: bf16[8,384,384], index: 0, kind: input, shape index: {}]
  %s1 = inlined_call_operand.hbm [shape: f32[8,384], index: 1, kind: input, shape index: {}]
  %s2 = inlined_call_operand.vmem [shape: f32[8,1], index: 2, kind: input, shape index: {}]
  %s3 = inlined_call_operand.hbm [shape: f32[8,384], index: 3, kind: output, shape index: {}]
  %s4 = sld [smem:[#allocation0]]
  $region38: #{tpu_custom_call.1} parent=0
    _
  %s6 = ssub.s32 1, %s4
  %s7 = scalar_select 0, %s6, %s4
  $region1: #{tpu_custom_call.1} parent=0
    #allocation3 [shape = 'u8[2359296]{0}', space=vmem, size = 0x240000, scoped, tag = 'input window, operand 0, single buffered']
    #allocation4 [shape = 's32[1]{0}', space=sflag, size = 0x4, scoped, tag = 'scoped memory for tpu_custom_call.1']
    #allocation5 [shape = 's32[1]{0}', space=sflag, size = 0x4, scoped, tag = 'scoped memory for tpu_custom_call.1']
    #allocation6 [shape = 'u8[12288]{0}', space=vmem, size = 0x3000, scoped, tag = 'input window, operand 1, single buffered']
    #allocation7 [shape = 's32[1]{0}', space=sflag, size = 0x4, scoped, tag = 'scoped memory for tpu_custom_call.1']
    #allocation8 [shape = 'u8[12288]{0}', space=vmem, size = 0x3000, scoped, tag = 'output window, operand 0, single buffered']
    %8 = vsyncpa [#allocation4], 0
    %9 = vsyncpa [#allocation7], 0
    %10 = vsyncpa [#allocation5], 0
    // Predicated region
    $region2: #{tpu_custom_call.1} parent=1 // pred_check
      _
    $region3: #{tpu_custom_call.1} parent=1 // pred_check_branch
      %12 = sbr.rel (0) target = $region5
    $region4: #{tpu_custom_call.1} parent=1 // pred_region
      %14 = vsyncadd [#allocation4], 0
      %s15 = sshll.u32 %s0, 4
      %s16 = int_to_ptr.hbm [resolvable:$true] %s15
      %s17 = sshll.u32 [#allocation3], 4
      %s18 = int_to_ptr.vmem [resolvable:$true] %s17
      %23 = dma.hbm_to_vmem [thread:$0]  %s16, 73728, %s18, [#allocation4], 192, 192, 12
    $region5: #{tpu_custom_call.1} parent=1 // pred_fallthru
      _
    // Predicated region
    $region6: #{tpu_custom_call.1} parent=1 // pred_check
      _
    $region7: #{tpu_custom_call.1} parent=1 // pred_check_branch
      %25 = sbr.rel (0) target = $region9
    $region8: #{tpu_custom_call.1} parent=1 // pred_region
      %27 = vsyncadd [#allocation7], 0
      %s29 = sshll.u32 %s1, 4
      %s30 = int_to_ptr.hbm [resolvable:$true] %s29
      %s31 = sshll.u32 [#allocation6], 4
      %s32 = int_to_ptr.vmem [resolvable:$true] %s31
      %34 = dma.hbm_to_vmem [thread:$0]  %s30, 384, %s32, [#allocation7]
    $region9: #{tpu_custom_call.1} parent=1 // pred_fallthru
      _
    // Predicated region
    $region10: #{tpu_custom_call.1} parent=1 // pred_check
      _
    $region11: #{tpu_custom_call.1} parent=1 // pred_check_branch
      %36 = sbr.rel (0) target = $region13
    $region12: #{tpu_custom_call.1} parent=1 // pred_region
      _
    $region13: #{tpu_custom_call.1} parent=1 // pred_fallthru
      _
    // Predicated region
    $region14: #{tpu_custom_call.1} parent=1 // pred_check
      _
    $region15: #{tpu_custom_call.1} parent=1 // pred_check_branch
      %38 = sbr.rel (0) target = $region17
    $region16: #{tpu_custom_call.1} parent=1 // pred_region
      %40 = dma.done [#allocation4], 73728
    $region17: #{tpu_custom_call.1} parent=1 // pred_fallthru
      _
    // Predicated region
    $region18: #{tpu_custom_call.1} parent=1 // pred_check
      _
    $region19: #{tpu_custom_call.1} parent=1 // pred_check_branch
      %42 = sbr.rel (0) target = $region21
    $region20: #{tpu_custom_call.1} parent=1 // pred_region
      %44 = dma.done [#allocation7], 384
    $region21: #{tpu_custom_call.1} parent=1 // pred_fallthru
      _
    %p45 = scmp.eq.s32.totalorder 0, 0
    // Predicated region
    $region22: #{tpu_custom_call.1} parent=1 // pred_check
      %p46 = pneg %p45
    $region23: #{tpu_custom_call.1} parent=1 // pred_check_branch
      %48 = sbr.rel (%p46) target = $region25
    $region24: #{tpu_custom_call.1} parent=1 // pred_region
      %49 = vst [vmem:[#allocation2] sm:$0xff] 0.0
      %50 = vst [vmem:[#allocation2 + $0x8] sm:$0xff] 0.0
      %51 = vst [vmem:[#allocation2 + $0x10] sm:$0xff] 0.0
    $region25: #{tpu_custom_call.1} parent=1 // pred_fallthru
      _
    %v52 = vld [vmem:[#allocation3] sm:$0xff]
    %v53 = vld [vmem:[#allocation3 + $0x8] sm:$0xf]
    %v54 = vld [vmem:[#allocation3 + $0xc] sm:$0xff]
    %v55 = vld [vmem:[#allocation3 + $0x14] sm:$0xf]
    %v56 = vld [vmem:[#allocation3 + $0x18] sm:$0xff]
    %v57 = vld [vmem:[#allocation3 + $0x20] sm:$0xf]
    %v58 = vld [vmem:[#allocation3 + $0x24] sm:$0xff]
    %v59 = vld [vmem:[#allocation3 + $0x2c] sm:$0xf]
    %v60 = vld [vmem:[#allocation3 + $0x30] sm:$0xff]
    %v61 = vld [vmem:[#allocation3 + $0x38] sm:$0xf]
    %v62 = vld [vmem:[#allocation3 + $0x3c] sm:$0xff]
    %v63 = vld [vmem:[#allocation3 + $0x44] sm:$0xf]
    %v64 = vld [vmem:[#allocation3 + $0x48] sm:$0xff]
    %v65 = vld [vmem:[#allocation3 + $0x50] sm:$0xf]
    %v66 = vld [vmem:[#allocation3 + $0x54] sm:$0xff]
    %v67 = vld [vmem:[#allocation3 + $0x5c] sm:$0xf]
    %v68 = vld [vmem:[#allocation3 + $0x60] sm:$0xff]
    %v69 = vld [vmem:[#allocation3 + $0x68] sm:$0xf]
    %v70 = vld [vmem:[#allocation3 + $0x6c] sm:$0xff]
    %v71 = vld [vmem:[#allocation3 + $0x74] sm:$0xf]
    %v72 = vld [vmem:[#allocation3 + $0x78] sm:$0xff]
    %v73 = vld [vmem:[#allocation3 + $0x80] sm:$0xf]
    %v74 = vld [vmem:[#allocation3 + $0x84] sm:$0xff]
    %v75 = vld [vmem:[#allocation3 + $0x8c] sm:$0xf]
    %v76 = vld [vmem:[#allocation3 + $0x90] sm:$0xff]
    %v77 = vld [vmem:[#allocation3 + $0x98] sm:$0xf]
    %v78 = vld [vmem:[#allocation3 + $0x9c] sm:$0xff]
    %v79 = vld [vmem:[#allocation3 + $0xa4] sm:$0xf]
    %v80 = vld [vmem:[#allocation3 + $0xa8] sm:$0xff]
    %v81 = vld [vmem:[#allocation3 + $0xb0] sm:$0xf]
    %v82 = vld [vmem:[#allocation3 + $0xb4] sm:$0xff]
    %v83 = vld [vmem:[#allocation3 + $0xbc] sm:$0xf]
    %v84 = vld [vmem:[#allocation3 + $0xc0] sm:$0xff]
    %v85 = vld [vmem:[#allocation3 + $0xc8] sm:$0xf]
    %v86 = vld [vmem:[#allocation3 + $0xcc] sm:$0xff]
    %v87 = vld [vmem:[#allocation3 + $0xd4] sm:$0xf]
    %v88 = vld [vmem:[#allocation3 + $0xd8] sm:$0xff]
    %v89 = vld [vmem:[#allocation3 + $0xe0] sm:$0xf]
    %v90 = vld [vmem:[#allocation3 + $0xe4] sm:$0xff]
    %v91 = vld [vmem:[#allocation3 + $0xec] sm:$0xf]
    %v92 = vld [vmem:[#allocation3 + $0xf0] sm:$0xff]
    %v93 = vld [vmem:[#allocation3 + $0xf8] sm:$0xf]
    %v94 = vld [vmem:[#allocation3 + $0xfc] sm:$0xff]
    %v95 = vld [vmem:[#allocation3 + $0x104] sm:$0xf]
    %v96 = vld [vmem:[#allocation3 + $0x108] sm:$0xff]
    %v97 = vld [vmem:[#allocation3 + $0x110] sm:$0xf]
    %v98 = vld [vmem:[#allocation3 + $0x114] sm:$0xff]
    %v99 = vld [vmem:[#allocation3 + $0x11c] sm:$0xf]
    %v100 = vld [vmem:[#allocation3 + $0x120] sm:$0xff]
    %v101 = vld [vmem:[#allocation3 + $0x128] sm:$0xf]
    %v102 = vld [vmem:[#allocation3 + $0x12c] sm:$0xff]
    %v103 = vld [vmem:[#allocation3 + $0x134] sm:$0xf]
    %v104 = vld [vmem:[#allocation3 + $0x138] sm:$0xff]
    %v105 = vld [vmem:[#allocation3 + $0x140] sm:$0xf]
    %v106 = vld [vmem:[#allocation3 + $0x144] sm:$0xff]
    %v107 = vld [vmem:[#allocation3 + $0x14c] sm:$0xf]
    %v108 = vld [vmem:[#allocation3 + $0x150] sm:$0xff]
    %v109 = vld [vmem:[#allocation3 + $0x158] sm:$0xf]
    %v110 = vld [vmem:[#allocation3 + $0x15c] sm:$0xff]
    %v111 = vld [vmem:[#allocation3 + $0x164] sm:$0xf]
    %v112 = vld [vmem:[#allocation3 + $0x168] sm:$0xff]
    %v113 = vld [vmem:[#allocation3 + $0x170] sm:$0xf]
    %v114 = vld [vmem:[#allocation3 + $0x174] sm:$0xff]
    %v115 = vld [vmem:[#allocation3 + $0x17c] sm:$0xf]
    %v116 = vld [vmem:[#allocation3 + $0x180] sm:$0xff]
    %v117 = vld [vmem:[#allocation3 + $0x188] sm:$0xf]
    %v118 = vld [vmem:[#allocation3 + $0x18c] sm:$0xff]
    %v119 = vld [vmem:[#allocation3 + $0x194] sm:$0xf]
    %v120 = vld [vmem:[#allocation3 + $0x198] sm:$0xff]
    %v121 = vld [vmem:[#allocation3 + $0x1a0] sm:$0xf]
    %v122 = vld [vmem:[#allocation3 + $0x1a4] sm:$0xff]
    %v123 = vld [vmem:[#allocation3 + $0x1ac] sm:$0xf]
    %v124 = vld [vmem:[#allocation3 + $0x1b0] sm:$0xff]
    %v125 = vld [vmem:[#allocation3 + $0x1b8] sm:$0xf]
    %v126 = vld [vmem:[#allocation3 + $0x1bc] sm:$0xff]
    %v127 = vld [vmem:[#allocation3 + $0x1c4] sm:$0xf]
    %v128 = vld [vmem:[#allocation3 + $0x1c8] sm:$0xff]
    %v129 = vld [vmem:[#allocation3 + $0x1d0] sm:$0xf]
    %v130 = vld [vmem:[#allocation3 + $0x1d4] sm:$0xff]
    %v131 = vld [vmem:[#allocation3 + $0x1dc] sm:$0xf]
    %v132 = vld [vmem:[#allocation3 + $0x1e0] sm:$0xff]
    %v133 = vld [vmem:[#allocation3 + $0x1e8] sm:$0xf]
    %v134 = vld [vmem:[#allocation3 + $0x1ec] sm:$0xff]
    %v135 = vld [vmem:[#allocation3 + $0x1f4] sm:$0xf]
    %v136 = vld [vmem:[#allocation3 + $0x1f8] sm:$0xff]
    %v137 = vld [vmem:[#allocation3 + $0x200] sm:$0xf]
    %v138 = vld [vmem:[#allocation3 + $0x204] sm:$0xff]
    %v139 = vld [vmem:[#allocation3 + $0x20c] sm:$0xf]
    %v140 = vld [vmem:[#allocation3 + $0x210] sm:$0xff]
    %v141 = vld [vmem:[#allocation3 + $0x218] sm:$0xf]
    %v142 = vld [vmem:[#allocation3 + $0x21c] sm:$0xff]
    %v143 = vld [vmem:[#allocation3 + $0x224] sm:$0xf]
    %v144 = vld [vmem:[#allocation3 + $0x228] sm:$0xff]
    %v145 = vld [vmem:[#allocation3 + $0x230] sm:$0xf]
    %v146 = vld [vmem:[#allocation3 + $0x234] sm:$0xff]
    %v147 = vld [vmem:[#allocation3 + $0x23c] sm:$0xf]
    %v148 = vld [vmem:[#allocation3 + $0x240] sm:$0xff]
    %v149 = vld [vmem:[#allocation3 + $0x248] sm:$0xf]
    %v150 = vld [vmem:[#allocation3 + $0x24c] sm:$0xff]
    %v151 = vld [vmem:[#allocation3 + $0x254] sm:$0xf]
    %v152 = vld [vmem:[#allocation3 + $0x258] sm:$0xff]
    %v153 = vld [vmem:[#allocation3 + $0x260] sm:$0xf]
    %v154 = vld [vmem:[#allocation3 + $0x264] sm:$0xff]
    %v155 = vld [vmem:[#allocation3 + $0x26c] sm:$0xf]
    %v156 = vld [vmem:[#allocation3 + $0x270] sm:$0xff]
    %v157 = vld [vmem:[#allocation3 + $0x278] sm:$0xf]
    %v158 = vld [vmem:[#allocation3 + $0x27c] sm:$0xff]
    %v159 = vld [vmem:[#allocation3 + $0x284] sm:$0xf]
    %v160 = vld [vmem:[#allocation3 + $0x288] sm:$0xff]
    %v161 = vld [vmem:[#allocation3 + $0x290] sm:$0xf]
    %v162 = vld [vmem:[#allocation3 + $0x294] sm:$0xff]
    %v163 = vld [vmem:[#allocation3 + $0x29c] sm:$0xf]
    %v164 = vld [vmem:[#allocation3 + $0x2a0] sm:$0xff]
    %v165 = vld [vmem:[#allocation3 + $0x2a8] sm:$0xf]
    %v166 = vld [vmem:[#allocation3 + $0x2ac] sm:$0xff]
    %v167 = vld [vmem:[#allocation3 + $0x2b4] sm:$0xf]
    %v168 = vld [vmem:[#allocation3 + $0x2b8] sm:$0xff]
    %v169 = vld [vmem:[#allocation3 + $0x2c0] sm:$0xf]
    %v170 = vld [vmem:[#allocation3 + $0x2c4] sm:$0xff]
    %v171 = vld [vmem:[#allocation3 + $0x2cc] sm:$0xf]
    %v172 = vld [vmem:[#allocation3 + $0x2d0] sm:$0xff]
    %v173 = vld [vmem:[#allocation3 + $0x2d8] sm:$0xf]
    %v174 = vld [vmem:[#allocation3 + $0x2dc] sm:$0xff]
    %v175 = vld [vmem:[#allocation3 + $0x2e4] sm:$0xf]
    %v176 = vld [vmem:[#allocation3 + $0x2e8] sm:$0xff]
    %v177 = vld [vmem:[#allocation3 + $0x2f0] sm:$0xf]
    %v178 = vld [vmem:[#allocation3 + $0x2f4] sm:$0xff]
    %v179 = vld [vmem:[#allocation3 + $0x2fc] sm:$0xf]
    %v180 = vld [vmem:[#allocation3 + $0x300] sm:$0xff]
    %v181 = vld [vmem:[#allocation3 + $0x308] sm:$0xf]
    %v182 = vld [vmem:[#allocation3 + $0x30c] sm:$0xff]
    %v183 = vld [vmem:[#allocation3 + $0x314] sm:$0xf]
    %v184 = vld [vmem:[#allocation3 + $0x318] sm:$0xff]
    %v185 = vld [vmem:[#allocation3 + $0x320] sm:$0xf]
    %v186 = vld [vmem:[#allocation3 + $0x324] sm:$0xff]
    %v187 = vld [vmem:[#allocation3 + $0x32c] sm:$0xf]
    %v188 = vld [vmem:[#allocation3 + $0x330] sm:$0xff]
    %v189 = vld [vmem:[#allocation3 + $0x338] sm:$0xf]
    %v190 = vld [vmem:[#allocation3 + $0x33c] sm:$0xff]
    %v191 = vld [vmem:[#allocation3 + $0x344] sm:$0xf]
    %v192 = vld [vmem:[#allocation3 + $0x348] sm:$0xff]
    %v193 = vld [vmem:[#allocation3 + $0x350] sm:$0xf]
    %v194 = vld [vmem:[#allocation3 + $0x354] sm:$0xff]
    %v195 = vld [vmem:[#allocation3 + $0x35c] sm:$0xf]
    %v196 = vld [vmem:[#allocation3 + $0x360] sm:$0xff]
    %v197 = vld [vmem:[#allocation3 + $0x368] sm:$0xf]
    %v198 = vld [vmem:[#allocation3 + $0x36c] sm:$0xff]
    %v199 = vld [vmem:[#allocation3 + $0x374] sm:$0xf]
    %v200 = vld [vmem:[#allocation3 + $0x378] sm:$0xff]
    %v201 = vld [vmem:[#allocation3 + $0x380] sm:$0xf]
    %v202 = vld [vmem:[#allocation3 + $0x384] sm:$0xff]
    %v203 = vld [vmem:[#allocation3 + $0x38c] sm:$0xf]
    %v204 = vld [vmem:[#allocation3 + $0x390] sm:$0xff]
    %v205 = vld [vmem:[#allocation3 + $0x398] sm:$0xf]
    %v206 = vld [vmem:[#allocation3 + $0x39c] sm:$0xff]
    %v207 = vld [vmem:[#allocation3 + $0x3a4] sm:$0xf]
    %v208 = vld [vmem:[#allocation3 + $0x3a8] sm:$0xff]
    %v209 = vld [vmem:[#allocation3 + $0x3b0] sm:$0xf]
    %v210 = vld [vmem:[#allocation3 + $0x3b4] sm:$0xff]
    %v211 = vld [vmem:[#allocation3 + $0x3bc] sm:$0xf]
    %v212 = vld [vmem:[#allocation3 + $0x3c0] sm:$0xff]
    %v213 = vld [vmem:[#allocation3 + $0x3c8] sm:$0xf]
    %v214 = vld [vmem:[#allocation3 + $0x3cc] sm:$0xff]
    %v215 = vld [vmem:[#allocation3 + $0x3d4] sm:$0xf]
    %v216 = vld [vmem:[#allocation3 + $0x3d8] sm:$0xff]
    %v217 = vld [vmem:[#allocation3 + $0x3e0] sm:$0xf]
    %v218 = vld [vmem:[#allocation3 + $0x3e4] sm:$0xff]
    %v219 = vld [vmem:[#allocation3 + $0x3ec] sm:$0xf]
    %v220 = vld [vmem:[#allocation3 + $0x3f0] sm:$0xff]
    %v221 = vld [vmem:[#allocation3 + $0x3f8] sm:$0xf]
    %v222 = vld [vmem:[#allocation3 + $0x3fc] sm:$0xff]
    %v223 = vld [vmem:[#allocation3 + $0x404] sm:$0xf]
    %v224 = vld [vmem:[#allocation3 + $0x408] sm:$0xff]
    %v225 = vld [vmem:[#allocation3 + $0x410] sm:$0xf]
    %v226 = vld [vmem:[#allocation3 + $0x414] sm:$0xff]
    %v227 = vld [vmem:[#allocation3 + $0x41c] sm:$0xf]
    %v228 = vld [vmem:[#allocation3 + $0x420] sm:$0xff]
    %v229 = vld [vmem:[#allocation3 + $0x428] sm:$0xf]
    %v230 = vld [vmem:[#allocation3 + $0x42c] sm:$0xff]
    %v231 = vld [vmem:[#allocation3 + $0x434] sm:$0xf]
    %v232 = vld [vmem:[#allocation3 + $0x438] sm:$0xff]
    %v233 = vld [vmem:[#allocation3 + $0x440] sm:$0xf]
    %v234 = vld [vmem:[#allocation3 + $0x444] sm:$0xff]
    %v235 = vld [vmem:[#allocation3 + $0x44c] sm:$0xf]
    %v236 = vld [vmem:[#allocation3 + $0x450] sm:$0xff]
    %v237 = vld [vmem:[#allocation3 + $0x458] sm:$0xf]
    %v238 = vld [vmem:[#allocation3 + $0x45c] sm:$0xff]
    %v239 = vld [vmem:[#allocation3 + $0x464] sm:$0xf]
    %v240 = vld [vmem:[#allocation3 + $0x468] sm:$0xff]
    %v241 = vld [vmem:[#allocation3 + $0x470] sm:$0xf]
    %v242 = vld [vmem:[#allocation3 + $0x474] sm:$0xff]
    %v243 = vld [vmem:[#allocation3 + $0x47c] sm:$0xf]
    %v244 = vld [vmem:[#allocation3 + $0x480] sm:$0xff]
    %v245 = vld [vmem:[#allocation3 + $0x488] sm:$0xf]
    %v246 = vld [vmem:[#allocation3 + $0x48c] sm:$0xff]
    %v247 = vld [vmem:[#allocation3 + $0x494] sm:$0xf]
    %v248 = vld [vmem:[#allocation3 + $0x498] sm:$0xff]
    %v249 = vld [vmem:[#allocation3 + $0x4a0] sm:$0xf]
    %v250 = vld [vmem:[#allocation3 + $0x4a4] sm:$0xff]
    %v251 = vld [vmem:[#allocation3 + $0x4ac] sm:$0xf]
    %v252 = vld [vmem:[#allocation3 + $0x4b0] sm:$0xff]
    %v253 = vld [vmem:[#allocation3 + $0x4b8] sm:$0xf]
    %v254 = vld [vmem:[#allocation3 + $0x4bc] sm:$0xff]
    %v255 = vld [vmem:[#allocation3 + $0x4c4] sm:$0xf]
    %v256 = vld [vmem:[#allocation3 + $0x4c8] sm:$0xff]
    %v257 = vld [vmem:[#allocation3 + $0x4d0] sm:$0xf]
    %v258 = vld [vmem:[#allocation3 + $0x4d4] sm:$0xff]
    %v259 = vld [vmem:[#allocation3 + $0x4dc] sm:$0xf]
    %v260 = vld [vmem:[#allocation3 + $0x4e0] sm:$0xff]
    %v261 = vld [vmem:[#allocation3 + $0x4e8] sm:$0xf]
    %v262 = vld [vmem:[#allocation3 + $0x4ec] sm:$0xff]
    %v263 = vld [vmem:[#allocation3 + $0x4f4] sm:$0xf]
    %v264 = vld [vmem:[#allocation3 + $0x4f8] sm:$0xff]
    %v265 = vld [vmem:[#allocation3 + $0x500] sm:$0xf]
    %v266 = vld [vmem:[#allocation3 + $0x504] sm:$0xff]
    %v267 = vld [vmem:[#allocation3 + $0x50c] sm:$0xf]
    %v268 = vld [vmem:[#allocation3 + $0x510] sm:$0xff]
    %v269 = vld [vmem:[#allocation3 + $0x518] sm:$0xf]
    %v270 = vld [vmem:[#allocation3 + $0x51c] sm:$0xff]
    %v271 = vld [vmem:[#allocation3 + $0x524] sm:$0xf]
    %v272 = vld [vmem:[#allocation3 + $0x528] sm:$0xff]
    %v273 = vld [vmem:[#allocation3 + $0x530] sm:$0xf]
    %v274 = vld [vmem:[#allocation3 + $0x534] sm:$0xff]
    %v275 = vld [vmem:[#allocation3 + $0x53c] sm:$0xf]
    %v276 = vld [vmem:[#allocation3 + $0x540] sm:$0xff]
    %v277 = vld [vmem:[#allocation3 + $0x548] sm:$0xf]
    %v278 = vld [vmem:[#allocation3 + $0x54c] sm:$0xff]
    %v279 = vld [vmem:[#allocation3 + $0x554] sm:$0xf]
    %v280 = vld [vmem:[#allocation3 + $0x558] sm:$0xff]
    %v281 = vld [vmem:[#allocation3 + $0x560] sm:$0xf]
    %v282 = vld [vmem:[#allocation3 + $0x564] sm:$0xff]
    %v283 = vld [vmem:[#allocation3 + $0x56c] sm:$0xf]
    %v284 = vld [vmem:[#allocation3 + $0x570] sm:$0xff]
    %v285 = vld [vmem:[#allocation3 + $0x578] sm:$0xf]
    %v286 = vld [vmem:[#allocation3 + $0x57c] sm:$0xff]
    %v287 = vld [vmem:[#allocation3 + $0x584] sm:$0xf]
    %v288 = vld [vmem:[#allocation3 + $0x588] sm:$0xff]
    %v289 = vld [vmem:[#allocation3 + $0x590] sm:$0xf]
    %v290 = vld [vmem:[#allocation3 + $0x594] sm:$0xff]
    %v291 = vld [vmem:[#allocation3 + $0x59c] sm:$0xf]
    %v292 = vld [vmem:[#allocation3 + $0x5a0] sm:$0xff]
    %v293 = vld [vmem:[#allocation3 + $0x5a8] sm:$0xf]
    %v294 = vld [vmem:[#allocation3 + $0x5ac] sm:$0xff]
    %v295 = vld [vmem:[#allocation3 + $0x5b4] sm:$0xf]
    %v296 = vld [vmem:[#allocation3 + $0x5b8] sm:$0xff]
    %v297 = vld [vmem:[#allocation3 + $0x5c0] sm:$0xf]
    %v298 = vld [vmem:[#allocation3 + $0x5c4] sm:$0xff]
    %v299 = vld [vmem:[#allocation3 + $0x5cc] sm:$0xf]
    %v300 = vld [vmem:[#allocation3 + $0x5d0] sm:$0xff]
    %v301 = vld [vmem:[#allocation3 + $0x5d8] sm:$0xf]
    %v302 = vld [vmem:[#allocation3 + $0x5dc] sm:$0xff]
    %v303 = vld [vmem:[#allocation3 + $0x5e4] sm:$0xf]
    %v304 = vld [vmem:[#allocation3 + $0x5e8] sm:$0xff]
    %v305 = vld [vmem:[#allocation3 + $0x5f0] sm:$0xf]
    %v306 = vld [vmem:[#allocation3 + $0x5f4] sm:$0xff]
    %v307 = vld [vmem:[#allocation3 + $0x5fc] sm:$0xf]
    %v308 = vld [vmem:[#allocation3 + $0x600] sm:$0xff]
    %v309 = vld [vmem:[#allocation3 + $0x608] sm:$0xf]
    %v310 = vld [vmem:[#allocation3 + $0x60c] sm:$0xff]
    %v311 = vld [vmem:[#allocation3 + $0x614] sm:$0xf]
    %v312 = vld [vmem:[#allocation3 + $0x618] sm:$0xff]
    %v313 = vld [vmem:[#allocation3 + $0x620] sm:$0xf]
    %v314 = vld [vmem:[#allocation3 + $0x624] sm:$0xff]
    %v315 = vld [vmem:[#allocation3 + $0x62c] sm:$0xf]
    %v316 = vld [vmem:[#allocation3 + $0x630] sm:$0xff]
    %v317 = vld [vmem:[#allocation3 + $0x638] sm:$0xf]
    %v318 = vld [vmem:[#allocation3 + $0x63c] sm:$0xff]
    %v319 = vld [vmem:[#allocation3 + $0x644] sm:$0xf]
    %v320 = vld [vmem:[#allocation3 + $0x648] sm:$0xff]
    %v321 = vld [vmem:[#allocation3 + $0x650] sm:$0xf]
    %v322 = vld [vmem:[#allocation3 + $0x654] sm:$0xff]
    %v323 = vld [vmem:[#allocation3 + $0x65c] sm:$0xf]
    %v324 = vld [vmem:[#allocation3 + $0x660] sm:$0xff]
    %v325 = vld [vmem:[#allocation3 + $0x668] sm:$0xf]
    %v326 = vld [vmem:[#allocation3 + $0x66c] sm:$0xff]
    %v327 = vld [vmem:[#allocation3 + $0x674] sm:$0xf]
    %v328 = vld [vmem:[#allocation3 + $0x678] sm:$0xff]
    %v329 = vld [vmem:[#allocation3 + $0x680] sm:$0xf]
    %v330 = vld [vmem:[#allocation3 + $0x684] sm:$0xff]
    %v331 = vld [vmem:[#allocation3 + $0x68c] sm:$0xf]
    %v332 = vld [vmem:[#allocation3 + $0x690] sm:$0xff]
    %v333 = vld [vmem:[#allocation3 + $0x698] sm:$0xf]
    %v334 = vld [vmem:[#allocation3 + $0x69c] sm:$0xff]
    %v335 = vld [vmem:[#allocation3 + $0x6a4] sm:$0xf]
    %v336 = vld [vmem:[#allocation3 + $0x6a8] sm:$0xff]
    %v337 = vld [vmem:[#allocation3 + $0x6b0] sm:$0xf]
    %v338 = vld [vmem:[#allocation3 + $0x6b4] sm:$0xff]
    %v339 = vld [vmem:[#allocation3 + $0x6bc] sm:$0xf]
    %v340 = vld [vmem:[#allocation3 + $0x6c0] sm:$0xff]
    %v341 = vld [vmem:[#allocation3 + $0x6c8] sm:$0xf]
    %v342 = vld [vmem:[#allocation3 + $0x6cc] sm:$0xff]
    %v343 = vld [vmem:[#allocation3 + $0x6d4] sm:$0xf]
    %v344 = vld [vmem:[#allocation3 + $0x6d8] sm:$0xff]
    %v345 = vld [vmem:[#allocation3 + $0x6e0] sm:$0xf]
    %v346 = vld [vmem:[#allocation3 + $0x6e4] sm:$0xff]
    %v347 = vld [vmem:[#allocation3 + $0x6ec] sm:$0xf]
    %v348 = vld [vmem:[#allocation3 + $0x6f0] sm:$0xff]
    %v349 = vld [vmem:[#allocation3 + $0x6f8] sm:$0xf]
    %v350 = vld [vmem:[#allocation3 + $0x6fc] sm:$0xff]
    %v351 = vld [vmem:[#allocation3 + $0x704] sm:$0xf]
    %v352 = vld [vmem:[#allocation3 + $0x708] sm:$0xff]
    %v353 = vld [vmem:[#allocation3 + $0x710] sm:$0xf]
    %v354 = vld [vmem:[#allocation3 + $0x714] sm:$0xff]
    %v355 = vld [vmem:[#allocation3 + $0x71c] sm:$0xf]
    %v356 = vld [vmem:[#allocation3 + $0x720] sm:$0xff]
    %v357 = vld [vmem:[#allocation3 + $0x728] sm:$0xf]
    %v358 = vld [vmem:[#allocation3 + $0x72c] sm:$0xff]
    %v359 = vld [vmem:[#allocation3 + $0x734] sm:$0xf]
    %v360 = vld [vmem:[#allocation3 + $0x738] sm:$0xff]
    %v361 = vld [vmem:[#allocation3 + $0x740] sm:$0xf]
    %v362 = vld [vmem:[#allocation3 + $0x744] sm:$0xff]
    %v363 = vld [vmem:[#allocation3 + $0x74c] sm:$0xf]
    %v364 = vld [vmem:[#allocation3 + $0x750] sm:$0xff]
    %v365 = vld [vmem:[#allocation3 + $0x758] sm:$0xf]
    %v366 = vld [vmem:[#allocation3 + $0x75c] sm:$0xff]
    %v367 = vld [vmem:[#allocation3 + $0x764] sm:$0xf]
    %v368 = vld [vmem:[#allocation3 + $0x768] sm:$0xff]
    %v369 = vld [vmem:[#allocation3 + $0x770] sm:$0xf]
    %v370 = vld [vmem:[#allocation3 + $0x774] sm:$0xff]
    %v371 = vld [vmem:[#allocation3 + $0x77c] sm:$0xf]
    %v372 = vld [vmem:[#allocation3 + $0x780] sm:$0xff]
    %v373 = vld [vmem:[#allocation3 + $0x788] sm:$0xf]
    %v374 = vld [vmem:[#allocation3 + $0x78c] sm:$0xff]
    %v375 = vld [vmem:[#allocation3 + $0x794] sm:$0xf]
    %v376 = vld [vmem:[#allocation3 + $0x798] sm:$0xff]
    %v377 = vld [vmem:[#allocation3 + $0x7a0] sm:$0xf]
    %v378 = vld [vmem:[#allocation3 + $0x7a4] sm:$0xff]
    %v379 = vld [vmem:[#allocation3 + $0x7ac] sm:$0xf]
    %v380 = vld [vmem:[#allocation3 + $0x7b0] sm:$0xff]
    %v381 = vld [vmem:[#allocation3 + $0x7b8] sm:$0xf]
    %v382 = vld [vmem:[#allocation3 + $0x7bc] sm:$0xff]
    %v383 = vld [vmem:[#allocation3 + $0x7c4] sm:$0xf]
    %v384 = vld [vmem:[#allocation3 + $0x7c8] sm:$0xff]
    %v385 = vld [vmem:[#allocation3 + $0x7d0] sm:$0xf]
    %v386 = vld [vmem:[#allocation3 + $0x7d4] sm:$0xff]
    %v387 = vld [vmem:[#allocation3 + $0x7dc] sm:$0xf]
    %v388 = vld [vmem:[#allocation3 + $0x7e0] sm:$0xff]
    %v389 = vld [vmem:[#allocation3 + $0x7e8] sm:$0xf]
    %v390 = vld [vmem:[#allocation3 + $0x7ec] sm:$0xff]
    %v391 = vld [vmem:[#allocation3 + $0x7f4] sm:$0xf]
    %v392 = vld [vmem:[#allocation3 + $0x7f8] sm:$0xff]
    %v393 = vld [vmem:[#allocation3 + $0x800] sm:$0xf]
    %v394 = vld [vmem:[#allocation3 + $0x804] sm:$0xff]
    %v395 = vld [vmem:[#allocation3 + $0x80c] sm:$0xf]
    %v396 = vld [vmem:[#allocation3 + $0x810] sm:$0xff]
    %v397 = vld [vmem:[#allocation3 + $0x818] sm:$0xf]
    %v398 = vld [vmem:[#allocation3 + $0x81c] sm:$0xff]
    %v399 = vld [vmem:[#allocation3 + $0x824] sm:$0xf]
    %v400 = vld [vmem:[#allocation3 + $0x828] sm:$0xff]
    %v401 = vld [vmem:[#allocation3 + $0x830] sm:$0xf]
    %v402 = vld [vmem:[#allocation3 + $0x834] sm:$0xff]
    %v403 = vld [vmem:[#allocation3 + $0x83c] sm:$0xf]
    %v404 = vld [vmem:[#allocation3 + $0x840] sm:$0xff]
    %v405 = vld [vmem:[#allocation3 + $0x848] sm:$0xf]
    %v406 = vld [vmem:[#allocation3 + $0x84c] sm:$0xff]
    %v407 = vld [vmem:[#allocation3 + $0x854] sm:$0xf]
    %v408 = vld [vmem:[#allocation3 + $0x858] sm:$0xff]
    %v409 = vld [vmem:[#allocation3 + $0x860] sm:$0xf]
    %v410 = vld [vmem:[#allocation3 + $0x864] sm:$0xff]
    %v411 = vld [vmem:[#allocation3 + $0x86c] sm:$0xf]
    %v412 = vld [vmem:[#allocation3 + $0x870] sm:$0xff]
    %v413 = vld [vmem:[#allocation3 + $0x878] sm:$0xf]
    %v414 = vld [vmem:[#allocation3 + $0x87c] sm:$0xff]
    %v415 = vld [vmem:[#allocation3 + $0x884] sm:$0xf]
    %v416 = vld [vmem:[#allocation3 + $0x888] sm:$0xff]
    %v417 = vld [vmem:[#allocation3 + $0x890] sm:$0xf]
    %v418 = vld [vmem:[#allocation3 + $0x894] sm:$0xff]
    %v419 = vld [vmem:[#allocation3 + $0x89c] sm:$0xf]
    %v420 = vld [vmem:[#allocation3 + $0x8a0] sm:$0xff]
    %v421 = vld [vmem:[#allocation3 + $0x8a8] sm:$0xf]
    %v422 = vld [vmem:[#allocation3 + $0x8ac] sm:$0xff]
    %v423 = vld [vmem:[#allocation3 + $0x8b4] sm:$0xf]
    %v424 = vld [vmem:[#allocation3 + $0x8b8] sm:$0xff]
    %v425 = vld [vmem:[#allocation3 + $0x8c0] sm:$0xf]
    %v426 = vld [vmem:[#allocation3 + $0x8c4] sm:$0xff]
    %v427 = vld [vmem:[#allocation3 + $0x8cc] sm:$0xf]
    %v428 = vld [vmem:[#allocation3 + $0x8d0] sm:$0xff]
    %v429 = vld [vmem:[#allocation3 + $0x8d8] sm:$0xf]
    %v430 = vld [vmem:[#allocation3 + $0x8dc] sm:$0xff]
    %v431 = vld [vmem:[#allocation3 + $0x8e4] sm:$0xf]
    %v432 = vld [vmem:[#allocation3 + $0x8e8] sm:$0xff]
    %v433 = vld [vmem:[#allocation3 + $0x8f0] sm:$0xf]
    %v434 = vld [vmem:[#allocation3 + $0x8f4] sm:$0xff]
    %v435 = vld [vmem:[#allocation3 + $0x8fc] sm:$0xf]
    %v436 = vld [vmem:[#allocation3 + $0x900] sm:$0xff]
    %v437 = vld [vmem:[#allocation3 + $0x908] sm:$0xf]
    %v438 = vld [vmem:[#allocation3 + $0x90c] sm:$0xff]
    %v439 = vld [vmem:[#allocation3 + $0x914] sm:$0xf]
    %v440 = vld [vmem:[#allocation3 + $0x918] sm:$0xff]
    %v441 = vld [vmem:[#allocation3 + $0x920] sm:$0xf]
    %v442 = vld [vmem:[#allocation3 + $0x924] sm:$0xff]
    %v443 = vld [vmem:[#allocation3 + $0x92c] sm:$0xf]
    %v444 = vld [vmem:[#allocation3 + $0x930] sm:$0xff]
    %v445 = vld [vmem:[#allocation3 + $0x938] sm:$0xf]
    %v446 = vld [vmem:[#allocation3 + $0x93c] sm:$0xff]
    %v447 = vld [vmem:[#allocation3 + $0x944] sm:$0xf]
    %v448 = vld [vmem:[#allocation3 + $0x948] sm:$0xff]
    %v449 = vld [vmem:[#allocation3 + $0x950] sm:$0xf]
    %v450 = vld [vmem:[#allocation3 + $0x954] sm:$0xff]
    %v451 = vld [vmem:[#allocation3 + $0x95c] sm:$0xf]
    %v452 = vld [vmem:[#allocation3 + $0x960] sm:$0xff]
    %v453 = vld [vmem:[#allocation3 + $0x968] sm:$0xf]
    %v454 = vld [vmem:[#allocation3 + $0x96c] sm:$0xff]
    %v455 = vld [vmem:[#allocation3 + $0x974] sm:$0xf]
    %v456 = vld [vmem:[#allocation3 + $0x978] sm:$0xff]
    %v457 = vld [vmem:[#allocation3 + $0x980] sm:$0xf]
    %v458 = vld [vmem:[#allocation3 + $0x984] sm:$0xff]
    %v459 = vld [vmem:[#allocation3 + $0x98c] sm:$0xf]
    %v460 = vld [vmem:[#allocation3 + $0x990] sm:$0xff]
    %v461 = vld [vmem:[#allocation3 + $0x998] sm:$0xf]
    %v462 = vld [vmem:[#allocation3 + $0x99c] sm:$0xff]
    %v463 = vld [vmem:[#allocation3 + $0x9a4] sm:$0xf]
    %v464 = vld [vmem:[#allocation3 + $0x9a8] sm:$0xff]
    %v465 = vld [vmem:[#allocation3 + $0x9b0] sm:$0xf]
    %v466 = vld [vmem:[#allocation3 + $0x9b4] sm:$0xff]
    %v467 = vld [vmem:[#allocation3 + $0x9bc] sm:$0xf]
    %v468 = vld [vmem:[#allocation3 + $0x9c0] sm:$0xff]
    %v469 = vld [vmem:[#allocation3 + $0x9c8] sm:$0xf]
    %v470 = vld [vmem:[#allocation3 + $0x9cc] sm:$0xff]
    %v471 = vld [vmem:[#allocation3 + $0x9d4] sm:$0xf]
    %v472 = vld [vmem:[#allocation3 + $0x9d8] sm:$0xff]
    %v473 = vld [vmem:[#allocation3 + $0x9e0] sm:$0xf]
    %v474 = vld [vmem:[#allocation3 + $0x9e4] sm:$0xff]
    %v475 = vld [vmem:[#allocation3 + $0x9ec] sm:$0xf]
    %v476 = vld [vmem:[#allocation3 + $0x9f0] sm:$0xff]
    %v477 = vld [vmem:[#allocation3 + $0x9f8] sm:$0xf]
    %v478 = vld [vmem:[#allocation3 + $0x9fc] sm:$0xff]
    %v479 = vld [vmem:[#allocation3 + $0xa04] sm:$0xf]
    %v480 = vld [vmem:[#allocation3 + $0xa08] sm:$0xff]
    %v481 = vld [vmem:[#allocation3 + $0xa10] sm:$0xf]
    %v482 = vld [vmem:[#allocation3 + $0xa14] sm:$0xff]
    %v483 = vld [vmem:[#allocation3 + $0xa1c] sm:$0xf]
    %v484 = vld [vmem:[#allocation3 + $0xa20] sm:$0xff]
    %v485 = vld [vmem:[#allocation3 + $0xa28] sm:$0xf]
    %v486 = vld [vmem:[#allocation3 + $0xa2c] sm:$0xff]
    %v487 = vld [vmem:[#allocation3 + $0xa34] sm:$0xf]
    %v488 = vld [vmem:[#allocation3 + $0xa38] sm:$0xff]
    %v489 = vld [vmem:[#allocation3 + $0xa40] sm:$0xf]
    %v490 = vld [vmem:[#allocation3 + $0xa44] sm:$0xff]
    %v491 = vld [vmem:[#allocation3 + $0xa4c] sm:$0xf]
    %v492 = vld [vmem:[#allocation3 + $0xa50] sm:$0xff]
    %v493 = vld [vmem:[#allocation3 + $0xa58] sm:$0xf]
    %v494 = vld [vmem:[#allocation3 + $0xa5c] sm:$0xff]
    %v495 = vld [vmem:[#allocation3 + $0xa64] sm:$0xf]
    %v496 = vld [vmem:[#allocation3 + $0xa68] sm:$0xff]
    %v497 = vld [vmem:[#allocation3 + $0xa70] sm:$0xf]
    %v498 = vld [vmem:[#allocation3 + $0xa74] sm:$0xff]
    %v499 = vld [vmem:[#allocation3 + $0xa7c] sm:$0xf]
    %v500 = vld [vmem:[#allocation3 + $0xa80] sm:$0xff]
    %v501 = vld [vmem:[#allocation3 + $0xa88] sm:$0xf]
    %v502 = vld [vmem:[#allocation3 + $0xa8c] sm:$0xff]
    %v503 = vld [vmem:[#allocation3 + $0xa94] sm:$0xf]
    %v504 = vld [vmem:[#allocation3 + $0xa98] sm:$0xff]
    %v505 = vld [vmem:[#allocation3 + $0xaa0] sm:$0xf]
    %v506 = vld [vmem:[#allocation3 + $0xaa4] sm:$0xff]
    %v507 = vld [vmem:[#allocation3 + $0xaac] sm:$0xf]
    %v508 = vld [vmem:[#allocation3 + $0xab0] sm:$0xff]
    %v509 = vld [vmem:[#allocation3 + $0xab8] sm:$0xf]
    %v510 = vld [vmem:[#allocation3 + $0xabc] sm:$0xff]
    %v511 = vld [vmem:[#allocation3 + $0xac4] sm:$0xf]
    %v512 = vld [vmem:[#allocation3 + $0xac8] sm:$0xff]
    %v513 = vld [vmem:[#allocation3 + $0xad0] sm:$0xf]
    %v514 = vld [vmem:[#allocation3 + $0xad4] sm:$0xff]
    %v515 = vld [vmem:[#allocation3 + $0xadc] sm:$0xf]
    %v516 = vld [vmem:[#allocation3 + $0xae0] sm:$0xff]
    %v517 = vld [vmem:[#allocation3 + $0xae8] sm:$0xf]
    %v518 = vld [vmem:[#allocation3 + $0xaec] sm:$0xff]
    %v519 = vld [vmem:[#allocation3 + $0xaf4] sm:$0xf]
    %v520 = vld [vmem:[#allocation3 + $0xaf8] sm:$0xff]
    %v521 = vld [vmem:[#allocation3 + $0xb00] sm:$0xf]
    %v522 = vld [vmem:[#allocation3 + $0xb04] sm:$0xff]
    %v523 = vld [vmem:[#allocation3 + $0xb0c] sm:$0xf]
    %v524 = vld [vmem:[#allocation3 + $0xb10] sm:$0xff]
    %v525 = vld [vmem:[#allocation3 + $0xb18] sm:$0xf]
    %v526 = vld [vmem:[#allocation3 + $0xb1c] sm:$0xff]
    %v527 = vld [vmem:[#allocation3 + $0xb24] sm:$0xf]
    %v528 = vld [vmem:[#allocation3 + $0xb28] sm:$0xff]
    %v529 = vld [vmem:[#allocation3 + $0xb30] sm:$0xf]
    %v530 = vld [vmem:[#allocation3 + $0xb34] sm:$0xff]
    %v531 = vld [vmem:[#allocation3 + $0xb3c] sm:$0xf]
    %v532 = vld [vmem:[#allocation3 + $0xb40] sm:$0xff]
    %v533 = vld [vmem:[#allocation3 + $0xb48] sm:$0xf]
    %v534 = vld [vmem:[#allocation3 + $0xb4c] sm:$0xff]
    %v535 = vld [vmem:[#allocation3 + $0xb54] sm:$0xf]
    %v536 = vld [vmem:[#allocation3 + $0xb58] sm:$0xff]
    %v537 = vld [vmem:[#allocation3 + $0xb60] sm:$0xf]
    %v538 = vld [vmem:[#allocation3 + $0xb64] sm:$0xff]
    %v539 = vld [vmem:[#allocation3 + $0xb6c] sm:$0xf]
    %v540 = vld [vmem:[#allocation3 + $0xb70] sm:$0xff]
    %v541 = vld [vmem:[#allocation3 + $0xb78] sm:$0xf]
    %v542 = vld [vmem:[#allocation3 + $0xb7c] sm:$0xff]
    %v543 = vld [vmem:[#allocation3 + $0xb84] sm:$0xf]
    %v544 = vld [vmem:[#allocation3 + $0xb88] sm:$0xff]
    %v545 = vld [vmem:[#allocation3 + $0xb90] sm:$0xf]
    %v546 = vld [vmem:[#allocation3 + $0xb94] sm:$0xff]
    %v547 = vld [vmem:[#allocation3 + $0xb9c] sm:$0xf]
    %v548 = vld [vmem:[#allocation3 + $0xba0] sm:$0xff]
    %v549 = vld [vmem:[#allocation3 + $0xba8] sm:$0xf]
    %v550 = vld [vmem:[#allocation3 + $0xbac] sm:$0xff]
    %v551 = vld [vmem:[#allocation3 + $0xbb4] sm:$0xf]
    %v552 = vld [vmem:[#allocation3 + $0xbb8] sm:$0xff]
    %v553 = vld [vmem:[#allocation3 + $0xbc0] sm:$0xf]
    %v554 = vld [vmem:[#allocation3 + $0xbc4] sm:$0xff]
    %v555 = vld [vmem:[#allocation3 + $0xbcc] sm:$0xf]
    %v556 = vld [vmem:[#allocation3 + $0xbd0] sm:$0xff]
    %v557 = vld [vmem:[#allocation3 + $0xbd8] sm:$0xf]
    %v558 = vld [vmem:[#allocation3 + $0xbdc] sm:$0xff]
    %v559 = vld [vmem:[#allocation3 + $0xbe4] sm:$0xf]
    %v560 = vld [vmem:[#allocation3 + $0xbe8] sm:$0xff]
    %v561 = vld [vmem:[#allocation3 + $0xbf0] sm:$0xf]
    %v562 = vld [vmem:[#allocation3 + $0xbf4] sm:$0xff]
    %v563 = vld [vmem:[#allocation3 + $0xbfc] sm:$0xf]
    %v564 = vld [vmem:[#allocation3 + $0xc00] sm:$0xff]
    %v565 = vld [vmem:[#allocation3 + $0xc08] sm:$0xf]
    %v566 = vld [vmem:[#allocation3 + $0xc0c] sm:$0xff]
    %v567 = vld [vmem:[#allocation3 + $0xc14] sm:$0xf]
    %v568 = vld [vmem:[#allocation3 + $0xc18] sm:$0xff]
    %v569 = vld [vmem:[#allocation3 + $0xc20] sm:$0xf]
    %v570 = vld [vmem:[#allocation3 + $0xc24] sm:$0xff]
    %v571 = vld [vmem:[#allocation3 + $0xc2c] sm:$0xf]
    %v572 = vld [vmem:[#allocation3 + $0xc30] sm:$0xff]
    %v573 = vld [vmem:[#allocation3 + $0xc38] sm:$0xf]
    %v574 = vld [vmem:[#allocation3 + $0xc3c] sm:$0xff]
    %v575 = vld [vmem:[#allocation3 + $0xc44] sm:$0xf]
    %v576 = vld [vmem:[#allocation3 + $0xc48] sm:$0xff]
    %v577 = vld [vmem:[#allocation3 + $0xc50] sm:$0xf]
    %v578 = vld [vmem:[#allocation3 + $0xc54] sm:$0xff]
    %v579 = vld [vmem:[#allocation3 + $0xc5c] sm:$0xf]
    %v580 = vld [vmem:[#allocation3 + $0xc60] sm:$0xff]
    %v581 = vld [vmem:[#allocation3 + $0xc68] sm:$0xf]
    %v582 = vld [vmem:[#allocation3 + $0xc6c] sm:$0xff]
    %v583 = vld [vmem:[#allocation3 + $0xc74] sm:$0xf]
    %v584 = vld [vmem:[#allocation3 + $0xc78] sm:$0xff]
    %v585 = vld [vmem:[#allocation3 + $0xc80] sm:$0xf]
    %v586 = vld [vmem:[#allocation3 + $0xc84] sm:$0xff]
    %v587 = vld [vmem:[#allocation3 + $0xc8c] sm:$0xf]
    %v588 = vld [vmem:[#allocation3 + $0xc90] sm:$0xff]
    %v589 = vld [vmem:[#allocation3 + $0xc98] sm:$0xf]
    %v590 = vld [vmem:[#allocation3 + $0xc9c] sm:$0xff]
    %v591 = vld [vmem:[#allocation3 + $0xca4] sm:$0xf]
    %v592 = vld [vmem:[#allocation3 + $0xca8] sm:$0xff]
    %v593 = vld [vmem:[#allocation3 + $0xcb0] sm:$0xf]
    %v594 = vld [vmem:[#allocation3 + $0xcb4] sm:$0xff]
    %v595 = vld [vmem:[#allocation3 + $0xcbc] sm:$0xf]
    %v596 = vld [vmem:[#allocation3 + $0xcc0] sm:$0xff]
    %v597 = vld [vmem:[#allocation3 + $0xcc8] sm:$0xf]
    %v598 = vld [vmem:[#allocation3 + $0xccc] sm:$0xff]
    %v599 = vld [vmem:[#allocation3 + $0xcd4] sm:$0xf]
    %v600 = vld [vmem:[#allocation3 + $0xcd8] sm:$0xff]
    %v601 = vld [vmem:[#allocation3 + $0xce0] sm:$0xf]
    %v602 = vld [vmem:[#allocation3 + $0xce4] sm:$0xff]
    %v603 = vld [vmem:[#allocation3 + $0xcec] sm:$0xf]
    %v604 = vld [vmem:[#allocation3 + $0xcf0] sm:$0xff]
    %v605 = vld [vmem:[#allocation3 + $0xcf8] sm:$0xf]
    %v606 = vld [vmem:[#allocation3 + $0xcfc] sm:$0xff]
    %v607 = vld [vmem:[#allocation3 + $0xd04] sm:$0xf]
    %v608 = vld [vmem:[#allocation3 + $0xd08] sm:$0xff]
    %v609 = vld [vmem:[#allocation3 + $0xd10] sm:$0xf]
    %v610 = vld [vmem:[#allocation3 + $0xd14] sm:$0xff]
    %v611 = vld [vmem:[#allocation3 + $0xd1c] sm:$0xf]
    %v612 = vld [vmem:[#allocation3 + $0xd20] sm:$0xff]
    %v613 = vld [vmem:[#allocation3 + $0xd28] sm:$0xf]
    %v614 = vld [vmem:[#allocation3 + $0xd2c] sm:$0xff]
    %v615 = vld [vmem:[#allocation3 + $0xd34] sm:$0xf]
    %v616 = vld [vmem:[#allocation3 + $0xd38] sm:$0xff]
    %v617 = vld [vmem:[#allocation3 + $0xd40] sm:$0xf]
    %v618 = vld [vmem:[#allocation3 + $0xd44] sm:$0xff]
    %v619 = vld [vmem:[#allocation3 + $0xd4c] sm:$0xf]
    %v620 = vld [vmem:[#allocation3 + $0xd50] sm:$0xff]
    %v621 = vld [vmem:[#allocation3 + $0xd58] sm:$0xf]
    %v622 = vld [vmem:[#allocation3 + $0xd5c] sm:$0xff]
    %v623 = vld [vmem:[#allocation3 + $0xd64] sm:$0xf]
    %v624 = vld [vmem:[#allocation3 + $0xd68] sm:$0xff]
    %v625 = vld [vmem:[#allocation3 + $0xd70] sm:$0xf]
    %v626 = vld [vmem:[#allocation3 + $0xd74] sm:$0xff]
    %v627 = vld [vmem:[#allocation3 + $0xd7c] sm:$0xf]
    %v628 = vld [vmem:[#allocation3 + $0xd80] sm:$0xff]
    %v629 = vld [vmem:[#allocation3 + $0xd88] sm:$0xf]
    %v630 = vld [vmem:[#allocation3 + $0xd8c] sm:$0xff]
    %v631 = vld [vmem:[#allocation3 + $0xd94] sm:$0xf]
    %v632 = vld [vmem:[#allocation3 + $0xd98] sm:$0xff]
    %v633 = vld [vmem:[#allocation3 + $0xda0] sm:$0xf]
    %v634 = vld [vmem:[#allocation3 + $0xda4] sm:$0xff]
    %v635 = vld [vmem:[#allocation3 + $0xdac] sm:$0xf]
    %v636 = vld [vmem:[#allocation3 + $0xdb0] sm:$0xff]
    %v637 = vld [vmem:[#allocation3 + $0xdb8] sm:$0xf]
    %v638 = vld [vmem:[#allocation3 + $0xdbc] sm:$0xff]
    %v639 = vld [vmem:[#allocation3 + $0xdc4] sm:$0xf]
    %v640 = vld [vmem:[#allocation3 + $0xdc8] sm:$0xff]
    %v641 = vld [vmem:[#allocation3 + $0xdd0] sm:$0xf]
    %v642 = vld [vmem:[#allocation3 + $0xdd4] sm:$0xff]
    %v643 = vld [vmem:[#allocation3 + $0xddc] sm:$0xf]
    %v644 = vld [vmem:[#allocation3 + $0xde0] sm:$0xff]
    %v645 = vld [vmem:[#allocation3 + $0xde8] sm:$0xf]
    %v646 = vld [vmem:[#allocation3 + $0xdec] sm:$0xff]
    %v647 = vld [vmem:[#allocation3 + $0xdf4] sm:$0xf]
    %v648 = vld [vmem:[#allocation3 + $0xdf8] sm:$0xff]
    %v649 = vld [vmem:[#allocation3 + $0xe00] sm:$0xf]
    %v650 = vld [vmem:[#allocation3 + $0xe04] sm:$0xff]
    %v651 = vld [vmem:[#allocation3 + $0xe0c] sm:$0xf]
    %v652 = vld [vmem:[#allocation3 + $0xe10] sm:$0xff]
    %v653 = vld [vmem:[#allocation3 + $0xe18] sm:$0xf]
    %v654 = vld [vmem:[#allocation3 + $0xe1c] sm:$0xff]
    %v655 = vld [vmem:[#allocation3 + $0xe24] sm:$0xf]
    %v656 = vld [vmem:[#allocation3 + $0xe28] sm:$0xff]
    %v657 = vld [vmem:[#allocation3 + $0xe30] sm:$0xf]
    %v658 = vld [vmem:[#allocation3 + $0xe34] sm:$0xff]
    %v659 = vld [vmem:[#allocation3 + $0xe3c] sm:$0xf]
    %v660 = vld [vmem:[#allocation3 + $0xe40] sm:$0xff]
    %v661 = vld [vmem:[#allocation3 + $0xe48] sm:$0xf]
    %v662 = vld [vmem:[#allocation3 + $0xe4c] sm:$0xff]
    %v663 = vld [vmem:[#allocation3 + $0xe54] sm:$0xf]
    %v664 = vld [vmem:[#allocation3 + $0xe58] sm:$0xff]
    %v665 = vld [vmem:[#allocation3 + $0xe60] sm:$0xf]
    %v666 = vld [vmem:[#allocation3 + $0xe64] sm:$0xff]
    %v667 = vld [vmem:[#allocation3 + $0xe6c] sm:$0xf]
    %v668 = vld [vmem:[#allocation3 + $0xe70] sm:$0xff]
    %v669 = vld [vmem:[#allocation3 + $0xe78] sm:$0xf]
    %v670 = vld [vmem:[#allocation3 + $0xe7c] sm:$0xff]
    %v671 = vld [vmem:[#allocation3 + $0xe84] sm:$0xf]
    %v672 = vld [vmem:[#allocation3 + $0xe88] sm:$0xff]
    %v673 = vld [vmem:[#allocation3 + $0xe90] sm:$0xf]
    %v674 = vld [vmem:[#allocation3 + $0xe94] sm:$0xff]
    %v675 = vld [vmem:[#allocation3 + $0xe9c] sm:$0xf]
    %v676 = vld [vmem:[#allocation3 + $0xea0] sm:$0xff]
    %v677 = vld [vmem:[#allocation3 + $0xea8] sm:$0xf]
    %v678 = vld [vmem:[#allocation3 + $0xeac] sm:$0xff]
    %v679 = vld [vmem:[#allocation3 + $0xeb4] sm:$0xf]
    %v680 = vld [vmem:[#allocation3 + $0xeb8] sm:$0xff]
    %v681 = vld [vmem:[#allocation3 + $0xec0] sm:$0xf]
    %v682 = vld [vmem:[#allocation3 + $0xec4] sm:$0xff]
    %v683 = vld [vmem:[#allocation3 + $0xecc] sm:$0xf]
    %v684 = vld [vmem:[#allocation3 + $0xed0] sm:$0xff]
    %v685 = vld [vmem:[#allocation3 + $0xed8] sm:$0xf]
    %v686 = vld [vmem:[#allocation3 + $0xedc] sm:$0xff]
    %v687 = vld [vmem:[#allocation3 + $0xee4] sm:$0xf]
    %v688 = vld [vmem:[#allocation3 + $0xee8] sm:$0xff]
    %v689 = vld [vmem:[#allocation3 + $0xef0] sm:$0xf]
    %v690 = vld [vmem:[#allocation3 + $0xef4] sm:$0xff]
    %v691 = vld [vmem:[#allocation3 + $0xefc] sm:$0xf]
    %v692 = vld [vmem:[#allocation3 + $0xf00] sm:$0xff]
    %v693 = vld [vmem:[#allocation3 + $0xf08] sm:$0xf]
    %v694 = vld [vmem:[#allocation3 + $0xf0c] sm:$0xff]
    %v695 = vld [vmem:[#allocation3 + $0xf14] sm:$0xf]
    %v696 = vld [vmem:[#allocation3 + $0xf18] sm:$0xff]
    %v697 = vld [vmem:[#allocation3 + $0xf20] sm:$0xf]
    %v698 = vld [vmem:[#allocation3 + $0xf24] sm:$0xff]
    %v699 = vld [vmem:[#allocation3 + $0xf2c] sm:$0xf]
    %v700 = vld [vmem:[#allocation3 + $0xf30] sm:$0xff]
    %v701 = vld [vmem:[#allocation3 + $0xf38] sm:$0xf]
    %v702 = vld [vmem:[#allocation3 + $0xf3c] sm:$0xff]
    %v703 = vld [vmem:[#allocation3 + $0xf44] sm:$0xf]
    %v704 = vld [vmem:[#allocation3 + $0xf48] sm:$0xff]
    %v705 = vld [vmem:[#allocation3 + $0xf50] sm:$0xf]
    %v706 = vld [vmem:[#allocation3 + $0xf54] sm:$0xff]
    %v707 = vld [vmem:[#allocation3 + $0xf5c] sm:$0xf]
    %v708 = vld [vmem:[#allocation3 + $0xf60] sm:$0xff]
    %v709 = vld [vmem:[#allocation3 + $0xf68] sm:$0xf]
    %v710 = vld [vmem:[#allocation3 + $0xf6c] sm:$0xff]
    %v711 = vld [vmem:[#allocation3 + $0xf74] sm:$0xf]
    %v712 = vld [vmem:[#allocation3 + $0xf78] sm:$0xff]
    %v713 = vld [vmem:[#allocation3 + $0xf80] sm:$0xf]
    %v714 = vld [vmem:[#allocation3 + $0xf84] sm:$0xff]
    %v715 = vld [vmem:[#allocation3 + $0xf8c] sm:$0xf]
    %v716 = vld [vmem:[#allocation3 + $0xf90] sm:$0xff]
    %v717 = vld [vmem:[#allocation3 + $0xf98] sm:$0xf]
    %v718 = vld [vmem:[#allocation3 + $0xf9c] sm:$0xff]
    %v719 = vld [vmem:[#allocation3 + $0xfa4] sm:$0xf]
    %v720 = vld [vmem:[#allocation3 + $0xfa8] sm:$0xff]
    %v721 = vld [vmem:[#allocation3 + $0xfb0] sm:$0xf]
    %v722 = vld [vmem:[#allocation3 + $0xfb4] sm:$0xff]
    %v723 = vld [vmem:[#allocation3 + $0xfbc] sm:$0xf]
    %v724 = vld [vmem:[#allocation3 + $0xfc0] sm:$0xff]
    %v725 = vld [vmem:[#allocation3 + $0xfc8] sm:$0xf]
    %v726 = vld [vmem:[#allocation3 + $0xfcc] sm:$0xff]
    %v727 = vld [vmem:[#allocation3 + $0xfd4] sm:$0xf]
    %v728 = vld [vmem:[#allocation3 + $0xfd8] sm:$0xff]
    %v729 = vld [vmem:[#allocation3 + $0xfe0] sm:$0xf]
    %v730 = vld [vmem:[#allocation3 + $0xfe4] sm:$0xff]
    %v731 = vld [vmem:[#allocation3 + $0xfec] sm:$0xf]
    %v732 = vld [vmem:[#allocation3 + $0xff0] sm:$0xff]
    %v733 = vld [vmem:[#allocation3 + $0xff8] sm:$0xf]
    %v734 = vld [vmem:[#allocation3 + $0xffc] sm:$0xff]
    %v735 = vld [vmem:[#allocation3 + $0x1004] sm:$0xf]
    %v736 = vld [vmem:[#allocation3 + $0x1008] sm:$0xff]
    %v737 = vld [vmem:[#allocation3 + $0x1010] sm:$0xf]
    %v738 = vld [vmem:[#allocation3 + $0x1014] sm:$0xff]
    %v739 = vld [vmem:[#allocation3 + $0x101c] sm:$0xf]
    %v740 = vld [vmem:[#allocation3 + $0x1020] sm:$0xff]
    %v741 = vld [vmem:[#allocation3 + $0x1028] sm:$0xf]
    %v742 = vld [vmem:[#allocation3 + $0x102c] sm:$0xff]
    %v743 = vld [vmem:[#allocation3 + $0x1034] sm:$0xf]
    %v744 = vld [vmem:[#allocation3 + $0x1038] sm:$0xff]
    %v745 = vld [vmem:[#allocation3 + $0x1040] sm:$0xf]
    %v746 = vld [vmem:[#allocation3 + $0x1044] sm:$0xff]
    %v747 = vld [vmem:[#allocation3 + $0x104c] sm:$0xf]
    %v748 = vld [vmem:[#allocation3 + $0x1050] sm:$0xff]
    %v749 = vld [vmem:[#allocation3 + $0x1058] sm:$0xf]
    %v750 = vld [vmem:[#allocation3 + $0x105c] sm:$0xff]
    %v751 = vld [vmem:[#allocation3 + $0x1064] sm:$0xf]
    %v752 = vld [vmem:[#allocation3 + $0x1068] sm:$0xff]
    %v753 = vld [vmem:[#allocation3 + $0x1070] sm:$0xf]
    %v754 = vld [vmem:[#allocation3 + $0x1074] sm:$0xff]
    %v755 = vld [vmem:[#allocation3 + $0x107c] sm:$0xf]
    %v756 = vld [vmem:[#allocation3 + $0x1080] sm:$0xff]
    %v757 = vld [vmem:[#allocation3 + $0x1088] sm:$0xf]
    %v758 = vld [vmem:[#allocation3 + $0x108c] sm:$0xff]
    %v759 = vld [vmem:[#allocation3 + $0x1094] sm:$0xf]
    %v760 = vld [vmem:[#allocation3 + $0x1098] sm:$0xff]
    %v761 = vld [vmem:[#allocation3 + $0x10a0] sm:$0xf]
    %v762 = vld [vmem:[#allocation3 + $0x10a4] sm:$0xff]
    %v763 = vld [vmem:[#allocation3 + $0x10ac] sm:$0xf]
    %v764 = vld [vmem:[#allocation3 + $0x10b0] sm:$0xff]
    %v765 = vld [vmem:[#allocation3 + $0x10b8] sm:$0xf]
    %v766 = vld [vmem:[#allocation3 + $0x10bc] sm:$0xff]
    %v767 = vld [vmem:[#allocation3 + $0x10c4] sm:$0xf]
    %v768 = vld [vmem:[#allocation3 + $0x10c8] sm:$0xff]
    %v769 = vld [vmem:[#allocation3 + $0x10d0] sm:$0xf]
    %v770 = vld [vmem:[#allocation3 + $0x10d4] sm:$0xff]
    %v771 = vld [vmem:[#allocation3 + $0x10dc] sm:$0xf]
    %v772 = vld [vmem:[#allocation3 + $0x10e0] sm:$0xff]
    %v773 = vld [vmem:[#allocation3 + $0x10e8] sm:$0xf]
    %v774 = vld [vmem:[#allocation3 + $0x10ec] sm:$0xff]
    %v775 = vld [vmem:[#allocation3 + $0x10f4] sm:$0xf]
    %v776 = vld [vmem:[#allocation3 + $0x10f8] sm:$0xff]
    %v777 = vld [vmem:[#allocation3 + $0x1100] sm:$0xf]
    %v778 = vld [vmem:[#allocation3 + $0x1104] sm:$0xff]
    %v779 = vld [vmem:[#allocation3 + $0x110c] sm:$0xf]
    %v780 = vld [vmem:[#allocation3 + $0x1110] sm:$0xff]
    %v781 = vld [vmem:[#allocation3 + $0x1118] sm:$0xf]
    %v782 = vld [vmem:[#allocation3 + $0x111c] sm:$0xff]
    %v783 = vld [vmem:[#allocation3 + $0x1124] sm:$0xf]
    %v784 = vld [vmem:[#allocation3 + $0x1128] sm:$0xff]
    %v785 = vld [vmem:[#allocation3 + $0x1130] sm:$0xf]
    %v786 = vld [vmem:[#allocation3 + $0x1134] sm:$0xff]
    %v787 = vld [vmem:[#allocation3 + $0x113c] sm:$0xf]
    %v788 = vld [vmem:[#allocation3 + $0x1140] sm:$0xff]
    %v789 = vld [vmem:[#allocation3 + $0x1148] sm:$0xf]
    %v790 = vld [vmem:[#allocation3 + $0x114c] sm:$0xff]
    %v791 = vld [vmem:[#allocation3 + $0x1154] sm:$0xf]
    %v792 = vld [vmem:[#allocation3 + $0x1158] sm:$0xff]
    %v793 = vld [vmem:[#allocation3 + $0x1160] sm:$0xf]
    %v794 = vld [vmem:[#allocation3 + $0x1164] sm:$0xff]
    %v795 = vld [vmem:[#allocation3 + $0x116c] sm:$0xf]
    %v796 = vld [vmem:[#allocation3 + $0x1170] sm:$0xff]
    %v797 = vld [vmem:[#allocation3 + $0x1178] sm:$0xf]
    %v798 = vld [vmem:[#allocation3 + $0x117c] sm:$0xff]
    %v799 = vld [vmem:[#allocation3 + $0x1184] sm:$0xf]
    %v800 = vld [vmem:[#allocation3 + $0x1188] sm:$0xff]
    %v801 = vld [vmem:[#allocation3 + $0x1190] sm:$0xf]
    %v802 = vld [vmem:[#allocation3 + $0x1194] sm:$0xff]
    %v803 = vld [vmem:[#allocation3 + $0x119c] sm:$0xf]
    %v804 = vld [vmem:[#allocation3 + $0x11a0] sm:$0xff]
    %v805 = vld [vmem:[#allocation3 + $0x11a8] sm:$0xf]
    %v806 = vld [vmem:[#allocation3 + $0x11ac] sm:$0xff]
    %v807 = vld [vmem:[#allocation3 + $0x11b4] sm:$0xf]
    %v808 = vld [vmem:[#allocation3 + $0x11b8] sm:$0xff]
    %v809 = vld [vmem:[#allocation3 + $0x11c0] sm:$0xf]
    %v810 = vld [vmem:[#allocation3 + $0x11c4] sm:$0xff]
    %v811 = vld [vmem:[#allocation3 + $0x11cc] sm:$0xf]
    %v812 = vld [vmem:[#allocation3 + $0x11d0] sm:$0xff]
    %v813 = vld [vmem:[#allocation3 + $0x11d8] sm:$0xf]
    %v814 = vld [vmem:[#allocation3 + $0x11dc] sm:$0xff]
    %v815 = vld [vmem:[#allocation3 + $0x11e4] sm:$0xf]
    %v816 = vld [vmem:[#allocation3 + $0x11e8] sm:$0xff]
    %v817 = vld [vmem:[#allocation3 + $0x11f0] sm:$0xf]
    %v818 = vld [vmem:[#allocation3 + $0x11f4] sm:$0xff]
    %v819 = vld [vmem:[#allocation3 + $0x11fc] sm:$0xf]
    %v820 = vunpack.c.l.bf16 %v52
    %v821 = vunpack.c.h.bf16 %v52
    %v822 = vunpack.c.l.bf16 %v53
    %v823 = vunpack.c.l.bf16 %v54
    %v824 = vunpack.c.h.bf16 %v54
    %v825 = vunpack.c.l.bf16 %v55
    %v826 = vunpack.c.l.bf16 %v56
    %v827 = vunpack.c.h.bf16 %v56
    %v828 = vunpack.c.l.bf16 %v57
    %v829 = vunpack.c.l.bf16 %v58
    %v830 = vunpack.c.h.bf16 %v58
    %v831 = vunpack.c.l.bf16 %v59
    %v832 = vunpack.c.l.bf16 %v60
    %v833 = vunpack.c.h.bf16 %v60
    %v834 = vunpack.c.l.bf16 %v61
    %v835 = vunpack.c.l.bf16 %v62
    %v836 = vunpack.c.h.bf16 %v62
    %v837 = vunpack.c.l.bf16 %v63
    %v838 = vunpack.c.l.bf16 %v64
    %v839 = vunpack.c.h.bf16 %v64
    %v840 = vunpack.c.l.bf16 %v65
    %v841 = vunpack.c.l.bf16 %v66
    %v842 = vunpack.c.h.bf16 %v66
    %v843 = vunpack.c.l.bf16 %v67
    %v844 = vunpack.c.l.bf16 %v68
    %v845 = vunpack.c.h.bf16 %v68
    %v846 = vunpack.c.l.bf16 %v69
    %v847 = vunpack.c.l.bf16 %v70
    %v848 = vunpack.c.h.bf16 %v70
    %v849 = vunpack.c.l.bf16 %v71
    %v850 = vunpack.c.l.bf16 %v72
    %v851 = vunpack.c.h.bf16 %v72
    %v852 = vunpack.c.l.bf16 %v73
    %v853 = vunpack.c.l.bf16 %v74
    %v854 = vunpack.c.h.bf16 %v74
    %v855 = vunpack.c.l.bf16 %v75
    %v856 = vunpack.c.l.bf16 %v76
    %v857 = vunpack.c.h.bf16 %v76
    %v858 = vunpack.c.l.bf16 %v77
    %v859 = vunpack.c.l.bf16 %v78
    %v860 = vunpack.c.h.bf16 %v78
    %v861 = vunpack.c.l.bf16 %v79
    %v862 = vunpack.c.l.bf16 %v80
    %v863 = vunpack.c.h.bf16 %v80
    %v864 = vunpack.c.l.bf16 %v81
    %v865 = vunpack.c.l.bf16 %v82
    %v866 = vunpack.c.h.bf16 %v82
    %v867 = vunpack.c.l.bf16 %v83
    %v868 = vunpack.c.l.bf16 %v84
    %v869 = vunpack.c.h.bf16 %v84
    %v870 = vunpack.c.l.bf16 %v85
    %v871 = vunpack.c.l.bf16 %v86
    %v872 = vunpack.c.h.bf16 %v86
    %v873 = vunpack.c.l.bf16 %v87
    %v874 = vunpack.c.l.bf16 %v88
    %v875 = vunpack.c.h.bf16 %v88
    %v876 = vunpack.c.l.bf16 %v89
    %v877 = vunpack.c.l.bf16 %v90
    %v878 = vunpack.c.h.bf16 %v90
    %v879 = vunpack.c.l.bf16 %v91
    %v880 = vunpack.c.l.bf16 %v92
    %v881 = vunpack.c.h.bf16 %v92
    %v882 = vunpack.c.l.bf16 %v93
    %v883 = vunpack.c.l.bf16 %v94
    %v884 = vunpack.c.h.bf16 %v94
    %v885 = vunpack.c.l.bf16 %v95
    %v886 = vunpack.c.l.bf16 %v96
    %v887 = vunpack.c.h.bf16 %v96
    %v888 = vunpack.c.l.bf16 %v97
    %v889 = vunpack.c.l.bf16 %v98
    %v890 = vunpack.c.h.bf16 %v98
    %v891 = vunpack.c.l.bf16 %v99
    %v892 = vunpack.c.l.bf16 %v100
    %v893 = vunpack.c.h.bf16 %v100
    %v894 = vunpack.c.l.bf16 %v101
    %v895 = vunpack.c.l.bf16 %v102
    %v896 = vunpack.c.h.bf16 %v102
    %v897 = vunpack.c.l.bf16 %v103
    %v898 = vunpack.c.l.bf16 %v104
    %v899 = vunpack.c.h.bf16 %v104
    %v900 = vunpack.c.l.bf16 %v105
    %v901 = vunpack.c.l.bf16 %v106
    %v902 = vunpack.c.h.bf16 %v106
    %v903 = vunpack.c.l.bf16 %v107
    %v904 = vunpack.c.l.bf16 %v108
    %v905 = vunpack.c.h.bf16 %v108
    %v906 = vunpack.c.l.bf16 %v109
    %v907 = vunpack.c.l.bf16 %v110
    %v908 = vunpack.c.h.bf16 %v110
    %v909 = vunpack.c.l.bf16 %v111
    %v910 = vunpack.c.l.bf16 %v112
    %v911 = vunpack.c.h.bf16 %v112
    %v912 = vunpack.c.l.bf16 %v113
    %v913 = vunpack.c.l.bf16 %v114
    %v914 = vunpack.c.h.bf16 %v114
    %v915 = vunpack.c.l.bf16 %v115
    %v916 = vunpack.c.l.bf16 %v116
    %v917 = vunpack.c.h.bf16 %v116
    %v918 = vunpack.c.l.bf16 %v117
    %v919 = vunpack.c.l.bf16 %v118
    %v920 = vunpack.c.h.bf16 %v118
    %v921 = vunpack.c.l.bf16 %v119
    %v922 = vunpack.c.l.bf16 %v120
    %v923 = vunpack.c.h.bf16 %v120
    %v924 = vunpack.c.l.bf16 %v121
    %v925 = vunpack.c.l.bf16 %v122
    %v926 = vunpack.c.h.bf16 %v122
    %v927 = vunpack.c.l.bf16 %v123
    %v928 = vunpack.c.l.bf16 %v124
    %v929 = vunpack.c.h.bf16 %v124
    %v930 = vunpack.c.l.bf16 %v125
    %v931 = vunpack.c.l.bf16 %v126
    %v932 = vunpack.c.h.bf16 %v126
    %v933 = vunpack.c.l.bf16 %v127
    %v934 = vunpack.c.l.bf16 %v128
    %v935 = vunpack.c.h.bf16 %v128
    %v936 = vunpack.c.l.bf16 %v129
    %v937 = vunpack.c.l.bf16 %v130
    %v938 = vunpack.c.h.bf16 %v130
    %v939 = vunpack.c.l.bf16 %v131
    %v940 = vunpack.c.l.bf16 %v132
    %v941 = vunpack.c.h.bf16 %v132
    %v942 = vunpack.c.l.bf16 %v133
    %v943 = vunpack.c.l.bf16 %v134
    %v944 = vunpack.c.h.bf16 %v134
    %v945 = vunpack.c.l.bf16 %v135
    %v946 = vunpack.c.l.bf16 %v136
    %v947 = vunpack.c.h.bf16 %v136
    %v948 = vunpack.c.l.bf16 %v137
    %v949 = vunpack.c.l.bf16 %v138
    %v950 = vunpack.c.h.bf16 %v138
    %v951 = vunpack.c.l.bf16 %v139
    %v952 = vunpack.c.l.bf16 %v140
    %v953 = vunpack.c.h.bf16 %v140
    %v954 = vunpack.c.l.bf16 %v141
    %v955 = vunpack.c.l.bf16 %v142
    %v956 = vunpack.c.h.bf16 %v142
    %v957 = vunpack.c.l.bf16 %v143
    %v958 = vunpack.c.l.bf16 %v144
    %v959 = vunpack.c.h.bf16 %v144
    %v960 = vunpack.c.l.bf16 %v145
    %v961 = vunpack.c.l.bf16 %v146
    %v962 = vunpack.c.h.bf16 %v146
    %v963 = vunpack.c.l.bf16 %v147
    %v964 = vunpack.c.l.bf16 %v148
    %v965 = vunpack.c.h.bf16 %v148
    %v966 = vunpack.c.l.bf16 %v149
    %v967 = vunpack.c.l.bf16 %v150
    %v968 = vunpack.c.h.bf16 %v150
    %v969 = vunpack.c.l.bf16 %v151
    %v970 = vunpack.c.l.bf16 %v152
    %v971 = vunpack.c.h.bf16 %v152
    %v972 = vunpack.c.l.bf16 %v153
    %v973 = vunpack.c.l.bf16 %v154
    %v974 = vunpack.c.h.bf16 %v154
    %v975 = vunpack.c.l.bf16 %v155
    %v976 = vunpack.c.l.bf16 %v156
    %v977 = vunpack.c.h.bf16 %v156
    %v978 = vunpack.c.l.bf16 %v157
    %v979 = vunpack.c.l.bf16 %v158
    %v980 = vunpack.c.h.bf16 %v158
    %v981 = vunpack.c.l.bf16 %v159
    %v982 = vunpack.c.l.bf16 %v160
    %v983 = vunpack.c.h.bf16 %v160
    %v984 = vunpack.c.l.bf16 %v161
    %v985 = vunpack.c.l.bf16 %v162
    %v986 = vunpack.c.h.bf16 %v162
    %v987 = vunpack.c.l.bf16 %v163
    %v988 = vunpack.c.l.bf16 %v164
    %v989 = vunpack.c.h.bf16 %v164
    %v990 = vunpack.c.l.bf16 %v165
    %v991 = vunpack.c.l.bf16 %v166
    %v992 = vunpack.c.h.bf16 %v166
    %v993 = vunpack.c.l.bf16 %v167
    %v994 = vunpack.c.l.bf16 %v168
    %v995 = vunpack.c.h.bf16 %v168
    %v996 = vunpack.c.l.bf16 %v169
    %v997 = vunpack.c.l.bf16 %v170
    %v998 = vunpack.c.h.bf16 %v170
    %v999 = vunpack.c.l.bf16 %v171
    %v1000 = vunpack.c.l.bf16 %v172
    %v1001 = vunpack.c.h.bf16 %v172
    %v1002 = vunpack.c.l.bf16 %v173
    %v1003 = vunpack.c.l.bf16 %v174
    %v1004 = vunpack.c.h.bf16 %v174
    %v1005 = vunpack.c.l.bf16 %v175
    %v1006 = vunpack.c.l.bf16 %v176
    %v1007 = vunpack.c.h.bf16 %v176
    %v1008 = vunpack.c.l.bf16 %v177
    %v1009 = vunpack.c.l.bf16 %v178
    %v1010 = vunpack.c.h.bf16 %v178
    %v1011 = vunpack.c.l.bf16 %v179
    %v1012 = vunpack.c.l.bf16 %v180
    %v1013 = vunpack.c.h.bf16 %v180
    %v1014 = vunpack.c.l.bf16 %v181
    %v1015 = vunpack.c.l.bf16 %v182
    %v1016 = vunpack.c.h.bf16 %v182
    %v1017 = vunpack.c.l.bf16 %v183
    %v1018 = vunpack.c.l.bf16 %v184
    %v1019 = vunpack.c.h.bf16 %v184
    %v1020 = vunpack.c.l.bf16 %v185
    %v1021 = vunpack.c.l.bf16 %v186
    %v1022 = vunpack.c.h.bf16 %v186
    %v1023 = vunpack.c.l.bf16 %v187
    %v1024 = vunpack.c.l.bf16 %v188
    %v1025 = vunpack.c.h.bf16 %v188
    %v1026 = vunpack.c.l.bf16 %v189
    %v1027 = vunpack.c.l.bf16 %v190
    %v1028 = vunpack.c.h.bf16 %v190
    %v1029 = vunpack.c.l.bf16 %v191
    %v1030 = vunpack.c.l.bf16 %v192
    %v1031 = vunpack.c.h.bf16 %v192
    %v1032 = vunpack.c.l.bf16 %v193
    %v1033 = vunpack.c.l.bf16 %v194
    %v1034 = vunpack.c.h.bf16 %v194
    %v1035 = vunpack.c.l.bf16 %v195
    %v1036 = vunpack.c.l.bf16 %v196
    %v1037 = vunpack.c.h.bf16 %v196
    %v1038 = vunpack.c.l.bf16 %v197
    %v1039 = vunpack.c.l.bf16 %v198
    %v1040 = vunpack.c.h.bf16 %v198
    %v1041 = vunpack.c.l.bf16 %v199
    %v1042 = vunpack.c.l.bf16 %v200
    %v1043 = vunpack.c.h.bf16 %v200
    %v1044 = vunpack.c.l.bf16 %v201
    %v1045 = vunpack.c.l.bf16 %v202
    %v1046 = vunpack.c.h.bf16 %v202
    %v1047 = vunpack.c.l.bf16 %v203
    %v1048 = vunpack.c.l.bf16 %v204
    %v1049 = vunpack.c.h.bf16 %v204
    %v1050 = vunpack.c.l.bf16 %v205
    %v1051 = vunpack.c.l.bf16 %v206
    %v1052 = vunpack.c.h.bf16 %v206
    %v1053 = vunpack.c.l.bf16 %v207
    %v1054 = vunpack.c.l.bf16 %v208
    %v1055 = vunpack.c.h.bf16 %v208
    %v1056 = vunpack.c.l.bf16 %v209
    %v1057 = vunpack.c.l.bf16 %v210
    %v1058 = vunpack.c.h.bf16 %v210
    %v1059 = vunpack.c.l.bf16 %v211
    %v1060 = vunpack.c.l.bf16 %v212
    %v1061 = vunpack.c.h.bf16 %v212
    %v1062 = vunpack.c.l.bf16 %v213
    %v1063 = vunpack.c.l.bf16 %v214
    %v1064 = vunpack.c.h.bf16 %v214
    %v1065 = vunpack.c.l.bf16 %v215
    %v1066 = vunpack.c.l.bf16 %v216
    %v1067 = vunpack.c.h.bf16 %v216
    %v1068 = vunpack.c.l.bf16 %v217
    %v1069 = vunpack.c.l.bf16 %v218
    %v1070 = vunpack.c.h.bf16 %v218
    %v1071 = vunpack.c.l.bf16 %v219
    %v1072 = vunpack.c.l.bf16 %v220
    %v1073 = vunpack.c.h.bf16 %v220
    %v1074 = vunpack.c.l.bf16 %v221
    %v1075 = vunpack.c.l.bf16 %v222
    %v1076 = vunpack.c.h.bf16 %v222
    %v1077 = vunpack.c.l.bf16 %v223
    %v1078 = vunpack.c.l.bf16 %v224
    %v1079 = vunpack.c.h.bf16 %v224
    %v1080 = vunpack.c.l.bf16 %v225
    %v1081 = vunpack.c.l.bf16 %v226
    %v1082 = vunpack.c.h.bf16 %v226
    %v1083 = vunpack.c.l.bf16 %v227
    %v1084 = vunpack.c.l.bf16 %v228
    %v1085 = vunpack.c.h.bf16 %v228
    %v1086 = vunpack.c.l.bf16 %v229
    %v1087 = vunpack.c.l.bf16 %v230
    %v1088 = vunpack.c.h.bf16 %v230
    %v1089 = vunpack.c.l.bf16 %v231
    %v1090 = vunpack.c.l.bf16 %v232
    %v1091 = vunpack.c.h.bf16 %v232
    %v1092 = vunpack.c.l.bf16 %v233
    %v1093 = vunpack.c.l.bf16 %v234
    %v1094 = vunpack.c.h.bf16 %v234
    %v1095 = vunpack.c.l.bf16 %v235
    %v1096 = vunpack.c.l.bf16 %v236
    %v1097 = vunpack.c.h.bf16 %v236
    %v1098 = vunpack.c.l.bf16 %v237
    %v1099 = vunpack.c.l.bf16 %v238
    %v1100 = vunpack.c.h.bf16 %v238
    %v1101 = vunpack.c.l.bf16 %v239
    %v1102 = vunpack.c.l.bf16 %v240
    %v1103 = vunpack.c.h.bf16 %v240
    %v1104 = vunpack.c.l.bf16 %v241
    %v1105 = vunpack.c.l.bf16 %v242
    %v1106 = vunpack.c.h.bf16 %v242
    %v1107 = vunpack.c.l.bf16 %v243
    %v1108 = vunpack.c.l.bf16 %v244
    %v1109 = vunpack.c.h.bf16 %v244
    %v1110 = vunpack.c.l.bf16 %v245
    %v1111 = vunpack.c.l.bf16 %v246
    %v1112 = vunpack.c.h.bf16 %v246
    %v1113 = vunpack.c.l.bf16 %v247
    %v1114 = vunpack.c.l.bf16 %v248
    %v1115 = vunpack.c.h.bf16 %v248
    %v1116 = vunpack.c.l.bf16 %v249
    %v1117 = vunpack.c.l.bf16 %v250
    %v1118 = vunpack.c.h.bf16 %v250
    %v1119 = vunpack.c.l.bf16 %v251
    %v1120 = vunpack.c.l.bf16 %v252
    %v1121 = vunpack.c.h.bf16 %v252
    %v1122 = vunpack.c.l.bf16 %v253
    %v1123 = vunpack.c.l.bf16 %v254
    %v1124 = vunpack.c.h.bf16 %v254
    %v1125 = vunpack.c.l.bf16 %v255
    %v1126 = vunpack.c.l.bf16 %v256
    %v1127 = vunpack.c.h.bf16 %v256
    %v1128 = vunpack.c.l.bf16 %v257
    %v1129 = vunpack.c.l.bf16 %v258
    %v1130 = vunpack.c.h.bf16 %v258
    %v1131 = vunpack.c.l.bf16 %v259
    %v1132 = vunpack.c.l.bf16 %v260
    %v1133 = vunpack.c.h.bf16 %v260
    %v1134 = vunpack.c.l.bf16 %v261
    %v1135 = vunpack.c.l.bf16 %v262
    %v1136 = vunpack.c.h.bf16 %v262
    %v1137 = vunpack.c.l.bf16 %v263
    %v1138 = vunpack.c.l.bf16 %v264
    %v1139 = vunpack.c.h.bf16 %v264
    %v1140 = vunpack.c.l.bf16 %v265
    %v1141 = vunpack.c.l.bf16 %v266
    %v1142 = vunpack.c.h.bf16 %v266
    %v1143 = vunpack.c.l.bf16 %v267
    %v1144 = vunpack.c.l.bf16 %v268
    %v1145 = vunpack.c.h.bf16 %v268
    %v1146 = vunpack.c.l.bf16 %v269
    %v1147 = vunpack.c.l.bf16 %v270
    %v1148 = vunpack.c.h.bf16 %v270
    %v1149 = vunpack.c.l.bf16 %v271
    %v1150 = vunpack.c.l.bf16 %v272
    %v1151 = vunpack.c.h.bf16 %v272
    %v1152 = vunpack.c.l.bf16 %v273
    %v1153 = vunpack.c.l.bf16 %v274
    %v1154 = vunpack.c.h.bf16 %v274
    %v1155 = vunpack.c.l.bf16 %v275
    %v1156 = vunpack.c.l.bf16 %v276
    %v1157 = vunpack.c.h.bf16 %v276
    %v1158 = vunpack.c.l.bf16 %v277
    %v1159 = vunpack.c.l.bf16 %v278
    %v1160 = vunpack.c.h.bf16 %v278
    %v1161 = vunpack.c.l.bf16 %v279
    %v1162 = vunpack.c.l.bf16 %v280
    %v1163 = vunpack.c.h.bf16 %v280
    %v1164 = vunpack.c.l.bf16 %v281
    %v1165 = vunpack.c.l.bf16 %v282
    %v1166 = vunpack.c.h.bf16 %v282
    %v1167 = vunpack.c.l.bf16 %v283
    %v1168 = vunpack.c.l.bf16 %v284
    %v1169 = vunpack.c.h.bf16 %v284
    %v1170 = vunpack.c.l.bf16 %v285
    %v1171 = vunpack.c.l.bf16 %v286
    %v1172 = vunpack.c.h.bf16 %v286
    %v1173 = vunpack.c.l.bf16 %v287
    %v1174 = vunpack.c.l.bf16 %v288
    %v1175 = vunpack.c.h.bf16 %v288
    %v1176 = vunpack.c.l.bf16 %v289
    %v1177 = vunpack.c.l.bf16 %v290
    %v1178 = vunpack.c.h.bf16 %v290
    %v1179 = vunpack.c.l.bf16 %v291
    %v1180 = vunpack.c.l.bf16 %v292
    %v1181 = vunpack.c.h.bf16 %v292
    %v1182 = vunpack.c.l.bf16 %v293
    %v1183 = vunpack.c.l.bf16 %v294
    %v1184 = vunpack.c.h.bf16 %v294
    %v1185 = vunpack.c.l.bf16 %v295
    %v1186 = vunpack.c.l.bf16 %v296
    %v1187 = vunpack.c.h.bf16 %v296
    %v1188 = vunpack.c.l.bf16 %v297
    %v1189 = vunpack.c.l.bf16 %v298
    %v1190 = vunpack.c.h.bf16 %v298
    %v1191 = vunpack.c.l.bf16 %v299
    %v1192 = vunpack.c.l.bf16 %v300
    %v1193 = vunpack.c.h.bf16 %v300
    %v1194 = vunpack.c.l.bf16 %v301
    %v1195 = vunpack.c.l.bf16 %v302
    %v1196 = vunpack.c.h.bf16 %v302
    %v1197 = vunpack.c.l.bf16 %v303
    %v1198 = vunpack.c.l.bf16 %v304
    %v1199 = vunpack.c.h.bf16 %v304
    %v1200 = vunpack.c.l.bf16 %v305
    %v1201 = vunpack.c.l.bf16 %v306
    %v1202 = vunpack.c.h.bf16 %v306
    %v1203 = vunpack.c.l.bf16 %v307
    %v1204 = vunpack.c.l.bf16 %v308
    %v1205 = vunpack.c.h.bf16 %v308
    %v1206 = vunpack.c.l.bf16 %v309
    %v1207 = vunpack.c.l.bf16 %v310
    %v1208 = vunpack.c.h.bf16 %v310
    %v1209 = vunpack.c.l.bf16 %v311
    %v1210 = vunpack.c.l.bf16 %v312
    %v1211 = vunpack.c.h.bf16 %v312
    %v1212 = vunpack.c.l.bf16 %v313
    %v1213 = vunpack.c.l.bf16 %v314
    %v1214 = vunpack.c.h.bf16 %v314
    %v1215 = vunpack.c.l.bf16 %v315
    %v1216 = vunpack.c.l.bf16 %v316
    %v1217 = vunpack.c.h.bf16 %v316
    %v1218 = vunpack.c.l.bf16 %v317
    %v1219 = vunpack.c.l.bf16 %v318
    %v1220 = vunpack.c.h.bf16 %v318
    %v1221 = vunpack.c.l.bf16 %v319
    %v1222 = vunpack.c.l.bf16 %v320
    %v1223 = vunpack.c.h.bf16 %v320
    %v1224 = vunpack.c.l.bf16 %v321
    %v1225 = vunpack.c.l.bf16 %v322
    %v1226 = vunpack.c.h.bf16 %v322
    %v1227 = vunpack.c.l.bf16 %v323
    %v1228 = vunpack.c.l.bf16 %v324
    %v1229 = vunpack.c.h.bf16 %v324
    %v1230 = vunpack.c.l.bf16 %v325
    %v1231 = vunpack.c.l.bf16 %v326
    %v1232 = vunpack.c.h.bf16 %v326
    %v1233 = vunpack.c.l.bf16 %v327
    %v1234 = vunpack.c.l.bf16 %v328
    %v1235 = vunpack.c.h.bf16 %v328
    %v1236 = vunpack.c.l.bf16 %v329
    %v1237 = vunpack.c.l.bf16 %v330
    %v1238 = vunpack.c.h.bf16 %v330
    %v1239 = vunpack.c.l.bf16 %v331
    %v1240 = vunpack.c.l.bf16 %v332
    %v1241 = vunpack.c.h.bf16 %v332
    %v1242 = vunpack.c.l.bf16 %v333
    %v1243 = vunpack.c.l.bf16 %v334
    %v1244 = vunpack.c.h.bf16 %v334
    %v1245 = vunpack.c.l.bf16 %v335
    %v1246 = vunpack.c.l.bf16 %v336
    %v1247 = vunpack.c.h.bf16 %v336
    %v1248 = vunpack.c.l.bf16 %v337
    %v1249 = vunpack.c.l.bf16 %v338
    %v1250 = vunpack.c.h.bf16 %v338
    %v1251 = vunpack.c.l.bf16 %v339
    %v1252 = vunpack.c.l.bf16 %v340
    %v1253 = vunpack.c.h.bf16 %v340
    %v1254 = vunpack.c.l.bf16 %v341
    %v1255 = vunpack.c.l.bf16 %v342
    %v1256 = vunpack.c.h.bf16 %v342
    %v1257 = vunpack.c.l.bf16 %v343
    %v1258 = vunpack.c.l.bf16 %v344
    %v1259 = vunpack.c.h.bf16 %v344
    %v1260 = vunpack.c.l.bf16 %v345
    %v1261 = vunpack.c.l.bf16 %v346
    %v1262 = vunpack.c.h.bf16 %v346
    %v1263 = vunpack.c.l.bf16 %v347
    %v1264 = vunpack.c.l.bf16 %v348
    %v1265 = vunpack.c.h.bf16 %v348
    %v1266 = vunpack.c.l.bf16 %v349
    %v1267 = vunpack.c.l.bf16 %v350
    %v1268 = vunpack.c.h.bf16 %v350
    %v1269 = vunpack.c.l.bf16 %v351
    %v1270 = vunpack.c.l.bf16 %v352
    %v1271 = vunpack.c.h.bf16 %v352
    %v1272 = vunpack.c.l.bf16 %v353
    %v1273 = vunpack.c.l.bf16 %v354
    %v1274 = vunpack.c.h.bf16 %v354
    %v1275 = vunpack.c.l.bf16 %v355
    %v1276 = vunpack.c.l.bf16 %v356
    %v1277 = vunpack.c.h.bf16 %v356
    %v1278 = vunpack.c.l.bf16 %v357
    %v1279 = vunpack.c.l.bf16 %v358
    %v1280 = vunpack.c.h.bf16 %v358
    %v1281 = vunpack.c.l.bf16 %v359
    %v1282 = vunpack.c.l.bf16 %v360
    %v1283 = vunpack.c.h.bf16 %v360
    %v1284 = vunpack.c.l.bf16 %v361
    %v1285 = vunpack.c.l.bf16 %v362
    %v1286 = vunpack.c.h.bf16 %v362
    %v1287 = vunpack.c.l.bf16 %v363
    %v1288 = vunpack.c.l.bf16 %v364
    %v1289 = vunpack.c.h.bf16 %v364
    %v1290 = vunpack.c.l.bf16 %v365
    %v1291 = vunpack.c.l.bf16 %v366
    %v1292 = vunpack.c.h.bf16 %v366
    %v1293 = vunpack.c.l.bf16 %v367
    %v1294 = vunpack.c.l.bf16 %v368
    %v1295 = vunpack.c.h.bf16 %v368
    %v1296 = vunpack.c.l.bf16 %v369
    %v1297 = vunpack.c.l.bf16 %v370
    %v1298 = vunpack.c.h.bf16 %v370
    %v1299 = vunpack.c.l.bf16 %v371
    %v1300 = vunpack.c.l.bf16 %v372
    %v1301 = vunpack.c.h.bf16 %v372
    %v1302 = vunpack.c.l.bf16 %v373
    %v1303 = vunpack.c.l.bf16 %v374
    %v1304 = vunpack.c.h.bf16 %v374
    %v1305 = vunpack.c.l.bf16 %v375
    %v1306 = vunpack.c.l.bf16 %v376
    %v1307 = vunpack.c.h.bf16 %v376
    %v1308 = vunpack.c.l.bf16 %v377
    %v1309 = vunpack.c.l.bf16 %v378
    %v1310 = vunpack.c.h.bf16 %v378
    %v1311 = vunpack.c.l.bf16 %v379
    %v1312 = vunpack.c.l.bf16 %v380
    %v1313 = vunpack.c.h.bf16 %v380
    %v1314 = vunpack.c.l.bf16 %v381
    %v1315 = vunpack.c.l.bf16 %v382
    %v1316 = vunpack.c.h.bf16 %v382
    %v1317 = vunpack.c.l.bf16 %v383
    %v1318 = vunpack.c.l.bf16 %v384
    %v1319 = vunpack.c.h.bf16 %v384
    %v1320 = vunpack.c.l.bf16 %v385
    %v1321 = vunpack.c.l.bf16 %v386
    %v1322 = vunpack.c.h.bf16 %v386
    %v1323 = vunpack.c.l.bf16 %v387
    %v1324 = vunpack.c.l.bf16 %v388
    %v1325 = vunpack.c.h.bf16 %v388
    %v1326 = vunpack.c.l.bf16 %v389
    %v1327 = vunpack.c.l.bf16 %v390
    %v1328 = vunpack.c.h.bf16 %v390
    %v1329 = vunpack.c.l.bf16 %v391
    %v1330 = vunpack.c.l.bf16 %v392
    %v1331 = vunpack.c.h.bf16 %v392
    %v1332 = vunpack.c.l.bf16 %v393
    %v1333 = vunpack.c.l.bf16 %v394
    %v1334 = vunpack.c.h.bf16 %v394
    %v1335 = vunpack.c.l.bf16 %v395
    %v1336 = vunpack.c.l.bf16 %v396
    %v1337 = vunpack.c.h.bf16 %v396
    %v1338 = vunpack.c.l.bf16 %v397
    %v1339 = vunpack.c.l.bf16 %v398
    %v1340 = vunpack.c.h.bf16 %v398
    %v1341 = vunpack.c.l.bf16 %v399
    %v1342 = vunpack.c.l.bf16 %v400
    %v1343 = vunpack.c.h.bf16 %v400
    %v1344 = vunpack.c.l.bf16 %v401
    %v1345 = vunpack.c.l.bf16 %v402
    %v1346 = vunpack.c.h.bf16 %v402
    %v1347 = vunpack.c.l.bf16 %v403
    %v1348 = vunpack.c.l.bf16 %v404
    %v1349 = vunpack.c.h.bf16 %v404
    %v1350 = vunpack.c.l.bf16 %v405
    %v1351 = vunpack.c.l.bf16 %v406
    %v1352 = vunpack.c.h.bf16 %v406
    %v1353 = vunpack.c.l.bf16 %v407
    %v1354 = vunpack.c.l.bf16 %v408
    %v1355 = vunpack.c.h.bf16 %v408
    %v1356 = vunpack.c.l.bf16 %v409
    %v1357 = vunpack.c.l.bf16 %v410
    %v1358 = vunpack.c.h.bf16 %v410
    %v1359 = vunpack.c.l.bf16 %v411
    %v1360 = vunpack.c.l.bf16 %v412
    %v1361 = vunpack.c.h.bf16 %v412
    %v1362 = vunpack.c.l.bf16 %v413
    %v1363 = vunpack.c.l.bf16 %v414
    %v1364 = vunpack.c.h.bf16 %v414
    %v1365 = vunpack.c.l.bf16 %v415
    %v1366 = vunpack.c.l.bf16 %v416
    %v1367 = vunpack.c.h.bf16 %v416
    %v1368 = vunpack.c.l.bf16 %v417
    %v1369 = vunpack.c.l.bf16 %v418
    %v1370 = vunpack.c.h.bf16 %v418
    %v1371 = vunpack.c.l.bf16 %v419
    %v1372 = vunpack.c.l.bf16 %v420
    %v1373 = vunpack.c.h.bf16 %v420
    %v1374 = vunpack.c.l.bf16 %v421
    %v1375 = vunpack.c.l.bf16 %v422
    %v1376 = vunpack.c.h.bf16 %v422
    %v1377 = vunpack.c.l.bf16 %v423
    %v1378 = vunpack.c.l.bf16 %v424
    %v1379 = vunpack.c.h.bf16 %v424
    %v1380 = vunpack.c.l.bf16 %v425
    %v1381 = vunpack.c.l.bf16 %v426
    %v1382 = vunpack.c.h.bf16 %v426
    %v1383 = vunpack.c.l.bf16 %v427
    %v1384 = vunpack.c.l.bf16 %v428
    %v1385 = vunpack.c.h.bf16 %v428
    %v1386 = vunpack.c.l.bf16 %v429
    %v1387 = vunpack.c.l.bf16 %v430
    %v1388 = vunpack.c.h.bf16 %v430
    %v1389 = vunpack.c.l.bf16 %v431
    %v1390 = vunpack.c.l.bf16 %v432
    %v1391 = vunpack.c.h.bf16 %v432
    %v1392 = vunpack.c.l.bf16 %v433
    %v1393 = vunpack.c.l.bf16 %v434
    %v1394 = vunpack.c.h.bf16 %v434
    %v1395 = vunpack.c.l.bf16 %v435
    %v1396 = vunpack.c.l.bf16 %v436
    %v1397 = vunpack.c.h.bf16 %v436
    %v1398 = vunpack.c.l.bf16 %v437
    %v1399 = vunpack.c.l.bf16 %v438
    %v1400 = vunpack.c.h.bf16 %v438
    %v1401 = vunpack.c.l.bf16 %v439
    %v1402 = vunpack.c.l.bf16 %v440
    %v1403 = vunpack.c.h.bf16 %v440
    %v1404 = vunpack.c.l.bf16 %v441
    %v1405 = vunpack.c.l.bf16 %v442
    %v1406 = vunpack.c.h.bf16 %v442
    %v1407 = vunpack.c.l.bf16 %v443
    %v1408 = vunpack.c.l.bf16 %v444
    %v1409 = vunpack.c.h.bf16 %v444
    %v1410 = vunpack.c.l.bf16 %v445
    %v1411 = vunpack.c.l.bf16 %v446
    %v1412 = vunpack.c.h.bf16 %v446
    %v1413 = vunpack.c.l.bf16 %v447
    %v1414 = vunpack.c.l.bf16 %v448
    %v1415 = vunpack.c.h.bf16 %v448
    %v1416 = vunpack.c.l.bf16 %v449
    %v1417 = vunpack.c.l.bf16 %v450
    %v1418 = vunpack.c.h.bf16 %v450
    %v1419 = vunpack.c.l.bf16 %v451
    %v1420 = vunpack.c.l.bf16 %v452
    %v1421 = vunpack.c.h.bf16 %v452
    %v1422 = vunpack.c.l.bf16 %v453
    %v1423 = vunpack.c.l.bf16 %v454
    %v1424 = vunpack.c.h.bf16 %v454
    %v1425 = vunpack.c.l.bf16 %v455
    %v1426 = vunpack.c.l.bf16 %v456
    %v1427 = vunpack.c.h.bf16 %v456
    %v1428 = vunpack.c.l.bf16 %v457
    %v1429 = vunpack.c.l.bf16 %v458
    %v1430 = vunpack.c.h.bf16 %v458
    %v1431 = vunpack.c.l.bf16 %v459
    %v1432 = vunpack.c.l.bf16 %v460
    %v1433 = vunpack.c.h.bf16 %v460
    %v1434 = vunpack.c.l.bf16 %v461
    %v1435 = vunpack.c.l.bf16 %v462
    %v1436 = vunpack.c.h.bf16 %v462
    %v1437 = vunpack.c.l.bf16 %v463
    %v1438 = vunpack.c.l.bf16 %v464
    %v1439 = vunpack.c.h.bf16 %v464
    %v1440 = vunpack.c.l.bf16 %v465
    %v1441 = vunpack.c.l.bf16 %v466
    %v1442 = vunpack.c.h.bf16 %v466
    %v1443 = vunpack.c.l.bf16 %v467
    %v1444 = vunpack.c.l.bf16 %v468
    %v1445 = vunpack.c.h.bf16 %v468
    %v1446 = vunpack.c.l.bf16 %v469
    %v1447 = vunpack.c.l.bf16 %v470
    %v1448 = vunpack.c.h.bf16 %v470
    %v1449 = vunpack.c.l.bf16 %v471
    %v1450 = vunpack.c.l.bf16 %v472
    %v1451 = vunpack.c.h.bf16 %v472
    %v1452 = vunpack.c.l.bf16 %v473
    %v1453 = vunpack.c.l.bf16 %v474
    %v1454 = vunpack.c.h.bf16 %v474
    %v1455 = vunpack.c.l.bf16 %v475
    %v1456 = vunpack.c.l.bf16 %v476
    %v1457 = vunpack.c.h.bf16 %v476
    %v1458 = vunpack.c.l.bf16 %v477
    %v1459 = vunpack.c.l.bf16 %v478
    %v1460 = vunpack.c.h.bf16 %v478
    %v1461 = vunpack.c.l.bf16 %v479
    %v1462 = vunpack.c.l.bf16 %v480
    %v1463 = vunpack.c.h.bf16 %v480
    %v1464 = vunpack.c.l.bf16 %v481
    %v1465 = vunpack.c.l.bf16 %v482
    %v1466 = vunpack.c.h.bf16 %v482
    %v1467 = vunpack.c.l.bf16 %v483
    %v1468 = vunpack.c.l.bf16 %v484
    %v1469 = vunpack.c.h.bf16 %v484
    %v1470 = vunpack.c.l.bf16 %v485
    %v1471 = vunpack.c.l.bf16 %v486
    %v1472 = vunpack.c.h.bf16 %v486
    %v1473 = vunpack.c.l.bf16 %v487
    %v1474 = vunpack.c.l.bf16 %v488
    %v1475 = vunpack.c.h.bf16 %v488
    %v1476 = vunpack.c.l.bf16 %v489
    %v1477 = vunpack.c.l.bf16 %v490
    %v1478 = vunpack.c.h.bf16 %v490
    %v1479 = vunpack.c.l.bf16 %v491
    %v1480 = vunpack.c.l.bf16 %v492
    %v1481 = vunpack.c.h.bf16 %v492
    %v1482 = vunpack.c.l.bf16 %v493
    %v1483 = vunpack.c.l.bf16 %v494
    %v1484 = vunpack.c.h.bf16 %v494
    %v1485 = vunpack.c.l.bf16 %v495
    %v1486 = vunpack.c.l.bf16 %v496
    %v1487 = vunpack.c.h.bf16 %v496
    %v1488 = vunpack.c.l.bf16 %v497
    %v1489 = vunpack.c.l.bf16 %v498
    %v1490 = vunpack.c.h.bf16 %v498
    %v1491 = vunpack.c.l.bf16 %v499
    %v1492 = vunpack.c.l.bf16 %v500
    %v1493 = vunpack.c.h.bf16 %v500
    %v1494 = vunpack.c.l.bf16 %v501
    %v1495 = vunpack.c.l.bf16 %v502
    %v1496 = vunpack.c.h.bf16 %v502
    %v1497 = vunpack.c.l.bf16 %v503
    %v1498 = vunpack.c.l.bf16 %v504
    %v1499 = vunpack.c.h.bf16 %v504
    %v1500 = vunpack.c.l.bf16 %v505
    %v1501 = vunpack.c.l.bf16 %v506
    %v1502 = vunpack.c.h.bf16 %v506
    %v1503 = vunpack.c.l.bf16 %v507
    %v1504 = vunpack.c.l.bf16 %v508
    %v1505 = vunpack.c.h.bf16 %v508
    %v1506 = vunpack.c.l.bf16 %v509
    %v1507 = vunpack.c.l.bf16 %v510
    %v1508 = vunpack.c.h.bf16 %v510
    %v1509 = vunpack.c.l.bf16 %v511
    %v1510 = vunpack.c.l.bf16 %v512
    %v1511 = vunpack.c.h.bf16 %v512
    %v1512 = vunpack.c.l.bf16 %v513
    %v1513 = vunpack.c.l.bf16 %v514
    %v1514 = vunpack.c.h.bf16 %v514
    %v1515 = vunpack.c.l.bf16 %v515
    %v1516 = vunpack.c.l.bf16 %v516
    %v1517 = vunpack.c.h.bf16 %v516
    %v1518 = vunpack.c.l.bf16 %v517
    %v1519 = vunpack.c.l.bf16 %v518
    %v1520 = vunpack.c.h.bf16 %v518
    %v1521 = vunpack.c.l.bf16 %v519
    %v1522 = vunpack.c.l.bf16 %v520
    %v1523 = vunpack.c.h.bf16 %v520
    %v1524 = vunpack.c.l.bf16 %v521
    %v1525 = vunpack.c.l.bf16 %v522
    %v1526 = vunpack.c.h.bf16 %v522
    %v1527 = vunpack.c.l.bf16 %v523
    %v1528 = vunpack.c.l.bf16 %v524
    %v1529 = vunpack.c.h.bf16 %v524
    %v1530 = vunpack.c.l.bf16 %v525
    %v1531 = vunpack.c.l.bf16 %v526
    %v1532 = vunpack.c.h.bf16 %v526
    %v1533 = vunpack.c.l.bf16 %v527
    %v1534 = vunpack.c.l.bf16 %v528
    %v1535 = vunpack.c.h.bf16 %v528
    %v1536 = vunpack.c.l.bf16 %v529
    %v1537 = vunpack.c.l.bf16 %v530
    %v1538 = vunpack.c.h.bf16 %v530
    %v1539 = vunpack.c.l.bf16 %v531
    %v1540 = vunpack.c.l.bf16 %v532
    %v1541 = vunpack.c.h.bf16 %v532
    %v1542 = vunpack.c.l.bf16 %v533
    %v1543 = vunpack.c.l.bf16 %v534
    %v1544 = vunpack.c.h.bf16 %v534
    %v1545 = vunpack.c.l.bf16 %v535
    %v1546 = vunpack.c.l.bf16 %v536
    %v1547 = vunpack.c.h.bf16 %v536
    %v1548 = vunpack.c.l.bf16 %v537
    %v1549 = vunpack.c.l.bf16 %v538
    %v1550 = vunpack.c.h.bf16 %v538
    %v1551 = vunpack.c.l.bf16 %v539
    %v1552 = vunpack.c.l.bf16 %v540
    %v1553 = vunpack.c.h.bf16 %v540
    %v1554 = vunpack.c.l.bf16 %v541
    %v1555 = vunpack.c.l.bf16 %v542
    %v1556 = vunpack.c.h.bf16 %v542
    %v1557 = vunpack.c.l.bf16 %v543
    %v1558 = vunpack.c.l.bf16 %v544
    %v1559 = vunpack.c.h.bf16 %v544
    %v1560 = vunpack.c.l.bf16 %v545
    %v1561 = vunpack.c.l.bf16 %v546
    %v1562 = vunpack.c.h.bf16 %v546
    %v1563 = vunpack.c.l.bf16 %v547
    %v1564 = vunpack.c.l.bf16 %v548
    %v1565 = vunpack.c.h.bf16 %v548
    %v1566 = vunpack.c.l.bf16 %v549
    %v1567 = vunpack.c.l.bf16 %v550
    %v1568 = vunpack.c.h.bf16 %v550
    %v1569 = vunpack.c.l.bf16 %v551
    %v1570 = vunpack.c.l.bf16 %v552
    %v1571 = vunpack.c.h.bf16 %v552
    %v1572 = vunpack.c.l.bf16 %v553
    %v1573 = vunpack.c.l.bf16 %v554
    %v1574 = vunpack.c.h.bf16 %v554
    %v1575 = vunpack.c.l.bf16 %v555
    %v1576 = vunpack.c.l.bf16 %v556
    %v1577 = vunpack.c.h.bf16 %v556
    %v1578 = vunpack.c.l.bf16 %v557
    %v1579 = vunpack.c.l.bf16 %v558
    %v1580 = vunpack.c.h.bf16 %v558
    %v1581 = vunpack.c.l.bf16 %v559
    %v1582 = vunpack.c.l.bf16 %v560
    %v1583 = vunpack.c.h.bf16 %v560
    %v1584 = vunpack.c.l.bf16 %v561
    %v1585 = vunpack.c.l.bf16 %v562
    %v1586 = vunpack.c.h.bf16 %v562
    %v1587 = vunpack.c.l.bf16 %v563
    %v1588 = vunpack.c.l.bf16 %v564
    %v1589 = vunpack.c.h.bf16 %v564
    %v1590 = vunpack.c.l.bf16 %v565
    %v1591 = vunpack.c.l.bf16 %v566
    %v1592 = vunpack.c.h.bf16 %v566
    %v1593 = vunpack.c.l.bf16 %v567
    %v1594 = vunpack.c.l.bf16 %v568
    %v1595 = vunpack.c.h.bf16 %v568
    %v1596 = vunpack.c.l.bf16 %v569
    %v1597 = vunpack.c.l.bf16 %v570
    %v1598 = vunpack.c.h.bf16 %v570
    %v1599 = vunpack.c.l.bf16 %v571
    %v1600 = vunpack.c.l.bf16 %v572
    %v1601 = vunpack.c.h.bf16 %v572
    %v1602 = vunpack.c.l.bf16 %v573
    %v1603 = vunpack.c.l.bf16 %v574
    %v1604 = vunpack.c.h.bf16 %v574
    %v1605 = vunpack.c.l.bf16 %v575
    %v1606 = vunpack.c.l.bf16 %v576
    %v1607 = vunpack.c.h.bf16 %v576
    %v1608 = vunpack.c.l.bf16 %v577
    %v1609 = vunpack.c.l.bf16 %v578
    %v1610 = vunpack.c.h.bf16 %v578
    %v1611 = vunpack.c.l.bf16 %v579
    %v1612 = vunpack.c.l.bf16 %v580
    %v1613 = vunpack.c.h.bf16 %v580
    %v1614 = vunpack.c.l.bf16 %v581
    %v1615 = vunpack.c.l.bf16 %v582
    %v1616 = vunpack.c.h.bf16 %v582
    %v1617 = vunpack.c.l.bf16 %v583
    %v1618 = vunpack.c.l.bf16 %v584
    %v1619 = vunpack.c.h.bf16 %v584
    %v1620 = vunpack.c.l.bf16 %v585
    %v1621 = vunpack.c.l.bf16 %v586
    %v1622 = vunpack.c.h.bf16 %v586
    %v1623 = vunpack.c.l.bf16 %v587
    %v1624 = vunpack.c.l.bf16 %v588
    %v1625 = vunpack.c.h.bf16 %v588
    %v1626 = vunpack.c.l.bf16 %v589
    %v1627 = vunpack.c.l.bf16 %v590
    %v1628 = vunpack.c.h.bf16 %v590
    %v1629 = vunpack.c.l.bf16 %v591
    %v1630 = vunpack.c.l.bf16 %v592
    %v1631 = vunpack.c.h.bf16 %v592
    %v1632 = vunpack.c.l.bf16 %v593
    %v1633 = vunpack.c.l.bf16 %v594
    %v1634 = vunpack.c.h.bf16 %v594
    %v1635 = vunpack.c.l.bf16 %v595
    %v1636 = vunpack.c.l.bf16 %v596
    %v1637 = vunpack.c.h.bf16 %v596
    %v1638 = vunpack.c.l.bf16 %v597
    %v1639 = vunpack.c.l.bf16 %v598
    %v1640 = vunpack.c.h.bf16 %v598
    %v1641 = vunpack.c.l.bf16 %v599
    %v1642 = vunpack.c.l.bf16 %v600
    %v1643 = vunpack.c.h.bf16 %v600
    %v1644 = vunpack.c.l.bf16 %v601
    %v1645 = vunpack.c.l.bf16 %v602
    %v1646 = vunpack.c.h.bf16 %v602
    %v1647 = vunpack.c.l.bf16 %v603
    %v1648 = vunpack.c.l.bf16 %v604
    %v1649 = vunpack.c.h.bf16 %v604
    %v1650 = vunpack.c.l.bf16 %v605
    %v1651 = vunpack.c.l.bf16 %v606
    %v1652 = vunpack.c.h.bf16 %v606
    %v1653 = vunpack.c.l.bf16 %v607
    %v1654 = vunpack.c.l.bf16 %v608
    %v1655 = vunpack.c.h.bf16 %v608
    %v1656 = vunpack.c.l.bf16 %v609
    %v1657 = vunpack.c.l.bf16 %v610
    %v1658 = vunpack.c.h.bf16 %v610
    %v1659 = vunpack.c.l.bf16 %v611
    %v1660 = vunpack.c.l.bf16 %v612
    %v1661 = vunpack.c.h.bf16 %v612
    %v1662 = vunpack.c.l.bf16 %v613
    %v1663 = vunpack.c.l.bf16 %v614
    %v1664 = vunpack.c.h.bf16 %v614
    %v1665 = vunpack.c.l.bf16 %v615
    %v1666 = vunpack.c.l.bf16 %v616
    %v1667 = vunpack.c.h.bf16 %v616
    %v1668 = vunpack.c.l.bf16 %v617
    %v1669 = vunpack.c.l.bf16 %v618
    %v1670 = vunpack.c.h.bf16 %v618
    %v1671 = vunpack.c.l.bf16 %v619
    %v1672 = vunpack.c.l.bf16 %v620
    %v1673 = vunpack.c.h.bf16 %v620
    %v1674 = vunpack.c.l.bf16 %v621
    %v1675 = vunpack.c.l.bf16 %v622
    %v1676 = vunpack.c.h.bf16 %v622
    %v1677 = vunpack.c.l.bf16 %v623
    %v1678 = vunpack.c.l.bf16 %v624
    %v1679 = vunpack.c.h.bf16 %v624
    %v1680 = vunpack.c.l.bf16 %v625
    %v1681 = vunpack.c.l.bf16 %v626
    %v1682 = vunpack.c.h.bf16 %v626
    %v1683 = vunpack.c.l.bf16 %v627
    %v1684 = vunpack.c.l.bf16 %v628
    %v1685 = vunpack.c.h.bf16 %v628
    %v1686 = vunpack.c.l.bf16 %v629
    %v1687 = vunpack.c.l.bf16 %v630
    %v1688 = vunpack.c.h.bf16 %v630
    %v1689 = vunpack.c.l.bf16 %v631
    %v1690 = vunpack.c.l.bf16 %v632
    %v1691 = vunpack.c.h.bf16 %v632
    %v1692 = vunpack.c.l.bf16 %v633
    %v1693 = vunpack.c.l.bf16 %v634
    %v1694 = vunpack.c.h.bf16 %v634
    %v1695 = vunpack.c.l.bf16 %v635
    %v1696 = vunpack.c.l.bf16 %v636
    %v1697 = vunpack.c.h.bf16 %v636
    %v1698 = vunpack.c.l.bf16 %v637
    %v1699 = vunpack.c.l.bf16 %v638
    %v1700 = vunpack.c.h.bf16 %v638
    %v1701 = vunpack.c.l.bf16 %v639
    %v1702 = vunpack.c.l.bf16 %v640
    %v1703 = vunpack.c.h.bf16 %v640
    %v1704 = vunpack.c.l.bf16 %v641
    %v1705 = vunpack.c.l.bf16 %v642
    %v1706 = vunpack.c.h.bf16 %v642
    %v1707 = vunpack.c.l.bf16 %v643
    %v1708 = vunpack.c.l.bf16 %v644
    %v1709 = vunpack.c.h.bf16 %v644
    %v1710 = vunpack.c.l.bf16 %v645
    %v1711 = vunpack.c.l.bf16 %v646
    %v1712 = vunpack.c.h.bf16 %v646
    %v1713 = vunpack.c.l.bf16 %v647
    %v1714 = vunpack.c.l.bf16 %v648
    %v1715 = vunpack.c.h.bf16 %v648
    %v1716 = vunpack.c.l.bf16 %v649
    %v1717 = vunpack.c.l.bf16 %v650
    %v1718 = vunpack.c.h.bf16 %v650
    %v1719 = vunpack.c.l.bf16 %v651
    %v1720 = vunpack.c.l.bf16 %v652
    %v1721 = vunpack.c.h.bf16 %v652
    %v1722 = vunpack.c.l.bf16 %v653
    %v1723 = vunpack.c.l.bf16 %v654
    %v1724 = vunpack.c.h.bf16 %v654
    %v1725 = vunpack.c.l.bf16 %v655
    %v1726 = vunpack.c.l.bf16 %v656
    %v1727 = vunpack.c.h.bf16 %v656
    %v1728 = vunpack.c.l.bf16 %v657
    %v1729 = vunpack.c.l.bf16 %v658
    %v1730 = vunpack.c.h.bf16 %v658
    %v1731 = vunpack.c.l.bf16 %v659
    %v1732 = vunpack.c.l.bf16 %v660
    %v1733 = vunpack.c.h.bf16 %v660
    %v1734 = vunpack.c.l.bf16 %v661
    %v1735 = vunpack.c.l.bf16 %v662
    %v1736 = vunpack.c.h.bf16 %v662
    %v1737 = vunpack.c.l.bf16 %v663
    %v1738 = vunpack.c.l.bf16 %v664
    %v1739 = vunpack.c.h.bf16 %v664
    %v1740 = vunpack.c.l.bf16 %v665
    %v1741 = vunpack.c.l.bf16 %v666
    %v1742 = vunpack.c.h.bf16 %v666
    %v1743 = vunpack.c.l.bf16 %v667
    %v1744 = vunpack.c.l.bf16 %v668
    %v1745 = vunpack.c.h.bf16 %v668
    %v1746 = vunpack.c.l.bf16 %v669
    %v1747 = vunpack.c.l.bf16 %v670
    %v1748 = vunpack.c.h.bf16 %v670
    %v1749 = vunpack.c.l.bf16 %v671
    %v1750 = vunpack.c.l.bf16 %v672
    %v1751 = vunpack.c.h.bf16 %v672
    %v1752 = vunpack.c.l.bf16 %v673
    %v1753 = vunpack.c.l.bf16 %v674
    %v1754 = vunpack.c.h.bf16 %v674
    %v1755 = vunpack.c.l.bf16 %v675
    %v1756 = vunpack.c.l.bf16 %v676
    %v1757 = vunpack.c.h.bf16 %v676
    %v1758 = vunpack.c.l.bf16 %v677
    %v1759 = vunpack.c.l.bf16 %v678
    %v1760 = vunpack.c.h.bf16 %v678
    %v1761 = vunpack.c.l.bf16 %v679
    %v1762 = vunpack.c.l.bf16 %v680
    %v1763 = vunpack.c.h.bf16 %v680
    %v1764 = vunpack.c.l.bf16 %v681
    %v1765 = vunpack.c.l.bf16 %v682
    %v1766 = vunpack.c.h.bf16 %v682
    %v1767 = vunpack.c.l.bf16 %v683
    %v1768 = vunpack.c.l.bf16 %v684
    %v1769 = vunpack.c.h.bf16 %v684
    %v1770 = vunpack.c.l.bf16 %v685
    %v1771 = vunpack.c.l.bf16 %v686
    %v1772 = vunpack.c.h.bf16 %v686
    %v1773 = vunpack.c.l.bf16 %v687
    %v1774 = vunpack.c.l.bf16 %v688
    %v1775 = vunpack.c.h.bf16 %v688
    %v1776 = vunpack.c.l.bf16 %v689
    %v1777 = vunpack.c.l.bf16 %v690
    %v1778 = vunpack.c.h.bf16 %v690
    %v1779 = vunpack.c.l.bf16 %v691
    %v1780 = vunpack.c.l.bf16 %v692
    %v1781 = vunpack.c.h.bf16 %v692
    %v1782 = vunpack.c.l.bf16 %v693
    %v1783 = vunpack.c.l.bf16 %v694
    %v1784 = vunpack.c.h.bf16 %v694
    %v1785 = vunpack.c.l.bf16 %v695
    %v1786 = vunpack.c.l.bf16 %v696
    %v1787 = vunpack.c.h.bf16 %v696
    %v1788 = vunpack.c.l.bf16 %v697
    %v1789 = vunpack.c.l.bf16 %v698
    %v1790 = vunpack.c.h.bf16 %v698
    %v1791 = vunpack.c.l.bf16 %v699
    %v1792 = vunpack.c.l.bf16 %v700
    %v1793 = vunpack.c.h.bf16 %v700
    %v1794 = vunpack.c.l.bf16 %v701
    %v1795 = vunpack.c.l.bf16 %v702
    %v1796 = vunpack.c.h.bf16 %v702
    %v1797 = vunpack.c.l.bf16 %v703
    %v1798 = vunpack.c.l.bf16 %v704
    %v1799 = vunpack.c.h.bf16 %v704
    %v1800 = vunpack.c.l.bf16 %v705
    %v1801 = vunpack.c.l.bf16 %v706
    %v1802 = vunpack.c.h.bf16 %v706
    %v1803 = vunpack.c.l.bf16 %v707
    %v1804 = vunpack.c.l.bf16 %v708
    %v1805 = vunpack.c.h.bf16 %v708
    %v1806 = vunpack.c.l.bf16 %v709
    %v1807 = vunpack.c.l.bf16 %v710
    %v1808 = vunpack.c.h.bf16 %v710
    %v1809 = vunpack.c.l.bf16 %v711
    %v1810 = vunpack.c.l.bf16 %v712
    %v1811 = vunpack.c.h.bf16 %v712
    %v1812 = vunpack.c.l.bf16 %v713
    %v1813 = vunpack.c.l.bf16 %v714
    %v1814 = vunpack.c.h.bf16 %v714
    %v1815 = vunpack.c.l.bf16 %v715
    %v1816 = vunpack.c.l.bf16 %v716
    %v1817 = vunpack.c.h.bf16 %v716
    %v1818 = vunpack.c.l.bf16 %v717
    %v1819 = vunpack.c.l.bf16 %v718
    %v1820 = vunpack.c.h.bf16 %v718
    %v1821 = vunpack.c.l.bf16 %v719
    %v1822 = vunpack.c.l.bf16 %v720
    %v1823 = vunpack.c.h.bf16 %v720
    %v1824 = vunpack.c.l.bf16 %v721
    %v1825 = vunpack.c.l.bf16 %v722
    %v1826 = vunpack.c.h.bf16 %v722
    %v1827 = vunpack.c.l.bf16 %v723
    %v1828 = vunpack.c.l.bf16 %v724
    %v1829 = vunpack.c.h.bf16 %v724
    %v1830 = vunpack.c.l.bf16 %v725
    %v1831 = vunpack.c.l.bf16 %v726
    %v1832 = vunpack.c.h.bf16 %v726
    %v1833 = vunpack.c.l.bf16 %v727
    %v1834 = vunpack.c.l.bf16 %v728
    %v1835 = vunpack.c.h.bf16 %v728
    %v1836 = vunpack.c.l.bf16 %v729
    %v1837 = vunpack.c.l.bf16 %v730
    %v1838 = vunpack.c.h.bf16 %v730
    %v1839 = vunpack.c.l.bf16 %v731
    %v1840 = vunpack.c.l.bf16 %v732
    %v1841 = vunpack.c.h.bf16 %v732
    %v1842 = vunpack.c.l.bf16 %v733
    %v1843 = vunpack.c.l.bf16 %v734
    %v1844 = vunpack.c.h.bf16 %v734
    %v1845 = vunpack.c.l.bf16 %v735
    %v1846 = vunpack.c.l.bf16 %v736
    %v1847 = vunpack.c.h.bf16 %v736
    %v1848 = vunpack.c.l.bf16 %v737
    %v1849 = vunpack.c.l.bf16 %v738
    %v1850 = vunpack.c.h.bf16 %v738
    %v1851 = vunpack.c.l.bf16 %v739
    %v1852 = vunpack.c.l.bf16 %v740
    %v1853 = vunpack.c.h.bf16 %v740
    %v1854 = vunpack.c.l.bf16 %v741
    %v1855 = vunpack.c.l.bf16 %v742
    %v1856 = vunpack.c.h.bf16 %v742
    %v1857 = vunpack.c.l.bf16 %v743
    %v1858 = vunpack.c.l.bf16 %v744
    %v1859 = vunpack.c.h.bf16 %v744
    %v1860 = vunpack.c.l.bf16 %v745
    %v1861 = vunpack.c.l.bf16 %v746
    %v1862 = vunpack.c.h.bf16 %v746
    %v1863 = vunpack.c.l.bf16 %v747
    %v1864 = vunpack.c.l.bf16 %v748
    %v1865 = vunpack.c.h.bf16 %v748
    %v1866 = vunpack.c.l.bf16 %v749
    %v1867 = vunpack.c.l.bf16 %v750
    %v1868 = vunpack.c.h.bf16 %v750
    %v1869 = vunpack.c.l.bf16 %v751
    %v1870 = vunpack.c.l.bf16 %v752
    %v1871 = vunpack.c.h.bf16 %v752
    %v1872 = vunpack.c.l.bf16 %v753
    %v1873 = vunpack.c.l.bf16 %v754
    %v1874 = vunpack.c.h.bf16 %v754
    %v1875 = vunpack.c.l.bf16 %v755
    %v1876 = vunpack.c.l.bf16 %v756
    %v1877 = vunpack.c.h.bf16 %v756
    %v1878 = vunpack.c.l.bf16 %v757
    %v1879 = vunpack.c.l.bf16 %v758
    %v1880 = vunpack.c.h.bf16 %v758
    %v1881 = vunpack.c.l.bf16 %v759
    %v1882 = vunpack.c.l.bf16 %v760
    %v1883 = vunpack.c.h.bf16 %v760
    %v1884 = vunpack.c.l.bf16 %v761
    %v1885 = vunpack.c.l.bf16 %v762
    %v1886 = vunpack.c.h.bf16 %v762
    %v1887 = vunpack.c.l.bf16 %v763
    %v1888 = vunpack.c.l.bf16 %v764
    %v1889 = vunpack.c.h.bf16 %v764
    %v1890 = vunpack.c.l.bf16 %v765
    %v1891 = vunpack.c.l.bf16 %v766
    %v1892 = vunpack.c.h.bf16 %v766
    %v1893 = vunpack.c.l.bf16 %v767
    %v1894 = vunpack.c.l.bf16 %v768
    %v1895 = vunpack.c.h.bf16 %v768
    %v1896 = vunpack.c.l.bf16 %v769
    %v1897 = vunpack.c.l.bf16 %v770
    %v1898 = vunpack.c.h.bf16 %v770
    %v1899 = vunpack.c.l.bf16 %v771
    %v1900 = vunpack.c.l.bf16 %v772
    %v1901 = vunpack.c.h.bf16 %v772
    %v1902 = vunpack.c.l.bf16 %v773
    %v1903 = vunpack.c.l.bf16 %v774
    %v1904 = vunpack.c.h.bf16 %v774
    %v1905 = vunpack.c.l.bf16 %v775
    %v1906 = vunpack.c.l.bf16 %v776
    %v1907 = vunpack.c.h.bf16 %v776
    %v1908 = vunpack.c.l.bf16 %v777
    %v1909 = vunpack.c.l.bf16 %v778
    %v1910 = vunpack.c.h.bf16 %v778
    %v1911 = vunpack.c.l.bf16 %v779
    %v1912 = vunpack.c.l.bf16 %v780
    %v1913 = vunpack.c.h.bf16 %v780
    %v1914 = vunpack.c.l.bf16 %v781
    %v1915 = vunpack.c.l.bf16 %v782
    %v1916 = vunpack.c.h.bf16 %v782
    %v1917 = vunpack.c.l.bf16 %v783
    %v1918 = vunpack.c.l.bf16 %v784
    %v1919 = vunpack.c.h.bf16 %v784
    %v1920 = vunpack.c.l.bf16 %v785
    %v1921 = vunpack.c.l.bf16 %v786
    %v1922 = vunpack.c.h.bf16 %v786
    %v1923 = vunpack.c.l.bf16 %v787
    %v1924 = vunpack.c.l.bf16 %v788
    %v1925 = vunpack.c.h.bf16 %v788
    %v1926 = vunpack.c.l.bf16 %v789
    %v1927 = vunpack.c.l.bf16 %v790
    %v1928 = vunpack.c.h.bf16 %v790
    %v1929 = vunpack.c.l.bf16 %v791
    %v1930 = vunpack.c.l.bf16 %v792
    %v1931 = vunpack.c.h.bf16 %v792
    %v1932 = vunpack.c.l.bf16 %v793
    %v1933 = vunpack.c.l.bf16 %v794
    %v1934 = vunpack.c.h.bf16 %v794
    %v1935 = vunpack.c.l.bf16 %v795
    %v1936 = vunpack.c.l.bf16 %v796
    %v1937 = vunpack.c.h.bf16 %v796
    %v1938 = vunpack.c.l.bf16 %v797
    %v1939 = vunpack.c.l.bf16 %v798
    %v1940 = vunpack.c.h.bf16 %v798
    %v1941 = vunpack.c.l.bf16 %v799
    %v1942 = vunpack.c.l.bf16 %v800
    %v1943 = vunpack.c.h.bf16 %v800
    %v1944 = vunpack.c.l.bf16 %v801
    %v1945 = vunpack.c.l.bf16 %v802
    %v1946 = vunpack.c.h.bf16 %v802
    %v1947 = vunpack.c.l.bf16 %v803
    %v1948 = vunpack.c.l.bf16 %v804
    %v1949 = vunpack.c.h.bf16 %v804
    %v1950 = vunpack.c.l.bf16 %v805
    %v1951 = vunpack.c.l.bf16 %v806
    %v1952 = vunpack.c.h.bf16 %v806
    %v1953 = vunpack.c.l.bf16 %v807
    %v1954 = vunpack.c.l.bf16 %v808
    %v1955 = vunpack.c.h.bf16 %v808
    %v1956 = vunpack.c.l.bf16 %v809
    %v1957 = vunpack.c.l.bf16 %v810
    %v1958 = vunpack.c.h.bf16 %v810
    %v1959 = vunpack.c.l.bf16 %v811
    %v1960 = vunpack.c.l.bf16 %v812
    %v1961 = vunpack.c.h.bf16 %v812
    %v1962 = vunpack.c.l.bf16 %v813
    %v1963 = vunpack.c.l.bf16 %v814
    %v1964 = vunpack.c.h.bf16 %v814
    %v1965 = vunpack.c.l.bf16 %v815
    %v1966 = vunpack.c.l.bf16 %v816
    %v1967 = vunpack.c.h.bf16 %v816
    %v1968 = vunpack.c.l.bf16 %v817
    %v1969 = vunpack.c.l.bf16 %v818
    %v1970 = vunpack.c.h.bf16 %v818
    %v1971 = vunpack.c.l.bf16 %v819
    %v1972 = vld [vmem:[#allocation6] sm:$0xff]
    %v1973 = vld [vmem:[#allocation6 + $0x8] sm:$0xff]
    %v1974 = vld [vmem:[#allocation6 + $0x10] sm:$0xff]
    %v1975 = vld [vmem:[#allocation2] sm:$0xff]
    %v1976 = vld [vmem:[#allocation2 + $0x8] sm:$0xff]
    %v1977 = vld [vmem:[#allocation2 + $0x10] sm:$0xff]
    %v1978 = vperm.slane %v1972, 0
    %v1979 = vlaneseq
    %v1980 = vshrl.u32 %v1979, 7
    %1982 = vset.pattern.permute.xlu0 %v1980
    %1983 = vperm.xlu0 %1982, %v1978
    %v1984 = vpop.permute.xlu0 %1983
    %v1985 = vlaneseq
    %v1986 = vshrl.u32 %v1985, 7
    %v1987 = vadd.s32 %v1986, 8
    %1988 = vset.pattern.permute.xlu0 %v1987
    %1989 = vperm.xlu0 %1988, %v1978
    %v1990 = vpop.permute.xlu0 %1989
    %v1991 = vlaneseq
    %v1992 = vshrl.u32 %v1991, 7
    %v1993 = vadd.s32 %v1992, 16
    %1994 = vset.pattern.permute.xlu0 %v1993
    %1995 = vperm.xlu0 %1994, %v1978
    %v1996 = vpop.permute.xlu0 %1995
    %v1997 = vlaneseq
    %v1998 = vshrl.u32 %v1997, 7
    %v1999 = vadd.s32 %v1998, 24
    %2000 = vset.pattern.permute.xlu0 %v1999
    %2001 = vperm.xlu0 %2000, %v1978
    %v2002 = vpop.permute.xlu0 %2001
    %v2003 = vlaneseq
    %v2004 = vshrl.u32 %v2003, 7
    %v2005 = vadd.s32 %v2004, 32
    %2006 = vset.pattern.permute.xlu0 %v2005
    %2007 = vperm.xlu0 %2006, %v1978
    %v2008 = vpop.permute.xlu0 %2007
    %v2009 = vlaneseq
    %v2010 = vshrl.u32 %v2009, 7
    %v2011 = vadd.s32 %v2010, 40
    %2012 = vset.pattern.permute.xlu0 %v2011
    %2013 = vperm.xlu0 %2012, %v1978
    %v2014 = vpop.permute.xlu0 %2013
    %v2015 = vlaneseq
    %v2016 = vshrl.u32 %v2015, 7
    %v2017 = vadd.s32 %v2016, 48
    %2018 = vset.pattern.permute.xlu0 %v2017
    %2019 = vperm.xlu0 %2018, %v1978
    %v2020 = vpop.permute.xlu0 %2019
    %v2021 = vlaneseq
    %v2022 = vshrl.u32 %v2021, 7
    %v2023 = vadd.s32 %v2022, 56
    %2024 = vset.pattern.permute.xlu0 %v2023
    %2025 = vperm.xlu0 %2024, %v1978
    %v2026 = vpop.permute.xlu0 %2025
    %v2027 = vlaneseq
    %v2028 = vshrl.u32 %v2027, 7
    %v2029 = vadd.s32 %v2028, 64
    %2030 = vset.pattern.permute.xlu0 %v2029
    %2031 = vperm.xlu0 %2030, %v1978
    %v2032 = vpop.permute.xlu0 %2031
    %v2033 = vlaneseq
    %v2034 = vshrl.u32 %v2033, 7
    %v2035 = vadd.s32 %v2034, 72
    %2036 = vset.pattern.permute.xlu0 %v2035
    %2037 = vperm.xlu0 %2036, %v1978
    %v2038 = vpop.permute.xlu0 %2037
    %v2039 = vlaneseq
    %v2040 = vshrl.u32 %v2039, 7
    %v2041 = vadd.s32 %v2040, 80
    %2042 = vset.pattern.permute.xlu0 %v2041
    %2043 = vperm.xlu0 %2042, %v1978
    %v2044 = vpop.permute.xlu0 %2043
    %v2045 = vlaneseq
    %v2046 = vshrl.u32 %v2045, 7
    %v2047 = vadd.s32 %v2046, 88
    %2048 = vset.pattern.permute.xlu0 %v2047
    %2049 = vperm.xlu0 %2048, %v1978
    %v2050 = vpop.permute.xlu0 %2049
    %v2051 = vlaneseq
    %v2052 = vshrl.u32 %v2051, 7
    %v2053 = vadd.s32 %v2052, 96
    %2054 = vset.pattern.permute.xlu0 %v2053
    %2055 = vperm.xlu0 %2054, %v1978
    %v2056 = vpop.permute.xlu0 %2055
    %v2057 = vlaneseq
    %v2058 = vshrl.u32 %v2057, 7
    %v2059 = vadd.s32 %v2058, 104
    %2060 = vset.pattern.permute.xlu0 %v2059
    %2061 = vperm.xlu0 %2060, %v1978
    %v2062 = vpop.permute.xlu0 %2061
    %v2063 = vlaneseq
    %v2064 = vshrl.u32 %v2063, 7
    %v2065 = vadd.s32 %v2064, 112
    %2066 = vset.pattern.permute.xlu0 %v2065
    %2067 = vperm.xlu0 %2066, %v1978
    %v2068 = vpop.permute.xlu0 %2067
    %v2069 = vlaneseq
    %v2070 = vshrl.u32 %v2069, 7
    %v2071 = vadd.s32 %v2070, 120
    %2072 = vset.pattern.permute.xlu0 %v2071
    %2073 = vperm.xlu0 %2072, %v1978
    %v2074 = vpop.permute.xlu0 %2073
    %v2075 = vperm.slane %v1973, 0
    %v2076 = vlaneseq
    %v2077 = vshrl.u32 %v2076, 7
    %2079 = vset.pattern.permute.xlu0 %v2077
    %2080 = vperm.xlu0 %2079, %v2075
    %v2081 = vpop.permute.xlu0 %2080
    %v2082 = vlaneseq
    %v2083 = vshrl.u32 %v2082, 7
    %v2084 = vadd.s32 %v2083, 8
    %2085 = vset.pattern.permute.xlu0 %v2084
    %2086 = vperm.xlu0 %2085, %v2075
    %v2087 = vpop.permute.xlu0 %2086
    %v2088 = vlaneseq
    %v2089 = vshrl.u32 %v2088, 7
    %v2090 = vadd.s32 %v2089, 16
    %2091 = vset.pattern.permute.xlu0 %v2090
    %2092 = vperm.xlu0 %2091, %v2075
    %v2093 = vpop.permute.xlu0 %2092
    %v2094 = vlaneseq
    %v2095 = vshrl.u32 %v2094, 7
    %v2096 = vadd.s32 %v2095, 24
    %2097 = vset.pattern.permute.xlu0 %v2096
    %2098 = vperm.xlu0 %2097, %v2075
    %v2099 = vpop.permute.xlu0 %2098
    %v2100 = vlaneseq
    %v2101 = vshrl.u32 %v2100, 7
    %v2102 = vadd.s32 %v2101, 32
    %2103 = vset.pattern.permute.xlu0 %v2102
    %2104 = vperm.xlu0 %2103, %v2075
    %v2105 = vpop.permute.xlu0 %2104
    %v2106 = vlaneseq
    %v2107 = vshrl.u32 %v2106, 7
    %v2108 = vadd.s32 %v2107, 40
    %2109 = vset.pattern.permute.xlu0 %v2108
    %2110 = vperm.xlu0 %2109, %v2075
    %v2111 = vpop.permute.xlu0 %2110
    %v2112 = vlaneseq
    %v2113 = vshrl.u32 %v2112, 7
    %v2114 = vadd.s32 %v2113, 48
    %2115 = vset.pattern.permute.xlu0 %v2114
    %2116 = vperm.xlu0 %2115, %v2075
    %v2117 = vpop.permute.xlu0 %2116
    %v2118 = vlaneseq
    %v2119 = vshrl.u32 %v2118, 7
    %v2120 = vadd.s32 %v2119, 56
    %2121 = vset.pattern.permute.xlu0 %v2120
    %2122 = vperm.xlu0 %2121, %v2075
    %v2123 = vpop.permute.xlu0 %2122
    %v2124 = vlaneseq
    %v2125 = vshrl.u32 %v2124, 7
    %v2126 = vadd.s32 %v2125, 64
    %2127 = vset.pattern.permute.xlu0 %v2126
    %2128 = vperm.xlu0 %2127, %v2075
    %v2129 = vpop.permute.xlu0 %2128
    %v2130 = vlaneseq
    %v2131 = vshrl.u32 %v2130, 7
    %v2132 = vadd.s32 %v2131, 72
    %2133 = vset.pattern.permute.xlu0 %v2132
    %2134 = vperm.xlu0 %2133, %v2075
    %v2135 = vpop.permute.xlu0 %2134
    %v2136 = vlaneseq
    %v2137 = vshrl.u32 %v2136, 7
    %v2138 = vadd.s32 %v2137, 80
    %2139 = vset.pattern.permute.xlu0 %v2138
    %2140 = vperm.xlu0 %2139, %v2075
    %v2141 = vpop.permute.xlu0 %2140
    %v2142 = vlaneseq
    %v2143 = vshrl.u32 %v2142, 7
    %v2144 = vadd.s32 %v2143, 88
    %2145 = vset.pattern.permute.xlu0 %v2144
    %2146 = vperm.xlu0 %2145, %v2075
    %v2147 = vpop.permute.xlu0 %2146
    %v2148 = vlaneseq
    %v2149 = vshrl.u32 %v2148, 7
    %v2150 = vadd.s32 %v2149, 96
    %2151 = vset.pattern.permute.xlu0 %v2150
    %2152 = vperm.xlu0 %2151, %v2075
    %v2153 = vpop.permute.xlu0 %2152
    %v2154 = vlaneseq
    %v2155 = vshrl.u32 %v2154, 7
    %v2156 = vadd.s32 %v2155, 104
    %2157 = vset.pattern.permute.xlu0 %v2156
    %2158 = vperm.xlu0 %2157, %v2075
    %v2159 = vpop.permute.xlu0 %2158
    %v2160 = vlaneseq
    %v2161 = vshrl.u32 %v2160, 7
    %v2162 = vadd.s32 %v2161, 112
    %2163 = vset.pattern.permute.xlu0 %v2162
    %2164 = vperm.xlu0 %2163, %v2075
    %v2165 = vpop.permute.xlu0 %2164
    %v2166 = vlaneseq
    %v2167 = vshrl.u32 %v2166, 7
    %v2168 = vadd.s32 %v2167, 120
    %2169 = vset.pattern.permute.xlu0 %v2168
    %2170 = vperm.xlu0 %2169, %v2075
    %v2171 = vpop.permute.xlu0 %2170
    %v2172 = vperm.slane %v1974, 0
    %v2173 = vlaneseq
    %v2174 = vshrl.u32 %v2173, 7
    %2176 = vset.pattern.permute.xlu0 %v2174
    %2177 = vperm.xlu0 %2176, %v2172
    %v2178 = vpop.permute.xlu0 %2177
    %v2179 = vlaneseq
    %v2180 = vshrl.u32 %v2179, 7
    %v2181 = vadd.s32 %v2180, 8
    %2182 = vset.pattern.permute.xlu0 %v2181
    %2183 = vperm.xlu0 %2182, %v2172
    %v2184 = vpop.permute.xlu0 %2183
    %v2185 = vlaneseq
    %v2186 = vshrl.u32 %v2185, 7
    %v2187 = vadd.s32 %v2186, 16
    %2188 = vset.pattern.permute.xlu0 %v2187
    %2189 = vperm.xlu0 %2188, %v2172
    %v2190 = vpop.permute.xlu0 %2189
    %v2191 = vlaneseq
    %v2192 = vshrl.u32 %v2191, 7
    %v2193 = vadd.s32 %v2192, 24
    %2194 = vset.pattern.permute.xlu0 %v2193
    %2195 = vperm.xlu0 %2194, %v2172
    %v2196 = vpop.permute.xlu0 %2195
    %v2197 = vlaneseq
    %v2198 = vshrl.u32 %v2197, 7
    %v2199 = vadd.s32 %v2198, 32
    %2200 = vset.pattern.permute.xlu0 %v2199
    %2201 = vperm.xlu0 %2200, %v2172
    %v2202 = vpop.permute.xlu0 %2201
    %v2203 = vlaneseq
    %v2204 = vshrl.u32 %v2203, 7
    %v2205 = vadd.s32 %v2204, 40
    %2206 = vset.pattern.permute.xlu0 %v2205
    %2207 = vperm.xlu0 %2206, %v2172
    %v2208 = vpop.permute.xlu0 %2207
    %v2209 = vlaneseq
    %v2210 = vshrl.u32 %v2209, 7
    %v2211 = vadd.s32 %v2210, 48
    %2212 = vset.pattern.permute.xlu0 %v2211
    %2213 = vperm.xlu0 %2212, %v2172
    %v2214 = vpop.permute.xlu0 %2213
    %v2215 = vlaneseq
    %v2216 = vshrl.u32 %v2215, 7
    %v2217 = vadd.s32 %v2216, 56
    %2218 = vset.pattern.permute.xlu0 %v2217
    %2219 = vperm.xlu0 %2218, %v2172
    %v2220 = vpop.permute.xlu0 %2219
    %v2221 = vlaneseq
    %v2222 = vshrl.u32 %v2221, 7
    %v2223 = vadd.s32 %v2222, 64
    %2224 = vset.pattern.permute.xlu0 %v2223
    %2225 = vperm.xlu0 %2224, %v2172
    %v2226 = vpop.permute.xlu0 %2225
    %v2227 = vlaneseq
    %v2228 = vshrl.u32 %v2227, 7
    %v2229 = vadd.s32 %v2228, 72
    %2230 = vset.pattern.permute.xlu0 %v2229
    %2231 = vperm.xlu0 %2230, %v2172
    %v2232 = vpop.permute.xlu0 %2231
    %v2233 = vlaneseq
    %v2234 = vshrl.u32 %v2233, 7
    %v2235 = vadd.s32 %v2234, 80
    %2236 = vset.pattern.permute.xlu0 %v2235
    %2237 = vperm.xlu0 %2236, %v2172
    %v2238 = vpop.permute.xlu0 %2237
    %v2239 = vlaneseq
    %v2240 = vshrl.u32 %v2239, 7
    %v2241 = vadd.s32 %v2240, 88
    %2242 = vset.pattern.permute.xlu0 %v2241
    %2243 = vperm.xlu0 %2242, %v2172
    %v2244 = vpop.permute.xlu0 %2243
    %v2245 = vlaneseq
    %v2246 = vshrl.u32 %v2245, 7
    %v2247 = vadd.s32 %v2246, 96
    %2248 = vset.pattern.permute.xlu0 %v2247
    %2249 = vperm.xlu0 %2248, %v2172
    %v2250 = vpop.permute.xlu0 %2249
    %v2251 = vlaneseq
    %v2252 = vshrl.u32 %v2251, 7
    %v2253 = vadd.s32 %v2252, 104
    %2254 = vset.pattern.permute.xlu0 %v2253
    %2255 = vperm.xlu0 %2254, %v2172
    %v2256 = vpop.permute.xlu0 %2255
    %v2257 = vlaneseq
    %v2258 = vshrl.u32 %v2257, 7
    %v2259 = vadd.s32 %v2258, 112
    %2260 = vset.pattern.permute.xlu0 %v2259
    %2261 = vperm.xlu0 %2260, %v2172
    %v2262 = vpop.permute.xlu0 %2261
    %v2263 = vlaneseq
    %v2264 = vshrl.u32 %v2263, 7
    %v2265 = vadd.s32 %v2264, 120
    %2266 = vset.pattern.permute.xlu0 %v2265
    %2267 = vperm.xlu0 %2266, %v2172
    %v2268 = vpop.permute.xlu0 %2267
    %v2269 = vperm.slane %v1972, 1
    %v2270 = vlaneseq
    %v2271 = vshrl.u32 %v2270, 7
    %2273 = vset.pattern.permute.xlu0 %v2271
    %2274 = vperm.xlu0 %2273, %v2269
    %v2275 = vpop.permute.xlu0 %2274
    %v2276 = vlaneseq
    %v2277 = vshrl.u32 %v2276, 7
    %v2278 = vadd.s32 %v2277, 8
    %2279 = vset.pattern.permute.xlu0 %v2278
    %2280 = vperm.xlu0 %2279, %v2269
    %v2281 = vpop.permute.xlu0 %2280
    %v2282 = vlaneseq
    %v2283 = vshrl.u32 %v2282, 7
    %v2284 = vadd.s32 %v2283, 16
    %2285 = vset.pattern.permute.xlu0 %v2284
    %2286 = vperm.xlu0 %2285, %v2269
    %v2287 = vpop.permute.xlu0 %2286
    %v2288 = vlaneseq
    %v2289 = vshrl.u32 %v2288, 7
    %v2290 = vadd.s32 %v2289, 24
    %2291 = vset.pattern.permute.xlu0 %v2290
    %2292 = vperm.xlu0 %2291, %v2269
    %v2293 = vpop.permute.xlu0 %2292
    %v2294 = vlaneseq
    %v2295 = vshrl.u32 %v2294, 7
    %v2296 = vadd.s32 %v2295, 32
    %2297 = vset.pattern.permute.xlu0 %v2296
    %2298 = vperm.xlu0 %2297, %v2269
    %v2299 = vpop.permute.xlu0 %2298
    %v2300 = vlaneseq
    %v2301 = vshrl.u32 %v2300, 7
    %v2302 = vadd.s32 %v2301, 40
    %2303 = vset.pattern.permute.xlu0 %v2302
    %2304 = vperm.xlu0 %2303, %v2269
    %v2305 = vpop.permute.xlu0 %2304
    %v2306 = vlaneseq
    %v2307 = vshrl.u32 %v2306, 7
    %v2308 = vadd.s32 %v2307, 48
    %2309 = vset.pattern.permute.xlu0 %v2308
    %2310 = vperm.xlu0 %2309, %v2269
    %v2311 = vpop.permute.xlu0 %2310
    %v2312 = vlaneseq
    %v2313 = vshrl.u32 %v2312, 7
    %v2314 = vadd.s32 %v2313, 56
    %2315 = vset.pattern.permute.xlu0 %v2314
    %2316 = vperm.xlu0 %2315, %v2269
    %v2317 = vpop.permute.xlu0 %2316
    %v2318 = vlaneseq
    %v2319 = vshrl.u32 %v2318, 7
    %v2320 = vadd.s32 %v2319, 64
    %2321 = vset.pattern.permute.xlu0 %v2320
    %2322 = vperm.xlu0 %2321, %v2269
    %v2323 = vpop.permute.xlu0 %2322
    %v2324 = vlaneseq
    %v2325 = vshrl.u32 %v2324, 7
    %v2326 = vadd.s32 %v2325, 72
    %2327 = vset.pattern.permute.xlu0 %v2326
    %2328 = vperm.xlu0 %2327, %v2269
    %v2329 = vpop.permute.xlu0 %2328
    %v2330 = vlaneseq
    %v2331 = vshrl.u32 %v2330, 7
    %v2332 = vadd.s32 %v2331, 80
    %2333 = vset.pattern.permute.xlu0 %v2332
    %2334 = vperm.xlu0 %2333, %v2269
    %v2335 = vpop.permute.xlu0 %2334
    %v2336 = vlaneseq
    %v2337 = vshrl.u32 %v2336, 7
    %v2338 = vadd.s32 %v2337, 88
    %2339 = vset.pattern.permute.xlu0 %v2338
    %2340 = vperm.xlu0 %2339, %v2269
    %v2341 = vpop.permute.xlu0 %2340
    %v2342 = vlaneseq
    %v2343 = vshrl.u32 %v2342, 7
    %v2344 = vadd.s32 %v2343, 96
    %2345 = vset.pattern.permute.xlu0 %v2344
    %2346 = vperm.xlu0 %2345, %v2269
    %v2347 = vpop.permute.xlu0 %2346
    %v2348 = vlaneseq
    %v2349 = vshrl.u32 %v2348, 7
    %v2350 = vadd.s32 %v2349, 104
    %2351 = vset.pattern.permute.xlu0 %v2350
    %2352 = vperm.xlu0 %2351, %v2269
    %v2353 = vpop.permute.xlu0 %2352
    %v2354 = vlaneseq
    %v2355 = vshrl.u32 %v2354, 7
    %v2356 = vadd.s32 %v2355, 112
    %2357 = vset.pattern.permute.xlu0 %v2356
    %2358 = vperm.xlu0 %2357, %v2269
    %v2359 = vpop.permute.xlu0 %2358
    %v2360 = vlaneseq
    %v2361 = vshrl.u32 %v2360, 7
    %v2362 = vadd.s32 %v2361, 120
    %2363 = vset.pattern.permute.xlu0 %v2362
    %2364 = vperm.xlu0 %2363, %v2269
    %v2365 = vpop.permute.xlu0 %2364
    %v2366 = vperm.slane %v1973, 1
    %v2367 = vlaneseq
    %v2368 = vshrl.u32 %v2367, 7
    %2370 = vset.pattern.permute.xlu0 %v2368
    %2371 = vperm.xlu0 %2370, %v2366
    %v2372 = vpop.permute.xlu0 %2371
    %v2373 = vlaneseq
    %v2374 = vshrl.u32 %v2373, 7
    %v2375 = vadd.s32 %v2374, 8
    %2376 = vset.pattern.permute.xlu0 %v2375
    %2377 = vperm.xlu0 %2376, %v2366
    %v2378 = vpop.permute.xlu0 %2377
    %v2379 = vlaneseq
    %v2380 = vshrl.u32 %v2379, 7
    %v2381 = vadd.s32 %v2380, 16
    %2382 = vset.pattern.permute.xlu0 %v2381
    %2383 = vperm.xlu0 %2382, %v2366
    %v2384 = vpop.permute.xlu0 %2383
    %v2385 = vlaneseq
    %v2386 = vshrl.u32 %v2385, 7
    %v2387 = vadd.s32 %v2386, 24
    %2388 = vset.pattern.permute.xlu0 %v2387
    %2389 = vperm.xlu0 %2388, %v2366
    %v2390 = vpop.permute.xlu0 %2389
    %v2391 = vlaneseq
    %v2392 = vshrl.u32 %v2391, 7
    %v2393 = vadd.s32 %v2392, 32
    %2394 = vset.pattern.permute.xlu0 %v2393
    %2395 = vperm.xlu0 %2394, %v2366
    %v2396 = vpop.permute.xlu0 %2395
    %v2397 = vlaneseq
    %v2398 = vshrl.u32 %v2397, 7
    %v2399 = vadd.s32 %v2398, 40
    %2400 = vset.pattern.permute.xlu0 %v2399
    %2401 = vperm.xlu0 %2400, %v2366
    %v2402 = vpop.permute.xlu0 %2401
    %v2403 = vlaneseq
    %v2404 = vshrl.u32 %v2403, 7
    %v2405 = vadd.s32 %v2404, 48
    %2406 = vset.pattern.permute.xlu0 %v2405
    %2407 = vperm.xlu0 %2406, %v2366
    %v2408 = vpop.permute.xlu0 %2407
    %v2409 = vlaneseq
    %v2410 = vshrl.u32 %v2409, 7
    %v2411 = vadd.s32 %v2410, 56
    %2412 = vset.pattern.permute.xlu0 %v2411
    %2413 = vperm.xlu0 %2412, %v2366
    %v2414 = vpop.permute.xlu0 %2413
    %v2415 = vlaneseq
    %v2416 = vshrl.u32 %v2415, 7
    %v2417 = vadd.s32 %v2416, 64
    %2418 = vset.pattern.permute.xlu0 %v2417
    %2419 = vperm.xlu0 %2418, %v2366
    %v2420 = vpop.permute.xlu0 %2419
    %v2421 = vlaneseq
    %v2422 = vshrl.u32 %v2421, 7
    %v2423 = vadd.s32 %v2422, 72
    %2424 = vset.pattern.permute.xlu0 %v2423
    %2425 = vperm.xlu0 %2424, %v2366
    %v2426 = vpop.permute.xlu0 %2425
    %v2427 = vlaneseq
    %v2428 = vshrl.u32 %v2427, 7
    %v2429 = vadd.s32 %v2428, 80
    %2430 = vset.pattern.permute.xlu0 %v2429
    %2431 = vperm.xlu0 %2430, %v2366
    %v2432 = vpop.permute.xlu0 %2431
    %v2433 = vlaneseq
    %v2434 = vshrl.u32 %v2433, 7
    %v2435 = vadd.s32 %v2434, 88
    %2436 = vset.pattern.permute.xlu0 %v2435
    %2437 = vperm.xlu0 %2436, %v2366
    %v2438 = vpop.permute.xlu0 %2437
    %v2439 = vlaneseq
    %v2440 = vshrl.u32 %v2439, 7
    %v2441 = vadd.s32 %v2440, 96
    %2442 = vset.pattern.permute.xlu0 %v2441
    %2443 = vperm.xlu0 %2442, %v2366
    %v2444 = vpop.permute.xlu0 %2443
    %v2445 = vlaneseq
    %v2446 = vshrl.u32 %v2445, 7
    %v2447 = vadd.s32 %v2446, 104
    %2448 = vset.pattern.permute.xlu0 %v2447
    %2449 = vperm.xlu0 %2448, %v2366
    %v2450 = vpop.permute.xlu0 %2449
    %v2451 = vlaneseq
    %v2452 = vshrl.u32 %v2451, 7
    %v2453 = vadd.s32 %v2452, 112
    %2454 = vset.pattern.permute.xlu0 %v2453
    %2455 = vperm.xlu0 %2454, %v2366
    %v2456 = vpop.permute.xlu0 %2455
    %v2457 = vlaneseq
    %v2458 = vshrl.u32 %v2457, 7
    %v2459 = vadd.s32 %v2458, 120
    %2460 = vset.pattern.permute.xlu0 %v2459
    %2461 = vperm.xlu0 %2460, %v2366
    %v2462 = vpop.permute.xlu0 %2461
    %v2463 = vperm.slane %v1974, 1
    %v2464 = vlaneseq
    %v2465 = vshrl.u32 %v2464, 7
    %2467 = vset.pattern.permute.xlu0 %v2465
    %2468 = vperm.xlu0 %2467, %v2463
    %v2469 = vpop.permute.xlu0 %2468
    %v2470 = vlaneseq
    %v2471 = vshrl.u32 %v2470, 7
    %v2472 = vadd.s32 %v2471, 8
    %2473 = vset.pattern.permute.xlu0 %v2472
    %2474 = vperm.xlu0 %2473, %v2463
    %v2475 = vpop.permute.xlu0 %2474
    %v2476 = vlaneseq
    %v2477 = vshrl.u32 %v2476, 7
    %v2478 = vadd.s32 %v2477, 16
    %2479 = vset.pattern.permute.xlu0 %v2478
    %2480 = vperm.xlu0 %2479, %v2463
    %v2481 = vpop.permute.xlu0 %2480
    %v2482 = vlaneseq
    %v2483 = vshrl.u32 %v2482, 7
    %v2484 = vadd.s32 %v2483, 24
    %2485 = vset.pattern.permute.xlu0 %v2484
    %2486 = vperm.xlu0 %2485, %v2463
    %v2487 = vpop.permute.xlu0 %2486
    %v2488 = vlaneseq
    %v2489 = vshrl.u32 %v2488, 7
    %v2490 = vadd.s32 %v2489, 32
    %2491 = vset.pattern.permute.xlu0 %v2490
    %2492 = vperm.xlu0 %2491, %v2463
    %v2493 = vpop.permute.xlu0 %2492
    %v2494 = vlaneseq
    %v2495 = vshrl.u32 %v2494, 7
    %v2496 = vadd.s32 %v2495, 40
    %2497 = vset.pattern.permute.xlu0 %v2496
    %2498 = vperm.xlu0 %2497, %v2463
    %v2499 = vpop.permute.xlu0 %2498
    %v2500 = vlaneseq
    %v2501 = vshrl.u32 %v2500, 7
    %v2502 = vadd.s32 %v2501, 48
    %2503 = vset.pattern.permute.xlu0 %v2502
    %2504 = vperm.xlu0 %2503, %v2463
    %v2505 = vpop.permute.xlu0 %2504
    %v2506 = vlaneseq
    %v2507 = vshrl.u32 %v2506, 7
    %v2508 = vadd.s32 %v2507, 56
    %2509 = vset.pattern.permute.xlu0 %v2508
    %2510 = vperm.xlu0 %2509, %v2463
    %v2511 = vpop.permute.xlu0 %2510
    %v2512 = vlaneseq
    %v2513 = vshrl.u32 %v2512, 7
    %v2514 = vadd.s32 %v2513, 64
    %2515 = vset.pattern.permute.xlu0 %v2514
    %2516 = vperm.xlu0 %2515, %v2463
    %v2517 = vpop.permute.xlu0 %2516
    %v2518 = vlaneseq
    %v2519 = vshrl.u32 %v2518, 7
    %v2520 = vadd.s32 %v2519, 72
    %2521 = vset.pattern.permute.xlu0 %v2520
    %2522 = vperm.xlu0 %2521, %v2463
    %v2523 = vpop.permute.xlu0 %2522
    %v2524 = vlaneseq
    %v2525 = vshrl.u32 %v2524, 7
    %v2526 = vadd.s32 %v2525, 80
    %2527 = vset.pattern.permute.xlu0 %v2526
    %2528 = vperm.xlu0 %2527, %v2463
    %v2529 = vpop.permute.xlu0 %2528
    %v2530 = vlaneseq
    %v2531 = vshrl.u32 %v2530, 7
    %v2532 = vadd.s32 %v2531, 88
    %2533 = vset.pattern.permute.xlu0 %v2532
    %2534 = vperm.xlu0 %2533, %v2463
    %v2535 = vpop.permute.xlu0 %2534
    %v2536 = vlaneseq
    %v2537 = vshrl.u32 %v2536, 7
    %v2538 = vadd.s32 %v2537, 96
    %2539 = vset.pattern.permute.xlu0 %v2538
    %2540 = vperm.xlu0 %2539, %v2463
    %v2541 = vpop.permute.xlu0 %2540
    %v2542 = vlaneseq
    %v2543 = vshrl.u32 %v2542, 7
    %v2544 = vadd.s32 %v2543, 104
    %2545 = vset.pattern.permute.xlu0 %v2544
    %2546 = vperm.xlu0 %2545, %v2463
    %v2547 = vpop.permute.xlu0 %2546
    %v2548 = vlaneseq
    %v2549 = vshrl.u32 %v2548, 7
    %v2550 = vadd.s32 %v2549, 112
    %2551 = vset.pattern.permute.xlu0 %v2550
    %2552 = vperm.xlu0 %2551, %v2463
    %v2553 = vpop.permute.xlu0 %2552
    %v2554 = vlaneseq
    %v2555 = vshrl.u32 %v2554, 7
    %v2556 = vadd.s32 %v2555, 120
    %2557 = vset.pattern.permute.xlu0 %v2556
    %2558 = vperm.xlu0 %2557, %v2463
    %v2559 = vpop.permute.xlu0 %2558
    %v2560 = vperm.slane %v1972, 2
    %v2561 = vlaneseq
    %v2562 = vshrl.u32 %v2561, 7
    %2564 = vset.pattern.permute.xlu0 %v2562
    %2565 = vperm.xlu0 %2564, %v2560
    %v2566 = vpop.permute.xlu0 %2565
    %v2567 = vlaneseq
    %v2568 = vshrl.u32 %v2567, 7
    %v2569 = vadd.s32 %v2568, 8
    %2570 = vset.pattern.permute.xlu0 %v2569
    %2571 = vperm.xlu0 %2570, %v2560
    %v2572 = vpop.permute.xlu0 %2571
    %v2573 = vlaneseq
    %v2574 = vshrl.u32 %v2573, 7
    %v2575 = vadd.s32 %v2574, 16
    %2576 = vset.pattern.permute.xlu0 %v2575
    %2577 = vperm.xlu0 %2576, %v2560
    %v2578 = vpop.permute.xlu0 %2577
    %v2579 = vlaneseq
    %v2580 = vshrl.u32 %v2579, 7
    %v2581 = vadd.s32 %v2580, 24
    %2582 = vset.pattern.permute.xlu0 %v2581
    %2583 = vperm.xlu0 %2582, %v2560
    %v2584 = vpop.permute.xlu0 %2583
    %v2585 = vlaneseq
    %v2586 = vshrl.u32 %v2585, 7
    %v2587 = vadd.s32 %v2586, 32
    %2588 = vset.pattern.permute.xlu0 %v2587
    %2589 = vperm.xlu0 %2588, %v2560
    %v2590 = vpop.permute.xlu0 %2589
    %v2591 = vlaneseq
    %v2592 = vshrl.u32 %v2591, 7
    %v2593 = vadd.s32 %v2592, 40
    %2594 = vset.pattern.permute.xlu0 %v2593
    %2595 = vperm.xlu0 %2594, %v2560
    %v2596 = vpop.permute.xlu0 %2595
    %v2597 = vlaneseq
    %v2598 = vshrl.u32 %v2597, 7
    %v2599 = vadd.s32 %v2598, 48
    %2600 = vset.pattern.permute.xlu0 %v2599
    %2601 = vperm.xlu0 %2600, %v2560
    %v2602 = vpop.permute.xlu0 %2601
    %v2603 = vlaneseq
    %v2604 = vshrl.u32 %v2603, 7
    %v2605 = vadd.s32 %v2604, 56
    %2606 = vset.pattern.permute.xlu0 %v2605
    %2607 = vperm.xlu0 %2606, %v2560
    %v2608 = vpop.permute.xlu0 %2607
    %v2609 = vlaneseq
    %v2610 = vshrl.u32 %v2609, 7
    %v2611 = vadd.s32 %v2610, 64
    %2612 = vset.pattern.permute.xlu0 %v2611
    %2613 = vperm.xlu0 %2612, %v2560
    %v2614 = vpop.permute.xlu0 %2613
    %v2615 = vlaneseq
    %v2616 = vshrl.u32 %v2615, 7
    %v2617 = vadd.s32 %v2616, 72
    %2618 = vset.pattern.permute.xlu0 %v2617
    %2619 = vperm.xlu0 %2618, %v2560
    %v2620 = vpop.permute.xlu0 %2619
    %v2621 = vlaneseq
    %v2622 = vshrl.u32 %v2621, 7
    %v2623 = vadd.s32 %v2622, 80
    %2624 = vset.pattern.permute.xlu0 %v2623
    %2625 = vperm.xlu0 %2624, %v2560
    %v2626 = vpop.permute.xlu0 %2625
    %v2627 = vlaneseq
    %v2628 = vshrl.u32 %v2627, 7
    %v2629 = vadd.s32 %v2628, 88
    %2630 = vset.pattern.permute.xlu0 %v2629
    %2631 = vperm.xlu0 %2630, %v2560
    %v2632 = vpop.permute.xlu0 %2631
    %v2633 = vlaneseq
    %v2634 = vshrl.u32 %v2633, 7
    %v2635 = vadd.s32 %v2634, 96
    %2636 = vset.pattern.permute.xlu0 %v2635
    %2637 = vperm.xlu0 %2636, %v2560
    %v2638 = vpop.permute.xlu0 %2637
    %v2639 = vlaneseq
    %v2640 = vshrl.u32 %v2639, 7
    %v2641 = vadd.s32 %v2640, 104
    %2642 = vset.pattern.permute.xlu0 %v2641
    %2643 = vperm.xlu0 %2642, %v2560
    %v2644 = vpop.permute.xlu0 %2643
    %v2645 = vlaneseq
    %v2646 = vshrl.u32 %v2645, 7
    %v2647 = vadd.s32 %v2646, 112
    %2648 = vset.pattern.permute.xlu0 %v2647
    %2649 = vperm.xlu0 %2648, %v2560
    %v2650 = vpop.permute.xlu0 %2649
    %v2651 = vlaneseq
    %v2652 = vshrl.u32 %v2651, 7
    %v2653 = vadd.s32 %v2652, 120
    %2654 = vset.pattern.permute.xlu0 %v2653
    %2655 = vperm.xlu0 %2654, %v2560
    %v2656 = vpop.permute.xlu0 %2655
    %v2657 = vperm.slane %v1973, 2
    %v2658 = vlaneseq
    %v2659 = vshrl.u32 %v2658, 7
    %2661 = vset.pattern.permute.xlu0 %v2659
    %2662 = vperm.xlu0 %2661, %v2657
    %v2663 = vpop.permute.xlu0 %2662
    %v2664 = vlaneseq
    %v2665 = vshrl.u32 %v2664, 7
    %v2666 = vadd.s32 %v2665, 8
    %2667 = vset.pattern.permute.xlu0 %v2666
    %2668 = vperm.xlu0 %2667, %v2657
    %v2669 = vpop.permute.xlu0 %2668
    %v2670 = vlaneseq
    %v2671 = vshrl.u32 %v2670, 7
    %v2672 = vadd.s32 %v2671, 16
    %2673 = vset.pattern.permute.xlu0 %v2672
    %2674 = vperm.xlu0 %2673, %v2657
    %v2675 = vpop.permute.xlu0 %2674
    %v2676 = vlaneseq
    %v2677 = vshrl.u32 %v2676, 7
    %v2678 = vadd.s32 %v2677, 24
    %2679 = vset.pattern.permute.xlu0 %v2678
    %2680 = vperm.xlu0 %2679, %v2657
    %v2681 = vpop.permute.xlu0 %2680
    %v2682 = vlaneseq
    %v2683 = vshrl.u32 %v2682, 7
    %v2684 = vadd.s32 %v2683, 32
    %2685 = vset.pattern.permute.xlu0 %v2684
    %2686 = vperm.xlu0 %2685, %v2657
    %v2687 = vpop.permute.xlu0 %2686
    %v2688 = vlaneseq
    %v2689 = vshrl.u32 %v2688, 7
    %v2690 = vadd.s32 %v2689, 40
    %2691 = vset.pattern.permute.xlu0 %v2690
    %2692 = vperm.xlu0 %2691, %v2657
    %v2693 = vpop.permute.xlu0 %2692
    %v2694 = vlaneseq
    %v2695 = vshrl.u32 %v2694, 7
    %v2696 = vadd.s32 %v2695, 48
    %2697 = vset.pattern.permute.xlu0 %v2696
    %2698 = vperm.xlu0 %2697, %v2657
    %v2699 = vpop.permute.xlu0 %2698
    %v2700 = vlaneseq
    %v2701 = vshrl.u32 %v2700, 7
    %v2702 = vadd.s32 %v2701, 56
    %2703 = vset.pattern.permute.xlu0 %v2702
    %2704 = vperm.xlu0 %2703, %v2657
    %v2705 = vpop.permute.xlu0 %2704
    %v2706 = vlaneseq
    %v2707 = vshrl.u32 %v2706, 7
    %v2708 = vadd.s32 %v2707, 64
    %2709 = vset.pattern.permute.xlu0 %v2708
    %2710 = vperm.xlu0 %2709, %v2657
    %v2711 = vpop.permute.xlu0 %2710
    %v2712 = vlaneseq
    %v2713 = vshrl.u32 %v2712, 7
    %v2714 = vadd.s32 %v2713, 72
    %2715 = vset.pattern.permute.xlu0 %v2714
    %2716 = vperm.xlu0 %2715, %v2657
    %v2717 = vpop.permute.xlu0 %2716
    %v2718 = vlaneseq
    %v2719 = vshrl.u32 %v2718, 7
    %v2720 = vadd.s32 %v2719, 80
    %2721 = vset.pattern.permute.xlu0 %v2720
    %2722 = vperm.xlu0 %2721, %v2657
    %v2723 = vpop.permute.xlu0 %2722
    %v2724 = vlaneseq
    %v2725 = vshrl.u32 %v2724, 7
    %v2726 = vadd.s32 %v2725, 88
    %2727 = vset.pattern.permute.xlu0 %v2726
    %2728 = vperm.xlu0 %2727, %v2657
    %v2729 = vpop.permute.xlu0 %2728
    %v2730 = vlaneseq
    %v2731 = vshrl.u32 %v2730, 7
    %v2732 = vadd.s32 %v2731, 96
    %2733 = vset.pattern.permute.xlu0 %v2732
    %2734 = vperm.xlu0 %2733, %v2657
    %v2735 = vpop.permute.xlu0 %2734
    %v2736 = vlaneseq
    %v2737 = vshrl.u32 %v2736, 7
    %v2738 = vadd.s32 %v2737, 104
    %2739 = vset.pattern.permute.xlu0 %v2738
    %2740 = vperm.xlu0 %2739, %v2657
    %v2741 = vpop.permute.xlu0 %2740
    %v2742 = vlaneseq
    %v2743 = vshrl.u32 %v2742, 7
    %v2744 = vadd.s32 %v2743, 112
    %2745 = vset.pattern.permute.xlu0 %v2744
    %2746 = vperm.xlu0 %2745, %v2657
    %v2747 = vpop.permute.xlu0 %2746
    %v2748 = vlaneseq
    %v2749 = vshrl.u32 %v2748, 7
    %v2750 = vadd.s32 %v2749, 120
    %2751 = vset.pattern.permute.xlu0 %v2750
    %2752 = vperm.xlu0 %2751, %v2657
    %v2753 = vpop.permute.xlu0 %2752
    %v2754 = vperm.slane %v1974, 2
    %v2755 = vlaneseq
    %v2756 = vshrl.u32 %v2755, 7
    %2758 = vset.pattern.permute.xlu0 %v2756
    %2759 = vperm.xlu0 %2758, %v2754
    %v2760 = vpop.permute.xlu0 %2759
    %v2761 = vlaneseq
    %v2762 = vshrl.u32 %v2761, 7
    %v2763 = vadd.s32 %v2762, 8
    %2764 = vset.pattern.permute.xlu0 %v2763
    %2765 = vperm.xlu0 %2764, %v2754
    %v2766 = vpop.permute.xlu0 %2765
    %v2767 = vlaneseq
    %v2768 = vshrl.u32 %v2767, 7
    %v2769 = vadd.s32 %v2768, 16
    %2770 = vset.pattern.permute.xlu0 %v2769
    %2771 = vperm.xlu0 %2770, %v2754
    %v2772 = vpop.permute.xlu0 %2771
    %v2773 = vlaneseq
    %v2774 = vshrl.u32 %v2773, 7
    %v2775 = vadd.s32 %v2774, 24
    %2776 = vset.pattern.permute.xlu0 %v2775
    %2777 = vperm.xlu0 %2776, %v2754
    %v2778 = vpop.permute.xlu0 %2777
    %v2779 = vlaneseq
    %v2780 = vshrl.u32 %v2779, 7
    %v2781 = vadd.s32 %v2780, 32
    %2782 = vset.pattern.permute.xlu0 %v2781
    %2783 = vperm.xlu0 %2782, %v2754
    %v2784 = vpop.permute.xlu0 %2783
    %v2785 = vlaneseq
    %v2786 = vshrl.u32 %v2785, 7
    %v2787 = vadd.s32 %v2786, 40
    %2788 = vset.pattern.permute.xlu0 %v2787
    %2789 = vperm.xlu0 %2788, %v2754
    %v2790 = vpop.permute.xlu0 %2789
    %v2791 = vlaneseq
    %v2792 = vshrl.u32 %v2791, 7
    %v2793 = vadd.s32 %v2792, 48
    %2794 = vset.pattern.permute.xlu0 %v2793
    %2795 = vperm.xlu0 %2794, %v2754
    %v2796 = vpop.permute.xlu0 %2795
    %v2797 = vlaneseq
    %v2798 = vshrl.u32 %v2797, 7
    %v2799 = vadd.s32 %v2798, 56
    %2800 = vset.pattern.permute.xlu0 %v2799
    %2801 = vperm.xlu0 %2800, %v2754
    %v2802 = vpop.permute.xlu0 %2801
    %v2803 = vlaneseq
    %v2804 = vshrl.u32 %v2803, 7
    %v2805 = vadd.s32 %v2804, 64
    %2806 = vset.pattern.permute.xlu0 %v2805
    %2807 = vperm.xlu0 %2806, %v2754
    %v2808 = vpop.permute.xlu0 %2807
    %v2809 = vlaneseq
    %v2810 = vshrl.u32 %v2809, 7
    %v2811 = vadd.s32 %v2810, 72
    %2812 = vset.pattern.permute.xlu0 %v2811
    %2813 = vperm.xlu0 %2812, %v2754
    %v2814 = vpop.permute.xlu0 %2813
    %v2815 = vlaneseq
    %v2816 = vshrl.u32 %v2815, 7
    %v2817 = vadd.s32 %v2816, 80
    %2818 = vset.pattern.permute.xlu0 %v2817
    %2819 = vperm.xlu0 %2818, %v2754
    %v2820 = vpop.permute.xlu0 %2819
    %v2821 = vlaneseq
    %v2822 = vshrl.u32 %v2821, 7
    %v2823 = vadd.s32 %v2822, 88
    %2824 = vset.pattern.permute.xlu0 %v2823
    %2825 = vperm.xlu0 %2824, %v2754
    %v2826 = vpop.permute.xlu0 %2825
    %v2827 = vlaneseq
    %v2828 = vshrl.u32 %v2827, 7
    %v2829 = vadd.s32 %v2828, 96
    %2830 = vset.pattern.permute.xlu0 %v2829
    %2831 = vperm.xlu0 %2830, %v2754
    %v2832 = vpop.permute.xlu0 %2831
    %v2833 = vlaneseq
    %v2834 = vshrl.u32 %v2833, 7
    %v2835 = vadd.s32 %v2834, 104
    %2836 = vset.pattern.permute.xlu0 %v2835
    %2837 = vperm.xlu0 %2836, %v2754
    %v2838 = vpop.permute.xlu0 %2837
    %v2839 = vlaneseq
    %v2840 = vshrl.u32 %v2839, 7
    %v2841 = vadd.s32 %v2840, 112
    %2842 = vset.pattern.permute.xlu0 %v2841
    %2843 = vperm.xlu0 %2842, %v2754
    %v2844 = vpop.permute.xlu0 %2843
    %v2845 = vlaneseq
    %v2846 = vshrl.u32 %v2845, 7
    %v2847 = vadd.s32 %v2846, 120
    %2848 = vset.pattern.permute.xlu0 %v2847
    %2849 = vperm.xlu0 %2848, %v2754
    %v2850 = vpop.permute.xlu0 %2849
    %v2851 = vperm.slane %v1972, 3
    %v2852 = vlaneseq
    %v2853 = vshrl.u32 %v2852, 7
    %2855 = vset.pattern.permute.xlu0 %v2853
    %2856 = vperm.xlu0 %2855, %v2851
    %v2857 = vpop.permute.xlu0 %2856
    %v2858 = vlaneseq
    %v2859 = vshrl.u32 %v2858, 7
    %v2860 = vadd.s32 %v2859, 8
    %2861 = vset.pattern.permute.xlu0 %v2860
    %2862 = vperm.xlu0 %2861, %v2851
    %v2863 = vpop.permute.xlu0 %2862
    %v2864 = vlaneseq
    %v2865 = vshrl.u32 %v2864, 7
    %v2866 = vadd.s32 %v2865, 16
    %2867 = vset.pattern.permute.xlu0 %v2866
    %2868 = vperm.xlu0 %2867, %v2851
    %v2869 = vpop.permute.xlu0 %2868
    %v2870 = vlaneseq
    %v2871 = vshrl.u32 %v2870, 7
    %v2872 = vadd.s32 %v2871, 24
    %2873 = vset.pattern.permute.xlu0 %v2872
    %2874 = vperm.xlu0 %2873, %v2851
    %v2875 = vpop.permute.xlu0 %2874
    %v2876 = vlaneseq
    %v2877 = vshrl.u32 %v2876, 7
    %v2878 = vadd.s32 %v2877, 32
    %2879 = vset.pattern.permute.xlu0 %v2878
    %2880 = vperm.xlu0 %2879, %v2851
    %v2881 = vpop.permute.xlu0 %2880
    %v2882 = vlaneseq
    %v2883 = vshrl.u32 %v2882, 7
    %v2884 = vadd.s32 %v2883, 40
    %2885 = vset.pattern.permute.xlu0 %v2884
    %2886 = vperm.xlu0 %2885, %v2851
    %v2887 = vpop.permute.xlu0 %2886
    %v2888 = vlaneseq
    %v2889 = vshrl.u32 %v2888, 7
    %v2890 = vadd.s32 %v2889, 48
    %2891 = vset.pattern.permute.xlu0 %v2890
    %2892 = vperm.xlu0 %2891, %v2851
    %v2893 = vpop.permute.xlu0 %2892
    %v2894 = vlaneseq
    %v2895 = vshrl.u32 %v2894, 7
    %v2896 = vadd.s32 %v2895, 56
    %2897 = vset.pattern.permute.xlu0 %v2896
    %2898 = vperm.xlu0 %2897, %v2851
    %v2899 = vpop.permute.xlu0 %2898
    %v2900 = vlaneseq
    %v2901 = vshrl.u32 %v2900, 7
    %v2902 = vadd.s32 %v2901, 64
    %2903 = vset.pattern.permute.xlu0 %v2902
    %2904 = vperm.xlu0 %2903, %v2851
    %v2905 = vpop.permute.xlu0 %2904
    %v2906 = vlaneseq
    %v2907 = vshrl.u32 %v2906, 7
    %v2908 = vadd.s32 %v2907, 72
    %2909 = vset.pattern.permute.xlu0 %v2908
    %2910 = vperm.xlu0 %2909, %v2851
    %v2911 = vpop.permute.xlu0 %2910
    %v2912 = vlaneseq
    %v2913 = vshrl.u32 %v2912, 7
    %v2914 = vadd.s32 %v2913, 80
    %2915 = vset.pattern.permute.xlu0 %v2914
    %2916 = vperm.xlu0 %2915, %v2851
    %v2917 = vpop.permute.xlu0 %2916
    %v2918 = vlaneseq
    %v2919 = vshrl.u32 %v2918, 7
    %v2920 = vadd.s32 %v2919, 88
    %2921 = vset.pattern.permute.xlu0 %v2920
    %2922 = vperm.xlu0 %2921, %v2851
    %v2923 = vpop.permute.xlu0 %2922
    %v2924 = vlaneseq
    %v2925 = vshrl.u32 %v2924, 7
    %v2926 = vadd.s32 %v2925, 96
    %2927 = vset.pattern.permute.xlu0 %v2926
    %2928 = vperm.xlu0 %2927, %v2851
    %v2929 = vpop.permute.xlu0 %2928
    %v2930 = vlaneseq
    %v2931 = vshrl.u32 %v2930, 7
    %v2932 = vadd.s32 %v2931, 104
    %2933 = vset.pattern.permute.xlu0 %v2932
    %2934 = vperm.xlu0 %2933, %v2851
    %v2935 = vpop.permute.xlu0 %2934
    %v2936 = vlaneseq
    %v2937 = vshrl.u32 %v2936, 7
    %v2938 = vadd.s32 %v2937, 112
    %2939 = vset.pattern.permute.xlu0 %v2938
    %2940 = vperm.xlu0 %2939, %v2851
    %v2941 = vpop.permute.xlu0 %2940
    %v2942 = vlaneseq
    %v2943 = vshrl.u32 %v2942, 7
    %v2944 = vadd.s32 %v2943, 120
    %2945 = vset.pattern.permute.xlu0 %v2944
    %2946 = vperm.xlu0 %2945, %v2851
    %v2947 = vpop.permute.xlu0 %2946
    %v2948 = vperm.slane %v1973, 3
    %v2949 = vlaneseq
    %v2950 = vshrl.u32 %v2949, 7
    %2952 = vset.pattern.permute.xlu0 %v2950
    %2953 = vperm.xlu0 %2952, %v2948
    %v2954 = vpop.permute.xlu0 %2953
    %v2955 = vlaneseq
    %v2956 = vshrl.u32 %v2955, 7
    %v2957 = vadd.s32 %v2956, 8
    %2958 = vset.pattern.permute.xlu0 %v2957
    %2959 = vperm.xlu0 %2958, %v2948
    %v2960 = vpop.permute.xlu0 %2959
    %v2961 = vlaneseq
    %v2962 = vshrl.u32 %v2961, 7
    %v2963 = vadd.s32 %v2962, 16
    %2964 = vset.pattern.permute.xlu0 %v2963
    %2965 = vperm.xlu0 %2964, %v2948
    %v2966 = vpop.permute.xlu0 %2965
    %v2967 = vlaneseq
    %v2968 = vshrl.u32 %v2967, 7
    %v2969 = vadd.s32 %v2968, 24
    %2970 = vset.pattern.permute.xlu0 %v2969
    %2971 = vperm.xlu0 %2970, %v2948
    %v2972 = vpop.permute.xlu0 %2971
    %v2973 = vlaneseq
    %v2974 = vshrl.u32 %v2973, 7
    %v2975 = vadd.s32 %v2974, 32
    %2976 = vset.pattern.permute.xlu0 %v2975
    %2977 = vperm.xlu0 %2976, %v2948
    %v2978 = vpop.permute.xlu0 %2977
    %v2979 = vlaneseq
    %v2980 = vshrl.u32 %v2979, 7
    %v2981 = vadd.s32 %v2980, 40
    %2982 = vset.pattern.permute.xlu0 %v2981
    %2983 = vperm.xlu0 %2982, %v2948
    %v2984 = vpop.permute.xlu0 %2983
    %v2985 = vlaneseq
    %v2986 = vshrl.u32 %v2985, 7
    %v2987 = vadd.s32 %v2986, 48
    %2988 = vset.pattern.permute.xlu0 %v2987
    %2989 = vperm.xlu0 %2988, %v2948
    %v2990 = vpop.permute.xlu0 %2989
    %v2991 = vlaneseq
    %v2992 = vshrl.u32 %v2991, 7
    %v2993 = vadd.s32 %v2992, 56
    %2994 = vset.pattern.permute.xlu0 %v2993
    %2995 = vperm.xlu0 %2994, %v2948
    %v2996 = vpop.permute.xlu0 %2995
    %v2997 = vlaneseq
    %v2998 = vshrl.u32 %v2997, 7
    %v2999 = vadd.s32 %v2998, 64
    %3000 = vset.pattern.permute.xlu0 %v2999
    %3001 = vperm.xlu0 %3000, %v2948
    %v3002 = vpop.permute.xlu0 %3001
    %v3003 = vlaneseq
    %v3004 = vshrl.u32 %v3003, 7
    %v3005 = vadd.s32 %v3004, 72
    %3006 = vset.pattern.permute.xlu0 %v3005
    %3007 = vperm.xlu0 %3006, %v2948
    %v3008 = vpop.permute.xlu0 %3007
    %v3009 = vlaneseq
    %v3010 = vshrl.u32 %v3009, 7
    %v3011 = vadd.s32 %v3010, 80
    %3012 = vset.pattern.permute.xlu0 %v3011
    %3013 = vperm.xlu0 %3012, %v2948
    %v3014 = vpop.permute.xlu0 %3013
    %v3015 = vlaneseq
    %v3016 = vshrl.u32 %v3015, 7
    %v3017 = vadd.s32 %v3016, 88
    %3018 = vset.pattern.permute.xlu0 %v3017
    %3019 = vperm.xlu0 %3018, %v2948
    %v3020 = vpop.permute.xlu0 %3019
    %v3021 = vlaneseq
    %v3022 = vshrl.u32 %v3021, 7
    %v3023 = vadd.s32 %v3022, 96
    %3024 = vset.pattern.permute.xlu0 %v3023
    %3025 = vperm.xlu0 %3024, %v2948
    %v3026 = vpop.permute.xlu0 %3025
    %v3027 = vlaneseq
    %v3028 = vshrl.u32 %v3027, 7
    %v3029 = vadd.s32 %v3028, 104
    %3030 = vset.pattern.permute.xlu0 %v3029
    %3031 = vperm.xlu0 %3030, %v2948
    %v3032 = vpop.permute.xlu0 %3031
    %v3033 = vlaneseq
    %v3034 = vshrl.u32 %v3033, 7
    %v3035 = vadd.s32 %v3034, 112
    %3036 = vset.pattern.permute.xlu0 %v3035
    %3037 = vperm.xlu0 %3036, %v2948
    %v3038 = vpop.permute.xlu0 %3037
    %v3039 = vlaneseq
    %v3040 = vshrl.u32 %v3039, 7
    %v3041 = vadd.s32 %v3040, 120
    %3042 = vset.pattern.permute.xlu0 %v3041
    %3043 = vperm.xlu0 %3042, %v2948
    %v3044 = vpop.permute.xlu0 %3043
    %v3045 = vperm.slane %v1974, 3
    %v3046 = vlaneseq
    %v3047 = vshrl.u32 %v3046, 7
    %3049 = vset.pattern.permute.xlu0 %v3047
    %3050 = vperm.xlu0 %3049, %v3045
    %v3051 = vpop.permute.xlu0 %3050
    %v3052 = vlaneseq
    %v3053 = vshrl.u32 %v3052, 7
    %v3054 = vadd.s32 %v3053, 8
    %3055 = vset.pattern.permute.xlu0 %v3054
    %3056 = vperm.xlu0 %3055, %v3045
    %v3057 = vpop.permute.xlu0 %3056
    %v3058 = vlaneseq
    %v3059 = vshrl.u32 %v3058, 7
    %v3060 = vadd.s32 %v3059, 16
    %3061 = vset.pattern.permute.xlu0 %v3060
    %3062 = vperm.xlu0 %3061, %v3045
    %v3063 = vpop.permute.xlu0 %3062
    %v3064 = vlaneseq
    %v3065 = vshrl.u32 %v3064, 7
    %v3066 = vadd.s32 %v3065, 24
    %3067 = vset.pattern.permute.xlu0 %v3066
    %3068 = vperm.xlu0 %3067, %v3045
    %v3069 = vpop.permute.xlu0 %3068
    %v3070 = vlaneseq
    %v3071 = vshrl.u32 %v3070, 7
    %v3072 = vadd.s32 %v3071, 32
    %3073 = vset.pattern.permute.xlu0 %v3072
    %3074 = vperm.xlu0 %3073, %v3045
    %v3075 = vpop.permute.xlu0 %3074
    %v3076 = vlaneseq
    %v3077 = vshrl.u32 %v3076, 7
    %v3078 = vadd.s32 %v3077, 40
    %3079 = vset.pattern.permute.xlu0 %v3078
    %3080 = vperm.xlu0 %3079, %v3045
    %v3081 = vpop.permute.xlu0 %3080
    %v3082 = vlaneseq
    %v3083 = vshrl.u32 %v3082, 7
    %v3084 = vadd.s32 %v3083, 48
    %3085 = vset.pattern.permute.xlu0 %v3084
    %3086 = vperm.xlu0 %3085, %v3045
    %v3087 = vpop.permute.xlu0 %3086
    %v3088 = vlaneseq
    %v3089 = vshrl.u32 %v3088, 7
    %v3090 = vadd.s32 %v3089, 56
    %3091 = vset.pattern.permute.xlu0 %v3090
    %3092 = vperm.xlu0 %3091, %v3045
    %v3093 = vpop.permute.xlu0 %3092
    %v3094 = vlaneseq
    %v3095 = vshrl.u32 %v3094, 7
    %v3096 = vadd.s32 %v3095, 64
    %3097 = vset.pattern.permute.xlu0 %v3096
    %3098 = vperm.xlu0 %3097, %v3045
    %v3099 = vpop.permute.xlu0 %3098
    %v3100 = vlaneseq
    %v3101 = vshrl.u32 %v3100, 7
    %v3102 = vadd.s32 %v3101, 72
    %3103 = vset.pattern.permute.xlu0 %v3102
    %3104 = vperm.xlu0 %3103, %v3045
    %v3105 = vpop.permute.xlu0 %3104
    %v3106 = vlaneseq
    %v3107 = vshrl.u32 %v3106, 7
    %v3108 = vadd.s32 %v3107, 80
    %3109 = vset.pattern.permute.xlu0 %v3108
    %3110 = vperm.xlu0 %3109, %v3045
    %v3111 = vpop.permute.xlu0 %3110
    %v3112 = vlaneseq
    %v3113 = vshrl.u32 %v3112, 7
    %v3114 = vadd.s32 %v3113, 88
    %3115 = vset.pattern.permute.xlu0 %v3114
    %3116 = vperm.xlu0 %3115, %v3045
    %v3117 = vpop.permute.xlu0 %3116
    %v3118 = vlaneseq
    %v3119 = vshrl.u32 %v3118, 7
    %v3120 = vadd.s32 %v3119, 96
    %3121 = vset.pattern.permute.xlu0 %v3120
    %3122 = vperm.xlu0 %3121, %v3045
    %v3123 = vpop.permute.xlu0 %3122
    %v3124 = vlaneseq
    %v3125 = vshrl.u32 %v3124, 7
    %v3126 = vadd.s32 %v3125, 104
    %3127 = vset.pattern.permute.xlu0 %v3126
    %3128 = vperm.xlu0 %3127, %v3045
    %v3129 = vpop.permute.xlu0 %3128
    %v3130 = vlaneseq
    %v3131 = vshrl.u32 %v3130, 7
    %v3132 = vadd.s32 %v3131, 112
    %3133 = vset.pattern.permute.xlu0 %v3132
    %3134 = vperm.xlu0 %3133, %v3045
    %v3135 = vpop.permute.xlu0 %3134
    %v3136 = vlaneseq
    %v3137 = vshrl.u32 %v3136, 7
    %v3138 = vadd.s32 %v3137, 120
    %3139 = vset.pattern.permute.xlu0 %v3138
    %3140 = vperm.xlu0 %3139, %v3045
    %v3141 = vpop.permute.xlu0 %3140
    %v3142 = vperm.slane %v1972, 4
    %v3143 = vlaneseq
    %v3144 = vshrl.u32 %v3143, 7
    %3146 = vset.pattern.permute.xlu0 %v3144
    %3147 = vperm.xlu0 %3146, %v3142
    %v3148 = vpop.permute.xlu0 %3147
    %v3149 = vlaneseq
    %v3150 = vshrl.u32 %v3149, 7
    %v3151 = vadd.s32 %v3150, 8
    %3152 = vset.pattern.permute.xlu0 %v3151
    %3153 = vperm.xlu0 %3152, %v3142
    %v3154 = vpop.permute.xlu0 %3153
    %v3155 = vlaneseq
    %v3156 = vshrl.u32 %v3155, 7
    %v3157 = vadd.s32 %v3156, 16
    %3158 = vset.pattern.permute.xlu0 %v3157
    %3159 = vperm.xlu0 %3158, %v3142
    %v3160 = vpop.permute.xlu0 %3159
    %v3161 = vlaneseq
    %v3162 = vshrl.u32 %v3161, 7
    %v3163 = vadd.s32 %v3162, 24
    %3164 = vset.pattern.permute.xlu0 %v3163
    %3165 = vperm.xlu0 %3164, %v3142
    %v3166 = vpop.permute.xlu0 %3165
    %v3167 = vlaneseq
    %v3168 = vshrl.u32 %v3167, 7
    %v3169 = vadd.s32 %v3168, 32
    %3170 = vset.pattern.permute.xlu0 %v3169
    %3171 = vperm.xlu0 %3170, %v3142
    %v3172 = vpop.permute.xlu0 %3171
    %v3173 = vlaneseq
    %v3174 = vshrl.u32 %v3173, 7
    %v3175 = vadd.s32 %v3174, 40
    %3176 = vset.pattern.permute.xlu0 %v3175
    %3177 = vperm.xlu0 %3176, %v3142
    %v3178 = vpop.permute.xlu0 %3177
    %v3179 = vlaneseq
    %v3180 = vshrl.u32 %v3179, 7
    %v3181 = vadd.s32 %v3180, 48
    %3182 = vset.pattern.permute.xlu0 %v3181
    %3183 = vperm.xlu0 %3182, %v3142
    %v3184 = vpop.permute.xlu0 %3183
    %v3185 = vlaneseq
    %v3186 = vshrl.u32 %v3185, 7
    %v3187 = vadd.s32 %v3186, 56
    %3188 = vset.pattern.permute.xlu0 %v3187
    %3189 = vperm.xlu0 %3188, %v3142
    %v3190 = vpop.permute.xlu0 %3189
    %v3191 = vlaneseq
    %v3192 = vshrl.u32 %v3191, 7
    %v3193 = vadd.s32 %v3192, 64
    %3194 = vset.pattern.permute.xlu0 %v3193
    %3195 = vperm.xlu0 %3194, %v3142
    %v3196 = vpop.permute.xlu0 %3195
    %v3197 = vlaneseq
    %v3198 = vshrl.u32 %v3197, 7
    %v3199 = vadd.s32 %v3198, 72
    %3200 = vset.pattern.permute.xlu0 %v3199
    %3201 = vperm.xlu0 %3200, %v3142
    %v3202 = vpop.permute.xlu0 %3201
    %v3203 = vlaneseq
    %v3204 = vshrl.u32 %v3203, 7
    %v3205 = vadd.s32 %v3204, 80
    %3206 = vset.pattern.permute.xlu0 %v3205
    %3207 = vperm.xlu0 %3206, %v3142
    %v3208 = vpop.permute.xlu0 %3207
    %v3209 = vlaneseq
    %v3210 = vshrl.u32 %v3209, 7
    %v3211 = vadd.s32 %v3210, 88
    %3212 = vset.pattern.permute.xlu0 %v3211
    %3213 = vperm.xlu0 %3212, %v3142
    %v3214 = vpop.permute.xlu0 %3213
    %v3215 = vlaneseq
    %v3216 = vshrl.u32 %v3215, 7
    %v3217 = vadd.s32 %v3216, 96
    %3218 = vset.pattern.permute.xlu0 %v3217
    %3219 = vperm.xlu0 %3218, %v3142
    %v3220 = vpop.permute.xlu0 %3219
    %v3221 = vlaneseq
    %v3222 = vshrl.u32 %v3221, 7
    %v3223 = vadd.s32 %v3222, 104
    %3224 = vset.pattern.permute.xlu0 %v3223
    %3225 = vperm.xlu0 %3224, %v3142
    %v3226 = vpop.permute.xlu0 %3225
    %v3227 = vlaneseq
    %v3228 = vshrl.u32 %v3227, 7
    %v3229 = vadd.s32 %v3228, 112
    %3230 = vset.pattern.permute.xlu0 %v3229
    %3231 = vperm.xlu0 %3230, %v3142
    %v3232 = vpop.permute.xlu0 %3231
    %v3233 = vlaneseq
    %v3234 = vshrl.u32 %v3233, 7
    %v3235 = vadd.s32 %v3234, 120
    %3236 = vset.pattern.permute.xlu0 %v3235
    %3237 = vperm.xlu0 %3236, %v3142
    %v3238 = vpop.permute.xlu0 %3237
    %v3239 = vperm.slane %v1973, 4
    %v3240 = vlaneseq
    %v3241 = vshrl.u32 %v3240, 7
    %3243 = vset.pattern.permute.xlu0 %v3241
    %3244 = vperm.xlu0 %3243, %v3239
    %v3245 = vpop.permute.xlu0 %3244
    %v3246 = vlaneseq
    %v3247 = vshrl.u32 %v3246, 7
    %v3248 = vadd.s32 %v3247, 8
    %3249 = vset.pattern.permute.xlu0 %v3248
    %3250 = vperm.xlu0 %3249, %v3239
    %v3251 = vpop.permute.xlu0 %3250
    %v3252 = vlaneseq
    %v3253 = vshrl.u32 %v3252, 7
    %v3254 = vadd.s32 %v3253, 16
    %3255 = vset.pattern.permute.xlu0 %v3254
    %3256 = vperm.xlu0 %3255, %v3239
    %v3257 = vpop.permute.xlu0 %3256
    %v3258 = vlaneseq
    %v3259 = vshrl.u32 %v3258, 7
    %v3260 = vadd.s32 %v3259, 24
    %3261 = vset.pattern.permute.xlu0 %v3260
    %3262 = vperm.xlu0 %3261, %v3239
    %v3263 = vpop.permute.xlu0 %3262
    %v3264 = vlaneseq
    %v3265 = vshrl.u32 %v3264, 7
    %v3266 = vadd.s32 %v3265, 32
    %3267 = vset.pattern.permute.xlu0 %v3266
    %3268 = vperm.xlu0 %3267, %v3239
    %v3269 = vpop.permute.xlu0 %3268
    %v3270 = vlaneseq
    %v3271 = vshrl.u32 %v3270, 7
    %v3272 = vadd.s32 %v3271, 40
    %3273 = vset.pattern.permute.xlu0 %v3272
    %3274 = vperm.xlu0 %3273, %v3239
    %v3275 = vpop.permute.xlu0 %3274
    %v3276 = vlaneseq
    %v3277 = vshrl.u32 %v3276, 7
    %v3278 = vadd.s32 %v3277, 48
    %3279 = vset.pattern.permute.xlu0 %v3278
    %3280 = vperm.xlu0 %3279, %v3239
    %v3281 = vpop.permute.xlu0 %3280
    %v3282 = vlaneseq
    %v3283 = vshrl.u32 %v3282, 7
    %v3284 = vadd.s32 %v3283, 56
    %3285 = vset.pattern.permute.xlu0 %v3284
    %3286 = vperm.xlu0 %3285, %v3239
    %v3287 = vpop.permute.xlu0 %3286
    %v3288 = vlaneseq
    %v3289 = vshrl.u32 %v3288, 7
    %v3290 = vadd.s32 %v3289, 64
    %3291 = vset.pattern.permute.xlu0 %v3290
    %3292 = vperm.xlu0 %3291, %v3239
    %v3293 = vpop.permute.xlu0 %3292
    %v3294 = vlaneseq
    %v3295 = vshrl.u32 %v3294, 7
    %v3296 = vadd.s32 %v3295, 72
    %3297 = vset.pattern.permute.xlu0 %v3296
    %3298 = vperm.xlu0 %3297, %v3239
    %v3299 = vpop.permute.xlu0 %3298
    %v3300 = vlaneseq
    %v3301 = vshrl.u32 %v3300, 7
    %v3302 = vadd.s32 %v3301, 80
    %3303 = vset.pattern.permute.xlu0 %v3302
    %3304 = vperm.xlu0 %3303, %v3239
    %v3305 = vpop.permute.xlu0 %3304
    %v3306 = vlaneseq
    %v3307 = vshrl.u32 %v3306, 7
    %v3308 = vadd.s32 %v3307, 88
    %3309 = vset.pattern.permute.xlu0 %v3308
    %3310 = vperm.xlu0 %3309, %v3239
    %v3311 = vpop.permute.xlu0 %3310
    %v3312 = vlaneseq
    %v3313 = vshrl.u32 %v3312, 7
    %v3314 = vadd.s32 %v3313, 96
    %3315 = vset.pattern.permute.xlu0 %v3314
    %3316 = vperm.xlu0 %3315, %v3239
    %v3317 = vpop.permute.xlu0 %3316
    %v3318 = vlaneseq
    %v3319 = vshrl.u32 %v3318, 7
    %v3320 = vadd.s32 %v3319, 104
    %3321 = vset.pattern.permute.xlu0 %v3320
    %3322 = vperm.xlu0 %3321, %v3239
    %v3323 = vpop.permute.xlu0 %3322
    %v3324 = vlaneseq
    %v3325 = vshrl.u32 %v3324, 7
    %v3326 = vadd.s32 %v3325, 112
    %3327 = vset.pattern.permute.xlu0 %v3326
    %3328 = vperm.xlu0 %3327, %v3239
    %v3329 = vpop.permute.xlu0 %3328
    %v3330 = vlaneseq
    %v3331 = vshrl.u32 %v3330, 7
    %v3332 = vadd.s32 %v3331, 120
    %3333 = vset.pattern.permute.xlu0 %v3332
    %3334 = vperm.xlu0 %3333, %v3239
    %v3335 = vpop.permute.xlu0 %3334
    %v3336 = vperm.slane %v1974, 4
    %v3337 = vlaneseq
    %v3338 = vshrl.u32 %v3337, 7
    %3340 = vset.pattern.permute.xlu0 %v3338
    %3341 = vperm.xlu0 %3340, %v3336
    %v3342 = vpop.permute.xlu0 %3341
    %v3343 = vlaneseq
    %v3344 = vshrl.u32 %v3343, 7
    %v3345 = vadd.s32 %v3344, 8
    %3346 = vset.pattern.permute.xlu0 %v3345
    %3347 = vperm.xlu0 %3346, %v3336
    %v3348 = vpop.permute.xlu0 %3347
    %v3349 = vlaneseq
    %v3350 = vshrl.u32 %v3349, 7
    %v3351 = vadd.s32 %v3350, 16
    %3352 = vset.pattern.permute.xlu0 %v3351
    %3353 = vperm.xlu0 %3352, %v3336
    %v3354 = vpop.permute.xlu0 %3353
    %v3355 = vlaneseq
    %v3356 = vshrl.u32 %v3355, 7
    %v3357 = vadd.s32 %v3356, 24
    %3358 = vset.pattern.permute.xlu0 %v3357
    %3359 = vperm.xlu0 %3358, %v3336
    %v3360 = vpop.permute.xlu0 %3359
    %v3361 = vlaneseq
    %v3362 = vshrl.u32 %v3361, 7
    %v3363 = vadd.s32 %v3362, 32
    %3364 = vset.pattern.permute.xlu0 %v3363
    %3365 = vperm.xlu0 %3364, %v3336
    %v3366 = vpop.permute.xlu0 %3365
    %v3367 = vlaneseq
    %v3368 = vshrl.u32 %v3367, 7
    %v3369 = vadd.s32 %v3368, 40
    %3370 = vset.pattern.permute.xlu0 %v3369
    %3371 = vperm.xlu0 %3370, %v3336
    %v3372 = vpop.permute.xlu0 %3371
    %v3373 = vlaneseq
    %v3374 = vshrl.u32 %v3373, 7
    %v3375 = vadd.s32 %v3374, 48
    %3376 = vset.pattern.permute.xlu0 %v3375
    %3377 = vperm.xlu0 %3376, %v3336
    %v3378 = vpop.permute.xlu0 %3377
    %v3379 = vlaneseq
    %v3380 = vshrl.u32 %v3379, 7
    %v3381 = vadd.s32 %v3380, 56
    %3382 = vset.pattern.permute.xlu0 %v3381
    %3383 = vperm.xlu0 %3382, %v3336
    %v3384 = vpop.permute.xlu0 %3383
    %v3385 = vlaneseq
    %v3386 = vshrl.u32 %v3385, 7
    %v3387 = vadd.s32 %v3386, 64
    %3388 = vset.pattern.permute.xlu0 %v3387
    %3389 = vperm.xlu0 %3388, %v3336
    %v3390 = vpop.permute.xlu0 %3389
    %v3391 = vlaneseq
    %v3392 = vshrl.u32 %v3391, 7
    %v3393 = vadd.s32 %v3392, 72
    %3394 = vset.pattern.permute.xlu0 %v3393
    %3395 = vperm.xlu0 %3394, %v3336
    %v3396 = vpop.permute.xlu0 %3395
    %v3397 = vlaneseq
    %v3398 = vshrl.u32 %v3397, 7
    %v3399 = vadd.s32 %v3398, 80
    %3400 = vset.pattern.permute.xlu0 %v3399
    %3401 = vperm.xlu0 %3400, %v3336
    %v3402 = vpop.permute.xlu0 %3401
    %v3403 = vlaneseq
    %v3404 = vshrl.u32 %v3403, 7
    %v3405 = vadd.s32 %v3404, 88
    %3406 = vset.pattern.permute.xlu0 %v3405
    %3407 = vperm.xlu0 %3406, %v3336
    %v3408 = vpop.permute.xlu0 %3407
    %v3409 = vlaneseq
    %v3410 = vshrl.u32 %v3409, 7
    %v3411 = vadd.s32 %v3410, 96
    %3412 = vset.pattern.permute.xlu0 %v3411
    %3413 = vperm.xlu0 %3412, %v3336
    %v3414 = vpop.permute.xlu0 %3413
    %v3415 = vlaneseq
    %v3416 = vshrl.u32 %v3415, 7
    %v3417 = vadd.s32 %v3416, 104
    %3418 = vset.pattern.permute.xlu0 %v3417
    %3419 = vperm.xlu0 %3418, %v3336
    %v3420 = vpop.permute.xlu0 %3419
    %v3421 = vlaneseq
    %v3422 = vshrl.u32 %v3421, 7
    %v3423 = vadd.s32 %v3422, 112
    %3424 = vset.pattern.permute.xlu0 %v3423
    %3425 = vperm.xlu0 %3424, %v3336
    %v3426 = vpop.permute.xlu0 %3425
    %v3427 = vlaneseq
    %v3428 = vshrl.u32 %v3427, 7
    %v3429 = vadd.s32 %v3428, 120
    %3430 = vset.pattern.permute.xlu0 %v3429
    %3431 = vperm.xlu0 %3430, %v3336
    %v3432 = vpop.permute.xlu0 %3431
    %v3433 = vperm.slane %v1972, 5
    %v3434 = vlaneseq
    %v3435 = vshrl.u32 %v3434, 7
    %3437 = vset.pattern.permute.xlu0 %v3435
    %3438 = vperm.xlu0 %3437, %v3433
    %v3439 = vpop.permute.xlu0 %3438
    %v3440 = vlaneseq
    %v3441 = vshrl.u32 %v3440, 7
    %v3442 = vadd.s32 %v3441, 8
    %3443 = vset.pattern.permute.xlu0 %v3442
    %3444 = vperm.xlu0 %3443, %v3433
    %v3445 = vpop.permute.xlu0 %3444
    %v3446 = vlaneseq
    %v3447 = vshrl.u32 %v3446, 7
    %v3448 = vadd.s32 %v3447, 16
    %3449 = vset.pattern.permute.xlu0 %v3448
    %3450 = vperm.xlu0 %3449, %v3433
    %v3451 = vpop.permute.xlu0 %3450
    %v3452 = vlaneseq
    %v3453 = vshrl.u32 %v3452, 7
    %v3454 = vadd.s32 %v3453, 24
    %3455 = vset.pattern.permute.xlu0 %v3454
    %3456 = vperm.xlu0 %3455, %v3433
    %v3457 = vpop.permute.xlu0 %3456
    %v3458 = vlaneseq
    %v3459 = vshrl.u32 %v3458, 7
    %v3460 = vadd.s32 %v3459, 32
    %3461 = vset.pattern.permute.xlu0 %v3460
    %3462 = vperm.xlu0 %3461, %v3433
    %v3463 = vpop.permute.xlu0 %3462
    %v3464 = vlaneseq
    %v3465 = vshrl.u32 %v3464, 7
    %v3466 = vadd.s32 %v3465, 40
    %3467 = vset.pattern.permute.xlu0 %v3466
    %3468 = vperm.xlu0 %3467, %v3433
    %v3469 = vpop.permute.xlu0 %3468
    %v3470 = vlaneseq
    %v3471 = vshrl.u32 %v3470, 7
    %v3472 = vadd.s32 %v3471, 48
    %3473 = vset.pattern.permute.xlu0 %v3472
    %3474 = vperm.xlu0 %3473, %v3433
    %v3475 = vpop.permute.xlu0 %3474
    %v3476 = vlaneseq
    %v3477 = vshrl.u32 %v3476, 7
    %v3478 = vadd.s32 %v3477, 56
    %3479 = vset.pattern.permute.xlu0 %v3478
    %3480 = vperm.xlu0 %3479, %v3433
    %v3481 = vpop.permute.xlu0 %3480
    %v3482 = vlaneseq
    %v3483 = vshrl.u32 %v3482, 7
    %v3484 = vadd.s32 %v3483, 64
    %3485 = vset.pattern.permute.xlu0 %v3484
    %3486 = vperm.xlu0 %3485, %v3433
    %v3487 = vpop.permute.xlu0 %3486
    %v3488 = vlaneseq
    %v3489 = vshrl.u32 %v3488, 7
    %v3490 = vadd.s32 %v3489, 72
    %3491 = vset.pattern.permute.xlu0 %v3490
    %3492 = vperm.xlu0 %3491, %v3433
    %v3493 = vpop.permute.xlu0 %3492
    %v3494 = vlaneseq
    %v3495 = vshrl.u32 %v3494, 7
    %v3496 = vadd.s32 %v3495, 80
    %3497 = vset.pattern.permute.xlu0 %v3496
    %3498 = vperm.xlu0 %3497, %v3433
    %v3499 = vpop.permute.xlu0 %3498
    %v3500 = vlaneseq
    %v3501 = vshrl.u32 %v3500, 7
    %v3502 = vadd.s32 %v3501, 88
    %3503 = vset.pattern.permute.xlu0 %v3502
    %3504 = vperm.xlu0 %3503, %v3433
    %v3505 = vpop.permute.xlu0 %3504
    %v3506 = vlaneseq
    %v3507 = vshrl.u32 %v3506, 7
    %v3508 = vadd.s32 %v3507, 96
    %3509 = vset.pattern.permute.xlu0 %v3508
    %3510 = vperm.xlu0 %3509, %v3433
    %v3511 = vpop.permute.xlu0 %3510
    %v3512 = vlaneseq
    %v3513 = vshrl.u32 %v3512, 7
    %v3514 = vadd.s32 %v3513, 104
    %3515 = vset.pattern.permute.xlu0 %v3514
    %3516 = vperm.xlu0 %3515, %v3433
    %v3517 = vpop.permute.xlu0 %3516
    %v3518 = vlaneseq
    %v3519 = vshrl.u32 %v3518, 7
    %v3520 = vadd.s32 %v3519, 112
    %3521 = vset.pattern.permute.xlu0 %v3520
    %3522 = vperm.xlu0 %3521, %v3433
    %v3523 = vpop.permute.xlu0 %3522
    %v3524 = vlaneseq
    %v3525 = vshrl.u32 %v3524, 7
    %v3526 = vadd.s32 %v3525, 120
    %3527 = vset.pattern.permute.xlu0 %v3526
    %3528 = vperm.xlu0 %3527, %v3433
    %v3529 = vpop.permute.xlu0 %3528
    %v3530 = vperm.slane %v1973, 5
    %v3531 = vlaneseq
    %v3532 = vshrl.u32 %v3531, 7
    %3534 = vset.pattern.permute.xlu0 %v3532
    %3535 = vperm.xlu0 %3534, %v3530
    %v3536 = vpop.permute.xlu0 %3535
    %v3537 = vlaneseq
    %v3538 = vshrl.u32 %v3537, 7
    %v3539 = vadd.s32 %v3538, 8
    %3540 = vset.pattern.permute.xlu0 %v3539
    %3541 = vperm.xlu0 %3540, %v3530
    %v3542 = vpop.permute.xlu0 %3541
    %v3543 = vlaneseq
    %v3544 = vshrl.u32 %v3543, 7
    %v3545 = vadd.s32 %v3544, 16
    %3546 = vset.pattern.permute.xlu0 %v3545
    %3547 = vperm.xlu0 %3546, %v3530
    %v3548 = vpop.permute.xlu0 %3547
    %v3549 = vlaneseq
    %v3550 = vshrl.u32 %v3549, 7
    %v3551 = vadd.s32 %v3550, 24
    %3552 = vset.pattern.permute.xlu0 %v3551
    %3553 = vperm.xlu0 %3552, %v3530
    %v3554 = vpop.permute.xlu0 %3553
    %v3555 = vlaneseq
    %v3556 = vshrl.u32 %v3555, 7
    %v3557 = vadd.s32 %v3556, 32
    %3558 = vset.pattern.permute.xlu0 %v3557
    %3559 = vperm.xlu0 %3558, %v3530
    %v3560 = vpop.permute.xlu0 %3559
    %v3561 = vlaneseq
    %v3562 = vshrl.u32 %v3561, 7
    %v3563 = vadd.s32 %v3562, 40
    %3564 = vset.pattern.permute.xlu0 %v3563
    %3565 = vperm.xlu0 %3564, %v3530
    %v3566 = vpop.permute.xlu0 %3565
    %v3567 = vlaneseq
    %v3568 = vshrl.u32 %v3567, 7
    %v3569 = vadd.s32 %v3568, 48
    %3570 = vset.pattern.permute.xlu0 %v3569
    %3571 = vperm.xlu0 %3570, %v3530
    %v3572 = vpop.permute.xlu0 %3571
    %v3573 = vlaneseq
    %v3574 = vshrl.u32 %v3573, 7
    %v3575 = vadd.s32 %v3574, 56
    %3576 = vset.pattern.permute.xlu0 %v3575
    %3577 = vperm.xlu0 %3576, %v3530
    %v3578 = vpop.permute.xlu0 %3577
    %v3579 = vlaneseq
    %v3580 = vshrl.u32 %v3579, 7
    %v3581 = vadd.s32 %v3580, 64
    %3582 = vset.pattern.permute.xlu0 %v3581
    %3583 = vperm.xlu0 %3582, %v3530
    %v3584 = vpop.permute.xlu0 %3583
    %v3585 = vlaneseq
    %v3586 = vshrl.u32 %v3585, 7
    %v3587 = vadd.s32 %v3586, 72
    %3588 = vset.pattern.permute.xlu0 %v3587
    %3589 = vperm.xlu0 %3588, %v3530
    %v3590 = vpop.permute.xlu0 %3589
    %v3591 = vlaneseq
    %v3592 = vshrl.u32 %v3591, 7
    %v3593 = vadd.s32 %v3592, 80
    %3594 = vset.pattern.permute.xlu0 %v3593
    %3595 = vperm.xlu0 %3594, %v3530
    %v3596 = vpop.permute.xlu0 %3595
    %v3597 = vlaneseq
    %v3598 = vshrl.u32 %v3597, 7
    %v3599 = vadd.s32 %v3598, 88
    %3600 = vset.pattern.permute.xlu0 %v3599
    %3601 = vperm.xlu0 %3600, %v3530
    %v3602 = vpop.permute.xlu0 %3601
    %v3603 = vlaneseq
    %v3604 = vshrl.u32 %v3603, 7
    %v3605 = vadd.s32 %v3604, 96
    %3606 = vset.pattern.permute.xlu0 %v3605
    %3607 = vperm.xlu0 %3606, %v3530
    %v3608 = vpop.permute.xlu0 %3607
    %v3609 = vlaneseq
    %v3610 = vshrl.u32 %v3609, 7
    %v3611 = vadd.s32 %v3610, 104
    %3612 = vset.pattern.permute.xlu0 %v3611
    %3613 = vperm.xlu0 %3612, %v3530
    %v3614 = vpop.permute.xlu0 %3613
    %v3615 = vlaneseq
    %v3616 = vshrl.u32 %v3615, 7
    %v3617 = vadd.s32 %v3616, 112
    %3618 = vset.pattern.permute.xlu0 %v3617
    %3619 = vperm.xlu0 %3618, %v3530
    %v3620 = vpop.permute.xlu0 %3619
    %v3621 = vlaneseq
    %v3622 = vshrl.u32 %v3621, 7
    %v3623 = vadd.s32 %v3622, 120
    %3624 = vset.pattern.permute.xlu0 %v3623
    %3625 = vperm.xlu0 %3624, %v3530
    %v3626 = vpop.permute.xlu0 %3625
    %v3627 = vperm.slane %v1974, 5
    %v3628 = vlaneseq
    %v3629 = vshrl.u32 %v3628, 7
    %3631 = vset.pattern.permute.xlu0 %v3629
    %3632 = vperm.xlu0 %3631, %v3627
    %v3633 = vpop.permute.xlu0 %3632
    %v3634 = vlaneseq
    %v3635 = vshrl.u32 %v3634, 7
    %v3636 = vadd.s32 %v3635, 8
    %3637 = vset.pattern.permute.xlu0 %v3636
    %3638 = vperm.xlu0 %3637, %v3627
    %v3639 = vpop.permute.xlu0 %3638
    %v3640 = vlaneseq
    %v3641 = vshrl.u32 %v3640, 7
    %v3642 = vadd.s32 %v3641, 16
    %3643 = vset.pattern.permute.xlu0 %v3642
    %3644 = vperm.xlu0 %3643, %v3627
    %v3645 = vpop.permute.xlu0 %3644
    %v3646 = vlaneseq
    %v3647 = vshrl.u32 %v3646, 7
    %v3648 = vadd.s32 %v3647, 24
    %3649 = vset.pattern.permute.xlu0 %v3648
    %3650 = vperm.xlu0 %3649, %v3627
    %v3651 = vpop.permute.xlu0 %3650
    %v3652 = vlaneseq
    %v3653 = vshrl.u32 %v3652, 7
    %v3654 = vadd.s32 %v3653, 32
    %3655 = vset.pattern.permute.xlu0 %v3654
    %3656 = vperm.xlu0 %3655, %v3627
    %v3657 = vpop.permute.xlu0 %3656
    %v3658 = vlaneseq
    %v3659 = vshrl.u32 %v3658, 7
    %v3660 = vadd.s32 %v3659, 40
    %3661 = vset.pattern.permute.xlu0 %v3660
    %3662 = vperm.xlu0 %3661, %v3627
    %v3663 = vpop.permute.xlu0 %3662
    %v3664 = vlaneseq
    %v3665 = vshrl.u32 %v3664, 7
    %v3666 = vadd.s32 %v3665, 48
    %3667 = vset.pattern.permute.xlu0 %v3666
    %3668 = vperm.xlu0 %3667, %v3627
    %v3669 = vpop.permute.xlu0 %3668
    %v3670 = vlaneseq
    %v3671 = vshrl.u32 %v3670, 7
    %v3672 = vadd.s32 %v3671, 56
    %3673 = vset.pattern.permute.xlu0 %v3672
    %3674 = vperm.xlu0 %3673, %v3627
    %v3675 = vpop.permute.xlu0 %3674
    %v3676 = vlaneseq
    %v3677 = vshrl.u32 %v3676, 7
    %v3678 = vadd.s32 %v3677, 64
    %3679 = vset.pattern.permute.xlu0 %v3678
    %3680 = vperm.xlu0 %3679, %v3627
    %v3681 = vpop.permute.xlu0 %3680
    %v3682 = vlaneseq
    %v3683 = vshrl.u32 %v3682, 7
    %v3684 = vadd.s32 %v3683, 72
    %3685 = vset.pattern.permute.xlu0 %v3684
    %3686 = vperm.xlu0 %3685, %v3627
    %v3687 = vpop.permute.xlu0 %3686
    %v3688 = vlaneseq
    %v3689 = vshrl.u32 %v3688, 7
    %v3690 = vadd.s32 %v3689, 80
    %3691 = vset.pattern.permute.xlu0 %v3690
    %3692 = vperm.xlu0 %3691, %v3627
    %v3693 = vpop.permute.xlu0 %3692
    %v3694 = vlaneseq
    %v3695 = vshrl.u32 %v3694, 7
    %v3696 = vadd.s32 %v3695, 88
    %3697 = vset.pattern.permute.xlu0 %v3696
    %3698 = vperm.xlu0 %3697, %v3627
    %v3699 = vpop.permute.xlu0 %3698
    %v3700 = vlaneseq
    %v3701 = vshrl.u32 %v3700, 7
    %v3702 = vadd.s32 %v3701, 96
    %3703 = vset.pattern.permute.xlu0 %v3702
    %3704 = vperm.xlu0 %3703, %v3627
    %v3705 = vpop.permute.xlu0 %3704
    %v3706 = vlaneseq
    %v3707 = vshrl.u32 %v3706, 7
    %v3708 = vadd.s32 %v3707, 104
    %3709 = vset.pattern.permute.xlu0 %v3708
    %3710 = vperm.xlu0 %3709, %v3627
    %v3711 = vpop.permute.xlu0 %3710
    %v3712 = vlaneseq
    %v3713 = vshrl.u32 %v3712, 7
    %v3714 = vadd.s32 %v3713, 112
    %3715 = vset.pattern.permute.xlu0 %v3714
    %3716 = vperm.xlu0 %3715, %v3627
    %v3717 = vpop.permute.xlu0 %3716
    %v3718 = vlaneseq
    %v3719 = vshrl.u32 %v3718, 7
    %v3720 = vadd.s32 %v3719, 120
    %3721 = vset.pattern.permute.xlu0 %v3720
    %3722 = vperm.xlu0 %3721, %v3627
    %v3723 = vpop.permute.xlu0 %3722
    %v3724 = vperm.slane %v1972, 6
    %v3725 = vlaneseq
    %v3726 = vshrl.u32 %v3725, 7
    %3728 = vset.pattern.permute.xlu0 %v3726
    %3729 = vperm.xlu0 %3728, %v3724
    %v3730 = vpop.permute.xlu0 %3729
    %v3731 = vlaneseq
    %v3732 = vshrl.u32 %v3731, 7
    %v3733 = vadd.s32 %v3732, 8
    %3734 = vset.pattern.permute.xlu0 %v3733
    %3735 = vperm.xlu0 %3734, %v3724
    %v3736 = vpop.permute.xlu0 %3735
    %v3737 = vlaneseq
    %v3738 = vshrl.u32 %v3737, 7
    %v3739 = vadd.s32 %v3738, 16
    %3740 = vset.pattern.permute.xlu0 %v3739
    %3741 = vperm.xlu0 %3740, %v3724
    %v3742 = vpop.permute.xlu0 %3741
    %v3743 = vlaneseq
    %v3744 = vshrl.u32 %v3743, 7
    %v3745 = vadd.s32 %v3744, 24
    %3746 = vset.pattern.permute.xlu0 %v3745
    %3747 = vperm.xlu0 %3746, %v3724
    %v3748 = vpop.permute.xlu0 %3747
    %v3749 = vlaneseq
    %v3750 = vshrl.u32 %v3749, 7
    %v3751 = vadd.s32 %v3750, 32
    %3752 = vset.pattern.permute.xlu0 %v3751
    %3753 = vperm.xlu0 %3752, %v3724
    %v3754 = vpop.permute.xlu0 %3753
    %v3755 = vlaneseq
    %v3756 = vshrl.u32 %v3755, 7
    %v3757 = vadd.s32 %v3756, 40
    %3758 = vset.pattern.permute.xlu0 %v3757
    %3759 = vperm.xlu0 %3758, %v3724
    %v3760 = vpop.permute.xlu0 %3759
    %v3761 = vlaneseq
    %v3762 = vshrl.u32 %v3761, 7
    %v3763 = vadd.s32 %v3762, 48
    %3764 = vset.pattern.permute.xlu0 %v3763
    %3765 = vperm.xlu0 %3764, %v3724
    %v3766 = vpop.permute.xlu0 %3765
    %v3767 = vlaneseq
    %v3768 = vshrl.u32 %v3767, 7
    %v3769 = vadd.s32 %v3768, 56
    %3770 = vset.pattern.permute.xlu0 %v3769
    %3771 = vperm.xlu0 %3770, %v3724
    %v3772 = vpop.permute.xlu0 %3771
    %v3773 = vlaneseq
    %v3774 = vshrl.u32 %v3773, 7
    %v3775 = vadd.s32 %v3774, 64
    %3776 = vset.pattern.permute.xlu0 %v3775
    %3777 = vperm.xlu0 %3776, %v3724
    %v3778 = vpop.permute.xlu0 %3777
    %v3779 = vlaneseq
    %v3780 = vshrl.u32 %v3779, 7
    %v3781 = vadd.s32 %v3780, 72
    %3782 = vset.pattern.permute.xlu0 %v3781
    %3783 = vperm.xlu0 %3782, %v3724
    %v3784 = vpop.permute.xlu0 %3783
    %v3785 = vlaneseq
    %v3786 = vshrl.u32 %v3785, 7
    %v3787 = vadd.s32 %v3786, 80
    %3788 = vset.pattern.permute.xlu0 %v3787
    %3789 = vperm.xlu0 %3788, %v3724
    %v3790 = vpop.permute.xlu0 %3789
    %v3791 = vlaneseq
    %v3792 = vshrl.u32 %v3791, 7
    %v3793 = vadd.s32 %v3792, 88
    %3794 = vset.pattern.permute.xlu0 %v3793
    %3795 = vperm.xlu0 %3794, %v3724
    %v3796 = vpop.permute.xlu0 %3795
    %v3797 = vlaneseq
    %v3798 = vshrl.u32 %v3797, 7
    %v3799 = vadd.s32 %v3798, 96
    %3800 = vset.pattern.permute.xlu0 %v3799
    %3801 = vperm.xlu0 %3800, %v3724
    %v3802 = vpop.permute.xlu0 %3801
    %v3803 = vlaneseq
    %v3804 = vshrl.u32 %v3803, 7
    %v3805 = vadd.s32 %v3804, 104
    %3806 = vset.pattern.permute.xlu0 %v3805
    %3807 = vperm.xlu0 %3806, %v3724
    %v3808 = vpop.permute.xlu0 %3807
    %v3809 = vlaneseq
    %v3810 = vshrl.u32 %v3809, 7
    %v3811 = vadd.s32 %v3810, 112
    %3812 = vset.pattern.permute.xlu0 %v3811
    %3813 = vperm.xlu0 %3812, %v3724
    %v3814 = vpop.permute.xlu0 %3813
    %v3815 = vlaneseq
    %v3816 = vshrl.u32 %v3815, 7
    %v3817 = vadd.s32 %v3816, 120
    %3818 = vset.pattern.permute.xlu0 %v3817
    %3819 = vperm.xlu0 %3818, %v3724
    %v3820 = vpop.permute.xlu0 %3819
    %v3821 = vperm.slane %v1973, 6
    %v3822 = vlaneseq
    %v3823 = vshrl.u32 %v3822, 7
    %3825 = vset.pattern.permute.xlu0 %v3823
    %3826 = vperm.xlu0 %3825, %v3821
    %v3827 = vpop.permute.xlu0 %3826
    %v3828 = vlaneseq
    %v3829 = vshrl.u32 %v3828, 7
    %v3830 = vadd.s32 %v3829, 8
    %3831 = vset.pattern.permute.xlu0 %v3830
    %3832 = vperm.xlu0 %3831, %v3821
    %v3833 = vpop.permute.xlu0 %3832
    %v3834 = vlaneseq
    %v3835 = vshrl.u32 %v3834, 7
    %v3836 = vadd.s32 %v3835, 16
    %3837 = vset.pattern.permute.xlu0 %v3836
    %3838 = vperm.xlu0 %3837, %v3821
    %v3839 = vpop.permute.xlu0 %3838
    %v3840 = vlaneseq
    %v3841 = vshrl.u32 %v3840, 7
    %v3842 = vadd.s32 %v3841, 24
    %3843 = vset.pattern.permute.xlu0 %v3842
    %3844 = vperm.xlu0 %3843, %v3821
    %v3845 = vpop.permute.xlu0 %3844
    %v3846 = vlaneseq
    %v3847 = vshrl.u32 %v3846, 7
    %v3848 = vadd.s32 %v3847, 32
    %3849 = vset.pattern.permute.xlu0 %v3848
    %3850 = vperm.xlu0 %3849, %v3821
    %v3851 = vpop.permute.xlu0 %3850
    %v3852 = vlaneseq
    %v3853 = vshrl.u32 %v3852, 7
    %v3854 = vadd.s32 %v3853, 40
    %3855 = vset.pattern.permute.xlu0 %v3854
    %3856 = vperm.xlu0 %3855, %v3821
    %v3857 = vpop.permute.xlu0 %3856
    %v3858 = vlaneseq
    %v3859 = vshrl.u32 %v3858, 7
    %v3860 = vadd.s32 %v3859, 48
    %3861 = vset.pattern.permute.xlu0 %v3860
    %3862 = vperm.xlu0 %3861, %v3821
    %v3863 = vpop.permute.xlu0 %3862
    %v3864 = vlaneseq
    %v3865 = vshrl.u32 %v3864, 7
    %v3866 = vadd.s32 %v3865, 56
    %3867 = vset.pattern.permute.xlu0 %v3866
    %3868 = vperm.xlu0 %3867, %v3821
    %v3869 = vpop.permute.xlu0 %3868
    %v3870 = vlaneseq
    %v3871 = vshrl.u32 %v3870, 7
    %v3872 = vadd.s32 %v3871, 64
    %3873 = vset.pattern.permute.xlu0 %v3872
    %3874 = vperm.xlu0 %3873, %v3821
    %v3875 = vpop.permute.xlu0 %3874
    %v3876 = vlaneseq
    %v3877 = vshrl.u32 %v3876, 7
    %v3878 = vadd.s32 %v3877, 72
    %3879 = vset.pattern.permute.xlu0 %v3878
    %3880 = vperm.xlu0 %3879, %v3821
    %v3881 = vpop.permute.xlu0 %3880
    %v3882 = vlaneseq
    %v3883 = vshrl.u32 %v3882, 7
    %v3884 = vadd.s32 %v3883, 80
    %3885 = vset.pattern.permute.xlu0 %v3884
    %3886 = vperm.xlu0 %3885, %v3821
    %v3887 = vpop.permute.xlu0 %3886
    %v3888 = vlaneseq
    %v3889 = vshrl.u32 %v3888, 7
    %v3890 = vadd.s32 %v3889, 88
    %3891 = vset.pattern.permute.xlu0 %v3890
    %3892 = vperm.xlu0 %3891, %v3821
    %v3893 = vpop.permute.xlu0 %3892
    %v3894 = vlaneseq
    %v3895 = vshrl.u32 %v3894, 7
    %v3896 = vadd.s32 %v3895, 96
    %3897 = vset.pattern.permute.xlu0 %v3896
    %3898 = vperm.xlu0 %3897, %v3821
    %v3899 = vpop.permute.xlu0 %3898
    %v3900 = vlaneseq
    %v3901 = vshrl.u32 %v3900, 7
    %v3902 = vadd.s32 %v3901, 104
    %3903 = vset.pattern.permute.xlu0 %v3902
    %3904 = vperm.xlu0 %3903, %v3821
    %v3905 = vpop.permute.xlu0 %3904
    %v3906 = vlaneseq
    %v3907 = vshrl.u32 %v3906, 7
    %v3908 = vadd.s32 %v3907, 112
    %3909 = vset.pattern.permute.xlu0 %v3908
    %3910 = vperm.xlu0 %3909, %v3821
    %v3911 = vpop.permute.xlu0 %3910
    %v3912 = vlaneseq
    %v3913 = vshrl.u32 %v3912, 7
    %v3914 = vadd.s32 %v3913, 120
    %3915 = vset.pattern.permute.xlu0 %v3914
    %3916 = vperm.xlu0 %3915, %v3821
    %v3917 = vpop.permute.xlu0 %3916
    %v3918 = vperm.slane %v1974, 6
    %v3919 = vlaneseq
    %v3920 = vshrl.u32 %v3919, 7
    %3922 = vset.pattern.permute.xlu0 %v3920
    %3923 = vperm.xlu0 %3922, %v3918
    %v3924 = vpop.permute.xlu0 %3923
    %v3925 = vlaneseq
    %v3926 = vshrl.u32 %v3925, 7
    %v3927 = vadd.s32 %v3926, 8
    %3928 = vset.pattern.permute.xlu0 %v3927
    %3929 = vperm.xlu0 %3928, %v3918
    %v3930 = vpop.permute.xlu0 %3929
    %v3931 = vlaneseq
    %v3932 = vshrl.u32 %v3931, 7
    %v3933 = vadd.s32 %v3932, 16
    %3934 = vset.pattern.permute.xlu0 %v3933
    %3935 = vperm.xlu0 %3934, %v3918
    %v3936 = vpop.permute.xlu0 %3935
    %v3937 = vlaneseq
    %v3938 = vshrl.u32 %v3937, 7
    %v3939 = vadd.s32 %v3938, 24
    %3940 = vset.pattern.permute.xlu0 %v3939
    %3941 = vperm.xlu0 %3940, %v3918
    %v3942 = vpop.permute.xlu0 %3941
    %v3943 = vlaneseq
    %v3944 = vshrl.u32 %v3943, 7
    %v3945 = vadd.s32 %v3944, 32
    %3946 = vset.pattern.permute.xlu0 %v3945
    %3947 = vperm.xlu0 %3946, %v3918
    %v3948 = vpop.permute.xlu0 %3947
    %v3949 = vlaneseq
    %v3950 = vshrl.u32 %v3949, 7
    %v3951 = vadd.s32 %v3950, 40
    %3952 = vset.pattern.permute.xlu0 %v3951
    %3953 = vperm.xlu0 %3952, %v3918
    %v3954 = vpop.permute.xlu0 %3953
    %v3955 = vlaneseq
    %v3956 = vshrl.u32 %v3955, 7
    %v3957 = vadd.s32 %v3956, 48
    %3958 = vset.pattern.permute.xlu0 %v3957
    %3959 = vperm.xlu0 %3958, %v3918
    %v3960 = vpop.permute.xlu0 %3959
    %v3961 = vlaneseq
    %v3962 = vshrl.u32 %v3961, 7
    %v3963 = vadd.s32 %v3962, 56
    %3964 = vset.pattern.permute.xlu0 %v3963
    %3965 = vperm.xlu0 %3964, %v3918
    %v3966 = vpop.permute.xlu0 %3965
    %v3967 = vlaneseq
    %v3968 = vshrl.u32 %v3967, 7
    %v3969 = vadd.s32 %v3968, 64
    %3970 = vset.pattern.permute.xlu0 %v3969
    %3971 = vperm.xlu0 %3970, %v3918
    %v3972 = vpop.permute.xlu0 %3971
    %v3973 = vlaneseq
    %v3974 = vshrl.u32 %v3973, 7
    %v3975 = vadd.s32 %v3974, 72
    %3976 = vset.pattern.permute.xlu0 %v3975
    %3977 = vperm.xlu0 %3976, %v3918
    %v3978 = vpop.permute.xlu0 %3977
    %v3979 = vlaneseq
    %v3980 = vshrl.u32 %v3979, 7
    %v3981 = vadd.s32 %v3980, 80
    %3982 = vset.pattern.permute.xlu0 %v3981
    %3983 = vperm.xlu0 %3982, %v3918
    %v3984 = vpop.permute.xlu0 %3983
    %v3985 = vlaneseq
    %v3986 = vshrl.u32 %v3985, 7
    %v3987 = vadd.s32 %v3986, 88
    %3988 = vset.pattern.permute.xlu0 %v3987
    %3989 = vperm.xlu0 %3988, %v3918
    %v3990 = vpop.permute.xlu0 %3989
    %v3991 = vlaneseq
    %v3992 = vshrl.u32 %v3991, 7
    %v3993 = vadd.s32 %v3992, 96
    %3994 = vset.pattern.permute.xlu0 %v3993
    %3995 = vperm.xlu0 %3994, %v3918
    %v3996 = vpop.permute.xlu0 %3995
    %v3997 = vlaneseq
    %v3998 = vshrl.u32 %v3997, 7
    %v3999 = vadd.s32 %v3998, 104
    %4000 = vset.pattern.permute.xlu0 %v3999
    %4001 = vperm.xlu0 %4000, %v3918
    %v4002 = vpop.permute.xlu0 %4001
    %v4003 = vlaneseq
    %v4004 = vshrl.u32 %v4003, 7
    %v4005 = vadd.s32 %v4004, 112
    %4006 = vset.pattern.permute.xlu0 %v4005
    %4007 = vperm.xlu0 %4006, %v3918
    %v4008 = vpop.permute.xlu0 %4007
    %v4009 = vlaneseq
    %v4010 = vshrl.u32 %v4009, 7
    %v4011 = vadd.s32 %v4010, 120
    %4012 = vset.pattern.permute.xlu0 %v4011
    %4013 = vperm.xlu0 %4012, %v3918
    %v4014 = vpop.permute.xlu0 %4013
    %v4015 = vperm.slane %v1972, 7
    %v4016 = vlaneseq
    %v4017 = vshrl.u32 %v4016, 7
    %4019 = vset.pattern.permute.xlu0 %v4017
    %4020 = vperm.xlu0 %4019, %v4015
    %v4021 = vpop.permute.xlu0 %4020
    %v4022 = vlaneseq
    %v4023 = vshrl.u32 %v4022, 7
    %v4024 = vadd.s32 %v4023, 8
    %4025 = vset.pattern.permute.xlu0 %v4024
    %4026 = vperm.xlu0 %4025, %v4015
    %v4027 = vpop.permute.xlu0 %4026
    %v4028 = vlaneseq
    %v4029 = vshrl.u32 %v4028, 7
    %v4030 = vadd.s32 %v4029, 16
    %4031 = vset.pattern.permute.xlu0 %v4030
    %4032 = vperm.xlu0 %4031, %v4015
    %v4033 = vpop.permute.xlu0 %4032
    %v4034 = vlaneseq
    %v4035 = vshrl.u32 %v4034, 7
    %v4036 = vadd.s32 %v4035, 24
    %4037 = vset.pattern.permute.xlu0 %v4036
    %4038 = vperm.xlu0 %4037, %v4015
    %v4039 = vpop.permute.xlu0 %4038
    %v4040 = vlaneseq
    %v4041 = vshrl.u32 %v4040, 7
    %v4042 = vadd.s32 %v4041, 32
    %4043 = vset.pattern.permute.xlu0 %v4042
    %4044 = vperm.xlu0 %4043, %v4015
    %v4045 = vpop.permute.xlu0 %4044
    %v4046 = vlaneseq
    %v4047 = vshrl.u32 %v4046, 7
    %v4048 = vadd.s32 %v4047, 40
    %4049 = vset.pattern.permute.xlu0 %v4048
    %4050 = vperm.xlu0 %4049, %v4015
    %v4051 = vpop.permute.xlu0 %4050
    %v4052 = vlaneseq
    %v4053 = vshrl.u32 %v4052, 7
    %v4054 = vadd.s32 %v4053, 48
    %4055 = vset.pattern.permute.xlu0 %v4054
    %4056 = vperm.xlu0 %4055, %v4015
    %v4057 = vpop.permute.xlu0 %4056
    %v4058 = vlaneseq
    %v4059 = vshrl.u32 %v4058, 7
    %v4060 = vadd.s32 %v4059, 56
    %4061 = vset.pattern.permute.xlu0 %v4060
    %4062 = vperm.xlu0 %4061, %v4015
    %v4063 = vpop.permute.xlu0 %4062
    %v4064 = vlaneseq
    %v4065 = vshrl.u32 %v4064, 7
    %v4066 = vadd.s32 %v4065, 64
    %4067 = vset.pattern.permute.xlu0 %v4066
    %4068 = vperm.xlu0 %4067, %v4015
    %v4069 = vpop.permute.xlu0 %4068
    %v4070 = vlaneseq
    %v4071 = vshrl.u32 %v4070, 7
    %v4072 = vadd.s32 %v4071, 72
    %4073 = vset.pattern.permute.xlu0 %v4072
    %4074 = vperm.xlu0 %4073, %v4015
    %v4075 = vpop.permute.xlu0 %4074
    %v4076 = vlaneseq
    %v4077 = vshrl.u32 %v4076, 7
    %v4078 = vadd.s32 %v4077, 80
    %4079 = vset.pattern.permute.xlu0 %v4078
    %4080 = vperm.xlu0 %4079, %v4015
    %v4081 = vpop.permute.xlu0 %4080
    %v4082 = vlaneseq
    %v4083 = vshrl.u32 %v4082, 7
    %v4084 = vadd.s32 %v4083, 88
    %4085 = vset.pattern.permute.xlu0 %v4084
    %4086 = vperm.xlu0 %4085, %v4015
    %v4087 = vpop.permute.xlu0 %4086
    %v4088 = vlaneseq
    %v4089 = vshrl.u32 %v4088, 7
    %v4090 = vadd.s32 %v4089, 96
    %4091 = vset.pattern.permute.xlu0 %v4090
    %4092 = vperm.xlu0 %4091, %v4015
    %v4093 = vpop.permute.xlu0 %4092
    %v4094 = vlaneseq
    %v4095 = vshrl.u32 %v4094, 7
    %v4096 = vadd.s32 %v4095, 104
    %4097 = vset.pattern.permute.xlu0 %v4096
    %4098 = vperm.xlu0 %4097, %v4015
    %v4099 = vpop.permute.xlu0 %4098
    %v4100 = vlaneseq
    %v4101 = vshrl.u32 %v4100, 7
    %v4102 = vadd.s32 %v4101, 112
    %4103 = vset.pattern.permute.xlu0 %v4102
    %4104 = vperm.xlu0 %4103, %v4015
    %v4105 = vpop.permute.xlu0 %4104
    %v4106 = vlaneseq
    %v4107 = vshrl.u32 %v4106, 7
    %v4108 = vadd.s32 %v4107, 120
    %4109 = vset.pattern.permute.xlu0 %v4108
    %4110 = vperm.xlu0 %4109, %v4015
    %v4111 = vpop.permute.xlu0 %4110
    %v4112 = vperm.slane %v1973, 7
    %v4113 = vlaneseq
    %v4114 = vshrl.u32 %v4113, 7
    %4116 = vset.pattern.permute.xlu0 %v4114
    %4117 = vperm.xlu0 %4116, %v4112
    %v4118 = vpop.permute.xlu0 %4117
    %v4119 = vlaneseq
    %v4120 = vshrl.u32 %v4119, 7
    %v4121 = vadd.s32 %v4120, 8
    %4122 = vset.pattern.permute.xlu0 %v4121
    %4123 = vperm.xlu0 %4122, %v4112
    %v4124 = vpop.permute.xlu0 %4123
    %v4125 = vlaneseq
    %v4126 = vshrl.u32 %v4125, 7
    %v4127 = vadd.s32 %v4126, 16
    %4128 = vset.pattern.permute.xlu0 %v4127
    %4129 = vperm.xlu0 %4128, %v4112
    %v4130 = vpop.permute.xlu0 %4129
    %v4131 = vlaneseq
    %v4132 = vshrl.u32 %v4131, 7
    %v4133 = vadd.s32 %v4132, 24
    %4134 = vset.pattern.permute.xlu0 %v4133
    %4135 = vperm.xlu0 %4134, %v4112
    %v4136 = vpop.permute.xlu0 %4135
    %v4137 = vlaneseq
    %v4138 = vshrl.u32 %v4137, 7
    %v4139 = vadd.s32 %v4138, 32
    %4140 = vset.pattern.permute.xlu0 %v4139
    %4141 = vperm.xlu0 %4140, %v4112
    %v4142 = vpop.permute.xlu0 %4141
    %v4143 = vlaneseq
    %v4144 = vshrl.u32 %v4143, 7
    %v4145 = vadd.s32 %v4144, 40
    %4146 = vset.pattern.permute.xlu0 %v4145
    %4147 = vperm.xlu0 %4146, %v4112
    %v4148 = vpop.permute.xlu0 %4147
    %v4149 = vlaneseq
    %v4150 = vshrl.u32 %v4149, 7
    %v4151 = vadd.s32 %v4150, 48
    %4152 = vset.pattern.permute.xlu0 %v4151
    %4153 = vperm.xlu0 %4152, %v4112
    %v4154 = vpop.permute.xlu0 %4153
    %v4155 = vlaneseq
    %v4156 = vshrl.u32 %v4155, 7
    %v4157 = vadd.s32 %v4156, 56
    %4158 = vset.pattern.permute.xlu0 %v4157
    %4159 = vperm.xlu0 %4158, %v4112
    %v4160 = vpop.permute.xlu0 %4159
    %v4161 = vlaneseq
    %v4162 = vshrl.u32 %v4161, 7
    %v4163 = vadd.s32 %v4162, 64
    %4164 = vset.pattern.permute.xlu0 %v4163
    %4165 = vperm.xlu0 %4164, %v4112
    %v4166 = vpop.permute.xlu0 %4165
    %v4167 = vlaneseq
    %v4168 = vshrl.u32 %v4167, 7
    %v4169 = vadd.s32 %v4168, 72
    %4170 = vset.pattern.permute.xlu0 %v4169
    %4171 = vperm.xlu0 %4170, %v4112
    %v4172 = vpop.permute.xlu0 %4171
    %v4173 = vlaneseq
    %v4174 = vshrl.u32 %v4173, 7
    %v4175 = vadd.s32 %v4174, 80
    %4176 = vset.pattern.permute.xlu0 %v4175
    %4177 = vperm.xlu0 %4176, %v4112
    %v4178 = vpop.permute.xlu0 %4177
    %v4179 = vlaneseq
    %v4180 = vshrl.u32 %v4179, 7
    %v4181 = vadd.s32 %v4180, 88
    %4182 = vset.pattern.permute.xlu0 %v4181
    %4183 = vperm.xlu0 %4182, %v4112
    %v4184 = vpop.permute.xlu0 %4183
    %v4185 = vlaneseq
    %v4186 = vshrl.u32 %v4185, 7
    %v4187 = vadd.s32 %v4186, 96
    %4188 = vset.pattern.permute.xlu0 %v4187
    %4189 = vperm.xlu0 %4188, %v4112
    %v4190 = vpop.permute.xlu0 %4189
    %v4191 = vlaneseq
    %v4192 = vshrl.u32 %v4191, 7
    %v4193 = vadd.s32 %v4192, 104
    %4194 = vset.pattern.permute.xlu0 %v4193
    %4195 = vperm.xlu0 %4194, %v4112
    %v4196 = vpop.permute.xlu0 %4195
    %v4197 = vlaneseq
    %v4198 = vshrl.u32 %v4197, 7
    %v4199 = vadd.s32 %v4198, 112
    %4200 = vset.pattern.permute.xlu0 %v4199
    %4201 = vperm.xlu0 %4200, %v4112
    %v4202 = vpop.permute.xlu0 %4201
    %v4203 = vlaneseq
    %v4204 = vshrl.u32 %v4203, 7
    %v4205 = vadd.s32 %v4204, 120
    %4206 = vset.pattern.permute.xlu0 %v4205
    %4207 = vperm.xlu0 %4206, %v4112
    %v4208 = vpop.permute.xlu0 %4207
    %v4209 = vperm.slane %v1974, 7
    %v4210 = vlaneseq
    %v4211 = vshrl.u32 %v4210, 7
    %4213 = vset.pattern.permute.xlu0 %v4211
    %4214 = vperm.xlu0 %4213, %v4209
    %v4215 = vpop.permute.xlu0 %4214
    %v4216 = vlaneseq
    %v4217 = vshrl.u32 %v4216, 7
    %v4218 = vadd.s32 %v4217, 8
    %4219 = vset.pattern.permute.xlu0 %v4218
    %4220 = vperm.xlu0 %4219, %v4209
    %v4221 = vpop.permute.xlu0 %4220
    %v4222 = vlaneseq
    %v4223 = vshrl.u32 %v4222, 7
    %v4224 = vadd.s32 %v4223, 16
    %4225 = vset.pattern.permute.xlu0 %v4224
    %4226 = vperm.xlu0 %4225, %v4209
    %v4227 = vpop.permute.xlu0 %4226
    %v4228 = vlaneseq
    %v4229 = vshrl.u32 %v4228, 7
    %v4230 = vadd.s32 %v4229, 24
    %4231 = vset.pattern.permute.xlu0 %v4230
    %4232 = vperm.xlu0 %4231, %v4209
    %v4233 = vpop.permute.xlu0 %4232
    %v4234 = vlaneseq
    %v4235 = vshrl.u32 %v4234, 7
    %v4236 = vadd.s32 %v4235, 32
    %4237 = vset.pattern.permute.xlu0 %v4236
    %4238 = vperm.xlu0 %4237, %v4209
    %v4239 = vpop.permute.xlu0 %4238
    %v4240 = vlaneseq
    %v4241 = vshrl.u32 %v4240, 7
    %v4242 = vadd.s32 %v4241, 40
    %4243 = vset.pattern.permute.xlu0 %v4242
    %4244 = vperm.xlu0 %4243, %v4209
    %v4245 = vpop.permute.xlu0 %4244
    %v4246 = vlaneseq
    %v4247 = vshrl.u32 %v4246, 7
    %v4248 = vadd.s32 %v4247, 48
    %4249 = vset.pattern.permute.xlu0 %v4248
    %4250 = vperm.xlu0 %4249, %v4209
    %v4251 = vpop.permute.xlu0 %4250
    %v4252 = vlaneseq
    %v4253 = vshrl.u32 %v4252, 7
    %v4254 = vadd.s32 %v4253, 56
    %4255 = vset.pattern.permute.xlu0 %v4254
    %4256 = vperm.xlu0 %4255, %v4209
    %v4257 = vpop.permute.xlu0 %4256
    %v4258 = vlaneseq
    %v4259 = vshrl.u32 %v4258, 7
    %v4260 = vadd.s32 %v4259, 64
    %4261 = vset.pattern.permute.xlu0 %v4260
    %4262 = vperm.xlu0 %4261, %v4209
    %v4263 = vpop.permute.xlu0 %4262
    %v4264 = vlaneseq
    %v4265 = vshrl.u32 %v4264, 7
    %v4266 = vadd.s32 %v4265, 72
    %4267 = vset.pattern.permute.xlu0 %v4266
    %4268 = vperm.xlu0 %4267, %v4209
    %v4269 = vpop.permute.xlu0 %4268
    %v4270 = vlaneseq
    %v4271 = vshrl.u32 %v4270, 7
    %v4272 = vadd.s32 %v4271, 80
    %4273 = vset.pattern.permute.xlu0 %v4272
    %4274 = vperm.xlu0 %4273, %v4209
    %v4275 = vpop.permute.xlu0 %4274
    %v4276 = vlaneseq
    %v4277 = vshrl.u32 %v4276, 7
    %v4278 = vadd.s32 %v4277, 88
    %4279 = vset.pattern.permute.xlu0 %v4278
    %4280 = vperm.xlu0 %4279, %v4209
    %v4281 = vpop.permute.xlu0 %4280
    %v4282 = vlaneseq
    %v4283 = vshrl.u32 %v4282, 7
    %v4284 = vadd.s32 %v4283, 96
    %4285 = vset.pattern.permute.xlu0 %v4284
    %4286 = vperm.xlu0 %4285, %v4209
    %v4287 = vpop.permute.xlu0 %4286
    %v4288 = vlaneseq
    %v4289 = vshrl.u32 %v4288, 7
    %v4290 = vadd.s32 %v4289, 104
    %4291 = vset.pattern.permute.xlu0 %v4290
    %4292 = vperm.xlu0 %4291, %v4209
    %v4293 = vpop.permute.xlu0 %4292
    %v4294 = vlaneseq
    %v4295 = vshrl.u32 %v4294, 7
    %v4296 = vadd.s32 %v4295, 112
    %4297 = vset.pattern.permute.xlu0 %v4296
    %4298 = vperm.xlu0 %4297, %v4209
    %v4299 = vpop.permute.xlu0 %4298
    %v4300 = vlaneseq
    %v4301 = vshrl.u32 %v4300, 7
    %v4302 = vadd.s32 %v4301, 120
    %4303 = vset.pattern.permute.xlu0 %v4302
    %4304 = vperm.xlu0 %4303, %v4209
    %v4305 = vpop.permute.xlu0 %4304
    %v4306 = vmul.f32 %v820, %v1984
    %v4307 = vmul.f32 %v821, %v1984
    %v4308 = vmul.f32 %v822, %v1984
    %v4309 = vmul.f32 %v823, %v1990
    %v4310 = vmul.f32 %v824, %v1990
    %v4311 = vmul.f32 %v825, %v1990
    %v4312 = vmul.f32 %v826, %v1996
    %v4313 = vmul.f32 %v827, %v1996
    %v4314 = vmul.f32 %v828, %v1996
    %v4315 = vmul.f32 %v829, %v2002
    %v4316 = vmul.f32 %v830, %v2002
    %v4317 = vmul.f32 %v831, %v2002
    %v4318 = vmul.f32 %v832, %v2008
    %v4319 = vmul.f32 %v833, %v2008
    %v4320 = vmul.f32 %v834, %v2008
    %v4321 = vmul.f32 %v835, %v2014
    %v4322 = vmul.f32 %v836, %v2014
    %v4323 = vmul.f32 %v837, %v2014
    %v4324 = vmul.f32 %v838, %v2020
    %v4325 = vmul.f32 %v839, %v2020
    %v4326 = vmul.f32 %v840, %v2020
    %v4327 = vmul.f32 %v841, %v2026
    %v4328 = vmul.f32 %v842, %v2026
    %v4329 = vmul.f32 %v843, %v2026
    %v4330 = vmul.f32 %v844, %v2032
    %v4331 = vmul.f32 %v845, %v2032
    %v4332 = vmul.f32 %v846, %v2032
    %v4333 = vmul.f32 %v847, %v2038
    %v4334 = vmul.f32 %v848, %v2038
    %v4335 = vmul.f32 %v849, %v2038
    %v4336 = vmul.f32 %v850, %v2044
    %v4337 = vmul.f32 %v851, %v2044
    %v4338 = vmul.f32 %v852, %v2044
    %v4339 = vmul.f32 %v853, %v2050
    %v4340 = vmul.f32 %v854, %v2050
    %v4341 = vmul.f32 %v855, %v2050
    %v4342 = vmul.f32 %v856, %v2056
    %v4343 = vmul.f32 %v857, %v2056
    %v4344 = vmul.f32 %v858, %v2056
    %v4345 = vmul.f32 %v859, %v2062
    %v4346 = vmul.f32 %v860, %v2062
    %v4347 = vmul.f32 %v861, %v2062
    %v4348 = vmul.f32 %v862, %v2068
    %v4349 = vmul.f32 %v863, %v2068
    %v4350 = vmul.f32 %v864, %v2068
    %v4351 = vmul.f32 %v865, %v2074
    %v4352 = vmul.f32 %v866, %v2074
    %v4353 = vmul.f32 %v867, %v2074
    %v4354 = vmul.f32 %v868, %v2081
    %v4355 = vmul.f32 %v869, %v2081
    %v4356 = vmul.f32 %v870, %v2081
    %v4357 = vmul.f32 %v871, %v2087
    %v4358 = vmul.f32 %v872, %v2087
    %v4359 = vmul.f32 %v873, %v2087
    %v4360 = vmul.f32 %v874, %v2093
    %v4361 = vmul.f32 %v875, %v2093
    %v4362 = vmul.f32 %v876, %v2093
    %v4363 = vmul.f32 %v877, %v2099
    %v4364 = vmul.f32 %v878, %v2099
    %v4365 = vmul.f32 %v879, %v2099
    %v4366 = vmul.f32 %v880, %v2105
    %v4367 = vmul.f32 %v881, %v2105
    %v4368 = vmul.f32 %v882, %v2105
    %v4369 = vmul.f32 %v883, %v2111
    %v4370 = vmul.f32 %v884, %v2111
    %v4371 = vmul.f32 %v885, %v2111
    %v4372 = vmul.f32 %v886, %v2117
    %v4373 = vmul.f32 %v887, %v2117
    %v4374 = vmul.f32 %v888, %v2117
    %v4375 = vmul.f32 %v889, %v2123
    %v4376 = vmul.f32 %v890, %v2123
    %v4377 = vmul.f32 %v891, %v2123
    %v4378 = vmul.f32 %v892, %v2129
    %v4379 = vmul.f32 %v893, %v2129
    %v4380 = vmul.f32 %v894, %v2129
    %v4381 = vmul.f32 %v895, %v2135
    %v4382 = vmul.f32 %v896, %v2135
    %v4383 = vmul.f32 %v897, %v2135
    %v4384 = vmul.f32 %v898, %v2141
    %v4385 = vmul.f32 %v899, %v2141
    %v4386 = vmul.f32 %v900, %v2141
    %v4387 = vmul.f32 %v901, %v2147
    %v4388 = vmul.f32 %v902, %v2147
    %v4389 = vmul.f32 %v903, %v2147
    %v4390 = vmul.f32 %v904, %v2153
    %v4391 = vmul.f32 %v905, %v2153
    %v4392 = vmul.f32 %v906, %v2153
    %v4393 = vmul.f32 %v907, %v2159
    %v4394 = vmul.f32 %v908, %v2159
    %v4395 = vmul.f32 %v909, %v2159
    %v4396 = vmul.f32 %v910, %v2165
    %v4397 = vmul.f32 %v911, %v2165
    %v4398 = vmul.f32 %v912, %v2165
    %v4399 = vmul.f32 %v913, %v2171
    %v4400 = vmul.f32 %v914, %v2171
    %v4401 = vmul.f32 %v915, %v2171
    %v4402 = vmul.f32 %v916, %v2178
    %v4403 = vmul.f32 %v917, %v2178
    %v4404 = vmul.f32 %v918, %v2178
    %v4405 = vmul.f32 %v919, %v2184
    %v4406 = vmul.f32 %v920, %v2184
    %v4407 = vmul.f32 %v921, %v2184
    %v4408 = vmul.f32 %v922, %v2190
    %v4409 = vmul.f32 %v923, %v2190
    %v4410 = vmul.f32 %v924, %v2190
    %v4411 = vmul.f32 %v925, %v2196
    %v4412 = vmul.f32 %v926, %v2196
    %v4413 = vmul.f32 %v927, %v2196
    %v4414 = vmul.f32 %v928, %v2202
    %v4415 = vmul.f32 %v929, %v2202
    %v4416 = vmul.f32 %v930, %v2202
    %v4417 = vmul.f32 %v931, %v2208
    %v4418 = vmul.f32 %v932, %v2208
    %v4419 = vmul.f32 %v933, %v2208
    %v4420 = vmul.f32 %v934, %v2214
    %v4421 = vmul.f32 %v935, %v2214
    %v4422 = vmul.f32 %v936, %v2214
    %v4423 = vmul.f32 %v937, %v2220
    %v4424 = vmul.f32 %v938, %v2220
    %v4425 = vmul.f32 %v939, %v2220
    %v4426 = vmul.f32 %v940, %v2226
    %v4427 = vmul.f32 %v941, %v2226
    %v4428 = vmul.f32 %v942, %v2226
    %v4429 = vmul.f32 %v943, %v2232
    %v4430 = vmul.f32 %v944, %v2232
    %v4431 = vmul.f32 %v945, %v2232
    %v4432 = vmul.f32 %v946, %v2238
    %v4433 = vmul.f32 %v947, %v2238
    %v4434 = vmul.f32 %v948, %v2238
    %v4435 = vmul.f32 %v949, %v2244
    %v4436 = vmul.f32 %v950, %v2244
    %v4437 = vmul.f32 %v951, %v2244
    %v4438 = vmul.f32 %v952, %v2250
    %v4439 = vmul.f32 %v953, %v2250
    %v4440 = vmul.f32 %v954, %v2250
    %v4441 = vmul.f32 %v955, %v2256
    %v4442 = vmul.f32 %v956, %v2256
    %v4443 = vmul.f32 %v957, %v2256
    %v4444 = vmul.f32 %v958, %v2262
    %v4445 = vmul.f32 %v959, %v2262
    %v4446 = vmul.f32 %v960, %v2262
    %v4447 = vmul.f32 %v961, %v2268
    %v4448 = vmul.f32 %v962, %v2268
    %v4449 = vmul.f32 %v963, %v2268
    %v4450 = vmul.f32 %v964, %v2275
    %v4451 = vmul.f32 %v965, %v2275
    %v4452 = vmul.f32 %v966, %v2275
    %v4453 = vmul.f32 %v967, %v2281
    %v4454 = vmul.f32 %v968, %v2281
    %v4455 = vmul.f32 %v969, %v2281
    %v4456 = vmul.f32 %v970, %v2287
    %v4457 = vmul.f32 %v971, %v2287
    %v4458 = vmul.f32 %v972, %v2287
    %v4459 = vmul.f32 %v973, %v2293
    %v4460 = vmul.f32 %v974, %v2293
    %v4461 = vmul.f32 %v975, %v2293
    %v4462 = vmul.f32 %v976, %v2299
    %v4463 = vmul.f32 %v977, %v2299
    %v4464 = vmul.f32 %v978, %v2299
    %v4465 = vmul.f32 %v979, %v2305
    %v4466 = vmul.f32 %v980, %v2305
    %v4467 = vmul.f32 %v981, %v2305
    %v4468 = vmul.f32 %v982, %v2311
    %v4469 = vmul.f32 %v983, %v2311
    %v4470 = vmul.f32 %v984, %v2311
    %v4471 = vmul.f32 %v985, %v2317
    %v4472 = vmul.f32 %v986, %v2317
    %v4473 = vmul.f32 %v987, %v2317
    %v4474 = vmul.f32 %v988, %v2323
    %v4475 = vmul.f32 %v989, %v2323
    %v4476 = vmul.f32 %v990, %v2323
    %v4477 = vmul.f32 %v991, %v2329
    %v4478 = vmul.f32 %v992, %v2329
    %v4479 = vmul.f32 %v993, %v2329
    %v4480 = vmul.f32 %v994, %v2335
    %v4481 = vmul.f32 %v995, %v2335
    %v4482 = vmul.f32 %v996, %v2335
    %v4483 = vmul.f32 %v997, %v2341
    %v4484 = vmul.f32 %v998, %v2341
    %v4485 = vmul.f32 %v999, %v2341
    %v4486 = vmul.f32 %v1000, %v2347
    %v4487 = vmul.f32 %v1001, %v2347
    %v4488 = vmul.f32 %v1002, %v2347
    %v4489 = vmul.f32 %v1003, %v2353
    %v4490 = vmul.f32 %v1004, %v2353
    %v4491 = vmul.f32 %v1005, %v2353
    %v4492 = vmul.f32 %v1006, %v2359
    %v4493 = vmul.f32 %v1007, %v2359
    %v4494 = vmul.f32 %v1008, %v2359
    %v4495 = vmul.f32 %v1009, %v2365
    %v4496 = vmul.f32 %v1010, %v2365
    %v4497 = vmul.f32 %v1011, %v2365
    %v4498 = vmul.f32 %v1012, %v2372
    %v4499 = vmul.f32 %v1013, %v2372
    %v4500 = vmul.f32 %v1014, %v2372
    %v4501 = vmul.f32 %v1015, %v2378
    %v4502 = vmul.f32 %v1016, %v2378
    %v4503 = vmul.f32 %v1017, %v2378
    %v4504 = vmul.f32 %v1018, %v2384
    %v4505 = vmul.f32 %v1019, %v2384
    %v4506 = vmul.f32 %v1020, %v2384
    %v4507 = vmul.f32 %v1021, %v2390
    %v4508 = vmul.f32 %v1022, %v2390
    %v4509 = vmul.f32 %v1023, %v2390
    %v4510 = vmul.f32 %v1024, %v2396
    %v4511 = vmul.f32 %v1025, %v2396
    %v4512 = vmul.f32 %v1026, %v2396
    %v4513 = vmul.f32 %v1027, %v2402
    %v4514 = vmul.f32 %v1028, %v2402
    %v4515 = vmul.f32 %v1029, %v2402
    %v4516 = vmul.f32 %v1030, %v2408
    %v4517 = vmul.f32 %v1031, %v2408
    %v4518 = vmul.f32 %v1032, %v2408
    %v4519 = vmul.f32 %v1033, %v2414
    %v4520 = vmul.f32 %v1034, %v2414
    %v4521 = vmul.f32 %v1035, %v2414
    %v4522 = vmul.f32 %v1036, %v2420
    %v4523 = vmul.f32 %v1037, %v2420
    %v4524 = vmul.f32 %v1038, %v2420
    %v4525 = vmul.f32 %v1039, %v2426
    %v4526 = vmul.f32 %v1040, %v2426
    %v4527 = vmul.f32 %v1041, %v2426
    %v4528 = vmul.f32 %v1042, %v2432
    %v4529 = vmul.f32 %v1043, %v2432
    %v4530 = vmul.f32 %v1044, %v2432
    %v4531 = vmul.f32 %v1045, %v2438
    %v4532 = vmul.f32 %v1046, %v2438
    %v4533 = vmul.f32 %v1047, %v2438
    %v4534 = vmul.f32 %v1048, %v2444
    %v4535 = vmul.f32 %v1049, %v2444
    %v4536 = vmul.f32 %v1050, %v2444
    %v4537 = vmul.f32 %v1051, %v2450
    %v4538 = vmul.f32 %v1052, %v2450
    %v4539 = vmul.f32 %v1053, %v2450
    %v4540 = vmul.f32 %v1054, %v2456
    %v4541 = vmul.f32 %v1055, %v2456
    %v4542 = vmul.f32 %v1056, %v2456
    %v4543 = vmul.f32 %v1057, %v2462
    %v4544 = vmul.f32 %v1058, %v2462
    %v4545 = vmul.f32 %v1059, %v2462
    %v4546 = vmul.f32 %v1060, %v2469
    %v4547 = vmul.f32 %v1061, %v2469
    %v4548 = vmul.f32 %v1062, %v2469
    %v4549 = vmul.f32 %v1063, %v2475
    %v4550 = vmul.f32 %v1064, %v2475
    %v4551 = vmul.f32 %v1065, %v2475
    %v4552 = vmul.f32 %v1066, %v2481
    %v4553 = vmul.f32 %v1067, %v2481
    %v4554 = vmul.f32 %v1068, %v2481
    %v4555 = vmul.f32 %v1069, %v2487
    %v4556 = vmul.f32 %v1070, %v2487
    %v4557 = vmul.f32 %v1071, %v2487
    %v4558 = vmul.f32 %v1072, %v2493
    %v4559 = vmul.f32 %v1073, %v2493
    %v4560 = vmul.f32 %v1074, %v2493
    %v4561 = vmul.f32 %v1075, %v2499
    %v4562 = vmul.f32 %v1076, %v2499
    %v4563 = vmul.f32 %v1077, %v2499
    %v4564 = vmul.f32 %v1078, %v2505
    %v4565 = vmul.f32 %v1079, %v2505
    %v4566 = vmul.f32 %v1080, %v2505
    %v4567 = vmul.f32 %v1081, %v2511
    %v4568 = vmul.f32 %v1082, %v2511
    %v4569 = vmul.f32 %v1083, %v2511
    %v4570 = vmul.f32 %v1084, %v2517
    %v4571 = vmul.f32 %v1085, %v2517
    %v4572 = vmul.f32 %v1086, %v2517
    %v4573 = vmul.f32 %v1087, %v2523
    %v4574 = vmul.f32 %v1088, %v2523
    %v4575 = vmul.f32 %v1089, %v2523
    %v4576 = vmul.f32 %v1090, %v2529
    %v4577 = vmul.f32 %v1091, %v2529
    %v4578 = vmul.f32 %v1092, %v2529
    %v4579 = vmul.f32 %v1093, %v2535
    %v4580 = vmul.f32 %v1094, %v2535
    %v4581 = vmul.f32 %v1095, %v2535
    %v4582 = vmul.f32 %v1096, %v2541
    %v4583 = vmul.f32 %v1097, %v2541
    %v4584 = vmul.f32 %v1098, %v2541
    %v4585 = vmul.f32 %v1099, %v2547
    %v4586 = vmul.f32 %v1100, %v2547
    %v4587 = vmul.f32 %v1101, %v2547
    %v4588 = vmul.f32 %v1102, %v2553
    %v4589 = vmul.f32 %v1103, %v2553
    %v4590 = vmul.f32 %v1104, %v2553
    %v4591 = vmul.f32 %v1105, %v2559
    %v4592 = vmul.f32 %v1106, %v2559
    %v4593 = vmul.f32 %v1107, %v2559
    %v4594 = vmul.f32 %v1108, %v2566
    %v4595 = vmul.f32 %v1109, %v2566
    %v4596 = vmul.f32 %v1110, %v2566
    %v4597 = vmul.f32 %v1111, %v2572
    %v4598 = vmul.f32 %v1112, %v2572
    %v4599 = vmul.f32 %v1113, %v2572
    %v4600 = vmul.f32 %v1114, %v2578
    %v4601 = vmul.f32 %v1115, %v2578
    %v4602 = vmul.f32 %v1116, %v2578
    %v4603 = vmul.f32 %v1117, %v2584
    %v4604 = vmul.f32 %v1118, %v2584
    %v4605 = vmul.f32 %v1119, %v2584
    %v4606 = vmul.f32 %v1120, %v2590
    %v4607 = vmul.f32 %v1121, %v2590
    %v4608 = vmul.f32 %v1122, %v2590
    %v4609 = vmul.f32 %v1123, %v2596
    %v4610 = vmul.f32 %v1124, %v2596
    %v4611 = vmul.f32 %v1125, %v2596
    %v4612 = vmul.f32 %v1126, %v2602
    %v4613 = vmul.f32 %v1127, %v2602
    %v4614 = vmul.f32 %v1128, %v2602
    %v4615 = vmul.f32 %v1129, %v2608
    %v4616 = vmul.f32 %v1130, %v2608
    %v4617 = vmul.f32 %v1131, %v2608
    %v4618 = vmul.f32 %v1132, %v2614
    %v4619 = vmul.f32 %v1133, %v2614
    %v4620 = vmul.f32 %v1134, %v2614
    %v4621 = vmul.f32 %v1135, %v2620
    %v4622 = vmul.f32 %v1136, %v2620
    %v4623 = vmul.f32 %v1137, %v2620
    %v4624 = vmul.f32 %v1138, %v2626
    %v4625 = vmul.f32 %v1139, %v2626
    %v4626 = vmul.f32 %v1140, %v2626
    %v4627 = vmul.f32 %v1141, %v2632
    %v4628 = vmul.f32 %v1142, %v2632
    %v4629 = vmul.f32 %v1143, %v2632
    %v4630 = vmul.f32 %v1144, %v2638
    %v4631 = vmul.f32 %v1145, %v2638
    %v4632 = vmul.f32 %v1146, %v2638
    %v4633 = vmul.f32 %v1147, %v2644
    %v4634 = vmul.f32 %v1148, %v2644
    %v4635 = vmul.f32 %v1149, %v2644
    %v4636 = vmul.f32 %v1150, %v2650
    %v4637 = vmul.f32 %v1151, %v2650
    %v4638 = vmul.f32 %v1152, %v2650
    %v4639 = vmul.f32 %v1153, %v2656
    %v4640 = vmul.f32 %v1154, %v2656
    %v4641 = vmul.f32 %v1155, %v2656
    %v4642 = vmul.f32 %v1156, %v2663
    %v4643 = vmul.f32 %v1157, %v2663
    %v4644 = vmul.f32 %v1158, %v2663
    %v4645 = vmul.f32 %v1159, %v2669
    %v4646 = vmul.f32 %v1160, %v2669
    %v4647 = vmul.f32 %v1161, %v2669
    %v4648 = vmul.f32 %v1162, %v2675
    %v4649 = vmul.f32 %v1163, %v2675
    %v4650 = vmul.f32 %v1164, %v2675
    %v4651 = vmul.f32 %v1165, %v2681
    %v4652 = vmul.f32 %v1166, %v2681
    %v4653 = vmul.f32 %v1167, %v2681
    %v4654 = vmul.f32 %v1168, %v2687
    %v4655 = vmul.f32 %v1169, %v2687
    %v4656 = vmul.f32 %v1170, %v2687
    %v4657 = vmul.f32 %v1171, %v2693
    %v4658 = vmul.f32 %v1172, %v2693
    %v4659 = vmul.f32 %v1173, %v2693
    %v4660 = vmul.f32 %v1174, %v2699
    %v4661 = vmul.f32 %v1175, %v2699
    %v4662 = vmul.f32 %v1176, %v2699
    %v4663 = vmul.f32 %v1177, %v2705
    %v4664 = vmul.f32 %v1178, %v2705
    %v4665 = vmul.f32 %v1179, %v2705
    %v4666 = vmul.f32 %v1180, %v2711
    %v4667 = vmul.f32 %v1181, %v2711
    %v4668 = vmul.f32 %v1182, %v2711
    %v4669 = vmul.f32 %v1183, %v2717
    %v4670 = vmul.f32 %v1184, %v2717
    %v4671 = vmul.f32 %v1185, %v2717
    %v4672 = vmul.f32 %v1186, %v2723
    %v4673 = vmul.f32 %v1187, %v2723
    %v4674 = vmul.f32 %v1188, %v2723
    %v4675 = vmul.f32 %v1189, %v2729
    %v4676 = vmul.f32 %v1190, %v2729
    %v4677 = vmul.f32 %v1191, %v2729
    %v4678 = vmul.f32 %v1192, %v2735
    %v4679 = vmul.f32 %v1193, %v2735
    %v4680 = vmul.f32 %v1194, %v2735
    %v4681 = vmul.f32 %v1195, %v2741
    %v4682 = vmul.f32 %v1196, %v2741
    %v4683 = vmul.f32 %v1197, %v2741
    %v4684 = vmul.f32 %v1198, %v2747
    %v4685 = vmul.f32 %v1199, %v2747
    %v4686 = vmul.f32 %v1200, %v2747
    %v4687 = vmul.f32 %v1201, %v2753
    %v4688 = vmul.f32 %v1202, %v2753
    %v4689 = vmul.f32 %v1203, %v2753
    %v4690 = vmul.f32 %v1204, %v2760
    %v4691 = vmul.f32 %v1205, %v2760
    %v4692 = vmul.f32 %v1206, %v2760
    %v4693 = vmul.f32 %v1207, %v2766
    %v4694 = vmul.f32 %v1208, %v2766
    %v4695 = vmul.f32 %v1209, %v2766
    %v4696 = vmul.f32 %v1210, %v2772
    %v4697 = vmul.f32 %v1211, %v2772
    %v4698 = vmul.f32 %v1212, %v2772
    %v4699 = vmul.f32 %v1213, %v2778
    %v4700 = vmul.f32 %v1214, %v2778
    %v4701 = vmul.f32 %v1215, %v2778
    %v4702 = vmul.f32 %v1216, %v2784
    %v4703 = vmul.f32 %v1217, %v2784
    %v4704 = vmul.f32 %v1218, %v2784
    %v4705 = vmul.f32 %v1219, %v2790
    %v4706 = vmul.f32 %v1220, %v2790
    %v4707 = vmul.f32 %v1221, %v2790
    %v4708 = vmul.f32 %v1222, %v2796
    %v4709 = vmul.f32 %v1223, %v2796
    %v4710 = vmul.f32 %v1224, %v2796
    %v4711 = vmul.f32 %v1225, %v2802
    %v4712 = vmul.f32 %v1226, %v2802
    %v4713 = vmul.f32 %v1227, %v2802
    %v4714 = vmul.f32 %v1228, %v2808
    %v4715 = vmul.f32 %v1229, %v2808
    %v4716 = vmul.f32 %v1230, %v2808
    %v4717 = vmul.f32 %v1231, %v2814
    %v4718 = vmul.f32 %v1232, %v2814
    %v4719 = vmul.f32 %v1233, %v2814
    %v4720 = vmul.f32 %v1234, %v2820
    %v4721 = vmul.f32 %v1235, %v2820
    %v4722 = vmul.f32 %v1236, %v2820
    %v4723 = vmul.f32 %v1237, %v2826
    %v4724 = vmul.f32 %v1238, %v2826
    %v4725 = vmul.f32 %v1239, %v2826
    %v4726 = vmul.f32 %v1240, %v2832
    %v4727 = vmul.f32 %v1241, %v2832
    %v4728 = vmul.f32 %v1242, %v2832
    %v4729 = vmul.f32 %v1243, %v2838
    %v4730 = vmul.f32 %v1244, %v2838
    %v4731 = vmul.f32 %v1245, %v2838
    %v4732 = vmul.f32 %v1246, %v2844
    %v4733 = vmul.f32 %v1247, %v2844
    %v4734 = vmul.f32 %v1248, %v2844
    %v4735 = vmul.f32 %v1249, %v2850
    %v4736 = vmul.f32 %v1250, %v2850
    %v4737 = vmul.f32 %v1251, %v2850
    %v4738 = vmul.f32 %v1252, %v2857
    %v4739 = vmul.f32 %v1253, %v2857
    %v4740 = vmul.f32 %v1254, %v2857
    %v4741 = vmul.f32 %v1255, %v2863
    %v4742 = vmul.f32 %v1256, %v2863
    %v4743 = vmul.f32 %v1257, %v2863
    %v4744 = vmul.f32 %v1258, %v2869
    %v4745 = vmul.f32 %v1259, %v2869
    %v4746 = vmul.f32 %v1260, %v2869
    %v4747 = vmul.f32 %v1261, %v2875
    %v4748 = vmul.f32 %v1262, %v2875
    %v4749 = vmul.f32 %v1263, %v2875
    %v4750 = vmul.f32 %v1264, %v2881
    %v4751 = vmul.f32 %v1265, %v2881
    %v4752 = vmul.f32 %v1266, %v2881
    %v4753 = vmul.f32 %v1267, %v2887
    %v4754 = vmul.f32 %v1268, %v2887
    %v4755 = vmul.f32 %v1269, %v2887
    %v4756 = vmul.f32 %v1270, %v2893
    %v4757 = vmul.f32 %v1271, %v2893
    %v4758 = vmul.f32 %v1272, %v2893
    %v4759 = vmul.f32 %v1273, %v2899
    %v4760 = vmul.f32 %v1274, %v2899
    %v4761 = vmul.f32 %v1275, %v2899
    %v4762 = vmul.f32 %v1276, %v2905
    %v4763 = vmul.f32 %v1277, %v2905
    %v4764 = vmul.f32 %v1278, %v2905
    %v4765 = vmul.f32 %v1279, %v2911
    %v4766 = vmul.f32 %v1280, %v2911
    %v4767 = vmul.f32 %v1281, %v2911
    %v4768 = vmul.f32 %v1282, %v2917
    %v4769 = vmul.f32 %v1283, %v2917
    %v4770 = vmul.f32 %v1284, %v2917
    %v4771 = vmul.f32 %v1285, %v2923
    %v4772 = vmul.f32 %v1286, %v2923
    %v4773 = vmul.f32 %v1287, %v2923
    %v4774 = vmul.f32 %v1288, %v2929
    %v4775 = vmul.f32 %v1289, %v2929
    %v4776 = vmul.f32 %v1290, %v2929
    %v4777 = vmul.f32 %v1291, %v2935
    %v4778 = vmul.f32 %v1292, %v2935
    %v4779 = vmul.f32 %v1293, %v2935
    %v4780 = vmul.f32 %v1294, %v2941
    %v4781 = vmul.f32 %v1295, %v2941
    %v4782 = vmul.f32 %v1296, %v2941
    %v4783 = vmul.f32 %v1297, %v2947
    %v4784 = vmul.f32 %v1298, %v2947
    %v4785 = vmul.f32 %v1299, %v2947
    %v4786 = vmul.f32 %v1300, %v2954
    %v4787 = vmul.f32 %v1301, %v2954
    %v4788 = vmul.f32 %v1302, %v2954
    %v4789 = vmul.f32 %v1303, %v2960
    %v4790 = vmul.f32 %v1304, %v2960
    %v4791 = vmul.f32 %v1305, %v2960
    %v4792 = vmul.f32 %v1306, %v2966
    %v4793 = vmul.f32 %v1307, %v2966
    %v4794 = vmul.f32 %v1308, %v2966
    %v4795 = vmul.f32 %v1309, %v2972
    %v4796 = vmul.f32 %v1310, %v2972
    %v4797 = vmul.f32 %v1311, %v2972
    %v4798 = vmul.f32 %v1312, %v2978
    %v4799 = vmul.f32 %v1313, %v2978
    %v4800 = vmul.f32 %v1314, %v2978
    %v4801 = vmul.f32 %v1315, %v2984
    %v4802 = vmul.f32 %v1316, %v2984
    %v4803 = vmul.f32 %v1317, %v2984
    %v4804 = vmul.f32 %v1318, %v2990
    %v4805 = vmul.f32 %v1319, %v2990
    %v4806 = vmul.f32 %v1320, %v2990
    %v4807 = vmul.f32 %v1321, %v2996
    %v4808 = vmul.f32 %v1322, %v2996
    %v4809 = vmul.f32 %v1323, %v2996
    %v4810 = vmul.f32 %v1324, %v3002
    %v4811 = vmul.f32 %v1325, %v3002
    %v4812 = vmul.f32 %v1326, %v3002
    %v4813 = vmul.f32 %v1327, %v3008
    %v4814 = vmul.f32 %v1328, %v3008
    %v4815 = vmul.f32 %v1329, %v3008
    %v4816 = vmul.f32 %v1330, %v3014
    %v4817 = vmul.f32 %v1331, %v3014
    %v4818 = vmul.f32 %v1332, %v3014
    %v4819 = vmul.f32 %v1333, %v3020
    %v4820 = vmul.f32 %v1334, %v3020
    %v4821 = vmul.f32 %v1335, %v3020
    %v4822 = vmul.f32 %v1336, %v3026
    %v4823 = vmul.f32 %v1337, %v3026
    %v4824 = vmul.f32 %v1338, %v3026
    %v4825 = vmul.f32 %v1339, %v3032
    %v4826 = vmul.f32 %v1340, %v3032
    %v4827 = vmul.f32 %v1341, %v3032
    %v4828 = vmul.f32 %v1342, %v3038
    %v4829 = vmul.f32 %v1343, %v3038
    %v4830 = vmul.f32 %v1344, %v3038
    %v4831 = vmul.f32 %v1345, %v3044
    %v4832 = vmul.f32 %v1346, %v3044
    %v4833 = vmul.f32 %v1347, %v3044
    %v4834 = vmul.f32 %v1348, %v3051
    %v4835 = vmul.f32 %v1349, %v3051
    %v4836 = vmul.f32 %v1350, %v3051
    %v4837 = vmul.f32 %v1351, %v3057
    %v4838 = vmul.f32 %v1352, %v3057
    %v4839 = vmul.f32 %v1353, %v3057
    %v4840 = vmul.f32 %v1354, %v3063
    %v4841 = vmul.f32 %v1355, %v3063
    %v4842 = vmul.f32 %v1356, %v3063
    %v4843 = vmul.f32 %v1357, %v3069
    %v4844 = vmul.f32 %v1358, %v3069
    %v4845 = vmul.f32 %v1359, %v3069
    %v4846 = vmul.f32 %v1360, %v3075
    %v4847 = vmul.f32 %v1361, %v3075
    %v4848 = vmul.f32 %v1362, %v3075
    %v4849 = vmul.f32 %v1363, %v3081
    %v4850 = vmul.f32 %v1364, %v3081
    %v4851 = vmul.f32 %v1365, %v3081
    %v4852 = vmul.f32 %v1366, %v3087
    %v4853 = vmul.f32 %v1367, %v3087
    %v4854 = vmul.f32 %v1368, %v3087
    %v4855 = vmul.f32 %v1369, %v3093
    %v4856 = vmul.f32 %v1370, %v3093
    %v4857 = vmul.f32 %v1371, %v3093
    %v4858 = vmul.f32 %v1372, %v3099
    %v4859 = vmul.f32 %v1373, %v3099
    %v4860 = vmul.f32 %v1374, %v3099
    %v4861 = vmul.f32 %v1375, %v3105
    %v4862 = vmul.f32 %v1376, %v3105
    %v4863 = vmul.f32 %v1377, %v3105
    %v4864 = vmul.f32 %v1378, %v3111
    %v4865 = vmul.f32 %v1379, %v3111
    %v4866 = vmul.f32 %v1380, %v3111
    %v4867 = vmul.f32 %v1381, %v3117
    %v4868 = vmul.f32 %v1382, %v3117
    %v4869 = vmul.f32 %v1383, %v3117
    %v4870 = vmul.f32 %v1384, %v3123
    %v4871 = vmul.f32 %v1385, %v3123
    %v4872 = vmul.f32 %v1386, %v3123
    %v4873 = vmul.f32 %v1387, %v3129
    %v4874 = vmul.f32 %v1388, %v3129
    %v4875 = vmul.f32 %v1389, %v3129
    %v4876 = vmul.f32 %v1390, %v3135
    %v4877 = vmul.f32 %v1391, %v3135
    %v4878 = vmul.f32 %v1392, %v3135
    %v4879 = vmul.f32 %v1393, %v3141
    %v4880 = vmul.f32 %v1394, %v3141
    %v4881 = vmul.f32 %v1395, %v3141
    %v4882 = vmul.f32 %v1396, %v3148
    %v4883 = vmul.f32 %v1397, %v3148
    %v4884 = vmul.f32 %v1398, %v3148
    %v4885 = vmul.f32 %v1399, %v3154
    %v4886 = vmul.f32 %v1400, %v3154
    %v4887 = vmul.f32 %v1401, %v3154
    %v4888 = vmul.f32 %v1402, %v3160
    %v4889 = vmul.f32 %v1403, %v3160
    %v4890 = vmul.f32 %v1404, %v3160
    %v4891 = vmul.f32 %v1405, %v3166
    %v4892 = vmul.f32 %v1406, %v3166
    %v4893 = vmul.f32 %v1407, %v3166
    %v4894 = vmul.f32 %v1408, %v3172
    %v4895 = vmul.f32 %v1409, %v3172
    %v4896 = vmul.f32 %v1410, %v3172
    %v4897 = vmul.f32 %v1411, %v3178
    %v4898 = vmul.f32 %v1412, %v3178
    %v4899 = vmul.f32 %v1413, %v3178
    %v4900 = vmul.f32 %v1414, %v3184
    %v4901 = vmul.f32 %v1415, %v3184
    %v4902 = vmul.f32 %v1416, %v3184
    %v4903 = vmul.f32 %v1417, %v3190
    %v4904 = vmul.f32 %v1418, %v3190
    %v4905 = vmul.f32 %v1419, %v3190
    %v4906 = vmul.f32 %v1420, %v3196
    %v4907 = vmul.f32 %v1421, %v3196
    %v4908 = vmul.f32 %v1422, %v3196
    %v4909 = vmul.f32 %v1423, %v3202
    %v4910 = vmul.f32 %v1424, %v3202
    %v4911 = vmul.f32 %v1425, %v3202
    %v4912 = vmul.f32 %v1426, %v3208
    %v4913 = vmul.f32 %v1427, %v3208
    %v4914 = vmul.f32 %v1428, %v3208
    %v4915 = vmul.f32 %v1429, %v3214
    %v4916 = vmul.f32 %v1430, %v3214
    %v4917 = vmul.f32 %v1431, %v3214
    %v4918 = vmul.f32 %v1432, %v3220
    %v4919 = vmul.f32 %v1433, %v3220
    %v4920 = vmul.f32 %v1434, %v3220
    %v4921 = vmul.f32 %v1435, %v3226
    %v4922 = vmul.f32 %v1436, %v3226
    %v4923 = vmul.f32 %v1437, %v3226
    %v4924 = vmul.f32 %v1438, %v3232
    %v4925 = vmul.f32 %v1439, %v3232
    %v4926 = vmul.f32 %v1440, %v3232
    %v4927 = vmul.f32 %v1441, %v3238
    %v4928 = vmul.f32 %v1442, %v3238
    %v4929 = vmul.f32 %v1443, %v3238
    %v4930 = vmul.f32 %v1444, %v3245
    %v4931 = vmul.f32 %v1445, %v3245
    %v4932 = vmul.f32 %v1446, %v3245
    %v4933 = vmul.f32 %v1447, %v3251
    %v4934 = vmul.f32 %v1448, %v3251
    %v4935 = vmul.f32 %v1449, %v3251
    %v4936 = vmul.f32 %v1450, %v3257
    %v4937 = vmul.f32 %v1451, %v3257
    %v4938 = vmul.f32 %v1452, %v3257
    %v4939 = vmul.f32 %v1453, %v3263
    %v4940 = vmul.f32 %v1454, %v3263
    %v4941 = vmul.f32 %v1455, %v3263
    %v4942 = vmul.f32 %v1456, %v3269
    %v4943 = vmul.f32 %v1457, %v3269
    %v4944 = vmul.f32 %v1458, %v3269
    %v4945 = vmul.f32 %v1459, %v3275
    %v4946 = vmul.f32 %v1460, %v3275
    %v4947 = vmul.f32 %v1461, %v3275
    %v4948 = vmul.f32 %v1462, %v3281
    %v4949 = vmul.f32 %v1463, %v3281
    %v4950 = vmul.f32 %v1464, %v3281
    %v4951 = vmul.f32 %v1465, %v3287
    %v4952 = vmul.f32 %v1466, %v3287
    %v4953 = vmul.f32 %v1467, %v3287
    %v4954 = vmul.f32 %v1468, %v3293
    %v4955 = vmul.f32 %v1469, %v3293
    %v4956 = vmul.f32 %v1470, %v3293
    %v4957 = vmul.f32 %v1471, %v3299
    %v4958 = vmul.f32 %v1472, %v3299
    %v4959 = vmul.f32 %v1473, %v3299
    %v4960 = vmul.f32 %v1474, %v3305
    %v4961 = vmul.f32 %v1475, %v3305
    %v4962 = vmul.f32 %v1476, %v3305
    %v4963 = vmul.f32 %v1477, %v3311
    %v4964 = vmul.f32 %v1478, %v3311
    %v4965 = vmul.f32 %v1479, %v3311
    %v4966 = vmul.f32 %v1480, %v3317
    %v4967 = vmul.f32 %v1481, %v3317
    %v4968 = vmul.f32 %v1482, %v3317
    %v4969 = vmul.f32 %v1483, %v3323
    %v4970 = vmul.f32 %v1484, %v3323
    %v4971 = vmul.f32 %v1485, %v3323
    %v4972 = vmul.f32 %v1486, %v3329
    %v4973 = vmul.f32 %v1487, %v3329
    %v4974 = vmul.f32 %v1488, %v3329
    %v4975 = vmul.f32 %v1489, %v3335
    %v4976 = vmul.f32 %v1490, %v3335
    %v4977 = vmul.f32 %v1491, %v3335
    %v4978 = vmul.f32 %v1492, %v3342
    %v4979 = vmul.f32 %v1493, %v3342
    %v4980 = vmul.f32 %v1494, %v3342
    %v4981 = vmul.f32 %v1495, %v3348
    %v4982 = vmul.f32 %v1496, %v3348
    %v4983 = vmul.f32 %v1497, %v3348
    %v4984 = vmul.f32 %v1498, %v3354
    %v4985 = vmul.f32 %v1499, %v3354
    %v4986 = vmul.f32 %v1500, %v3354
    %v4987 = vmul.f32 %v1501, %v3360
    %v4988 = vmul.f32 %v1502, %v3360
    %v4989 = vmul.f32 %v1503, %v3360
    %v4990 = vmul.f32 %v1504, %v3366
    %v4991 = vmul.f32 %v1505, %v3366
    %v4992 = vmul.f32 %v1506, %v3366
    %v4993 = vmul.f32 %v1507, %v3372
    %v4994 = vmul.f32 %v1508, %v3372
    %v4995 = vmul.f32 %v1509, %v3372
    %v4996 = vmul.f32 %v1510, %v3378
    %v4997 = vmul.f32 %v1511, %v3378
    %v4998 = vmul.f32 %v1512, %v3378
    %v4999 = vmul.f32 %v1513, %v3384
    %v5000 = vmul.f32 %v1514, %v3384
    %v5001 = vmul.f32 %v1515, %v3384
    %v5002 = vmul.f32 %v1516, %v3390
    %v5003 = vmul.f32 %v1517, %v3390
    %v5004 = vmul.f32 %v1518, %v3390
    %v5005 = vmul.f32 %v1519, %v3396
    %v5006 = vmul.f32 %v1520, %v3396
    %v5007 = vmul.f32 %v1521, %v3396
    %v5008 = vmul.f32 %v1522, %v3402
    %v5009 = vmul.f32 %v1523, %v3402
    %v5010 = vmul.f32 %v1524, %v3402
    %v5011 = vmul.f32 %v1525, %v3408
    %v5012 = vmul.f32 %v1526, %v3408
    %v5013 = vmul.f32 %v1527, %v3408
    %v5014 = vmul.f32 %v1528, %v3414
    %v5015 = vmul.f32 %v1529, %v3414
    %v5016 = vmul.f32 %v1530, %v3414
    %v5017 = vmul.f32 %v1531, %v3420
    %v5018 = vmul.f32 %v1532, %v3420
    %v5019 = vmul.f32 %v1533, %v3420
    %v5020 = vmul.f32 %v1534, %v3426
    %v5021 = vmul.f32 %v1535, %v3426
    %v5022 = vmul.f32 %v1536, %v3426
    %v5023 = vmul.f32 %v1537, %v3432
    %v5024 = vmul.f32 %v1538, %v3432
    %v5025 = vmul.f32 %v1539, %v3432
    %v5026 = vmul.f32 %v1540, %v3439
    %v5027 = vmul.f32 %v1541, %v3439
    %v5028 = vmul.f32 %v1542, %v3439
    %v5029 = vmul.f32 %v1543, %v3445
    %v5030 = vmul.f32 %v1544, %v3445
    %v5031 = vmul.f32 %v1545, %v3445
    %v5032 = vmul.f32 %v1546, %v3451
    %v5033 = vmul.f32 %v1547, %v3451
    %v5034 = vmul.f32 %v1548, %v3451
    %v5035 = vmul.f32 %v1549, %v3457
    %v5036 = vmul.f32 %v1550, %v3457
    %v5037 = vmul.f32 %v1551, %v3457
    %v5038 = vmul.f32 %v1552, %v3463
    %v5039 = vmul.f32 %v1553, %v3463
    %v5040 = vmul.f32 %v1554, %v3463
    %v5041 = vmul.f32 %v1555, %v3469
    %v5042 = vmul.f32 %v1556, %v3469
    %v5043 = vmul.f32 %v1557, %v3469
    %v5044 = vmul.f32 %v1558, %v3475
    %v5045 = vmul.f32 %v1559, %v3475
    %v5046 = vmul.f32 %v1560, %v3475
    %v5047 = vmul.f32 %v1561, %v3481
    %v5048 = vmul.f32 %v1562, %v3481
    %v5049 = vmul.f32 %v1563, %v3481
    %v5050 = vmul.f32 %v1564, %v3487
    %v5051 = vmul.f32 %v1565, %v3487
    %v5052 = vmul.f32 %v1566, %v3487
    %v5053 = vmul.f32 %v1567, %v3493
    %v5054 = vmul.f32 %v1568, %v3493
    %v5055 = vmul.f32 %v1569, %v3493
    %v5056 = vmul.f32 %v1570, %v3499
    %v5057 = vmul.f32 %v1571, %v3499
    %v5058 = vmul.f32 %v1572, %v3499
    %v5059 = vmul.f32 %v1573, %v3505
    %v5060 = vmul.f32 %v1574, %v3505
    %v5061 = vmul.f32 %v1575, %v3505
    %v5062 = vmul.f32 %v1576, %v3511
    %v5063 = vmul.f32 %v1577, %v3511
    %v5064 = vmul.f32 %v1578, %v3511
    %v5065 = vmul.f32 %v1579, %v3517
    %v5066 = vmul.f32 %v1580, %v3517
    %v5067 = vmul.f32 %v1581, %v3517
    %v5068 = vmul.f32 %v1582, %v3523
    %v5069 = vmul.f32 %v1583, %v3523
    %v5070 = vmul.f32 %v1584, %v3523
    %v5071 = vmul.f32 %v1585, %v3529
    %v5072 = vmul.f32 %v1586, %v3529
    %v5073 = vmul.f32 %v1587, %v3529
    %v5074 = vmul.f32 %v1588, %v3536
    %v5075 = vmul.f32 %v1589, %v3536
    %v5076 = vmul.f32 %v1590, %v3536
    %v5077 = vmul.f32 %v1591, %v3542
    %v5078 = vmul.f32 %v1592, %v3542
    %v5079 = vmul.f32 %v1593, %v3542
    %v5080 = vmul.f32 %v1594, %v3548
    %v5081 = vmul.f32 %v1595, %v3548
    %v5082 = vmul.f32 %v1596, %v3548
    %v5083 = vmul.f32 %v1597, %v3554
    %v5084 = vmul.f32 %v1598, %v3554
    %v5085 = vmul.f32 %v1599, %v3554
    %v5086 = vmul.f32 %v1600, %v3560
    %v5087 = vmul.f32 %v1601, %v3560
    %v5088 = vmul.f32 %v1602, %v3560
    %v5089 = vmul.f32 %v1603, %v3566
    %v5090 = vmul.f32 %v1604, %v3566
    %v5091 = vmul.f32 %v1605, %v3566
    %v5092 = vmul.f32 %v1606, %v3572
    %v5093 = vmul.f32 %v1607, %v3572
    %v5094 = vmul.f32 %v1608, %v3572
    %v5095 = vmul.f32 %v1609, %v3578
    %v5096 = vmul.f32 %v1610, %v3578
    %v5097 = vmul.f32 %v1611, %v3578
    %v5098 = vmul.f32 %v1612, %v3584
    %v5099 = vmul.f32 %v1613, %v3584
    %v5100 = vmul.f32 %v1614, %v3584
    %v5101 = vmul.f32 %v1615, %v3590
    %v5102 = vmul.f32 %v1616, %v3590
    %v5103 = vmul.f32 %v1617, %v3590
    %v5104 = vmul.f32 %v1618, %v3596
    %v5105 = vmul.f32 %v1619, %v3596
    %v5106 = vmul.f32 %v1620, %v3596
    %v5107 = vmul.f32 %v1621, %v3602
    %v5108 = vmul.f32 %v1622, %v3602
    %v5109 = vmul.f32 %v1623, %v3602
    %v5110 = vmul.f32 %v1624, %v3608
    %v5111 = vmul.f32 %v1625, %v3608
    %v5112 = vmul.f32 %v1626, %v3608
    %v5113 = vmul.f32 %v1627, %v3614
    %v5114 = vmul.f32 %v1628, %v3614
    %v5115 = vmul.f32 %v1629, %v3614
    %v5116 = vmul.f32 %v1630, %v3620
    %v5117 = vmul.f32 %v1631, %v3620
    %v5118 = vmul.f32 %v1632, %v3620
    %v5119 = vmul.f32 %v1633, %v3626
    %v5120 = vmul.f32 %v1634, %v3626
    %v5121 = vmul.f32 %v1635, %v3626
    %v5122 = vmul.f32 %v1636, %v3633
    %v5123 = vmul.f32 %v1637, %v3633
    %v5124 = vmul.f32 %v1638, %v3633
    %v5125 = vmul.f32 %v1639, %v3639
    %v5126 = vmul.f32 %v1640, %v3639
    %v5127 = vmul.f32 %v1641, %v3639
    %v5128 = vmul.f32 %v1642, %v3645
    %v5129 = vmul.f32 %v1643, %v3645
    %v5130 = vmul.f32 %v1644, %v3645
    %v5131 = vmul.f32 %v1645, %v3651
    %v5132 = vmul.f32 %v1646, %v3651
    %v5133 = vmul.f32 %v1647, %v3651
    %v5134 = vmul.f32 %v1648, %v3657
    %v5135 = vmul.f32 %v1649, %v3657
    %v5136 = vmul.f32 %v1650, %v3657
    %v5137 = vmul.f32 %v1651, %v3663
    %v5138 = vmul.f32 %v1652, %v3663
    %v5139 = vmul.f32 %v1653, %v3663
    %v5140 = vmul.f32 %v1654, %v3669
    %v5141 = vmul.f32 %v1655, %v3669
    %v5142 = vmul.f32 %v1656, %v3669
    %v5143 = vmul.f32 %v1657, %v3675
    %v5144 = vmul.f32 %v1658, %v3675
    %v5145 = vmul.f32 %v1659, %v3675
    %v5146 = vmul.f32 %v1660, %v3681
    %v5147 = vmul.f32 %v1661, %v3681
    %v5148 = vmul.f32 %v1662, %v3681
    %v5149 = vmul.f32 %v1663, %v3687
    %v5150 = vmul.f32 %v1664, %v3687
    %v5151 = vmul.f32 %v1665, %v3687
    %v5152 = vmul.f32 %v1666, %v3693
    %v5153 = vmul.f32 %v1667, %v3693
    %v5154 = vmul.f32 %v1668, %v3693
    %v5155 = vmul.f32 %v1669, %v3699
    %v5156 = vmul.f32 %v1670, %v3699
    %v5157 = vmul.f32 %v1671, %v3699
    %v5158 = vmul.f32 %v1672, %v3705
    %v5159 = vmul.f32 %v1673, %v3705
    %v5160 = vmul.f32 %v1674, %v3705
    %v5161 = vmul.f32 %v1675, %v3711
    %v5162 = vmul.f32 %v1676, %v3711
    %v5163 = vmul.f32 %v1677, %v3711
    %v5164 = vmul.f32 %v1678, %v3717
    %v5165 = vmul.f32 %v1679, %v3717
    %v5166 = vmul.f32 %v1680, %v3717
    %v5167 = vmul.f32 %v1681, %v3723
    %v5168 = vmul.f32 %v1682, %v3723
    %v5169 = vmul.f32 %v1683, %v3723
    %v5170 = vmul.f32 %v1684, %v3730
    %v5171 = vmul.f32 %v1685, %v3730
    %v5172 = vmul.f32 %v1686, %v3730
    %v5173 = vmul.f32 %v1687, %v3736
    %v5174 = vmul.f32 %v1688, %v3736
    %v5175 = vmul.f32 %v1689, %v3736
    %v5176 = vmul.f32 %v1690, %v3742
    %v5177 = vmul.f32 %v1691, %v3742
    %v5178 = vmul.f32 %v1692, %v3742
    %v5179 = vmul.f32 %v1693, %v3748
    %v5180 = vmul.f32 %v1694, %v3748
    %v5181 = vmul.f32 %v1695, %v3748
    %v5182 = vmul.f32 %v1696, %v3754
    %v5183 = vmul.f32 %v1697, %v3754
    %v5184 = vmul.f32 %v1698, %v3754
    %v5185 = vmul.f32 %v1699, %v3760
    %v5186 = vmul.f32 %v1700, %v3760
    %v5187 = vmul.f32 %v1701, %v3760
    %v5188 = vmul.f32 %v1702, %v3766
    %v5189 = vmul.f32 %v1703, %v3766
    %v5190 = vmul.f32 %v1704, %v3766
    %v5191 = vmul.f32 %v1705, %v3772
    %v5192 = vmul.f32 %v1706, %v3772
    %v5193 = vmul.f32 %v1707, %v3772
    %v5194 = vmul.f32 %v1708, %v3778
    %v5195 = vmul.f32 %v1709, %v3778
    %v5196 = vmul.f32 %v1710, %v3778
    %v5197 = vmul.f32 %v1711, %v3784
    %v5198 = vmul.f32 %v1712, %v3784
    %v5199 = vmul.f32 %v1713, %v3784
    %v5200 = vmul.f32 %v1714, %v3790
    %v5201 = vmul.f32 %v1715, %v3790
    %v5202 = vmul.f32 %v1716, %v3790
    %v5203 = vmul.f32 %v1717, %v3796
    %v5204 = vmul.f32 %v1718, %v3796
    %v5205 = vmul.f32 %v1719, %v3796
    %v5206 = vmul.f32 %v1720, %v3802
    %v5207 = vmul.f32 %v1721, %v3802
    %v5208 = vmul.f32 %v1722, %v3802
    %v5209 = vmul.f32 %v1723, %v3808
    %v5210 = vmul.f32 %v1724, %v3808
    %v5211 = vmul.f32 %v1725, %v3808
    %v5212 = vmul.f32 %v1726, %v3814
    %v5213 = vmul.f32 %v1727, %v3814
    %v5214 = vmul.f32 %v1728, %v3814
    %v5215 = vmul.f32 %v1729, %v3820
    %v5216 = vmul.f32 %v1730, %v3820
    %v5217 = vmul.f32 %v1731, %v3820
    %v5218 = vmul.f32 %v1732, %v3827
    %v5219 = vmul.f32 %v1733, %v3827
    %v5220 = vmul.f32 %v1734, %v3827
    %v5221 = vmul.f32 %v1735, %v3833
    %v5222 = vmul.f32 %v1736, %v3833
    %v5223 = vmul.f32 %v1737, %v3833
    %v5224 = vmul.f32 %v1738, %v3839
    %v5225 = vmul.f32 %v1739, %v3839
    %v5226 = vmul.f32 %v1740, %v3839
    %v5227 = vmul.f32 %v1741, %v3845
    %v5228 = vmul.f32 %v1742, %v3845
    %v5229 = vmul.f32 %v1743, %v3845
    %v5230 = vmul.f32 %v1744, %v3851
    %v5231 = vmul.f32 %v1745, %v3851
    %v5232 = vmul.f32 %v1746, %v3851
    %v5233 = vmul.f32 %v1747, %v3857
    %v5234 = vmul.f32 %v1748, %v3857
    %v5235 = vmul.f32 %v1749, %v3857
    %v5236 = vmul.f32 %v1750, %v3863
    %v5237 = vmul.f32 %v1751, %v3863
    %v5238 = vmul.f32 %v1752, %v3863
    %v5239 = vmul.f32 %v1753, %v3869
    %v5240 = vmul.f32 %v1754, %v3869
    %v5241 = vmul.f32 %v1755, %v3869
    %v5242 = vmul.f32 %v1756, %v3875
    %v5243 = vmul.f32 %v1757, %v3875
    %v5244 = vmul.f32 %v1758, %v3875
    %v5245 = vmul.f32 %v1759, %v3881
    %v5246 = vmul.f32 %v1760, %v3881
    %v5247 = vmul.f32 %v1761, %v3881
    %v5248 = vmul.f32 %v1762, %v3887
    %v5249 = vmul.f32 %v1763, %v3887
    %v5250 = vmul.f32 %v1764, %v3887
    %v5251 = vmul.f32 %v1765, %v3893
    %v5252 = vmul.f32 %v1766, %v3893
    %v5253 = vmul.f32 %v1767, %v3893
    %v5254 = vmul.f32 %v1768, %v3899
    %v5255 = vmul.f32 %v1769, %v3899
    %v5256 = vmul.f32 %v1770, %v3899
    %v5257 = vmul.f32 %v1771, %v3905
    %v5258 = vmul.f32 %v1772, %v3905
    %v5259 = vmul.f32 %v1773, %v3905
    %v5260 = vmul.f32 %v1774, %v3911
    %v5261 = vmul.f32 %v1775, %v3911
    %v5262 = vmul.f32 %v1776, %v3911
    %v5263 = vmul.f32 %v1777, %v3917
    %v5264 = vmul.f32 %v1778, %v3917
    %v5265 = vmul.f32 %v1779, %v3917
    %v5266 = vmul.f32 %v1780, %v3924
    %v5267 = vmul.f32 %v1781, %v3924
    %v5268 = vmul.f32 %v1782, %v3924
    %v5269 = vmul.f32 %v1783, %v3930
    %v5270 = vmul.f32 %v1784, %v3930
    %v5271 = vmul.f32 %v1785, %v3930
    %v5272 = vmul.f32 %v1786, %v3936
    %v5273 = vmul.f32 %v1787, %v3936
    %v5274 = vmul.f32 %v1788, %v3936
    %v5275 = vmul.f32 %v1789, %v3942
    %v5276 = vmul.f32 %v1790, %v3942
    %v5277 = vmul.f32 %v1791, %v3942
    %v5278 = vmul.f32 %v1792, %v3948
    %v5279 = vmul.f32 %v1793, %v3948
    %v5280 = vmul.f32 %v1794, %v3948
    %v5281 = vmul.f32 %v1795, %v3954
    %v5282 = vmul.f32 %v1796, %v3954
    %v5283 = vmul.f32 %v1797, %v3954
    %v5284 = vmul.f32 %v1798, %v3960
    %v5285 = vmul.f32 %v1799, %v3960
    %v5286 = vmul.f32 %v1800, %v3960
    %v5287 = vmul.f32 %v1801, %v3966
    %v5288 = vmul.f32 %v1802, %v3966
    %v5289 = vmul.f32 %v1803, %v3966
    %v5290 = vmul.f32 %v1804, %v3972
    %v5291 = vmul.f32 %v1805, %v3972
    %v5292 = vmul.f32 %v1806, %v3972
    %v5293 = vmul.f32 %v1807, %v3978
    %v5294 = vmul.f32 %v1808, %v3978
    %v5295 = vmul.f32 %v1809, %v3978
    %v5296 = vmul.f32 %v1810, %v3984
    %v5297 = vmul.f32 %v1811, %v3984
    %v5298 = vmul.f32 %v1812, %v3984
    %v5299 = vmul.f32 %v1813, %v3990
    %v5300 = vmul.f32 %v1814, %v3990
    %v5301 = vmul.f32 %v1815, %v3990
    %v5302 = vmul.f32 %v1816, %v3996
    %v5303 = vmul.f32 %v1817, %v3996
    %v5304 = vmul.f32 %v1818, %v3996
    %v5305 = vmul.f32 %v1819, %v4002
    %v5306 = vmul.f32 %v1820, %v4002
    %v5307 = vmul.f32 %v1821, %v4002
    %v5308 = vmul.f32 %v1822, %v4008
    %v5309 = vmul.f32 %v1823, %v4008
    %v5310 = vmul.f32 %v1824, %v4008
    %v5311 = vmul.f32 %v1825, %v4014
    %v5312 = vmul.f32 %v1826, %v4014
    %v5313 = vmul.f32 %v1827, %v4014
    %v5314 = vmul.f32 %v1828, %v4021
    %v5315 = vmul.f32 %v1829, %v4021
    %v5316 = vmul.f32 %v1830, %v4021
    %v5317 = vmul.f32 %v1831, %v4027
    %v5318 = vmul.f32 %v1832, %v4027
    %v5319 = vmul.f32 %v1833, %v4027
    %v5320 = vmul.f32 %v1834, %v4033
    %v5321 = vmul.f32 %v1835, %v4033
    %v5322 = vmul.f32 %v1836, %v4033
    %v5323 = vmul.f32 %v1837, %v4039
    %v5324 = vmul.f32 %v1838, %v4039
    %v5325 = vmul.f32 %v1839, %v4039
    %v5326 = vmul.f32 %v1840, %v4045
    %v5327 = vmul.f32 %v1841, %v4045
    %v5328 = vmul.f32 %v1842, %v4045
    %v5329 = vmul.f32 %v1843, %v4051
    %v5330 = vmul.f32 %v1844, %v4051
    %v5331 = vmul.f32 %v1845, %v4051
    %v5332 = vmul.f32 %v1846, %v4057
    %v5333 = vmul.f32 %v1847, %v4057
    %v5334 = vmul.f32 %v1848, %v4057
    %v5335 = vmul.f32 %v1849, %v4063
    %v5336 = vmul.f32 %v1850, %v4063
    %v5337 = vmul.f32 %v1851, %v4063
    %v5338 = vmul.f32 %v1852, %v4069
    %v5339 = vmul.f32 %v1853, %v4069
    %v5340 = vmul.f32 %v1854, %v4069
    %v5341 = vmul.f32 %v1855, %v4075
    %v5342 = vmul.f32 %v1856, %v4075
    %v5343 = vmul.f32 %v1857, %v4075
    %v5344 = vmul.f32 %v1858, %v4081
    %v5345 = vmul.f32 %v1859, %v4081
    %v5346 = vmul.f32 %v1860, %v4081
    %v5347 = vmul.f32 %v1861, %v4087
    %v5348 = vmul.f32 %v1862, %v4087
    %v5349 = vmul.f32 %v1863, %v4087
    %v5350 = vmul.f32 %v1864, %v4093
    %v5351 = vmul.f32 %v1865, %v4093
    %v5352 = vmul.f32 %v1866, %v4093
    %v5353 = vmul.f32 %v1867, %v4099
    %v5354 = vmul.f32 %v1868, %v4099
    %v5355 = vmul.f32 %v1869, %v4099
    %v5356 = vmul.f32 %v1870, %v4105
    %v5357 = vmul.f32 %v1871, %v4105
    %v5358 = vmul.f32 %v1872, %v4105
    %v5359 = vmul.f32 %v1873, %v4111
    %v5360 = vmul.f32 %v1874, %v4111
    %v5361 = vmul.f32 %v1875, %v4111
    %v5362 = vmul.f32 %v1876, %v4118
    %v5363 = vmul.f32 %v1877, %v4118
    %v5364 = vmul.f32 %v1878, %v4118
    %v5365 = vmul.f32 %v1879, %v4124
    %v5366 = vmul.f32 %v1880, %v4124
    %v5367 = vmul.f32 %v1881, %v4124
    %v5368 = vmul.f32 %v1882, %v4130
    %v5369 = vmul.f32 %v1883, %v4130
    %v5370 = vmul.f32 %v1884, %v4130
    %v5371 = vmul.f32 %v1885, %v4136
    %v5372 = vmul.f32 %v1886, %v4136
    %v5373 = vmul.f32 %v1887, %v4136
    %v5374 = vmul.f32 %v1888, %v4142
    %v5375 = vmul.f32 %v1889, %v4142
    %v5376 = vmul.f32 %v1890, %v4142
    %v5377 = vmul.f32 %v1891, %v4148
    %v5378 = vmul.f32 %v1892, %v4148
    %v5379 = vmul.f32 %v1893, %v4148
    %v5380 = vmul.f32 %v1894, %v4154
    %v5381 = vmul.f32 %v1895, %v4154
    %v5382 = vmul.f32 %v1896, %v4154
    %v5383 = vmul.f32 %v1897, %v4160
    %v5384 = vmul.f32 %v1898, %v4160
    %v5385 = vmul.f32 %v1899, %v4160
    %v5386 = vmul.f32 %v1900, %v4166
    %v5387 = vmul.f32 %v1901, %v4166
    %v5388 = vmul.f32 %v1902, %v4166
    %v5389 = vmul.f32 %v1903, %v4172
    %v5390 = vmul.f32 %v1904, %v4172
    %v5391 = vmul.f32 %v1905, %v4172
    %v5392 = vmul.f32 %v1906, %v4178
    %v5393 = vmul.f32 %v1907, %v4178
    %v5394 = vmul.f32 %v1908, %v4178
    %v5395 = vmul.f32 %v1909, %v4184
    %v5396 = vmul.f32 %v1910, %v4184
    %v5397 = vmul.f32 %v1911, %v4184
    %v5398 = vmul.f32 %v1912, %v4190
    %v5399 = vmul.f32 %v1913, %v4190
    %v5400 = vmul.f32 %v1914, %v4190
    %v5401 = vmul.f32 %v1915, %v4196
    %v5402 = vmul.f32 %v1916, %v4196
    %v5403 = vmul.f32 %v1917, %v4196
    %v5404 = vmul.f32 %v1918, %v4202
    %v5405 = vmul.f32 %v1919, %v4202
    %v5406 = vmul.f32 %v1920, %v4202
    %v5407 = vmul.f32 %v1921, %v4208
    %v5408 = vmul.f32 %v1922, %v4208
    %v5409 = vmul.f32 %v1923, %v4208
    %v5410 = vmul.f32 %v1924, %v4215
    %v5411 = vmul.f32 %v1925, %v4215
    %v5412 = vmul.f32 %v1926, %v4215
    %v5413 = vmul.f32 %v1927, %v4221
    %v5414 = vmul.f32 %v1928, %v4221
    %v5415 = vmul.f32 %v1929, %v4221
    %v5416 = vmul.f32 %v1930, %v4227
    %v5417 = vmul.f32 %v1931, %v4227
    %v5418 = vmul.f32 %v1932, %v4227
    %v5419 = vmul.f32 %v1933, %v4233
    %v5420 = vmul.f32 %v1934, %v4233
    %v5421 = vmul.f32 %v1935, %v4233
    %v5422 = vmul.f32 %v1936, %v4239
    %v5423 = vmul.f32 %v1937, %v4239
    %v5424 = vmul.f32 %v1938, %v4239
    %v5425 = vmul.f32 %v1939, %v4245
    %v5426 = vmul.f32 %v1940, %v4245
    %v5427 = vmul.f32 %v1941, %v4245
    %v5428 = vmul.f32 %v1942, %v4251
    %v5429 = vmul.f32 %v1943, %v4251
    %v5430 = vmul.f32 %v1944, %v4251
    %v5431 = vmul.f32 %v1945, %v4257
    %v5432 = vmul.f32 %v1946, %v4257
    %v5433 = vmul.f32 %v1947, %v4257
    %v5434 = vmul.f32 %v1948, %v4263
    %v5435 = vmul.f32 %v1949, %v4263
    %v5436 = vmul.f32 %v1950, %v4263
    %v5437 = vmul.f32 %v1951, %v4269
    %v5438 = vmul.f32 %v1952, %v4269
    %v5439 = vmul.f32 %v1953, %v4269
    %v5440 = vmul.f32 %v1954, %v4275
    %v5441 = vmul.f32 %v1955, %v4275
    %v5442 = vmul.f32 %v1956, %v4275
    %v5443 = vmul.f32 %v1957, %v4281
    %v5444 = vmul.f32 %v1958, %v4281
    %v5445 = vmul.f32 %v1959, %v4281
    %v5446 = vmul.f32 %v1960, %v4287
    %v5447 = vmul.f32 %v1961, %v4287
    %v5448 = vmul.f32 %v1962, %v4287
    %v5449 = vmul.f32 %v1963, %v4293
    %v5450 = vmul.f32 %v1964, %v4293
    %v5451 = vmul.f32 %v1965, %v4293
    %v5452 = vmul.f32 %v1966, %v4299
    %v5453 = vmul.f32 %v1967, %v4299
    %v5454 = vmul.f32 %v1968, %v4299
    %v5455 = vmul.f32 %v1969, %v4305
    %v5456 = vmul.f32 %v1970, %v4305
    %v5457 = vmul.f32 %v1971, %v4305
    %v5458 = vadd.f32 %v4306, %v4309
    %v5459 = vadd.f32 %v5458, %v4312
    %v5460 = vadd.f32 %v5459, %v4315
    %v5461 = vadd.f32 %v5460, %v4318
    %v5462 = vadd.f32 %v5461, %v4321
    %v5463 = vadd.f32 %v5462, %v4324
    %v5464 = vadd.f32 %v5463, %v4327
    %v5465 = vadd.f32 %v5464, %v4330
    %v5466 = vadd.f32 %v5465, %v4333
    %v5467 = vadd.f32 %v5466, %v4336
    %v5468 = vadd.f32 %v5467, %v4339
    %v5469 = vadd.f32 %v5468, %v4342
    %v5470 = vadd.f32 %v5469, %v4345
    %v5471 = vadd.f32 %v5470, %v4348
    %v5472 = vadd.f32 %v5471, %v4351
    %v5473 = vadd.f32 %v5472, %v4354
    %v5474 = vadd.f32 %v5473, %v4357
    %v5475 = vadd.f32 %v5474, %v4360
    %v5476 = vadd.f32 %v5475, %v4363
    %v5477 = vadd.f32 %v5476, %v4366
    %v5478 = vadd.f32 %v5477, %v4369
    %v5479 = vadd.f32 %v5478, %v4372
    %v5480 = vadd.f32 %v5479, %v4375
    %v5481 = vadd.f32 %v5480, %v4378
    %v5482 = vadd.f32 %v5481, %v4381
    %v5483 = vadd.f32 %v5482, %v4384
    %v5484 = vadd.f32 %v5483, %v4387
    %v5485 = vadd.f32 %v5484, %v4390
    %v5486 = vadd.f32 %v5485, %v4393
    %v5487 = vadd.f32 %v5486, %v4396
    %v5488 = vadd.f32 %v5487, %v4399
    %v5489 = vadd.f32 %v5488, %v4402
    %v5490 = vadd.f32 %v5489, %v4405
    %v5491 = vadd.f32 %v5490, %v4408
    %v5492 = vadd.f32 %v5491, %v4411
    %v5493 = vadd.f32 %v5492, %v4414
    %v5494 = vadd.f32 %v5493, %v4417
    %v5495 = vadd.f32 %v5494, %v4420
    %v5496 = vadd.f32 %v5495, %v4423
    %v5497 = vadd.f32 %v5496, %v4426
    %v5498 = vadd.f32 %v5497, %v4429
    %v5499 = vadd.f32 %v5498, %v4432
    %v5500 = vadd.f32 %v5499, %v4435
    %v5501 = vadd.f32 %v5500, %v4438
    %v5502 = vadd.f32 %v5501, %v4441
    %v5503 = vadd.f32 %v5502, %v4444
    %v5504 = vadd.f32 %v5503, %v4447
    %v5505 = vrot.slane %v5504, 4
    %v5506 = vadd.f32 %v5504, %v5505
    %v5507 = vrot.slane %v5506, 2
    %v5508 = vadd.f32 %v5506, %v5507
    %v5509 = vrot.slane %v5508, 1
    %v5510 = vadd.f32 %v5508, %v5509
    %v5511 = vadd.f32 %v4307, %v4310
    %v5512 = vadd.f32 %v5511, %v4313
    %v5513 = vadd.f32 %v5512, %v4316
    %v5514 = vadd.f32 %v5513, %v4319
    %v5515 = vadd.f32 %v5514, %v4322
    %v5516 = vadd.f32 %v5515, %v4325
    %v5517 = vadd.f32 %v5516, %v4328
    %v5518 = vadd.f32 %v5517, %v4331
    %v5519 = vadd.f32 %v5518, %v4334
    %v5520 = vadd.f32 %v5519, %v4337
    %v5521 = vadd.f32 %v5520, %v4340
    %v5522 = vadd.f32 %v5521, %v4343
    %v5523 = vadd.f32 %v5522, %v4346
    %v5524 = vadd.f32 %v5523, %v4349
    %v5525 = vadd.f32 %v5524, %v4352
    %v5526 = vadd.f32 %v5525, %v4355
    %v5527 = vadd.f32 %v5526, %v4358
    %v5528 = vadd.f32 %v5527, %v4361
    %v5529 = vadd.f32 %v5528, %v4364
    %v5530 = vadd.f32 %v5529, %v4367
    %v5531 = vadd.f32 %v5530, %v4370
    %v5532 = vadd.f32 %v5531, %v4373
    %v5533 = vadd.f32 %v5532, %v4376
    %v5534 = vadd.f32 %v5533, %v4379
    %v5535 = vadd.f32 %v5534, %v4382
    %v5536 = vadd.f32 %v5535, %v4385
    %v5537 = vadd.f32 %v5536, %v4388
    %v5538 = vadd.f32 %v5537, %v4391
    %v5539 = vadd.f32 %v5538, %v4394
    %v5540 = vadd.f32 %v5539, %v4397
    %v5541 = vadd.f32 %v5540, %v4400
    %v5542 = vadd.f32 %v5541, %v4403
    %v5543 = vadd.f32 %v5542, %v4406
    %v5544 = vadd.f32 %v5543, %v4409
    %v5545 = vadd.f32 %v5544, %v4412
    %v5546 = vadd.f32 %v5545, %v4415
    %v5547 = vadd.f32 %v5546, %v4418
    %v5548 = vadd.f32 %v5547, %v4421
    %v5549 = vadd.f32 %v5548, %v4424
    %v5550 = vadd.f32 %v5549, %v4427
    %v5551 = vadd.f32 %v5550, %v4430
    %v5552 = vadd.f32 %v5551, %v4433
    %v5553 = vadd.f32 %v5552, %v4436
    %v5554 = vadd.f32 %v5553, %v4439
    %v5555 = vadd.f32 %v5554, %v4442
    %v5556 = vadd.f32 %v5555, %v4445
    %v5557 = vadd.f32 %v5556, %v4448
    %v5558 = vrot.slane %v5557, 4
    %v5559 = vadd.f32 %v5557, %v5558
    %v5560 = vrot.slane %v5559, 2
    %v5561 = vadd.f32 %v5559, %v5560
    %v5562 = vrot.slane %v5561, 1
    %v5563 = vadd.f32 %v5561, %v5562
    %v5564 = vadd.f32 %v4308, %v4311
    %v5565 = vadd.f32 %v5564, %v4314
    %v5566 = vadd.f32 %v5565, %v4317
    %v5567 = vadd.f32 %v5566, %v4320
    %v5568 = vadd.f32 %v5567, %v4323
    %v5569 = vadd.f32 %v5568, %v4326
    %v5570 = vadd.f32 %v5569, %v4329
    %v5571 = vadd.f32 %v5570, %v4332
    %v5572 = vadd.f32 %v5571, %v4335
    %v5573 = vadd.f32 %v5572, %v4338
    %v5574 = vadd.f32 %v5573, %v4341
    %v5575 = vadd.f32 %v5574, %v4344
    %v5576 = vadd.f32 %v5575, %v4347
    %v5577 = vadd.f32 %v5576, %v4350
    %v5578 = vadd.f32 %v5577, %v4353
    %v5579 = vadd.f32 %v5578, %v4356
    %v5580 = vadd.f32 %v5579, %v4359
    %v5581 = vadd.f32 %v5580, %v4362
    %v5582 = vadd.f32 %v5581, %v4365
    %v5583 = vadd.f32 %v5582, %v4368
    %v5584 = vadd.f32 %v5583, %v4371
    %v5585 = vadd.f32 %v5584, %v4374
    %v5586 = vadd.f32 %v5585, %v4377
    %v5587 = vadd.f32 %v5586, %v4380
    %v5588 = vadd.f32 %v5587, %v4383
    %v5589 = vadd.f32 %v5588, %v4386
    %v5590 = vadd.f32 %v5589, %v4389
    %v5591 = vadd.f32 %v5590, %v4392
    %v5592 = vadd.f32 %v5591, %v4395
    %v5593 = vadd.f32 %v5592, %v4398
    %v5594 = vadd.f32 %v5593, %v4401
    %v5595 = vadd.f32 %v5594, %v4404
    %v5596 = vadd.f32 %v5595, %v4407
    %v5597 = vadd.f32 %v5596, %v4410
    %v5598 = vadd.f32 %v5597, %v4413
    %v5599 = vadd.f32 %v5598, %v4416
    %v5600 = vadd.f32 %v5599, %v4419
    %v5601 = vadd.f32 %v5600, %v4422
    %v5602 = vadd.f32 %v5601, %v4425
    %v5603 = vadd.f32 %v5602, %v4428
    %v5604 = vadd.f32 %v5603, %v4431
    %v5605 = vadd.f32 %v5604, %v4434
    %v5606 = vadd.f32 %v5605, %v4437
    %v5607 = vadd.f32 %v5606, %v4440
    %v5608 = vadd.f32 %v5607, %v4443
    %v5609 = vadd.f32 %v5608, %v4446
    %v5610 = vadd.f32 %v5609, %v4449
    %v5611 = vrot.slane %v5610, 4
    %v5612 = vadd.f32 %v5610, %v5611
    %v5613 = vrot.slane %v5612, 2
    %v5614 = vadd.f32 %v5612, %v5613
    %v5615 = vrot.slane %v5614, 1
    %v5616 = vadd.f32 %v5614, %v5615
    %v5617 = vadd.f32 %v4450, %v4453
    %v5618 = vadd.f32 %v5617, %v4456
    %v5619 = vadd.f32 %v5618, %v4459
    %v5620 = vadd.f32 %v5619, %v4462
    %v5621 = vadd.f32 %v5620, %v4465
    %v5622 = vadd.f32 %v5621, %v4468
    %v5623 = vadd.f32 %v5622, %v4471
    %v5624 = vadd.f32 %v5623, %v4474
    %v5625 = vadd.f32 %v5624, %v4477
    %v5626 = vadd.f32 %v5625, %v4480
    %v5627 = vadd.f32 %v5626, %v4483
    %v5628 = vadd.f32 %v5627, %v4486
    %v5629 = vadd.f32 %v5628, %v4489
    %v5630 = vadd.f32 %v5629, %v4492
    %v5631 = vadd.f32 %v5630, %v4495
    %v5632 = vadd.f32 %v5631, %v4498
    %v5633 = vadd.f32 %v5632, %v4501
    %v5634 = vadd.f32 %v5633, %v4504
    %v5635 = vadd.f32 %v5634, %v4507
    %v5636 = vadd.f32 %v5635, %v4510
    %v5637 = vadd.f32 %v5636, %v4513
    %v5638 = vadd.f32 %v5637, %v4516
    %v5639 = vadd.f32 %v5638, %v4519
    %v5640 = vadd.f32 %v5639, %v4522
    %v5641 = vadd.f32 %v5640, %v4525
    %v5642 = vadd.f32 %v5641, %v4528
    %v5643 = vadd.f32 %v5642, %v4531
    %v5644 = vadd.f32 %v5643, %v4534
    %v5645 = vadd.f32 %v5644, %v4537
    %v5646 = vadd.f32 %v5645, %v4540
    %v5647 = vadd.f32 %v5646, %v4543
    %v5648 = vadd.f32 %v5647, %v4546
    %v5649 = vadd.f32 %v5648, %v4549
    %v5650 = vadd.f32 %v5649, %v4552
    %v5651 = vadd.f32 %v5650, %v4555
    %v5652 = vadd.f32 %v5651, %v4558
    %v5653 = vadd.f32 %v5652, %v4561
    %v5654 = vadd.f32 %v5653, %v4564
    %v5655 = vadd.f32 %v5654, %v4567
    %v5656 = vadd.f32 %v5655, %v4570
    %v5657 = vadd.f32 %v5656, %v4573
    %v5658 = vadd.f32 %v5657, %v4576
    %v5659 = vadd.f32 %v5658, %v4579
    %v5660 = vadd.f32 %v5659, %v4582
    %v5661 = vadd.f32 %v5660, %v4585
    %v5662 = vadd.f32 %v5661, %v4588
    %v5663 = vadd.f32 %v5662, %v4591
    %v5664 = vrot.slane %v5663, 4
    %v5665 = vadd.f32 %v5663, %v5664
    %v5666 = vrot.slane %v5665, 2
    %v5667 = vadd.f32 %v5665, %v5666
    %v5668 = vrot.slane %v5667, 1
    %v5669 = vadd.f32 %v5667, %v5668
    %v5670 = vadd.f32 %v4451, %v4454
    %v5671 = vadd.f32 %v5670, %v4457
    %v5672 = vadd.f32 %v5671, %v4460
    %v5673 = vadd.f32 %v5672, %v4463
    %v5674 = vadd.f32 %v5673, %v4466
    %v5675 = vadd.f32 %v5674, %v4469
    %v5676 = vadd.f32 %v5675, %v4472
    %v5677 = vadd.f32 %v5676, %v4475
    %v5678 = vadd.f32 %v5677, %v4478
    %v5679 = vadd.f32 %v5678, %v4481
    %v5680 = vadd.f32 %v5679, %v4484
    %v5681 = vadd.f32 %v5680, %v4487
    %v5682 = vadd.f32 %v5681, %v4490
    %v5683 = vadd.f32 %v5682, %v4493
    %v5684 = vadd.f32 %v5683, %v4496
    %v5685 = vadd.f32 %v5684, %v4499
    %v5686 = vadd.f32 %v5685, %v4502
    %v5687 = vadd.f32 %v5686, %v4505
    %v5688 = vadd.f32 %v5687, %v4508
    %v5689 = vadd.f32 %v5688, %v4511
    %v5690 = vadd.f32 %v5689, %v4514
    %v5691 = vadd.f32 %v5690, %v4517
    %v5692 = vadd.f32 %v5691, %v4520
    %v5693 = vadd.f32 %v5692, %v4523
    %v5694 = vadd.f32 %v5693, %v4526
    %v5695 = vadd.f32 %v5694, %v4529
    %v5696 = vadd.f32 %v5695, %v4532
    %v5697 = vadd.f32 %v5696, %v4535
    %v5698 = vadd.f32 %v5697, %v4538
    %v5699 = vadd.f32 %v5698, %v4541
    %v5700 = vadd.f32 %v5699, %v4544
    %v5701 = vadd.f32 %v5700, %v4547
    %v5702 = vadd.f32 %v5701, %v4550
    %v5703 = vadd.f32 %v5702, %v4553
    %v5704 = vadd.f32 %v5703, %v4556
    %v5705 = vadd.f32 %v5704, %v4559
    %v5706 = vadd.f32 %v5705, %v4562
    %v5707 = vadd.f32 %v5706, %v4565
    %v5708 = vadd.f32 %v5707, %v4568
    %v5709 = vadd.f32 %v5708, %v4571
    %v5710 = vadd.f32 %v5709, %v4574
    %v5711 = vadd.f32 %v5710, %v4577
    %v5712 = vadd.f32 %v5711, %v4580
    %v5713 = vadd.f32 %v5712, %v4583
    %v5714 = vadd.f32 %v5713, %v4586
    %v5715 = vadd.f32 %v5714, %v4589
    %v5716 = vadd.f32 %v5715, %v4592
    %v5717 = vrot.slane %v5716, 4
    %v5718 = vadd.f32 %v5716, %v5717
    %v5719 = vrot.slane %v5718, 2
    %v5720 = vadd.f32 %v5718, %v5719
    %v5721 = vrot.slane %v5720, 1
    %v5722 = vadd.f32 %v5720, %v5721
    %v5723 = vadd.f32 %v4452, %v4455
    %v5724 = vadd.f32 %v5723, %v4458
    %v5725 = vadd.f32 %v5724, %v4461
    %v5726 = vadd.f32 %v5725, %v4464
    %v5727 = vadd.f32 %v5726, %v4467
    %v5728 = vadd.f32 %v5727, %v4470
    %v5729 = vadd.f32 %v5728, %v4473
    %v5730 = vadd.f32 %v5729, %v4476
    %v5731 = vadd.f32 %v5730, %v4479
    %v5732 = vadd.f32 %v5731, %v4482
    %v5733 = vadd.f32 %v5732, %v4485
    %v5734 = vadd.f32 %v5733, %v4488
    %v5735 = vadd.f32 %v5734, %v4491
    %v5736 = vadd.f32 %v5735, %v4494
    %v5737 = vadd.f32 %v5736, %v4497
    %v5738 = vadd.f32 %v5737, %v4500
    %v5739 = vadd.f32 %v5738, %v4503
    %v5740 = vadd.f32 %v5739, %v4506
    %v5741 = vadd.f32 %v5740, %v4509
    %v5742 = vadd.f32 %v5741, %v4512
    %v5743 = vadd.f32 %v5742, %v4515
    %v5744 = vadd.f32 %v5743, %v4518
    %v5745 = vadd.f32 %v5744, %v4521
    %v5746 = vadd.f32 %v5745, %v4524
    %v5747 = vadd.f32 %v5746, %v4527
    %v5748 = vadd.f32 %v5747, %v4530
    %v5749 = vadd.f32 %v5748, %v4533
    %v5750 = vadd.f32 %v5749, %v4536
    %v5751 = vadd.f32 %v5750, %v4539
    %v5752 = vadd.f32 %v5751, %v4542
    %v5753 = vadd.f32 %v5752, %v4545
    %v5754 = vadd.f32 %v5753, %v4548
    %v5755 = vadd.f32 %v5754, %v4551
    %v5756 = vadd.f32 %v5755, %v4554
    %v5757 = vadd.f32 %v5756, %v4557
    %v5758 = vadd.f32 %v5757, %v4560
    %v5759 = vadd.f32 %v5758, %v4563
    %v5760 = vadd.f32 %v5759, %v4566
    %v5761 = vadd.f32 %v5760, %v4569
    %v5762 = vadd.f32 %v5761, %v4572
    %v5763 = vadd.f32 %v5762, %v4575
    %v5764 = vadd.f32 %v5763, %v4578
    %v5765 = vadd.f32 %v5764, %v4581
    %v5766 = vadd.f32 %v5765, %v4584
    %v5767 = vadd.f32 %v5766, %v4587
    %v5768 = vadd.f32 %v5767, %v4590
    %v5769 = vadd.f32 %v5768, %v4593
    %v5770 = vrot.slane %v5769, 4
    %v5771 = vadd.f32 %v5769, %v5770
    %v5772 = vrot.slane %v5771, 2
    %v5773 = vadd.f32 %v5771, %v5772
    %v5774 = vrot.slane %v5773, 1
    %v5775 = vadd.f32 %v5773, %v5774
    %v5776 = vadd.f32 %v4594, %v4597
    %v5777 = vadd.f32 %v5776, %v4600
    %v5778 = vadd.f32 %v5777, %v4603
    %v5779 = vadd.f32 %v5778, %v4606
    %v5780 = vadd.f32 %v5779, %v4609
    %v5781 = vadd.f32 %v5780, %v4612
    %v5782 = vadd.f32 %v5781, %v4615
    %v5783 = vadd.f32 %v5782, %v4618
    %v5784 = vadd.f32 %v5783, %v4621
    %v5785 = vadd.f32 %v5784, %v4624
    %v5786 = vadd.f32 %v5785, %v4627
    %v5787 = vadd.f32 %v5786, %v4630
    %v5788 = vadd.f32 %v5787, %v4633
    %v5789 = vadd.f32 %v5788, %v4636
    %v5790 = vadd.f32 %v5789, %v4639
    %v5791 = vadd.f32 %v5790, %v4642
    %v5792 = vadd.f32 %v5791, %v4645
    %v5793 = vadd.f32 %v5792, %v4648
    %v5794 = vadd.f32 %v5793, %v4651
    %v5795 = vadd.f32 %v5794, %v4654
    %v5796 = vadd.f32 %v5795, %v4657
    %v5797 = vadd.f32 %v5796, %v4660
    %v5798 = vadd.f32 %v5797, %v4663
    %v5799 = vadd.f32 %v5798, %v4666
    %v5800 = vadd.f32 %v5799, %v4669
    %v5801 = vadd.f32 %v5800, %v4672
    %v5802 = vadd.f32 %v5801, %v4675
    %v5803 = vadd.f32 %v5802, %v4678
    %v5804 = vadd.f32 %v5803, %v4681
    %v5805 = vadd.f32 %v5804, %v4684
    %v5806 = vadd.f32 %v5805, %v4687
    %v5807 = vadd.f32 %v5806, %v4690
    %v5808 = vadd.f32 %v5807, %v4693
    %v5809 = vadd.f32 %v5808, %v4696
    %v5810 = vadd.f32 %v5809, %v4699
    %v5811 = vadd.f32 %v5810, %v4702
    %v5812 = vadd.f32 %v5811, %v4705
    %v5813 = vadd.f32 %v5812, %v4708
    %v5814 = vadd.f32 %v5813, %v4711
    %v5815 = vadd.f32 %v5814, %v4714
    %v5816 = vadd.f32 %v5815, %v4717
    %v5817 = vadd.f32 %v5816, %v4720
    %v5818 = vadd.f32 %v5817, %v4723
    %v5819 = vadd.f32 %v5818, %v4726
    %v5820 = vadd.f32 %v5819, %v4729
    %v5821 = vadd.f32 %v5820, %v4732
    %v5822 = vadd.f32 %v5821, %v4735
    %v5823 = vrot.slane %v5822, 4
    %v5824 = vadd.f32 %v5822, %v5823
    %v5825 = vrot.slane %v5824, 2
    %v5826 = vadd.f32 %v5824, %v5825
    %v5827 = vrot.slane %v5826, 1
    %v5828 = vadd.f32 %v5826, %v5827
    %v5829 = vadd.f32 %v4595, %v4598
    %v5830 = vadd.f32 %v5829, %v4601
    %v5831 = vadd.f32 %v5830, %v4604
    %v5832 = vadd.f32 %v5831, %v4607
    %v5833 = vadd.f32 %v5832, %v4610
    %v5834 = vadd.f32 %v5833, %v4613
    %v5835 = vadd.f32 %v5834, %v4616
    %v5836 = vadd.f32 %v5835, %v4619
    %v5837 = vadd.f32 %v5836, %v4622
    %v5838 = vadd.f32 %v5837, %v4625
    %v5839 = vadd.f32 %v5838, %v4628
    %v5840 = vadd.f32 %v5839, %v4631
    %v5841 = vadd.f32 %v5840, %v4634
    %v5842 = vadd.f32 %v5841, %v4637
    %v5843 = vadd.f32 %v5842, %v4640
    %v5844 = vadd.f32 %v5843, %v4643
    %v5845 = vadd.f32 %v5844, %v4646
    %v5846 = vadd.f32 %v5845, %v4649
    %v5847 = vadd.f32 %v5846, %v4652
    %v5848 = vadd.f32 %v5847, %v4655
    %v5849 = vadd.f32 %v5848, %v4658
    %v5850 = vadd.f32 %v5849, %v4661
    %v5851 = vadd.f32 %v5850, %v4664
    %v5852 = vadd.f32 %v5851, %v4667
    %v5853 = vadd.f32 %v5852, %v4670
    %v5854 = vadd.f32 %v5853, %v4673
    %v5855 = vadd.f32 %v5854, %v4676
    %v5856 = vadd.f32 %v5855, %v4679
    %v5857 = vadd.f32 %v5856, %v4682
    %v5858 = vadd.f32 %v5857, %v4685
    %v5859 = vadd.f32 %v5858, %v4688
    %v5860 = vadd.f32 %v5859, %v4691
    %v5861 = vadd.f32 %v5860, %v4694
    %v5862 = vadd.f32 %v5861, %v4697
    %v5863 = vadd.f32 %v5862, %v4700
    %v5864 = vadd.f32 %v5863, %v4703
    %v5865 = vadd.f32 %v5864, %v4706
    %v5866 = vadd.f32 %v5865, %v4709
    %v5867 = vadd.f32 %v5866, %v4712
    %v5868 = vadd.f32 %v5867, %v4715
    %v5869 = vadd.f32 %v5868, %v4718
    %v5870 = vadd.f32 %v5869, %v4721
    %v5871 = vadd.f32 %v5870, %v4724
    %v5872 = vadd.f32 %v5871, %v4727
    %v5873 = vadd.f32 %v5872, %v4730
    %v5874 = vadd.f32 %v5873, %v4733
    %v5875 = vadd.f32 %v5874, %v4736
    %v5876 = vrot.slane %v5875, 4
    %v5877 = vadd.f32 %v5875, %v5876
    %v5878 = vrot.slane %v5877, 2
    %v5879 = vadd.f32 %v5877, %v5878
    %v5880 = vrot.slane %v5879, 1
    %v5881 = vadd.f32 %v5879, %v5880
    %v5882 = vadd.f32 %v4596, %v4599
    %v5883 = vadd.f32 %v5882, %v4602
    %v5884 = vadd.f32 %v5883, %v4605
    %v5885 = vadd.f32 %v5884, %v4608
    %v5886 = vadd.f32 %v5885, %v4611
    %v5887 = vadd.f32 %v5886, %v4614
    %v5888 = vadd.f32 %v5887, %v4617
    %v5889 = vadd.f32 %v5888, %v4620
    %v5890 = vadd.f32 %v5889, %v4623
    %v5891 = vadd.f32 %v5890, %v4626
    %v5892 = vadd.f32 %v5891, %v4629
    %v5893 = vadd.f32 %v5892, %v4632
    %v5894 = vadd.f32 %v5893, %v4635
    %v5895 = vadd.f32 %v5894, %v4638
    %v5896 = vadd.f32 %v5895, %v4641
    %v5897 = vadd.f32 %v5896, %v4644
    %v5898 = vadd.f32 %v5897, %v4647
    %v5899 = vadd.f32 %v5898, %v4650
    %v5900 = vadd.f32 %v5899, %v4653
    %v5901 = vadd.f32 %v5900, %v4656
    %v5902 = vadd.f32 %v5901, %v4659
    %v5903 = vadd.f32 %v5902, %v4662
    %v5904 = vadd.f32 %v5903, %v4665
    %v5905 = vadd.f32 %v5904, %v4668
    %v5906 = vadd.f32 %v5905, %v4671
    %v5907 = vadd.f32 %v5906, %v4674
    %v5908 = vadd.f32 %v5907, %v4677
    %v5909 = vadd.f32 %v5908, %v4680
    %v5910 = vadd.f32 %v5909, %v4683
    %v5911 = vadd.f32 %v5910, %v4686
    %v5912 = vadd.f32 %v5911, %v4689
    %v5913 = vadd.f32 %v5912, %v4692
    %v5914 = vadd.f32 %v5913, %v4695
    %v5915 = vadd.f32 %v5914, %v4698
    %v5916 = vadd.f32 %v5915, %v4701
    %v5917 = vadd.f32 %v5916, %v4704
    %v5918 = vadd.f32 %v5917, %v4707
    %v5919 = vadd.f32 %v5918, %v4710
    %v5920 = vadd.f32 %v5919, %v4713
    %v5921 = vadd.f32 %v5920, %v4716
    %v5922 = vadd.f32 %v5921, %v4719
    %v5923 = vadd.f32 %v5922, %v4722
    %v5924 = vadd.f32 %v5923, %v4725
    %v5925 = vadd.f32 %v5924, %v4728
    %v5926 = vadd.f32 %v5925, %v4731
    %v5927 = vadd.f32 %v5926, %v4734
    %v5928 = vadd.f32 %v5927, %v4737
    %v5929 = vrot.slane %v5928, 4
    %v5930 = vadd.f32 %v5928, %v5929
    %v5931 = vrot.slane %v5930, 2
    %v5932 = vadd.f32 %v5930, %v5931
    %v5933 = vrot.slane %v5932, 1
    %v5934 = vadd.f32 %v5932, %v5933
    %v5935 = vadd.f32 %v4738, %v4741
    %v5936 = vadd.f32 %v5935, %v4744
    %v5937 = vadd.f32 %v5936, %v4747
    %v5938 = vadd.f32 %v5937, %v4750
    %v5939 = vadd.f32 %v5938, %v4753
    %v5940 = vadd.f32 %v5939, %v4756
    %v5941 = vadd.f32 %v5940, %v4759
    %v5942 = vadd.f32 %v5941, %v4762
    %v5943 = vadd.f32 %v5942, %v4765
    %v5944 = vadd.f32 %v5943, %v4768
    %v5945 = vadd.f32 %v5944, %v4771
    %v5946 = vadd.f32 %v5945, %v4774
    %v5947 = vadd.f32 %v5946, %v4777
    %v5948 = vadd.f32 %v5947, %v4780
    %v5949 = vadd.f32 %v5948, %v4783
    %v5950 = vadd.f32 %v5949, %v4786
    %v5951 = vadd.f32 %v5950, %v4789
    %v5952 = vadd.f32 %v5951, %v4792
    %v5953 = vadd.f32 %v5952, %v4795
    %v5954 = vadd.f32 %v5953, %v4798
    %v5955 = vadd.f32 %v5954, %v4801
    %v5956 = vadd.f32 %v5955, %v4804
    %v5957 = vadd.f32 %v5956, %v4807
    %v5958 = vadd.f32 %v5957, %v4810
    %v5959 = vadd.f32 %v5958, %v4813
    %v5960 = vadd.f32 %v5959, %v4816
    %v5961 = vadd.f32 %v5960, %v4819
    %v5962 = vadd.f32 %v5961, %v4822
    %v5963 = vadd.f32 %v5962, %v4825
    %v5964 = vadd.f32 %v5963, %v4828
    %v5965 = vadd.f32 %v5964, %v4831
    %v5966 = vadd.f32 %v5965, %v4834
    %v5967 = vadd.f32 %v5966, %v4837
    %v5968 = vadd.f32 %v5967, %v4840
    %v5969 = vadd.f32 %v5968, %v4843
    %v5970 = vadd.f32 %v5969, %v4846
    %v5971 = vadd.f32 %v5970, %v4849
    %v5972 = vadd.f32 %v5971, %v4852
    %v5973 = vadd.f32 %v5972, %v4855
    %v5974 = vadd.f32 %v5973, %v4858
    %v5975 = vadd.f32 %v5974, %v4861
    %v5976 = vadd.f32 %v5975, %v4864
    %v5977 = vadd.f32 %v5976, %v4867
    %v5978 = vadd.f32 %v5977, %v4870
    %v5979 = vadd.f32 %v5978, %v4873
    %v5980 = vadd.f32 %v5979, %v4876
    %v5981 = vadd.f32 %v5980, %v4879
    %v5982 = vrot.slane %v5981, 4
    %v5983 = vadd.f32 %v5981, %v5982
    %v5984 = vrot.slane %v5983, 2
    %v5985 = vadd.f32 %v5983, %v5984
    %v5986 = vrot.slane %v5985, 1
    %v5987 = vadd.f32 %v5985, %v5986
    %v5988 = vadd.f32 %v4739, %v4742
    %v5989 = vadd.f32 %v5988, %v4745
    %v5990 = vadd.f32 %v5989, %v4748
    %v5991 = vadd.f32 %v5990, %v4751
    %v5992 = vadd.f32 %v5991, %v4754
    %v5993 = vadd.f32 %v5992, %v4757
    %v5994 = vadd.f32 %v5993, %v4760
    %v5995 = vadd.f32 %v5994, %v4763
    %v5996 = vadd.f32 %v5995, %v4766
    %v5997 = vadd.f32 %v5996, %v4769
    %v5998 = vadd.f32 %v5997, %v4772
    %v5999 = vadd.f32 %v5998, %v4775
    %v6000 = vadd.f32 %v5999, %v4778
    %v6001 = vadd.f32 %v6000, %v4781
    %v6002 = vadd.f32 %v6001, %v4784
    %v6003 = vadd.f32 %v6002, %v4787
    %v6004 = vadd.f32 %v6003, %v4790
    %v6005 = vadd.f32 %v6004, %v4793
    %v6006 = vadd.f32 %v6005, %v4796
    %v6007 = vadd.f32 %v6006, %v4799
    %v6008 = vadd.f32 %v6007, %v4802
    %v6009 = vadd.f32 %v6008, %v4805
    %v6010 = vadd.f32 %v6009, %v4808
    %v6011 = vadd.f32 %v6010, %v4811
    %v6012 = vadd.f32 %v6011, %v4814
    %v6013 = vadd.f32 %v6012, %v4817
    %v6014 = vadd.f32 %v6013, %v4820
    %v6015 = vadd.f32 %v6014, %v4823
    %v6016 = vadd.f32 %v6015, %v4826
    %v6017 = vadd.f32 %v6016, %v4829
    %v6018 = vadd.f32 %v6017, %v4832
    %v6019 = vadd.f32 %v6018, %v4835
    %v6020 = vadd.f32 %v6019, %v4838
    %v6021 = vadd.f32 %v6020, %v4841
    %v6022 = vadd.f32 %v6021, %v4844
    %v6023 = vadd.f32 %v6022, %v4847
    %v6024 = vadd.f32 %v6023, %v4850
    %v6025 = vadd.f32 %v6024, %v4853
    %v6026 = vadd.f32 %v6025, %v4856
    %v6027 = vadd.f32 %v6026, %v4859
    %v6028 = vadd.f32 %v6027, %v4862
    %v6029 = vadd.f32 %v6028, %v4865
    %v6030 = vadd.f32 %v6029, %v4868
    %v6031 = vadd.f32 %v6030, %v4871
    %v6032 = vadd.f32 %v6031, %v4874
    %v6033 = vadd.f32 %v6032, %v4877
    %v6034 = vadd.f32 %v6033, %v4880
    %v6035 = vrot.slane %v6034, 4
    %v6036 = vadd.f32 %v6034, %v6035
    %v6037 = vrot.slane %v6036, 2
    %v6038 = vadd.f32 %v6036, %v6037
    %v6039 = vrot.slane %v6038, 1
    %v6040 = vadd.f32 %v6038, %v6039
    %v6041 = vadd.f32 %v4740, %v4743
    %v6042 = vadd.f32 %v6041, %v4746
    %v6043 = vadd.f32 %v6042, %v4749
    %v6044 = vadd.f32 %v6043, %v4752
    %v6045 = vadd.f32 %v6044, %v4755
    %v6046 = vadd.f32 %v6045, %v4758
    %v6047 = vadd.f32 %v6046, %v4761
    %v6048 = vadd.f32 %v6047, %v4764
    %v6049 = vadd.f32 %v6048, %v4767
    %v6050 = vadd.f32 %v6049, %v4770
    %v6051 = vadd.f32 %v6050, %v4773
    %v6052 = vadd.f32 %v6051, %v4776
    %v6053 = vadd.f32 %v6052, %v4779
    %v6054 = vadd.f32 %v6053, %v4782
    %v6055 = vadd.f32 %v6054, %v4785
    %v6056 = vadd.f32 %v6055, %v4788
    %v6057 = vadd.f32 %v6056, %v4791
    %v6058 = vadd.f32 %v6057, %v4794
    %v6059 = vadd.f32 %v6058, %v4797
    %v6060 = vadd.f32 %v6059, %v4800
    %v6061 = vadd.f32 %v6060, %v4803
    %v6062 = vadd.f32 %v6061, %v4806
    %v6063 = vadd.f32 %v6062, %v4809
    %v6064 = vadd.f32 %v6063, %v4812
    %v6065 = vadd.f32 %v6064, %v4815
    %v6066 = vadd.f32 %v6065, %v4818
    %v6067 = vadd.f32 %v6066, %v4821
    %v6068 = vadd.f32 %v6067, %v4824
    %v6069 = vadd.f32 %v6068, %v4827
    %v6070 = vadd.f32 %v6069, %v4830
    %v6071 = vadd.f32 %v6070, %v4833
    %v6072 = vadd.f32 %v6071, %v4836
    %v6073 = vadd.f32 %v6072, %v4839
    %v6074 = vadd.f32 %v6073, %v4842
    %v6075 = vadd.f32 %v6074, %v4845
    %v6076 = vadd.f32 %v6075, %v4848
    %v6077 = vadd.f32 %v6076, %v4851
    %v6078 = vadd.f32 %v6077, %v4854
    %v6079 = vadd.f32 %v6078, %v4857
    %v6080 = vadd.f32 %v6079, %v4860
    %v6081 = vadd.f32 %v6080, %v4863
    %v6082 = vadd.f32 %v6081, %v4866
    %v6083 = vadd.f32 %v6082, %v4869
    %v6084 = vadd.f32 %v6083, %v4872
    %v6085 = vadd.f32 %v6084, %v4875
    %v6086 = vadd.f32 %v6085, %v4878
    %v6087 = vadd.f32 %v6086, %v4881
    %v6088 = vrot.slane %v6087, 4
    %v6089 = vadd.f32 %v6087, %v6088
    %v6090 = vrot.slane %v6089, 2
    %v6091 = vadd.f32 %v6089, %v6090
    %v6092 = vrot.slane %v6091, 1
    %v6093 = vadd.f32 %v6091, %v6092
    %v6094 = vadd.f32 %v4882, %v4885
    %v6095 = vadd.f32 %v6094, %v4888
    %v6096 = vadd.f32 %v6095, %v4891
    %v6097 = vadd.f32 %v6096, %v4894
    %v6098 = vadd.f32 %v6097, %v4897
    %v6099 = vadd.f32 %v6098, %v4900
    %v6100 = vadd.f32 %v6099, %v4903
    %v6101 = vadd.f32 %v6100, %v4906
    %v6102 = vadd.f32 %v6101, %v4909
    %v6103 = vadd.f32 %v6102, %v4912
    %v6104 = vadd.f32 %v6103, %v4915
    %v6105 = vadd.f32 %v6104, %v4918
    %v6106 = vadd.f32 %v6105, %v4921
    %v6107 = vadd.f32 %v6106, %v4924
    %v6108 = vadd.f32 %v6107, %v4927
    %v6109 = vadd.f32 %v6108, %v4930
    %v6110 = vadd.f32 %v6109, %v4933
    %v6111 = vadd.f32 %v6110, %v4936
    %v6112 = vadd.f32 %v6111, %v4939
    %v6113 = vadd.f32 %v6112, %v4942
    %v6114 = vadd.f32 %v6113, %v4945
    %v6115 = vadd.f32 %v6114, %v4948
    %v6116 = vadd.f32 %v6115, %v4951
    %v6117 = vadd.f32 %v6116, %v4954
    %v6118 = vadd.f32 %v6117, %v4957
    %v6119 = vadd.f32 %v6118, %v4960
    %v6120 = vadd.f32 %v6119, %v4963
    %v6121 = vadd.f32 %v6120, %v4966
    %v6122 = vadd.f32 %v6121, %v4969
    %v6123 = vadd.f32 %v6122, %v4972
    %v6124 = vadd.f32 %v6123, %v4975
    %v6125 = vadd.f32 %v6124, %v4978
    %v6126 = vadd.f32 %v6125, %v4981
    %v6127 = vadd.f32 %v6126, %v4984
    %v6128 = vadd.f32 %v6127, %v4987
    %v6129 = vadd.f32 %v6128, %v4990
    %v6130 = vadd.f32 %v6129, %v4993
    %v6131 = vadd.f32 %v6130, %v4996
    %v6132 = vadd.f32 %v6131, %v4999
    %v6133 = vadd.f32 %v6132, %v5002
    %v6134 = vadd.f32 %v6133, %v5005
    %v6135 = vadd.f32 %v6134, %v5008
    %v6136 = vadd.f32 %v6135, %v5011
    %v6137 = vadd.f32 %v6136, %v5014
    %v6138 = vadd.f32 %v6137, %v5017
    %v6139 = vadd.f32 %v6138, %v5020
    %v6140 = vadd.f32 %v6139, %v5023
    %v6141 = vrot.slane %v6140, 4
    %v6142 = vadd.f32 %v6140, %v6141
    %v6143 = vrot.slane %v6142, 2
    %v6144 = vadd.f32 %v6142, %v6143
    %v6145 = vrot.slane %v6144, 1
    %v6146 = vadd.f32 %v6144, %v6145
    %v6147 = vadd.f32 %v4883, %v4886
    %v6148 = vadd.f32 %v6147, %v4889
    %v6149 = vadd.f32 %v6148, %v4892
    %v6150 = vadd.f32 %v6149, %v4895
    %v6151 = vadd.f32 %v6150, %v4898
    %v6152 = vadd.f32 %v6151, %v4901
    %v6153 = vadd.f32 %v6152, %v4904
    %v6154 = vadd.f32 %v6153, %v4907
    %v6155 = vadd.f32 %v6154, %v4910
    %v6156 = vadd.f32 %v6155, %v4913
    %v6157 = vadd.f32 %v6156, %v4916
    %v6158 = vadd.f32 %v6157, %v4919
    %v6159 = vadd.f32 %v6158, %v4922
    %v6160 = vadd.f32 %v6159, %v4925
    %v6161 = vadd.f32 %v6160, %v4928
    %v6162 = vadd.f32 %v6161, %v4931
    %v6163 = vadd.f32 %v6162, %v4934
    %v6164 = vadd.f32 %v6163, %v4937
    %v6165 = vadd.f32 %v6164, %v4940
    %v6166 = vadd.f32 %v6165, %v4943
    %v6167 = vadd.f32 %v6166, %v4946
    %v6168 = vadd.f32 %v6167, %v4949
    %v6169 = vadd.f32 %v6168, %v4952
    %v6170 = vadd.f32 %v6169, %v4955
    %v6171 = vadd.f32 %v6170, %v4958
    %v6172 = vadd.f32 %v6171, %v4961
    %v6173 = vadd.f32 %v6172, %v4964
    %v6174 = vadd.f32 %v6173, %v4967
    %v6175 = vadd.f32 %v6174, %v4970
    %v6176 = vadd.f32 %v6175, %v4973
    %v6177 = vadd.f32 %v6176, %v4976
    %v6178 = vadd.f32 %v6177, %v4979
    %v6179 = vadd.f32 %v6178, %v4982
    %v6180 = vadd.f32 %v6179, %v4985
    %v6181 = vadd.f32 %v6180, %v4988
    %v6182 = vadd.f32 %v6181, %v4991
    %v6183 = vadd.f32 %v6182, %v4994
    %v6184 = vadd.f32 %v6183, %v4997
    %v6185 = vadd.f32 %v6184, %v5000
    %v6186 = vadd.f32 %v6185, %v5003
    %v6187 = vadd.f32 %v6186, %v5006
    %v6188 = vadd.f32 %v6187, %v5009
    %v6189 = vadd.f32 %v6188, %v5012
    %v6190 = vadd.f32 %v6189, %v5015
    %v6191 = vadd.f32 %v6190, %v5018
    %v6192 = vadd.f32 %v6191, %v5021
    %v6193 = vadd.f32 %v6192, %v5024
    %v6194 = vrot.slane %v6193, 4
    %v6195 = vadd.f32 %v6193, %v6194
    %v6196 = vrot.slane %v6195, 2
    %v6197 = vadd.f32 %v6195, %v6196
    %v6198 = vrot.slane %v6197, 1
    %v6199 = vadd.f32 %v6197, %v6198
    %v6200 = vadd.f32 %v4884, %v4887
    %v6201 = vadd.f32 %v6200, %v4890
    %v6202 = vadd.f32 %v6201, %v4893
    %v6203 = vadd.f32 %v6202, %v4896
    %v6204 = vadd.f32 %v6203, %v4899
    %v6205 = vadd.f32 %v6204, %v4902
    %v6206 = vadd.f32 %v6205, %v4905
    %v6207 = vadd.f32 %v6206, %v4908
    %v6208 = vadd.f32 %v6207, %v4911
    %v6209 = vadd.f32 %v6208, %v4914
    %v6210 = vadd.f32 %v6209, %v4917
    %v6211 = vadd.f32 %v6210, %v4920
    %v6212 = vadd.f32 %v6211, %v4923
    %v6213 = vadd.f32 %v6212, %v4926
    %v6214 = vadd.f32 %v6213, %v4929
    %v6215 = vadd.f32 %v6214, %v4932
    %v6216 = vadd.f32 %v6215, %v4935
    %v6217 = vadd.f32 %v6216, %v4938
    %v6218 = vadd.f32 %v6217, %v4941
    %v6219 = vadd.f32 %v6218, %v4944
    %v6220 = vadd.f32 %v6219, %v4947
    %v6221 = vadd.f32 %v6220, %v4950
    %v6222 = vadd.f32 %v6221, %v4953
    %v6223 = vadd.f32 %v6222, %v4956
    %v6224 = vadd.f32 %v6223, %v4959
    %v6225 = vadd.f32 %v6224, %v4962
    %v6226 = vadd.f32 %v6225, %v4965
    %v6227 = vadd.f32 %v6226, %v4968
    %v6228 = vadd.f32 %v6227, %v4971
    %v6229 = vadd.f32 %v6228, %v4974
    %v6230 = vadd.f32 %v6229, %v4977
    %v6231 = vadd.f32 %v6230, %v4980
    %v6232 = vadd.f32 %v6231, %v4983
    %v6233 = vadd.f32 %v6232, %v4986
    %v6234 = vadd.f32 %v6233, %v4989
    %v6235 = vadd.f32 %v6234, %v4992
    %v6236 = vadd.f32 %v6235, %v4995
    %v6237 = vadd.f32 %v6236, %v4998
    %v6238 = vadd.f32 %v6237, %v5001
    %v6239 = vadd.f32 %v6238, %v5004
    %v6240 = vadd.f32 %v6239, %v5007
    %v6241 = vadd.f32 %v6240, %v5010
    %v6242 = vadd.f32 %v6241, %v5013
    %v6243 = vadd.f32 %v6242, %v5016
    %v6244 = vadd.f32 %v6243, %v5019
    %v6245 = vadd.f32 %v6244, %v5022
    %v6246 = vadd.f32 %v6245, %v5025
    %v6247 = vrot.slane %v6246, 4
    %v6248 = vadd.f32 %v6246, %v6247
    %v6249 = vrot.slane %v6248, 2
    %v6250 = vadd.f32 %v6248, %v6249
    %v6251 = vrot.slane %v6250, 1
    %v6252 = vadd.f32 %v6250, %v6251
    %v6253 = vadd.f32 %v5026, %v5029
    %v6254 = vadd.f32 %v6253, %v5032
    %v6255 = vadd.f32 %v6254, %v5035
    %v6256 = vadd.f32 %v6255, %v5038
    %v6257 = vadd.f32 %v6256, %v5041
    %v6258 = vadd.f32 %v6257, %v5044
    %v6259 = vadd.f32 %v6258, %v5047
    %v6260 = vadd.f32 %v6259, %v5050
    %v6261 = vadd.f32 %v6260, %v5053
    %v6262 = vadd.f32 %v6261, %v5056
    %v6263 = vadd.f32 %v6262, %v5059
    %v6264 = vadd.f32 %v6263, %v5062
    %v6265 = vadd.f32 %v6264, %v5065
    %v6266 = vadd.f32 %v6265, %v5068
    %v6267 = vadd.f32 %v6266, %v5071
    %v6268 = vadd.f32 %v6267, %v5074
    %v6269 = vadd.f32 %v6268, %v5077
    %v6270 = vadd.f32 %v6269, %v5080
    %v6271 = vadd.f32 %v6270, %v5083
    %v6272 = vadd.f32 %v6271, %v5086
    %v6273 = vadd.f32 %v6272, %v5089
    %v6274 = vadd.f32 %v6273, %v5092
    %v6275 = vadd.f32 %v6274, %v5095
    %v6276 = vadd.f32 %v6275, %v5098
    %v6277 = vadd.f32 %v6276, %v5101
    %v6278 = vadd.f32 %v6277, %v5104
    %v6279 = vadd.f32 %v6278, %v5107
    %v6280 = vadd.f32 %v6279, %v5110
    %v6281 = vadd.f32 %v6280, %v5113
    %v6282 = vadd.f32 %v6281, %v5116
    %v6283 = vadd.f32 %v6282, %v5119
    %v6284 = vadd.f32 %v6283, %v5122
    %v6285 = vadd.f32 %v6284, %v5125
    %v6286 = vadd.f32 %v6285, %v5128
    %v6287 = vadd.f32 %v6286, %v5131
    %v6288 = vadd.f32 %v6287, %v5134
    %v6289 = vadd.f32 %v6288, %v5137
    %v6290 = vadd.f32 %v6289, %v5140
    %v6291 = vadd.f32 %v6290, %v5143
    %v6292 = vadd.f32 %v6291, %v5146
    %v6293 = vadd.f32 %v6292, %v5149
    %v6294 = vadd.f32 %v6293, %v5152
    %v6295 = vadd.f32 %v6294, %v5155
    %v6296 = vadd.f32 %v6295, %v5158
    %v6297 = vadd.f32 %v6296, %v5161
    %v6298 = vadd.f32 %v6297, %v5164
    %v6299 = vadd.f32 %v6298, %v5167
    %v6300 = vrot.slane %v6299, 4
    %v6301 = vadd.f32 %v6299, %v6300
    %v6302 = vrot.slane %v6301, 2
    %v6303 = vadd.f32 %v6301, %v6302
    %v6304 = vrot.slane %v6303, 1
    %v6305 = vadd.f32 %v6303, %v6304
    %v6306 = vadd.f32 %v5027, %v5030
    %v6307 = vadd.f32 %v6306, %v5033
    %v6308 = vadd.f32 %v6307, %v5036
    %v6309 = vadd.f32 %v6308, %v5039
    %v6310 = vadd.f32 %v6309, %v5042
    %v6311 = vadd.f32 %v6310, %v5045
    %v6312 = vadd.f32 %v6311, %v5048
    %v6313 = vadd.f32 %v6312, %v5051
    %v6314 = vadd.f32 %v6313, %v5054
    %v6315 = vadd.f32 %v6314, %v5057
    %v6316 = vadd.f32 %v6315, %v5060
    %v6317 = vadd.f32 %v6316, %v5063
    %v6318 = vadd.f32 %v6317, %v5066
    %v6319 = vadd.f32 %v6318, %v5069
    %v6320 = vadd.f32 %v6319, %v5072
    %v6321 = vadd.f32 %v6320, %v5075
    %v6322 = vadd.f32 %v6321, %v5078
    %v6323 = vadd.f32 %v6322, %v5081
    %v6324 = vadd.f32 %v6323, %v5084
    %v6325 = vadd.f32 %v6324, %v5087
    %v6326 = vadd.f32 %v6325, %v5090
    %v6327 = vadd.f32 %v6326, %v5093
    %v6328 = vadd.f32 %v6327, %v5096
    %v6329 = vadd.f32 %v6328, %v5099
    %v6330 = vadd.f32 %v6329, %v5102
    %v6331 = vadd.f32 %v6330, %v5105
    %v6332 = vadd.f32 %v6331, %v5108
    %v6333 = vadd.f32 %v6332, %v5111
    %v6334 = vadd.f32 %v6333, %v5114
    %v6335 = vadd.f32 %v6334, %v5117
    %v6336 = vadd.f32 %v6335, %v5120
    %v6337 = vadd.f32 %v6336, %v5123
    %v6338 = vadd.f32 %v6337, %v5126
    %v6339 = vadd.f32 %v6338, %v5129
    %v6340 = vadd.f32 %v6339, %v5132
    %v6341 = vadd.f32 %v6340, %v5135
    %v6342 = vadd.f32 %v6341, %v5138
    %v6343 = vadd.f32 %v6342, %v5141
    %v6344 = vadd.f32 %v6343, %v5144
    %v6345 = vadd.f32 %v6344, %v5147
    %v6346 = vadd.f32 %v6345, %v5150
    %v6347 = vadd.f32 %v6346, %v5153
    %v6348 = vadd.f32 %v6347, %v5156
    %v6349 = vadd.f32 %v6348, %v5159
    %v6350 = vadd.f32 %v6349, %v5162
    %v6351 = vadd.f32 %v6350, %v5165
    %v6352 = vadd.f32 %v6351, %v5168
    %v6353 = vrot.slane %v6352, 4
    %v6354 = vadd.f32 %v6352, %v6353
    %v6355 = vrot.slane %v6354, 2
    %v6356 = vadd.f32 %v6354, %v6355
    %v6357 = vrot.slane %v6356, 1
    %v6358 = vadd.f32 %v6356, %v6357
    %v6359 = vadd.f32 %v5028, %v5031
    %v6360 = vadd.f32 %v6359, %v5034
    %v6361 = vadd.f32 %v6360, %v5037
    %v6362 = vadd.f32 %v6361, %v5040
    %v6363 = vadd.f32 %v6362, %v5043
    %v6364 = vadd.f32 %v6363, %v5046
    %v6365 = vadd.f32 %v6364, %v5049
    %v6366 = vadd.f32 %v6365, %v5052
    %v6367 = vadd.f32 %v6366, %v5055
    %v6368 = vadd.f32 %v6367, %v5058
    %v6369 = vadd.f32 %v6368, %v5061
    %v6370 = vadd.f32 %v6369, %v5064
    %v6371 = vadd.f32 %v6370, %v5067
    %v6372 = vadd.f32 %v6371, %v5070
    %v6373 = vadd.f32 %v6372, %v5073
    %v6374 = vadd.f32 %v6373, %v5076
    %v6375 = vadd.f32 %v6374, %v5079
    %v6376 = vadd.f32 %v6375, %v5082
    %v6377 = vadd.f32 %v6376, %v5085
    %v6378 = vadd.f32 %v6377, %v5088
    %v6379 = vadd.f32 %v6378, %v5091
    %v6380 = vadd.f32 %v6379, %v5094
    %v6381 = vadd.f32 %v6380, %v5097
    %v6382 = vadd.f32 %v6381, %v5100
    %v6383 = vadd.f32 %v6382, %v5103
    %v6384 = vadd.f32 %v6383, %v5106
    %v6385 = vadd.f32 %v6384, %v5109
    %v6386 = vadd.f32 %v6385, %v5112
    %v6387 = vadd.f32 %v6386, %v5115
    %v6388 = vadd.f32 %v6387, %v5118
    %v6389 = vadd.f32 %v6388, %v5121
    %v6390 = vadd.f32 %v6389, %v5124
    %v6391 = vadd.f32 %v6390, %v5127
    %v6392 = vadd.f32 %v6391, %v5130
    %v6393 = vadd.f32 %v6392, %v5133
    %v6394 = vadd.f32 %v6393, %v5136
    %v6395 = vadd.f32 %v6394, %v5139
    %v6396 = vadd.f32 %v6395, %v5142
    %v6397 = vadd.f32 %v6396, %v5145
    %v6398 = vadd.f32 %v6397, %v5148
    %v6399 = vadd.f32 %v6398, %v5151
    %v6400 = vadd.f32 %v6399, %v5154
    %v6401 = vadd.f32 %v6400, %v5157
    %v6402 = vadd.f32 %v6401, %v5160
    %v6403 = vadd.f32 %v6402, %v5163
    %v6404 = vadd.f32 %v6403, %v5166
    %v6405 = vadd.f32 %v6404, %v5169
    %v6406 = vrot.slane %v6405, 4
    %v6407 = vadd.f32 %v6405, %v6406
    %v6408 = vrot.slane %v6407, 2
    %v6409 = vadd.f32 %v6407, %v6408
    %v6410 = vrot.slane %v6409, 1
    %v6411 = vadd.f32 %v6409, %v6410
    %v6412 = vadd.f32 %v5170, %v5173
    %v6413 = vadd.f32 %v6412, %v5176
    %v6414 = vadd.f32 %v6413, %v5179
    %v6415 = vadd.f32 %v6414, %v5182
    %v6416 = vadd.f32 %v6415, %v5185
    %v6417 = vadd.f32 %v6416, %v5188
    %v6418 = vadd.f32 %v6417, %v5191
    %v6419 = vadd.f32 %v6418, %v5194
    %v6420 = vadd.f32 %v6419, %v5197
    %v6421 = vadd.f32 %v6420, %v5200
    %v6422 = vadd.f32 %v6421, %v5203
    %v6423 = vadd.f32 %v6422, %v5206
    %v6424 = vadd.f32 %v6423, %v5209
    %v6425 = vadd.f32 %v6424, %v5212
    %v6426 = vadd.f32 %v6425, %v5215
    %v6427 = vadd.f32 %v6426, %v5218
    %v6428 = vadd.f32 %v6427, %v5221
    %v6429 = vadd.f32 %v6428, %v5224
    %v6430 = vadd.f32 %v6429, %v5227
    %v6431 = vadd.f32 %v6430, %v5230
    %v6432 = vadd.f32 %v6431, %v5233
    %v6433 = vadd.f32 %v6432, %v5236
    %v6434 = vadd.f32 %v6433, %v5239
    %v6435 = vadd.f32 %v6434, %v5242
    %v6436 = vadd.f32 %v6435, %v5245
    %v6437 = vadd.f32 %v6436, %v5248
    %v6438 = vadd.f32 %v6437, %v5251
    %v6439 = vadd.f32 %v6438, %v5254
    %v6440 = vadd.f32 %v6439, %v5257
    %v6441 = vadd.f32 %v6440, %v5260
    %v6442 = vadd.f32 %v6441, %v5263
    %v6443 = vadd.f32 %v6442, %v5266
    %v6444 = vadd.f32 %v6443, %v5269
    %v6445 = vadd.f32 %v6444, %v5272
    %v6446 = vadd.f32 %v6445, %v5275
    %v6447 = vadd.f32 %v6446, %v5278
    %v6448 = vadd.f32 %v6447, %v5281
    %v6449 = vadd.f32 %v6448, %v5284
    %v6450 = vadd.f32 %v6449, %v5287
    %v6451 = vadd.f32 %v6450, %v5290
    %v6452 = vadd.f32 %v6451, %v5293
    %v6453 = vadd.f32 %v6452, %v5296
    %v6454 = vadd.f32 %v6453, %v5299
    %v6455 = vadd.f32 %v6454, %v5302
    %v6456 = vadd.f32 %v6455, %v5305
    %v6457 = vadd.f32 %v6456, %v5308
    %v6458 = vadd.f32 %v6457, %v5311
    %v6459 = vrot.slane %v6458, 4
    %v6460 = vadd.f32 %v6458, %v6459
    %v6461 = vrot.slane %v6460, 2
    %v6462 = vadd.f32 %v6460, %v6461
    %v6463 = vrot.slane %v6462, 1
    %v6464 = vadd.f32 %v6462, %v6463
    %v6465 = vadd.f32 %v5171, %v5174
    %v6466 = vadd.f32 %v6465, %v5177
    %v6467 = vadd.f32 %v6466, %v5180
    %v6468 = vadd.f32 %v6467, %v5183
    %v6469 = vadd.f32 %v6468, %v5186
    %v6470 = vadd.f32 %v6469, %v5189
    %v6471 = vadd.f32 %v6470, %v5192
    %v6472 = vadd.f32 %v6471, %v5195
    %v6473 = vadd.f32 %v6472, %v5198
    %v6474 = vadd.f32 %v6473, %v5201
    %v6475 = vadd.f32 %v6474, %v5204
    %v6476 = vadd.f32 %v6475, %v5207
    %v6477 = vadd.f32 %v6476, %v5210
    %v6478 = vadd.f32 %v6477, %v5213
    %v6479 = vadd.f32 %v6478, %v5216
    %v6480 = vadd.f32 %v6479, %v5219
    %v6481 = vadd.f32 %v6480, %v5222
    %v6482 = vadd.f32 %v6481, %v5225
    %v6483 = vadd.f32 %v6482, %v5228
    %v6484 = vadd.f32 %v6483, %v5231
    %v6485 = vadd.f32 %v6484, %v5234
    %v6486 = vadd.f32 %v6485, %v5237
    %v6487 = vadd.f32 %v6486, %v5240
    %v6488 = vadd.f32 %v6487, %v5243
    %v6489 = vadd.f32 %v6488, %v5246
    %v6490 = vadd.f32 %v6489, %v5249
    %v6491 = vadd.f32 %v6490, %v5252
    %v6492 = vadd.f32 %v6491, %v5255
    %v6493 = vadd.f32 %v6492, %v5258
    %v6494 = vadd.f32 %v6493, %v5261
    %v6495 = vadd.f32 %v6494, %v5264
    %v6496 = vadd.f32 %v6495, %v5267
    %v6497 = vadd.f32 %v6496, %v5270
    %v6498 = vadd.f32 %v6497, %v5273
    %v6499 = vadd.f32 %v6498, %v5276
    %v6500 = vadd.f32 %v6499, %v5279
    %v6501 = vadd.f32 %v6500, %v5282
    %v6502 = vadd.f32 %v6501, %v5285
    %v6503 = vadd.f32 %v6502, %v5288
    %v6504 = vadd.f32 %v6503, %v5291
    %v6505 = vadd.f32 %v6504, %v5294
    %v6506 = vadd.f32 %v6505, %v5297
    %v6507 = vadd.f32 %v6506, %v5300
    %v6508 = vadd.f32 %v6507, %v5303
    %v6509 = vadd.f32 %v6508, %v5306
    %v6510 = vadd.f32 %v6509, %v5309
    %v6511 = vadd.f32 %v6510, %v5312
    %v6512 = vrot.slane %v6511, 4
    %v6513 = vadd.f32 %v6511, %v6512
    %v6514 = vrot.slane %v6513, 2
    %v6515 = vadd.f32 %v6513, %v6514
    %v6516 = vrot.slane %v6515, 1
    %v6517 = vadd.f32 %v6515, %v6516
    %v6518 = vadd.f32 %v5172, %v5175
    %v6519 = vadd.f32 %v6518, %v5178
    %v6520 = vadd.f32 %v6519, %v5181
    %v6521 = vadd.f32 %v6520, %v5184
    %v6522 = vadd.f32 %v6521, %v5187
    %v6523 = vadd.f32 %v6522, %v5190
    %v6524 = vadd.f32 %v6523, %v5193
    %v6525 = vadd.f32 %v6524, %v5196
    %v6526 = vadd.f32 %v6525, %v5199
    %v6527 = vadd.f32 %v6526, %v5202
    %v6528 = vadd.f32 %v6527, %v5205
    %v6529 = vadd.f32 %v6528, %v5208
    %v6530 = vadd.f32 %v6529, %v5211
    %v6531 = vadd.f32 %v6530, %v5214
    %v6532 = vadd.f32 %v6531, %v5217
    %v6533 = vadd.f32 %v6532, %v5220
    %v6534 = vadd.f32 %v6533, %v5223
    %v6535 = vadd.f32 %v6534, %v5226
    %v6536 = vadd.f32 %v6535, %v5229
    %v6537 = vadd.f32 %v6536, %v5232
    %v6538 = vadd.f32 %v6537, %v5235
    %v6539 = vadd.f32 %v6538, %v5238
    %v6540 = vadd.f32 %v6539, %v5241
    %v6541 = vadd.f32 %v6540, %v5244
    %v6542 = vadd.f32 %v6541, %v5247
    %v6543 = vadd.f32 %v6542, %v5250
    %v6544 = vadd.f32 %v6543, %v5253
    %v6545 = vadd.f32 %v6544, %v5256
    %v6546 = vadd.f32 %v6545, %v5259
    %v6547 = vadd.f32 %v6546, %v5262
    %v6548 = vadd.f32 %v6547, %v5265
    %v6549 = vadd.f32 %v6548, %v5268
    %v6550 = vadd.f32 %v6549, %v5271
    %v6551 = vadd.f32 %v6550, %v5274
    %v6552 = vadd.f32 %v6551, %v5277
    %v6553 = vadd.f32 %v6552, %v5280
    %v6554 = vadd.f32 %v6553, %v5283
    %v6555 = vadd.f32 %v6554, %v5286
    %v6556 = vadd.f32 %v6555, %v5289
    %v6557 = vadd.f32 %v6556, %v5292
    %v6558 = vadd.f32 %v6557, %v5295
    %v6559 = vadd.f32 %v6558, %v5298
    %v6560 = vadd.f32 %v6559, %v5301
    %v6561 = vadd.f32 %v6560, %v5304
    %v6562 = vadd.f32 %v6561, %v5307
    %v6563 = vadd.f32 %v6562, %v5310
    %v6564 = vadd.f32 %v6563, %v5313
    %v6565 = vrot.slane %v6564, 4
    %v6566 = vadd.f32 %v6564, %v6565
    %v6567 = vrot.slane %v6566, 2
    %v6568 = vadd.f32 %v6566, %v6567
    %v6569 = vrot.slane %v6568, 1
    %v6570 = vadd.f32 %v6568, %v6569
    %v6571 = vadd.f32 %v5314, %v5317
    %v6572 = vadd.f32 %v6571, %v5320
    %v6573 = vadd.f32 %v6572, %v5323
    %v6574 = vadd.f32 %v6573, %v5326
    %v6575 = vadd.f32 %v6574, %v5329
    %v6576 = vadd.f32 %v6575, %v5332
    %v6577 = vadd.f32 %v6576, %v5335
    %v6578 = vadd.f32 %v6577, %v5338
    %v6579 = vadd.f32 %v6578, %v5341
    %v6580 = vadd.f32 %v6579, %v5344
    %v6581 = vadd.f32 %v6580, %v5347
    %v6582 = vadd.f32 %v6581, %v5350
    %v6583 = vadd.f32 %v6582, %v5353
    %v6584 = vadd.f32 %v6583, %v5356
    %v6585 = vadd.f32 %v6584, %v5359
    %v6586 = vadd.f32 %v6585, %v5362
    %v6587 = vadd.f32 %v6586, %v5365
    %v6588 = vadd.f32 %v6587, %v5368
    %v6589 = vadd.f32 %v6588, %v5371
    %v6590 = vadd.f32 %v6589, %v5374
    %v6591 = vadd.f32 %v6590, %v5377
    %v6592 = vadd.f32 %v6591, %v5380
    %v6593 = vadd.f32 %v6592, %v5383
    %v6594 = vadd.f32 %v6593, %v5386
    %v6595 = vadd.f32 %v6594, %v5389
    %v6596 = vadd.f32 %v6595, %v5392
    %v6597 = vadd.f32 %v6596, %v5395
    %v6598 = vadd.f32 %v6597, %v5398
    %v6599 = vadd.f32 %v6598, %v5401
    %v6600 = vadd.f32 %v6599, %v5404
    %v6601 = vadd.f32 %v6600, %v5407
    %v6602 = vadd.f32 %v6601, %v5410
    %v6603 = vadd.f32 %v6602, %v5413
    %v6604 = vadd.f32 %v6603, %v5416
    %v6605 = vadd.f32 %v6604, %v5419
    %v6606 = vadd.f32 %v6605, %v5422
    %v6607 = vadd.f32 %v6606, %v5425
    %v6608 = vadd.f32 %v6607, %v5428
    %v6609 = vadd.f32 %v6608, %v5431
    %v6610 = vadd.f32 %v6609, %v5434
    %v6611 = vadd.f32 %v6610, %v5437
    %v6612 = vadd.f32 %v6611, %v5440
    %v6613 = vadd.f32 %v6612, %v5443
    %v6614 = vadd.f32 %v6613, %v5446
    %v6615 = vadd.f32 %v6614, %v5449
    %v6616 = vadd.f32 %v6615, %v5452
    %v6617 = vadd.f32 %v6616, %v5455
    %v6618 = vrot.slane %v6617, 4
    %v6619 = vadd.f32 %v6617, %v6618
    %v6620 = vrot.slane %v6619, 2
    %v6621 = vadd.f32 %v6619, %v6620
    %v6622 = vrot.slane %v6621, 1
    %v6623 = vadd.f32 %v6621, %v6622
    %v6624 = vadd.f32 %v5315, %v5318
    %v6625 = vadd.f32 %v6624, %v5321
    %v6626 = vadd.f32 %v6625, %v5324
    %v6627 = vadd.f32 %v6626, %v5327
    %v6628 = vadd.f32 %v6627, %v5330
    %v6629 = vadd.f32 %v6628, %v5333
    %v6630 = vadd.f32 %v6629, %v5336
    %v6631 = vadd.f32 %v6630, %v5339
    %v6632 = vadd.f32 %v6631, %v5342
    %v6633 = vadd.f32 %v6632, %v5345
    %v6634 = vadd.f32 %v6633, %v5348
    %v6635 = vadd.f32 %v6634, %v5351
    %v6636 = vadd.f32 %v6635, %v5354
    %v6637 = vadd.f32 %v6636, %v5357
    %v6638 = vadd.f32 %v6637, %v5360
    %v6639 = vadd.f32 %v6638, %v5363
    %v6640 = vadd.f32 %v6639, %v5366
    %v6641 = vadd.f32 %v6640, %v5369
    %v6642 = vadd.f32 %v6641, %v5372
    %v6643 = vadd.f32 %v6642, %v5375
    %v6644 = vadd.f32 %v6643, %v5378
    %v6645 = vadd.f32 %v6644, %v5381
    %v6646 = vadd.f32 %v6645, %v5384
    %v6647 = vadd.f32 %v6646, %v5387
    %v6648 = vadd.f32 %v6647, %v5390
    %v6649 = vadd.f32 %v6648, %v5393
    %v6650 = vadd.f32 %v6649, %v5396
    %v6651 = vadd.f32 %v6650, %v5399
    %v6652 = vadd.f32 %v6651, %v5402
    %v6653 = vadd.f32 %v6652, %v5405
    %v6654 = vadd.f32 %v6653, %v5408
    %v6655 = vadd.f32 %v6654, %v5411
    %v6656 = vadd.f32 %v6655, %v5414
    %v6657 = vadd.f32 %v6656, %v5417
    %v6658 = vadd.f32 %v6657, %v5420
    %v6659 = vadd.f32 %v6658, %v5423
    %v6660 = vadd.f32 %v6659, %v5426
    %v6661 = vadd.f32 %v6660, %v5429
    %v6662 = vadd.f32 %v6661, %v5432
    %v6663 = vadd.f32 %v6662, %v5435
    %v6664 = vadd.f32 %v6663, %v5438
    %v6665 = vadd.f32 %v6664, %v5441
    %v6666 = vadd.f32 %v6665, %v5444
    %v6667 = vadd.f32 %v6666, %v5447
    %v6668 = vadd.f32 %v6667, %v5450
    %v6669 = vadd.f32 %v6668, %v5453
    %v6670 = vadd.f32 %v6669, %v5456
    %v6671 = vrot.slane %v6670, 4
    %v6672 = vadd.f32 %v6670, %v6671
    %v6673 = vrot.slane %v6672, 2
    %v6674 = vadd.f32 %v6672, %v6673
    %v6675 = vrot.slane %v6674, 1
    %v6676 = vadd.f32 %v6674, %v6675
    %v6677 = vadd.f32 %v5316, %v5319
    %v6678 = vadd.f32 %v6677, %v5322
    %v6679 = vadd.f32 %v6678, %v5325
    %v6680 = vadd.f32 %v6679, %v5328
    %v6681 = vadd.f32 %v6680, %v5331
    %v6682 = vadd.f32 %v6681, %v5334
    %v6683 = vadd.f32 %v6682, %v5337
    %v6684 = vadd.f32 %v6683, %v5340
    %v6685 = vadd.f32 %v6684, %v5343
    %v6686 = vadd.f32 %v6685, %v5346
    %v6687 = vadd.f32 %v6686, %v5349
    %v6688 = vadd.f32 %v6687, %v5352
    %v6689 = vadd.f32 %v6688, %v5355
    %v6690 = vadd.f32 %v6689, %v5358
    %v6691 = vadd.f32 %v6690, %v5361
    %v6692 = vadd.f32 %v6691, %v5364
    %v6693 = vadd.f32 %v6692, %v5367
    %v6694 = vadd.f32 %v6693, %v5370
    %v6695 = vadd.f32 %v6694, %v5373
    %v6696 = vadd.f32 %v6695, %v5376
    %v6697 = vadd.f32 %v6696, %v5379
    %v6698 = vadd.f32 %v6697, %v5382
    %v6699 = vadd.f32 %v6698, %v5385
    %v6700 = vadd.f32 %v6699, %v5388
    %v6701 = vadd.f32 %v6700, %v5391
    %v6702 = vadd.f32 %v6701, %v5394
    %v6703 = vadd.f32 %v6702, %v5397
    %v6704 = vadd.f32 %v6703, %v5400
    %v6705 = vadd.f32 %v6704, %v5403
    %v6706 = vadd.f32 %v6705, %v5406
    %v6707 = vadd.f32 %v6706, %v5409
    %v6708 = vadd.f32 %v6707, %v5412
    %v6709 = vadd.f32 %v6708, %v5415
    %v6710 = vadd.f32 %v6709, %v5418
    %v6711 = vadd.f32 %v6710, %v5421
    %v6712 = vadd.f32 %v6711, %v5424
    %v6713 = vadd.f32 %v6712, %v5427
    %v6714 = vadd.f32 %v6713, %v5430
    %v6715 = vadd.f32 %v6714, %v5433
    %v6716 = vadd.f32 %v6715, %v5436
    %v6717 = vadd.f32 %v6716, %v5439
    %v6718 = vadd.f32 %v6717, %v5442
    %v6719 = vadd.f32 %v6718, %v5445
    %v6720 = vadd.f32 %v6719, %v5448
    %v6721 = vadd.f32 %v6720, %v5451
    %v6722 = vadd.f32 %v6721, %v5454
    %v6723 = vadd.f32 %v6722, %v5457
    %v6724 = vrot.slane %v6723, 4
    %v6725 = vadd.f32 %v6723, %v6724
    %v6726 = vrot.slane %v6725, 2
    %v6727 = vadd.f32 %v6725, %v6726
    %v6728 = vrot.slane %v6727, 1
    %v6729 = vadd.f32 %v6727, %v6728
    %vm6754 = vcmask 1041409
    %v6755 = vsel %vm6754, %v5669, %v5510
    %vm6756 = vcmask 1042434
    %v6757 = vsel %vm6756, %v5828, %v6755
    %vm6758 = vcmask 1043459
    %v6759 = vsel %vm6758, %v5987, %v6757
    %vm6760 = vcmask 1044484
    %v6761 = vsel %vm6760, %v6146, %v6759
    %vm6762 = vcmask 1045509
    %v6763 = vsel %vm6762, %v6305, %v6761
    %vm6764 = vcmask 1046534
    %v6765 = vsel %vm6764, %v6464, %v6763
    %vm6766 = vcmask 1047559
    %v6767 = vsel %vm6766, %v6623, %v6765
    %v6768 = vsel %vm6754, %v5722, %v5563
    %v6769 = vsel %vm6756, %v5881, %v6768
    %v6770 = vsel %vm6758, %v6040, %v6769
    %v6771 = vsel %vm6760, %v6199, %v6770
    %v6772 = vsel %vm6762, %v6358, %v6771
    %v6773 = vsel %vm6764, %v6517, %v6772
    %v6774 = vsel %vm6766, %v6676, %v6773
    %v6775 = vsel %vm6754, %v5775, %v5616
    %v6776 = vsel %vm6756, %v5934, %v6775
    %v6777 = vsel %vm6758, %v6093, %v6776
    %v6778 = vsel %vm6760, %v6252, %v6777
    %v6779 = vsel %vm6762, %v6411, %v6778
    %v6780 = vsel %vm6764, %v6570, %v6779
    %v6781 = vsel %vm6766, %v6729, %v6780
    %v6785 = vadd.f32 %v1975, %v6767
    %v6786 = vadd.f32 %v1976, %v6774
    %v6787 = vadd.f32 %v1977, %v6781
    %6788 = vst [vmem:[#allocation2] sm:$0xff] %v6785
    %6789 = vst [vmem:[#allocation2 + $0x8] sm:$0xff] %v6786
    %6790 = vst [vmem:[#allocation2 + $0x10] sm:$0xff] %v6787
    // Predicated region
    $region26: #{tpu_custom_call.1} parent=1 // pred_check
      %p6791 = pneg %p45
    $region27: #{tpu_custom_call.1} parent=1 // pred_check_branch
      %6793 = sbr.rel (%p6791) target = $region29
    $region28: #{tpu_custom_call.1} parent=1 // pred_region
      %v6794 = vld [vmem:[#allocation2] sm:$0xff]
      %v6795 = vld [vmem:[#allocation2 + $0x8] sm:$0xff]
      %v6796 = vld [vmem:[#allocation2 + $0x10] sm:$0xff]
      %v6797 = vld [vmem:[%s2] sm:$0xff]
      %6799 = vset.pattern.permute.xlu0 0
      %6800 = vperm.xlu0 %6799, %v6797
      %v6801 = vpop.permute.xlu0 %6800
      %v6803 = vmul.f32 %v6794, %v6801
      %v6804 = vmul.f32 %v6795, %v6801
      %v6805 = vmul.f32 %v6796, %v6801
      %6806 = vst [vmem:[#allocation8] sm:$0xff] %v6803
      %6807 = vst [vmem:[#allocation8 + $0x8] sm:$0xff] %v6804
      %6808 = vst [vmem:[#allocation8 + $0x10] sm:$0xff] %v6805
    $region29: #{tpu_custom_call.1} parent=1 // pred_fallthru
      _
    // Predicated region
    $region30: #{tpu_custom_call.1} parent=1 // pred_check
      _
    $region31: #{tpu_custom_call.1} parent=1 // pred_check_branch
      %6810 = sbr.rel (0) target = $region33
    $region32: #{tpu_custom_call.1} parent=1 // pred_region
      %6812 = vsyncadd [#allocation5], 0
      %s6814 = sshll.u32 [#allocation8], 4
      %s6815 = int_to_ptr.vmem [resolvable:$true] %s6814
      %s6816 = sshll.u32 %s3, 4
      %s6817 = int_to_ptr.hbm [resolvable:$true] %s6816
      %6819 = dma.vmem_to_hbm [thread:$0]  %s6815, 384, %s6817, [#allocation5]
    $region33: #{tpu_custom_call.1} parent=1 // pred_fallthru
      _
    // Predicated region
    $region34: #{tpu_custom_call.1} parent=1 // pred_check
      _
    $region35: #{tpu_custom_call.1} parent=1 // pred_check_branch
      %6821 = sbr.rel (0) target = $region37
    $region36: #{tpu_custom_call.1} parent=1 // pred_region
      %6823 = dma.done [#allocation5], 384
    $region37: #{tpu_custom_call.1} parent=1 // pred_fallthru
      _
    %6824 = vsyncpa [#allocation4], 1
    %6825 = vsyncpa [#allocation7], 1
    %6826 = vsyncpa [#allocation5], 1

</llo_original>
